<compile_context>
chip_gen: v5e
topology: v5e:2x2
jax: 0.10.0
libtpu: 0.0.40
codegen_flags: <defaults>
</compile_context>

<pallas_src>
import functools

import jax
import jax.numpy as jnp
from jax.experimental import pallas as pl
from jax.experimental.pallas import tpu as pltpu


_LANE = 128
_SUBLANE = 8
_NEG_SLOPE = 0.1

# Chunk loop is Python-unrolled up to this many full 8-sublane chunks; beyond
# that we use pl.loop (the ~840-VALU-op body dwarfs the loop overhead and live
# ranges / compile time stay bounded).
_MAX_UNROLL_CHUNKS = 8

# Rough cost model (cycles) used only for host-side tile selection.
_ROW_COST = 26.0          # ~105 VALU ops per 128-px row / 4 VALU slots
_STEP_COST = 330.0        # ~0.35 us per grid step at ~1 GHz
_ODD_GRID_PENALTY = 1.5   # v7x has 2 TCs; an odd/1-step grid leaves one idle


def _round_up(x, m):
    return (x + m - 1) // m * m


def _leaky_relu(v):
    # max(v, 0.1*v): 2 VALU ops, numerically identical to LeakyReLU(0.1).
    return jnp.maximum(v, _NEG_SLOPE * v)


def _choose_tiling(B, HW, tile_pix_max):
    """Pick (tile_sub, rows_total): sublane rows per grid step and total
    (possibly padded) sublane rows, minimising a simple cost model.

    Candidates:
      * multi-tile: tile_sub is a multiple of 8 (BlockSpec sublane rule),
        pixels padded up to tile_sub*128 granularity;
      * single-tile: tile_sub equals the full row count (no 8-multiple needed
        because a block dim equal to the full array dim is always legal), so
        pixels only pad to a multiple of 128.
    Prefers an even total step count so both v7x TensorCores get fed.
    """
    rows_exact = -(-HW // _LANE)
    max_rows = max(_SUBLANE, tile_pix_max // _LANE)
    max_rows8 = max(_SUBLANE, (max_rows // _SUBLANE) * _SUBLANE)

    candidates = [(t, _round_up(rows_exact, t))
                  for t in range(_SUBLANE, max_rows8 + 1, _SUBLANE)]
    if rows_exact <= max_rows:
        candidates.append((rows_exact, rows_exact))   # single ragged tile

    best = None
    for tile_sub, rows_total in candidates:
        n_tiles = rows_total // tile_sub
        steps = B * n_tiles
        cost = rows_total * _ROW_COST + n_tiles * _STEP_COST
        if steps < 2 or steps % 2:
            cost *= _ODD_GRID_PENALTY
        if best is None or cost < best[0]:
            best = (cost, tile_sub, rows_total)
    return best[1], best[2]


def _make_pkernel_body(layer_dims, param_offsets, tile_sub):
    """Fused 4-layer 1x1-conv MLP over pixels, chunked into single vregs.

    layer_dims:     static ((cin, cout), ...) per layer.
    param_offsets:  static ((weight_off, bias_off), ...) into the parameter
                    table; weights stored (cout, cin) row-major then biases.
    """
    n_layers = len(layer_dims)
    cin0 = layer_dims[0][0]
    cout_last = layer_dims[-1][1]

    n_full = tile_sub // _SUBLANE
    tail = tile_sub % _SUBLANE

    def body(w_ref, x_ref, o_ref):
        # w_ref: (n_params, 8, 128)  pre-broadcast weight/bias slabs (VMEM,
        #        constant index_map -> fetched once, resident across steps)
        # x_ref: (1, Cin0, tile_sub, 128)   lane-dense pixel tile
        # o_ref: (1, Cout_last, tile_sub, 128)

        def wslab(idx, csize):
            slab = w_ref[idx]                 # one lane-dense vld
            return slab if csize == _SUBLANE else slab[:csize]

        def process_chunk(start, csize):
            # One (csize<=8, 128) vreg chunk: everything register-resident.
            rows = [x_ref[0, ci, pl.ds(start, csize), :]
                    for ci in range(cin0)]
            for li, (cin, cout) in enumerate(layer_dims):
                w_off, b_off = param_offsets[li]
                new_rows = []
                for co in range(cout):
                    acc = wslab(w_off + co * cin, csize) * rows[0]
                    for ci in range(1, cin):
                        acc = acc + wslab(w_off + co * cin + ci, csize) * rows[ci]
                    acc = acc + wslab(b_off + co, csize)
                    if li != n_layers - 1:
                        acc = _leaky_relu(acc)
                    new_rows.append(acc)
                rows = new_rows
            for co in range(cout_last):
                o_ref[0, co, pl.ds(start, csize), :] = rows[co].astype(o_ref.dtype)

        if n_full > 0:
            if n_full <= _MAX_UNROLL_CHUNKS:
                for c in range(n_full):
                    process_chunk(c * _SUBLANE, _SUBLANE)
            else:
                @pl.loop(0, n_full)
                def _(c):
                    start = pl.multiple_of(c * _SUBLANE, _SUBLANE)
                    process_chunk(start, _SUBLANE)
        if tail:
            process_chunk(n_full * _SUBLANE, tail)

    return body


@functools.partial(jax.jit, static_argnames=("tile_pix_max", "compute_dtype"))
def pkernel_forward(x_nchw, params, tile_pix_max=32768, compute_dtype=jnp.float32):
    """x_nchw: (B, 3, H, W) float32. Returns (B, num_c, H, W) float32.

    compute_dtype=jnp.bfloat16 is an optional fast path for v6e/v7x (deviates
    slightly from the f32 PyTorch numerics; keep f32 on v5e).
    """
    w1, b1, w2, b2, w3, b3, w4, b4 = params
    B, Cin, H, W = x_nchw.shape
    num_c = w4.shape[1]
    layer_dims = tuple((w.shape[0], w.shape[1]) for w in (w1, w2, w3, w4))

    # Static offsets into the packed parameter table.
    param_offsets = []
    off = 0
    for cin, cout in layer_dims:
        param_offsets.append((off, off + cin * cout))
        off += cin * cout + cout
    n_params = off

    # Pack weights ((cout, cin) row-major) + biases, then pre-broadcast each
    # scalar into a full (8, 128) slab.  In-kernel every weight use is a single
    # lane-dense vld from a resident VMEM table (no SMEM sld + splat per FMA).
    pieces = []
    for w, b in ((w1, b1), (w2, b2), (w3, b3), (w4, b4)):
        pieces.append(jnp.transpose(w).reshape(-1))
        pieces.append(b.reshape(-1))
    p_flat = jnp.concatenate(pieces).astype(compute_dtype)
    w_table = jnp.broadcast_to(p_flat[:, None, None], (n_params, _SUBLANE, _LANE))

    HW = H * W
    tile_sub, rows_total = _choose_tiling(B, HW, tile_pix_max)
    n_tiles = rows_total // tile_sub
    HW_pad = rows_total * _LANE

    # NCHW -> (B, C, HW) is a free reshape (no transpose); pixels become the
    # lane/sublane axes.  For the single-tile path HW only needs to be a
    # multiple of 128, so typical shapes (and the 16x16 test) need NO padding.
    x_flat = x_nchw.astype(compute_dtype).reshape(B, Cin, HW)
    if HW_pad != HW:
        # TODO(synk): mask the ragged pixel tail in-kernel instead of this
        # host-side pad (+ output slice below) when HW is not 128-aligned.
        x_flat = jnp.pad(x_flat, ((0, 0), (0, 0), (0, HW_pad - HW)))
    x_tiled = x_flat.reshape(B, Cin, rows_total, _LANE)

    kernel = _make_pkernel_body(layer_dims, tuple(param_offsets), tile_sub)

    out_tiled = pl.pallas_call(
        kernel,
        out_shape=jax.ShapeDtypeStruct((B, num_c, rows_total, _LANE), jnp.float32),
        grid_spec=pltpu.PrefetchScalarGridSpec(
            num_scalar_prefetch=0,
            grid=(B, n_tiles),
            in_specs=[
                # pre-broadcast params: constant block index -> DMA'd once and
                # kept resident in VMEM across all grid steps
                pl.BlockSpec((n_params, _SUBLANE, _LANE), lambda b, j: (0, 0, 0)),
                # activations: (1, Cin, tile_sub, 128) lane-dense pixel tiles
                pl.BlockSpec((1, Cin, tile_sub, _LANE), lambda b, j: (b, 0, j, 0)),
            ],
            out_specs=pl.BlockSpec((1, num_c, tile_sub, _LANE),
                                   lambda b, j: (b, 0, j, 0)),
        ),
        compiler_params=pltpu.CompilerParams(
            dimension_semantics=("parallel", "parallel")),
    )(w_table, x_tiled)

    out = out_tiled.reshape(B, num_c, HW_pad)
    if HW_pad != HW:
        out = out[:, :, :HW]
    # PyTorch does pos.view(B, num_c, H, -1): identity for a 4-D tensor.
    return out.reshape(B, num_c, H, W)


def init_params(key, ch_in, ch_out):
    """Deterministic parameter init matching the PyTorch layer shapes.

    Conv2d(k=1) weight (Cout, Cin, 1, 1) is stored here as a (Cin, Cout)
    matmul weight; bias as (1, Cout)."""
    num_c = ch_in * ch_out
    dims = [(3, 16), (16, 16), (16, 4), (4, num_c)]
    params = []
    for idx, (cin, cout) in enumerate(dims):
        kw, kb = jax.random.split(jax.random.fold_in(key, idx))
        scale = 1.0 / jnp.sqrt(jnp.float32(cin))
        w = jax.random.uniform(kw, (cin, cout), jnp.float32, -scale, scale)
        b = jax.random.uniform(kb, (1, cout), jnp.float32, -scale, scale)
        params += [w, b]
    return tuple(params)


def reference_forward(x_nchw, params):
    """Pure-JAX reference replicating the PyTorch forward."""
    w1, b1, w2, b2, w3, b3, w4, b4 = params
    B, Cin, H, W = x_nchw.shape
    x = jnp.transpose(x_nchw, (0, 2, 3, 1)).reshape(-1, Cin)
    h = _leaky_relu(x @ w1 + b1)
    h = _leaky_relu(h @ w2 + b2)
    h = _leaky_relu(h @ w3 + b3)
    o = h @ w4 + b4
    return o.reshape(B, H, W, -1).transpose(0, 3, 1, 2)


if __name__ == "__main__":
    key = jax.random.PRNGKey(0)
    k_in, k_par = jax.random.split(key)

    # small shapes: batch=2, 3 input channels (positional map), 16x16 spatial
    B, H, W = 2, 16, 16
    ch_in, ch_out = 2, 2          # num_c = 4
    x = jax.random.normal(k_in, (B, 3, H, W), jnp.float32)

    params = init_params(k_par, ch_in, ch_out)

    out = pkernel_forward(x, params)
    out = jax.block_until_ready(out)

    ref = reference_forward(x, params)
    assert out.shape == (B, ch_in * ch_out, H, W), out.shape
    assert jnp.allclose(out, ref, atol=1e-5, rtol=1e-5), "mismatch vs reference"

    print("KERNEL_OK")
</pallas_src>

<mosaic_0001>
module attributes {stable_mosaic.version = 11 : i64} {
  func.func @body(%arg0: i32, %arg1: i32, %arg2: memref<424x8x128xf32, #tpu.memory_space<vmem>>, %arg3: memref<1x3x2x128xf32, #tpu.memory_space<vmem>>, %arg4: memref<1x4x2x128xf32, #tpu.memory_space<vmem>>) attributes {dimension_semantics = [#tpu.dimension_semantics<parallel>, #tpu.dimension_semantics<parallel>], iteration_bounds = array<i64: 2, 1>, scalar_prefetch = 0 : i64, scratch_operands = 0 : i64, tpu.core_type = #tpu.core_type<tc>, window_params = [{pipeline_mode = #tpu.pipeline_mode<synchronous>, transform_indices = @transform_0, window_bounds = array<i64: 424, 8, 128>}, {transform_indices = @transform_1, window_bounds = array<i64: 1, 3, 2, 128>}, {transform_indices = @transform_2, window_bounds = array<i64: 1, 4, 2, 128>}]} {
    %c0 = arith.constant 0 : index
    %c0_0 = arith.constant 0 : index
    %c0_1 = arith.constant 0 : index
    %c0_2 = arith.constant 0 : index
    %0 = vector.load %arg3[%c0, %c0_0, %c0_1, %c0_2] : memref<1x3x2x128xf32, #tpu.memory_space<vmem>>, vector<1x1x2x128xf32>
    %1 = vector.shape_cast %0 : vector<1x1x2x128xf32> to vector<2x128xf32>
    %c0_3 = arith.constant 0 : index
    %c1 = arith.constant 1 : index
    %c0_4 = arith.constant 0 : index
    %c0_5 = arith.constant 0 : index
    %2 = vector.load %arg3[%c0_3, %c1, %c0_4, %c0_5] : memref<1x3x2x128xf32, #tpu.memory_space<vmem>>, vector<1x1x2x128xf32>
    %3 = vector.shape_cast %2 : vector<1x1x2x128xf32> to vector<2x128xf32>
    %c0_6 = arith.constant 0 : index
    %c2 = arith.constant 2 : index
    %c0_7 = arith.constant 0 : index
    %c0_8 = arith.constant 0 : index
    %4 = vector.load %arg3[%c0_6, %c2, %c0_7, %c0_8] : memref<1x3x2x128xf32, #tpu.memory_space<vmem>>, vector<1x1x2x128xf32>
    %5 = vector.shape_cast %4 : vector<1x1x2x128xf32> to vector<2x128xf32>
    %c0_9 = arith.constant 0 : index
    %c0_10 = arith.constant 0 : index
    %c0_11 = arith.constant 0 : index
    %6 = vector.load %arg2[%c0_9, %c0_10, %c0_11] : memref<424x8x128xf32, #tpu.memory_space<vmem>>, vector<1x8x128xf32>
    %7 = vector.shape_cast %6 : vector<1x8x128xf32> to vector<8x128xf32>
    %8 = vector.extract_strided_slice %7 {offsets = [0, 0], sizes = [2, 128], strides = [1, 1]} : vector<8x128xf32> to vector<2x128xf32>
    %9 = arith.mulf %8, %1 : vector<2x128xf32>
    %c1_12 = arith.constant 1 : index
    %c0_13 = arith.constant 0 : index
    %c0_14 = arith.constant 0 : index
    %10 = vector.load %arg2[%c1_12, %c0_13, %c0_14] : memref<424x8x128xf32, #tpu.memory_space<vmem>>, vector<1x8x128xf32>
    %11 = vector.shape_cast %10 : vector<1x8x128xf32> to vector<8x128xf32>
    %12 = vector.extract_strided_slice %11 {offsets = [0, 0], sizes = [2, 128], strides = [1, 1]} : vector<8x128xf32> to vector<2x128xf32>
    %13 = arith.mulf %12, %3 : vector<2x128xf32>
    %14 = arith.addf %9, %13 : vector<2x128xf32>
    %c2_15 = arith.constant 2 : index
    %c0_16 = arith.constant 0 : index
    %c0_17 = arith.constant 0 : index
    %15 = vector.load %arg2[%c2_15, %c0_16, %c0_17] : memref<424x8x128xf32, #tpu.memory_space<vmem>>, vector<1x8x128xf32>
    %16 = vector.shape_cast %15 : vector<1x8x128xf32> to vector<8x128xf32>
    %17 = vector.extract_strided_slice %16 {offsets = [0, 0], sizes = [2, 128], strides = [1, 1]} : vector<8x128xf32> to vector<2x128xf32>
    %18 = arith.mulf %17, %5 : vector<2x128xf32>
    %19 = arith.addf %14, %18 : vector<2x128xf32>
    %c48 = arith.constant 48 : index
    %c0_18 = arith.constant 0 : index
    %c0_19 = arith.constant 0 : index
    %20 = vector.load %arg2[%c48, %c0_18, %c0_19] : memref<424x8x128xf32, #tpu.memory_space<vmem>>, vector<1x8x128xf32>
    %21 = vector.shape_cast %20 : vector<1x8x128xf32> to vector<8x128xf32>
    %22 = vector.extract_strided_slice %21 {offsets = [0, 0], sizes = [2, 128], strides = [1, 1]} : vector<8x128xf32> to vector<2x128xf32>
    %23 = arith.addf %19, %22 : vector<2x128xf32>
    %cst = arith.constant 1.000000e-01 : f32
    %24 = vector.broadcast %cst : f32 to vector<2x128xf32>
    %25 = arith.mulf %24, %23 : vector<2x128xf32>
    %26 = arith.maximumf %23, %25 : vector<2x128xf32>
    %c3 = arith.constant 3 : index
    %c0_20 = arith.constant 0 : index
    %c0_21 = arith.constant 0 : index
    %27 = vector.load %arg2[%c3, %c0_20, %c0_21] : memref<424x8x128xf32, #tpu.memory_space<vmem>>, vector<1x8x128xf32>
    %28 = vector.shape_cast %27 : vector<1x8x128xf32> to vector<8x128xf32>
    %29 = vector.extract_strided_slice %28 {offsets = [0, 0], sizes = [2, 128], strides = [1, 1]} : vector<8x128xf32> to vector<2x128xf32>
    %30 = arith.mulf %29, %1 : vector<2x128xf32>
    %c4 = arith.constant 4 : index
    %c0_22 = arith.constant 0 : index
    %c0_23 = arith.constant 0 : index
    %31 = vector.load %arg2[%c4, %c0_22, %c0_23] : memref<424x8x128xf32, #tpu.memory_space<vmem>>, vector<1x8x128xf32>
    %32 = vector.shape_cast %31 : vector<1x8x128xf32> to vector<8x128xf32>
    %33 = vector.extract_strided_slice %32 {offsets = [0, 0], sizes = [2, 128], strides = [1, 1]} : vector<8x128xf32> to vector<2x128xf32>
    %34 = arith.mulf %33, %3 : vector<2x128xf32>
    %35 = arith.addf %30, %34 : vector<2x128xf32>
    %c5 = arith.constant 5 : index
    %c0_24 = arith.constant 0 : index
    %c0_25 = arith.constant 0 : index
    %36 = vector.load %arg2[%c5, %c0_24, %c0_25] : memref<424x8x128xf32, #tpu.memory_space<vmem>>, vector<1x8x128xf32>
    %37 = vector.shape_cast %36 : vector<1x8x128xf32> to vector<8x128xf32>
    %38 = vector.extract_strided_slice %37 {offsets = [0, 0], sizes = [2, 128], strides = [1, 1]} : vector<8x128xf32> to vector<2x128xf32>
    %39 = arith.mulf %38, %5 : vector<2x128xf32>
    %40 = arith.addf %35, %39 : vector<2x128xf32>
    %c49 = arith.constant 49 : index
    %c0_26 = arith.constant 0 : index
    %c0_27 = arith.constant 0 : index
    %41 = vector.load %arg2[%c49, %c0_26, %c0_27] : memref<424x8x128xf32, #tpu.memory_space<vmem>>, vector<1x8x128xf32>
    %42 = vector.shape_cast %41 : vector<1x8x128xf32> to vector<8x128xf32>
    %43 = vector.extract_strided_slice %42 {offsets = [0, 0], sizes = [2, 128], strides = [1, 1]} : vector<8x128xf32> to vector<2x128xf32>
    %44 = arith.addf %40, %43 : vector<2x128xf32>
    %cst_28 = arith.constant 1.000000e-01 : f32
    %45 = vector.broadcast %cst_28 : f32 to vector<2x128xf32>
    %46 = arith.mulf %45, %44 : vector<2x128xf32>
    %47 = arith.maximumf %44, %46 : vector<2x128xf32>
    %c6 = arith.constant 6 : index
    %c0_29 = arith.constant 0 : index
    %c0_30 = arith.constant 0 : index
    %48 = vector.load %arg2[%c6, %c0_29, %c0_30] : memref<424x8x128xf32, #tpu.memory_space<vmem>>, vector<1x8x128xf32>
    %49 = vector.shape_cast %48 : vector<1x8x128xf32> to vector<8x128xf32>
    %50 = vector.extract_strided_slice %49 {offsets = [0, 0], sizes = [2, 128], strides = [1, 1]} : vector<8x128xf32> to vector<2x128xf32>
    %51 = arith.mulf %50, %1 : vector<2x128xf32>
    %c7 = arith.constant 7 : index
    %c0_31 = arith.constant 0 : index
    %c0_32 = arith.constant 0 : index
    %52 = vector.load %arg2[%c7, %c0_31, %c0_32] : memref<424x8x128xf32, #tpu.memory_space<vmem>>, vector<1x8x128xf32>
    %53 = vector.shape_cast %52 : vector<1x8x128xf32> to vector<8x128xf32>
    %54 = vector.extract_strided_slice %53 {offsets = [0, 0], sizes = [2, 128], strides = [1, 1]} : vector<8x128xf32> to vector<2x128xf32>
    %55 = arith.mulf %54, %3 : vector<2x128xf32>
    %56 = arith.addf %51, %55 : vector<2x128xf32>
    %c8 = arith.constant 8 : index
    %c0_33 = arith.constant 0 : index
    %c0_34 = arith.constant 0 : index
    %57 = vector.load %arg2[%c8, %c0_33, %c0_34] : memref<424x8x128xf32, #tpu.memory_space<vmem>>, vector<1x8x128xf32>
    %58 = vector.shape_cast %57 : vector<1x8x128xf32> to vector<8x128xf32>
    %59 = vector.extract_strided_slice %58 {offsets = [0, 0], sizes = [2, 128], strides = [1, 1]} : vector<8x128xf32> to vector<2x128xf32>
    %60 = arith.mulf %59, %5 : vector<2x128xf32>
    %61 = arith.addf %56, %60 : vector<2x128xf32>
    %c50 = arith.constant 50 : index
    %c0_35 = arith.constant 0 : index
    %c0_36 = arith.constant 0 : index
    %62 = vector.load %arg2[%c50, %c0_35, %c0_36] : memref<424x8x128xf32, #tpu.memory_space<vmem>>, vector<1x8x128xf32>
    %63 = vector.shape_cast %62 : vector<1x8x128xf32> to vector<8x128xf32>
    %64 = vector.extract_strided_slice %63 {offsets = [0, 0], sizes = [2, 128], strides = [1, 1]} : vector<8x128xf32> to vector<2x128xf32>
    %65 = arith.addf %61, %64 : vector<2x128xf32>
    %cst_37 = arith.constant 1.000000e-01 : f32
    %66 = vector.broadcast %cst_37 : f32 to vector<2x128xf32>
    %67 = arith.mulf %66, %65 : vector<2x128xf32>
    %68 = arith.maximumf %65, %67 : vector<2x128xf32>
    %c9 = arith.constant 9 : index
    %c0_38 = arith.constant 0 : index
    %c0_39 = arith.constant 0 : index
    %69 = vector.load %arg2[%c9, %c0_38, %c0_39] : memref<424x8x128xf32, #tpu.memory_space<vmem>>, vector<1x8x128xf32>
    %70 = vector.shape_cast %69 : vector<1x8x128xf32> to vector<8x128xf32>
    %71 = vector.extract_strided_slice %70 {offsets = [0, 0], sizes = [2, 128], strides = [1, 1]} : vector<8x128xf32> to vector<2x128xf32>
    %72 = arith.mulf %71, %1 : vector<2x128xf32>
    %c10 = arith.constant 10 : index
    %c0_40 = arith.constant 0 : index
    %c0_41 = arith.constant 0 : index
    %73 = vector.load %arg2[%c10, %c0_40, %c0_41] : memref<424x8x128xf32, #tpu.memory_space<vmem>>, vector<1x8x128xf32>
    %74 = vector.shape_cast %73 : vector<1x8x128xf32> to vector<8x128xf32>
    %75 = vector.extract_strided_slice %74 {offsets = [0, 0], sizes = [2, 128], strides = [1, 1]} : vector<8x128xf32> to vector<2x128xf32>
    %76 = arith.mulf %75, %3 : vector<2x128xf32>
    %77 = arith.addf %72, %76 : vector<2x128xf32>
    %c11 = arith.constant 11 : index
    %c0_42 = arith.constant 0 : index
    %c0_43 = arith.constant 0 : index
    %78 = vector.load %arg2[%c11, %c0_42, %c0_43] : memref<424x8x128xf32, #tpu.memory_space<vmem>>, vector<1x8x128xf32>
    %79 = vector.shape_cast %78 : vector<1x8x128xf32> to vector<8x128xf32>
    %80 = vector.extract_strided_slice %79 {offsets = [0, 0], sizes = [2, 128], strides = [1, 1]} : vector<8x128xf32> to vector<2x128xf32>
    %81 = arith.mulf %80, %5 : vector<2x128xf32>
    %82 = arith.addf %77, %81 : vector<2x128xf32>
    %c51 = arith.constant 51 : index
    %c0_44 = arith.constant 0 : index
    %c0_45 = arith.constant 0 : index
    %83 = vector.load %arg2[%c51, %c0_44, %c0_45] : memref<424x8x128xf32, #tpu.memory_space<vmem>>, vector<1x8x128xf32>
    %84 = vector.shape_cast %83 : vector<1x8x128xf32> to vector<8x128xf32>
    %85 = vector.extract_strided_slice %84 {offsets = [0, 0], sizes = [2, 128], strides = [1, 1]} : vector<8x128xf32> to vector<2x128xf32>
    %86 = arith.addf %82, %85 : vector<2x128xf32>
    %cst_46 = arith.constant 1.000000e-01 : f32
    %87 = vector.broadcast %cst_46 : f32 to vector<2x128xf32>
    %88 = arith.mulf %87, %86 : vector<2x128xf32>
    %89 = arith.maximumf %86, %88 : vector<2x128xf32>
    %c12 = arith.constant 12 : index
    %c0_47 = arith.constant 0 : index
    %c0_48 = arith.constant 0 : index
    %90 = vector.load %arg2[%c12, %c0_47, %c0_48] : memref<424x8x128xf32, #tpu.memory_space<vmem>>, vector<1x8x128xf32>
    %91 = vector.shape_cast %90 : vector<1x8x128xf32> to vector<8x128xf32>
    %92 = vector.extract_strided_slice %91 {offsets = [0, 0], sizes = [2, 128], strides = [1, 1]} : vector<8x128xf32> to vector<2x128xf32>
    %93 = arith.mulf %92, %1 : vector<2x128xf32>
    %c13 = arith.constant 13 : index
    %c0_49 = arith.constant 0 : index
    %c0_50 = arith.constant 0 : index
    %94 = vector.load %arg2[%c13, %c0_49, %c0_50] : memref<424x8x128xf32, #tpu.memory_space<vmem>>, vector<1x8x128xf32>
    %95 = vector.shape_cast %94 : vector<1x8x128xf32> to vector<8x128xf32>
    %96 = vector.extract_strided_slice %95 {offsets = [0, 0], sizes = [2, 128], strides = [1, 1]} : vector<8x128xf32> to vector<2x128xf32>
    %97 = arith.mulf %96, %3 : vector<2x128xf32>
    %98 = arith.addf %93, %97 : vector<2x128xf32>
    %c14 = arith.constant 14 : index
    %c0_51 = arith.constant 0 : index
    %c0_52 = arith.constant 0 : index
    %99 = vector.load %arg2[%c14, %c0_51, %c0_52] : memref<424x8x128xf32, #tpu.memory_space<vmem>>, vector<1x8x128xf32>
    %100 = vector.shape_cast %99 : vector<1x8x128xf32> to vector<8x128xf32>
    %101 = vector.extract_strided_slice %100 {offsets = [0, 0], sizes = [2, 128], strides = [1, 1]} : vector<8x128xf32> to vector<2x128xf32>
    %102 = arith.mulf %101, %5 : vector<2x128xf32>
    %103 = arith.addf %98, %102 : vector<2x128xf32>
    %c52 = arith.constant 52 : index
    %c0_53 = arith.constant 0 : index
    %c0_54 = arith.constant 0 : index
    %104 = vector.load %arg2[%c52, %c0_53, %c0_54] : memref<424x8x128xf32, #tpu.memory_space<vmem>>, vector<1x8x128xf32>
    %105 = vector.shape_cast %104 : vector<1x8x128xf32> to vector<8x128xf32>
    %106 = vector.extract_strided_slice %105 {offsets = [0, 0], sizes = [2, 128], strides = [1, 1]} : vector<8x128xf32> to vector<2x128xf32>
    %107 = arith.addf %103, %106 : vector<2x128xf32>
    %cst_55 = arith.constant 1.000000e-01 : f32
    %108 = vector.broadcast %cst_55 : f32 to vector<2x128xf32>
    %109 = arith.mulf %108, %107 : vector<2x128xf32>
    %110 = arith.maximumf %107, %109 : vector<2x128xf32>
    %c15 = arith.constant 15 : index
    %c0_56 = arith.constant 0 : index
    %c0_57 = arith.constant 0 : index
    %111 = vector.load %arg2[%c15, %c0_56, %c0_57] : memref<424x8x128xf32, #tpu.memory_space<vmem>>, vector<1x8x128xf32>
    %112 = vector.shape_cast %111 : vector<1x8x128xf32> to vector<8x128xf32>
    %113 = vector.extract_strided_slice %112 {offsets = [0, 0], sizes = [2, 128], strides = [1, 1]} : vector<8x128xf32> to vector<2x128xf32>
    %114 = arith.mulf %113, %1 : vector<2x128xf32>
    %c16 = arith.constant 16 : index
    %c0_58 = arith.constant 0 : index
    %c0_59 = arith.constant 0 : index
    %115 = vector.load %arg2[%c16, %c0_58, %c0_59] : memref<424x8x128xf32, #tpu.memory_space<vmem>>, vector<1x8x128xf32>
    %116 = vector.shape_cast %115 : vector<1x8x128xf32> to vector<8x128xf32>
    %117 = vector.extract_strided_slice %116 {offsets = [0, 0], sizes = [2, 128], strides = [1, 1]} : vector<8x128xf32> to vector<2x128xf32>
    %118 = arith.mulf %117, %3 : vector<2x128xf32>
    %119 = arith.addf %114, %118 : vector<2x128xf32>
    %c17 = arith.constant 17 : index
    %c0_60 = arith.constant 0 : index
    %c0_61 = arith.constant 0 : index
    %120 = vector.load %arg2[%c17, %c0_60, %c0_61] : memref<424x8x128xf32, #tpu.memory_space<vmem>>, vector<1x8x128xf32>
    %121 = vector.shape_cast %120 : vector<1x8x128xf32> to vector<8x128xf32>
    %122 = vector.extract_strided_slice %121 {offsets = [0, 0], sizes = [2, 128], strides = [1, 1]} : vector<8x128xf32> to vector<2x128xf32>
    %123 = arith.mulf %122, %5 : vector<2x128xf32>
    %124 = arith.addf %119, %123 : vector<2x128xf32>
    %c53 = arith.constant 53 : index
    %c0_62 = arith.constant 0 : index
    %c0_63 = arith.constant 0 : index
    %125 = vector.load %arg2[%c53, %c0_62, %c0_63] : memref<424x8x128xf32, #tpu.memory_space<vmem>>, vector<1x8x128xf32>
    %126 = vector.shape_cast %125 : vector<1x8x128xf32> to vector<8x128xf32>
    %127 = vector.extract_strided_slice %126 {offsets = [0, 0], sizes = [2, 128], strides = [1, 1]} : vector<8x128xf32> to vector<2x128xf32>
    %128 = arith.addf %124, %127 : vector<2x128xf32>
    %cst_64 = arith.constant 1.000000e-01 : f32
    %129 = vector.broadcast %cst_64 : f32 to vector<2x128xf32>
    %130 = arith.mulf %129, %128 : vector<2x128xf32>
    %131 = arith.maximumf %128, %130 : vector<2x128xf32>
    %c18 = arith.constant 18 : index
    %c0_65 = arith.constant 0 : index
    %c0_66 = arith.constant 0 : index
    %132 = vector.load %arg2[%c18, %c0_65, %c0_66] : memref<424x8x128xf32, #tpu.memory_space<vmem>>, vector<1x8x128xf32>
    %133 = vector.shape_cast %132 : vector<1x8x128xf32> to vector<8x128xf32>
    %134 = vector.extract_strided_slice %133 {offsets = [0, 0], sizes = [2, 128], strides = [1, 1]} : vector<8x128xf32> to vector<2x128xf32>
    %135 = arith.mulf %134, %1 : vector<2x128xf32>
    %c19 = arith.constant 19 : index
    %c0_67 = arith.constant 0 : index
    %c0_68 = arith.constant 0 : index
    %136 = vector.load %arg2[%c19, %c0_67, %c0_68] : memref<424x8x128xf32, #tpu.memory_space<vmem>>, vector<1x8x128xf32>
    %137 = vector.shape_cast %136 : vector<1x8x128xf32> to vector<8x128xf32>
    %138 = vector.extract_strided_slice %137 {offsets = [0, 0], sizes = [2, 128], strides = [1, 1]} : vector<8x128xf32> to vector<2x128xf32>
    %139 = arith.mulf %138, %3 : vector<2x128xf32>
    %140 = arith.addf %135, %139 : vector<2x128xf32>
    %c20 = arith.constant 20 : index
    %c0_69 = arith.constant 0 : index
    %c0_70 = arith.constant 0 : index
    %141 = vector.load %arg2[%c20, %c0_69, %c0_70] : memref<424x8x128xf32, #tpu.memory_space<vmem>>, vector<1x8x128xf32>
    %142 = vector.shape_cast %141 : vector<1x8x128xf32> to vector<8x128xf32>
    %143 = vector.extract_strided_slice %142 {offsets = [0, 0], sizes = [2, 128], strides = [1, 1]} : vector<8x128xf32> to vector<2x128xf32>
    %144 = arith.mulf %143, %5 : vector<2x128xf32>
    %145 = arith.addf %140, %144 : vector<2x128xf32>
    %c54 = arith.constant 54 : index
    %c0_71 = arith.constant 0 : index
    %c0_72 = arith.constant 0 : index
    %146 = vector.load %arg2[%c54, %c0_71, %c0_72] : memref<424x8x128xf32, #tpu.memory_space<vmem>>, vector<1x8x128xf32>
    %147 = vector.shape_cast %146 : vector<1x8x128xf32> to vector<8x128xf32>
    %148 = vector.extract_strided_slice %147 {offsets = [0, 0], sizes = [2, 128], strides = [1, 1]} : vector<8x128xf32> to vector<2x128xf32>
    %149 = arith.addf %145, %148 : vector<2x128xf32>
    %cst_73 = arith.constant 1.000000e-01 : f32
    %150 = vector.broadcast %cst_73 : f32 to vector<2x128xf32>
    %151 = arith.mulf %150, %149 : vector<2x128xf32>
    %152 = arith.maximumf %149, %151 : vector<2x128xf32>
    %c21 = arith.constant 21 : index
    %c0_74 = arith.constant 0 : index
    %c0_75 = arith.constant 0 : index
    %153 = vector.load %arg2[%c21, %c0_74, %c0_75] : memref<424x8x128xf32, #tpu.memory_space<vmem>>, vector<1x8x128xf32>
    %154 = vector.shape_cast %153 : vector<1x8x128xf32> to vector<8x128xf32>
    %155 = vector.extract_strided_slice %154 {offsets = [0, 0], sizes = [2, 128], strides = [1, 1]} : vector<8x128xf32> to vector<2x128xf32>
    %156 = arith.mulf %155, %1 : vector<2x128xf32>
    %c22 = arith.constant 22 : index
    %c0_76 = arith.constant 0 : index
    %c0_77 = arith.constant 0 : index
    %157 = vector.load %arg2[%c22, %c0_76, %c0_77] : memref<424x8x128xf32, #tpu.memory_space<vmem>>, vector<1x8x128xf32>
    %158 = vector.shape_cast %157 : vector<1x8x128xf32> to vector<8x128xf32>
    %159 = vector.extract_strided_slice %158 {offsets = [0, 0], sizes = [2, 128], strides = [1, 1]} : vector<8x128xf32> to vector<2x128xf32>
    %160 = arith.mulf %159, %3 : vector<2x128xf32>
    %161 = arith.addf %156, %160 : vector<2x128xf32>
    %c23 = arith.constant 23 : index
    %c0_78 = arith.constant 0 : index
    %c0_79 = arith.constant 0 : index
    %162 = vector.load %arg2[%c23, %c0_78, %c0_79] : memref<424x8x128xf32, #tpu.memory_space<vmem>>, vector<1x8x128xf32>
    %163 = vector.shape_cast %162 : vector<1x8x128xf32> to vector<8x128xf32>
    %164 = vector.extract_strided_slice %163 {offsets = [0, 0], sizes = [2, 128], strides = [1, 1]} : vector<8x128xf32> to vector<2x128xf32>
    %165 = arith.mulf %164, %5 : vector<2x128xf32>
    %166 = arith.addf %161, %165 : vector<2x128xf32>
    %c55 = arith.constant 55 : index
    %c0_80 = arith.constant 0 : index
    %c0_81 = arith.constant 0 : index
    %167 = vector.load %arg2[%c55, %c0_80, %c0_81] : memref<424x8x128xf32, #tpu.memory_space<vmem>>, vector<1x8x128xf32>
    %168 = vector.shape_cast %167 : vector<1x8x128xf32> to vector<8x128xf32>
    %169 = vector.extract_strided_slice %168 {offsets = [0, 0], sizes = [2, 128], strides = [1, 1]} : vector<8x128xf32> to vector<2x128xf32>
    %170 = arith.addf %166, %169 : vector<2x128xf32>
    %cst_82 = arith.constant 1.000000e-01 : f32
    %171 = vector.broadcast %cst_82 : f32 to vector<2x128xf32>
    %172 = arith.mulf %171, %170 : vector<2x128xf32>
    %173 = arith.maximumf %170, %172 : vector<2x128xf32>
    %c24 = arith.constant 24 : index
    %c0_83 = arith.constant 0 : index
    %c0_84 = arith.constant 0 : index
    %174 = vector.load %arg2[%c24, %c0_83, %c0_84] : memref<424x8x128xf32, #tpu.memory_space<vmem>>, vector<1x8x128xf32>
    %175 = vector.shape_cast %174 : vector<1x8x128xf32> to vector<8x128xf32>
    %176 = vector.extract_strided_slice %175 {offsets = [0, 0], sizes = [2, 128], strides = [1, 1]} : vector<8x128xf32> to vector<2x128xf32>
    %177 = arith.mulf %176, %1 : vector<2x128xf32>
    %c25 = arith.constant 25 : index
    %c0_85 = arith.constant 0 : index
    %c0_86 = arith.constant 0 : index
    %178 = vector.load %arg2[%c25, %c0_85, %c0_86] : memref<424x8x128xf32, #tpu.memory_space<vmem>>, vector<1x8x128xf32>
    %179 = vector.shape_cast %178 : vector<1x8x128xf32> to vector<8x128xf32>
    %180 = vector.extract_strided_slice %179 {offsets = [0, 0], sizes = [2, 128], strides = [1, 1]} : vector<8x128xf32> to vector<2x128xf32>
    %181 = arith.mulf %180, %3 : vector<2x128xf32>
    %182 = arith.addf %177, %181 : vector<2x128xf32>
    %c26 = arith.constant 26 : index
    %c0_87 = arith.constant 0 : index
    %c0_88 = arith.constant 0 : index
    %183 = vector.load %arg2[%c26, %c0_87, %c0_88] : memref<424x8x128xf32, #tpu.memory_space<vmem>>, vector<1x8x128xf32>
    %184 = vector.shape_cast %183 : vector<1x8x128xf32> to vector<8x128xf32>
    %185 = vector.extract_strided_slice %184 {offsets = [0, 0], sizes = [2, 128], strides = [1, 1]} : vector<8x128xf32> to vector<2x128xf32>
    %186 = arith.mulf %185, %5 : vector<2x128xf32>
    %187 = arith.addf %182, %186 : vector<2x128xf32>
    %c56 = arith.constant 56 : index
    %c0_89 = arith.constant 0 : index
    %c0_90 = arith.constant 0 : index
    %188 = vector.load %arg2[%c56, %c0_89, %c0_90] : memref<424x8x128xf32, #tpu.memory_space<vmem>>, vector<1x8x128xf32>
    %189 = vector.shape_cast %188 : vector<1x8x128xf32> to vector<8x128xf32>
    %190 = vector.extract_strided_slice %189 {offsets = [0, 0], sizes = [2, 128], strides = [1, 1]} : vector<8x128xf32> to vector<2x128xf32>
    %191 = arith.addf %187, %190 : vector<2x128xf32>
    %cst_91 = arith.constant 1.000000e-01 : f32
    %192 = vector.broadcast %cst_91 : f32 to vector<2x128xf32>
    %193 = arith.mulf %192, %191 : vector<2x128xf32>
    %194 = arith.maximumf %191, %193 : vector<2x128xf32>
    %c27 = arith.constant 27 : index
    %c0_92 = arith.constant 0 : index
    %c0_93 = arith.constant 0 : index
    %195 = vector.load %arg2[%c27, %c0_92, %c0_93] : memref<424x8x128xf32, #tpu.memory_space<vmem>>, vector<1x8x128xf32>
    %196 = vector.shape_cast %195 : vector<1x8x128xf32> to vector<8x128xf32>
    %197 = vector.extract_strided_slice %196 {offsets = [0, 0], sizes = [2, 128], strides = [1, 1]} : vector<8x128xf32> to vector<2x128xf32>
    %198 = arith.mulf %197, %1 : vector<2x128xf32>
    %c28 = arith.constant 28 : index
    %c0_94 = arith.constant 0 : index
    %c0_95 = arith.constant 0 : index
    %199 = vector.load %arg2[%c28, %c0_94, %c0_95] : memref<424x8x128xf32, #tpu.memory_space<vmem>>, vector<1x8x128xf32>
    %200 = vector.shape_cast %199 : vector<1x8x128xf32> to vector<8x128xf32>
    %201 = vector.extract_strided_slice %200 {offsets = [0, 0], sizes = [2, 128], strides = [1, 1]} : vector<8x128xf32> to vector<2x128xf32>
    %202 = arith.mulf %201, %3 : vector<2x128xf32>
    %203 = arith.addf %198, %202 : vector<2x128xf32>
    %c29 = arith.constant 29 : index
    %c0_96 = arith.constant 0 : index
    %c0_97 = arith.constant 0 : index
    %204 = vector.load %arg2[%c29, %c0_96, %c0_97] : memref<424x8x128xf32, #tpu.memory_space<vmem>>, vector<1x8x128xf32>
    %205 = vector.shape_cast %204 : vector<1x8x128xf32> to vector<8x128xf32>
    %206 = vector.extract_strided_slice %205 {offsets = [0, 0], sizes = [2, 128], strides = [1, 1]} : vector<8x128xf32> to vector<2x128xf32>
    %207 = arith.mulf %206, %5 : vector<2x128xf32>
    %208 = arith.addf %203, %207 : vector<2x128xf32>
    %c57 = arith.constant 57 : index
    %c0_98 = arith.constant 0 : index
    %c0_99 = arith.constant 0 : index
    %209 = vector.load %arg2[%c57, %c0_98, %c0_99] : memref<424x8x128xf32, #tpu.memory_space<vmem>>, vector<1x8x128xf32>
    %210 = vector.shape_cast %209 : vector<1x8x128xf32> to vector<8x128xf32>
    %211 = vector.extract_strided_slice %210 {offsets = [0, 0], sizes = [2, 128], strides = [1, 1]} : vector<8x128xf32> to vector<2x128xf32>
    %212 = arith.addf %208, %211 : vector<2x128xf32>
    %cst_100 = arith.constant 1.000000e-01 : f32
    %213 = vector.broadcast %cst_100 : f32 to vector<2x128xf32>
    %214 = arith.mulf %213, %212 : vector<2x128xf32>
    %215 = arith.maximumf %212, %214 : vector<2x128xf32>
    %c30 = arith.constant 30 : index
    %c0_101 = arith.constant 0 : index
    %c0_102 = arith.constant 0 : index
    %216 = vector.load %arg2[%c30, %c0_101, %c0_102] : memref<424x8x128xf32, #tpu.memory_space<vmem>>, vector<1x8x128xf32>
    %217 = vector.shape_cast %216 : vector<1x8x128xf32> to vector<8x128xf32>
    %218 = vector.extract_strided_slice %217 {offsets = [0, 0], sizes = [2, 128], strides = [1, 1]} : vector<8x128xf32> to vector<2x128xf32>
    %219 = arith.mulf %218, %1 : vector<2x128xf32>
    %c31 = arith.constant 31 : index
    %c0_103 = arith.constant 0 : index
    %c0_104 = arith.constant 0 : index
    %220 = vector.load %arg2[%c31, %c0_103, %c0_104] : memref<424x8x128xf32, #tpu.memory_space<vmem>>, vector<1x8x128xf32>
    %221 = vector.shape_cast %220 : vector<1x8x128xf32> to vector<8x128xf32>
    %222 = vector.extract_strided_slice %221 {offsets = [0, 0], sizes = [2, 128], strides = [1, 1]} : vector<8x128xf32> to vector<2x128xf32>
    %223 = arith.mulf %222, %3 : vector<2x128xf32>
    %224 = arith.addf %219, %223 : vector<2x128xf32>
    %c32 = arith.constant 32 : index
    %c0_105 = arith.constant 0 : index
    %c0_106 = arith.constant 0 : index
    %225 = vector.load %arg2[%c32, %c0_105, %c0_106] : memref<424x8x128xf32, #tpu.memory_space<vmem>>, vector<1x8x128xf32>
    %226 = vector.shape_cast %225 : vector<1x8x128xf32> to vector<8x128xf32>
    %227 = vector.extract_strided_slice %226 {offsets = [0, 0], sizes = [2, 128], strides = [1, 1]} : vector<8x128xf32> to vector<2x128xf32>
    %228 = arith.mulf %227, %5 : vector<2x128xf32>
    %229 = arith.addf %224, %228 : vector<2x128xf32>
    %c58 = arith.constant 58 : index
    %c0_107 = arith.constant 0 : index
    %c0_108 = arith.constant 0 : index
    %230 = vector.load %arg2[%c58, %c0_107, %c0_108] : memref<424x8x128xf32, #tpu.memory_space<vmem>>, vector<1x8x128xf32>
    %231 = vector.shape_cast %230 : vector<1x8x128xf32> to vector<8x128xf32>
    %232 = vector.extract_strided_slice %231 {offsets = [0, 0], sizes = [2, 128], strides = [1, 1]} : vector<8x128xf32> to vector<2x128xf32>
    %233 = arith.addf %229, %232 : vector<2x128xf32>
    %cst_109 = arith.constant 1.000000e-01 : f32
    %234 = vector.broadcast %cst_109 : f32 to vector<2x128xf32>
    %235 = arith.mulf %234, %233 : vector<2x128xf32>
    %236 = arith.maximumf %233, %235 : vector<2x128xf32>
    %c33 = arith.constant 33 : index
    %c0_110 = arith.constant 0 : index
    %c0_111 = arith.constant 0 : index
    %237 = vector.load %arg2[%c33, %c0_110, %c0_111] : memref<424x8x128xf32, #tpu.memory_space<vmem>>, vector<1x8x128xf32>
    %238 = vector.shape_cast %237 : vector<1x8x128xf32> to vector<8x128xf32>
    %239 = vector.extract_strided_slice %238 {offsets = [0, 0], sizes = [2, 128], strides = [1, 1]} : vector<8x128xf32> to vector<2x128xf32>
    %240 = arith.mulf %239, %1 : vector<2x128xf32>
    %c34 = arith.constant 34 : index
    %c0_112 = arith.constant 0 : index
    %c0_113 = arith.constant 0 : index
    %241 = vector.load %arg2[%c34, %c0_112, %c0_113] : memref<424x8x128xf32, #tpu.memory_space<vmem>>, vector<1x8x128xf32>
    %242 = vector.shape_cast %241 : vector<1x8x128xf32> to vector<8x128xf32>
    %243 = vector.extract_strided_slice %242 {offsets = [0, 0], sizes = [2, 128], strides = [1, 1]} : vector<8x128xf32> to vector<2x128xf32>
    %244 = arith.mulf %243, %3 : vector<2x128xf32>
    %245 = arith.addf %240, %244 : vector<2x128xf32>
    %c35 = arith.constant 35 : index
    %c0_114 = arith.constant 0 : index
    %c0_115 = arith.constant 0 : index
    %246 = vector.load %arg2[%c35, %c0_114, %c0_115] : memref<424x8x128xf32, #tpu.memory_space<vmem>>, vector<1x8x128xf32>
    %247 = vector.shape_cast %246 : vector<1x8x128xf32> to vector<8x128xf32>
    %248 = vector.extract_strided_slice %247 {offsets = [0, 0], sizes = [2, 128], strides = [1, 1]} : vector<8x128xf32> to vector<2x128xf32>
    %249 = arith.mulf %248, %5 : vector<2x128xf32>
    %250 = arith.addf %245, %249 : vector<2x128xf32>
    %c59 = arith.constant 59 : index
    %c0_116 = arith.constant 0 : index
    %c0_117 = arith.constant 0 : index
    %251 = vector.load %arg2[%c59, %c0_116, %c0_117] : memref<424x8x128xf32, #tpu.memory_space<vmem>>, vector<1x8x128xf32>
    %252 = vector.shape_cast %251 : vector<1x8x128xf32> to vector<8x128xf32>
    %253 = vector.extract_strided_slice %252 {offsets = [0, 0], sizes = [2, 128], strides = [1, 1]} : vector<8x128xf32> to vector<2x128xf32>
    %254 = arith.addf %250, %253 : vector<2x128xf32>
    %cst_118 = arith.constant 1.000000e-01 : f32
    %255 = vector.broadcast %cst_118 : f32 to vector<2x128xf32>
    %256 = arith.mulf %255, %254 : vector<2x128xf32>
    %257 = arith.maximumf %254, %256 : vector<2x128xf32>
    %c36 = arith.constant 36 : index
    %c0_119 = arith.constant 0 : index
    %c0_120 = arith.constant 0 : index
    %258 = vector.load %arg2[%c36, %c0_119, %c0_120] : memref<424x8x128xf32, #tpu.memory_space<vmem>>, vector<1x8x128xf32>
    %259 = vector.shape_cast %258 : vector<1x8x128xf32> to vector<8x128xf32>
    %260 = vector.extract_strided_slice %259 {offsets = [0, 0], sizes = [2, 128], strides = [1, 1]} : vector<8x128xf32> to vector<2x128xf32>
    %261 = arith.mulf %260, %1 : vector<2x128xf32>
    %c37 = arith.constant 37 : index
    %c0_121 = arith.constant 0 : index
    %c0_122 = arith.constant 0 : index
    %262 = vector.load %arg2[%c37, %c0_121, %c0_122] : memref<424x8x128xf32, #tpu.memory_space<vmem>>, vector<1x8x128xf32>
    %263 = vector.shape_cast %262 : vector<1x8x128xf32> to vector<8x128xf32>
    %264 = vector.extract_strided_slice %263 {offsets = [0, 0], sizes = [2, 128], strides = [1, 1]} : vector<8x128xf32> to vector<2x128xf32>
    %265 = arith.mulf %264, %3 : vector<2x128xf32>
    %266 = arith.addf %261, %265 : vector<2x128xf32>
    %c38 = arith.constant 38 : index
    %c0_123 = arith.constant 0 : index
    %c0_124 = arith.constant 0 : index
    %267 = vector.load %arg2[%c38, %c0_123, %c0_124] : memref<424x8x128xf32, #tpu.memory_space<vmem>>, vector<1x8x128xf32>
    %268 = vector.shape_cast %267 : vector<1x8x128xf32> to vector<8x128xf32>
    %269 = vector.extract_strided_slice %268 {offsets = [0, 0], sizes = [2, 128], strides = [1, 1]} : vector<8x128xf32> to vector<2x128xf32>
    %270 = arith.mulf %269, %5 : vector<2x128xf32>
    %271 = arith.addf %266, %270 : vector<2x128xf32>
    %c60 = arith.constant 60 : index
    %c0_125 = arith.constant 0 : index
    %c0_126 = arith.constant 0 : index
    %272 = vector.load %arg2[%c60, %c0_125, %c0_126] : memref<424x8x128xf32, #tpu.memory_space<vmem>>, vector<1x8x128xf32>
    %273 = vector.shape_cast %272 : vector<1x8x128xf32> to vector<8x128xf32>
    %274 = vector.extract_strided_slice %273 {offsets = [0, 0], sizes = [2, 128], strides = [1, 1]} : vector<8x128xf32> to vector<2x128xf32>
    %275 = arith.addf %271, %274 : vector<2x128xf32>
    %cst_127 = arith.constant 1.000000e-01 : f32
    %276 = vector.broadcast %cst_127 : f32 to vector<2x128xf32>
    %277 = arith.mulf %276, %275 : vector<2x128xf32>
    %278 = arith.maximumf %275, %277 : vector<2x128xf32>
    %c39 = arith.constant 39 : index
    %c0_128 = arith.constant 0 : index
    %c0_129 = arith.constant 0 : index
    %279 = vector.load %arg2[%c39, %c0_128, %c0_129] : memref<424x8x128xf32, #tpu.memory_space<vmem>>, vector<1x8x128xf32>
    %280 = vector.shape_cast %279 : vector<1x8x128xf32> to vector<8x128xf32>
    %281 = vector.extract_strided_slice %280 {offsets = [0, 0], sizes = [2, 128], strides = [1, 1]} : vector<8x128xf32> to vector<2x128xf32>
    %282 = arith.mulf %281, %1 : vector<2x128xf32>
    %c40 = arith.constant 40 : index
    %c0_130 = arith.constant 0 : index
    %c0_131 = arith.constant 0 : index
    %283 = vector.load %arg2[%c40, %c0_130, %c0_131] : memref<424x8x128xf32, #tpu.memory_space<vmem>>, vector<1x8x128xf32>
    %284 = vector.shape_cast %283 : vector<1x8x128xf32> to vector<8x128xf32>
    %285 = vector.extract_strided_slice %284 {offsets = [0, 0], sizes = [2, 128], strides = [1, 1]} : vector<8x128xf32> to vector<2x128xf32>
    %286 = arith.mulf %285, %3 : vector<2x128xf32>
    %287 = arith.addf %282, %286 : vector<2x128xf32>
    %c41 = arith.constant 41 : index
    %c0_132 = arith.constant 0 : index
    %c0_133 = arith.constant 0 : index
    %288 = vector.load %arg2[%c41, %c0_132, %c0_133] : memref<424x8x128xf32, #tpu.memory_space<vmem>>, vector<1x8x128xf32>
    %289 = vector.shape_cast %288 : vector<1x8x128xf32> to vector<8x128xf32>
    %290 = vector.extract_strided_slice %289 {offsets = [0, 0], sizes = [2, 128], strides = [1, 1]} : vector<8x128xf32> to vector<2x128xf32>
    %291 = arith.mulf %290, %5 : vector<2x128xf32>
    %292 = arith.addf %287, %291 : vector<2x128xf32>
    %c61 = arith.constant 61 : index
    %c0_134 = arith.constant 0 : index
    %c0_135 = arith.constant 0 : index
    %293 = vector.load %arg2[%c61, %c0_134, %c0_135] : memref<424x8x128xf32, #tpu.memory_space<vmem>>, vector<1x8x128xf32>
    %294 = vector.shape_cast %293 : vector<1x8x128xf32> to vector<8x128xf32>
    %295 = vector.extract_strided_slice %294 {offsets = [0, 0], sizes = [2, 128], strides = [1, 1]} : vector<8x128xf32> to vector<2x128xf32>
    %296 = arith.addf %292, %295 : vector<2x128xf32>
    %cst_136 = arith.constant 1.000000e-01 : f32
    %297 = vector.broadcast %cst_136 : f32 to vector<2x128xf32>
    %298 = arith.mulf %297, %296 : vector<2x128xf32>
    %299 = arith.maximumf %296, %298 : vector<2x128xf32>
    %c42 = arith.constant 42 : index
    %c0_137 = arith.constant 0 : index
    %c0_138 = arith.constant 0 : index
    %300 = vector.load %arg2[%c42, %c0_137, %c0_138] : memref<424x8x128xf32, #tpu.memory_space<vmem>>, vector<1x8x128xf32>
    %301 = vector.shape_cast %300 : vector<1x8x128xf32> to vector<8x128xf32>
    %302 = vector.extract_strided_slice %301 {offsets = [0, 0], sizes = [2, 128], strides = [1, 1]} : vector<8x128xf32> to vector<2x128xf32>
    %303 = arith.mulf %302, %1 : vector<2x128xf32>
    %c43 = arith.constant 43 : index
    %c0_139 = arith.constant 0 : index
    %c0_140 = arith.constant 0 : index
    %304 = vector.load %arg2[%c43, %c0_139, %c0_140] : memref<424x8x128xf32, #tpu.memory_space<vmem>>, vector<1x8x128xf32>
    %305 = vector.shape_cast %304 : vector<1x8x128xf32> to vector<8x128xf32>
    %306 = vector.extract_strided_slice %305 {offsets = [0, 0], sizes = [2, 128], strides = [1, 1]} : vector<8x128xf32> to vector<2x128xf32>
    %307 = arith.mulf %306, %3 : vector<2x128xf32>
    %308 = arith.addf %303, %307 : vector<2x128xf32>
    %c44 = arith.constant 44 : index
    %c0_141 = arith.constant 0 : index
    %c0_142 = arith.constant 0 : index
    %309 = vector.load %arg2[%c44, %c0_141, %c0_142] : memref<424x8x128xf32, #tpu.memory_space<vmem>>, vector<1x8x128xf32>
    %310 = vector.shape_cast %309 : vector<1x8x128xf32> to vector<8x128xf32>
    %311 = vector.extract_strided_slice %310 {offsets = [0, 0], sizes = [2, 128], strides = [1, 1]} : vector<8x128xf32> to vector<2x128xf32>
    %312 = arith.mulf %311, %5 : vector<2x128xf32>
    %313 = arith.addf %308, %312 : vector<2x128xf32>
    %c62 = arith.constant 62 : index
    %c0_143 = arith.constant 0 : index
    %c0_144 = arith.constant 0 : index
    %314 = vector.load %arg2[%c62, %c0_143, %c0_144] : memref<424x8x128xf32, #tpu.memory_space<vmem>>, vector<1x8x128xf32>
    %315 = vector.shape_cast %314 : vector<1x8x128xf32> to vector<8x128xf32>
    %316 = vector.extract_strided_slice %315 {offsets = [0, 0], sizes = [2, 128], strides = [1, 1]} : vector<8x128xf32> to vector<2x128xf32>
    %317 = arith.addf %313, %316 : vector<2x128xf32>
    %cst_145 = arith.constant 1.000000e-01 : f32
    %318 = vector.broadcast %cst_145 : f32 to vector<2x128xf32>
    %319 = arith.mulf %318, %317 : vector<2x128xf32>
    %320 = arith.maximumf %317, %319 : vector<2x128xf32>
    %c45 = arith.constant 45 : index
    %c0_146 = arith.constant 0 : index
    %c0_147 = arith.constant 0 : index
    %321 = vector.load %arg2[%c45, %c0_146, %c0_147] : memref<424x8x128xf32, #tpu.memory_space<vmem>>, vector<1x8x128xf32>
    %322 = vector.shape_cast %321 : vector<1x8x128xf32> to vector<8x128xf32>
    %323 = vector.extract_strided_slice %322 {offsets = [0, 0], sizes = [2, 128], strides = [1, 1]} : vector<8x128xf32> to vector<2x128xf32>
    %324 = arith.mulf %323, %1 : vector<2x128xf32>
    %c46 = arith.constant 46 : index
    %c0_148 = arith.constant 0 : index
    %c0_149 = arith.constant 0 : index
    %325 = vector.load %arg2[%c46, %c0_148, %c0_149] : memref<424x8x128xf32, #tpu.memory_space<vmem>>, vector<1x8x128xf32>
    %326 = vector.shape_cast %325 : vector<1x8x128xf32> to vector<8x128xf32>
    %327 = vector.extract_strided_slice %326 {offsets = [0, 0], sizes = [2, 128], strides = [1, 1]} : vector<8x128xf32> to vector<2x128xf32>
    %328 = arith.mulf %327, %3 : vector<2x128xf32>
    %329 = arith.addf %324, %328 : vector<2x128xf32>
    %c47 = arith.constant 47 : index
    %c0_150 = arith.constant 0 : index
    %c0_151 = arith.constant 0 : index
    %330 = vector.load %arg2[%c47, %c0_150, %c0_151] : memref<424x8x128xf32, #tpu.memory_space<vmem>>, vector<1x8x128xf32>
    %331 = vector.shape_cast %330 : vector<1x8x128xf32> to vector<8x128xf32>
    %332 = vector.extract_strided_slice %331 {offsets = [0, 0], sizes = [2, 128], strides = [1, 1]} : vector<8x128xf32> to vector<2x128xf32>
    %333 = arith.mulf %332, %5 : vector<2x128xf32>
    %334 = arith.addf %329, %333 : vector<2x128xf32>
    %c63 = arith.constant 63 : index
    %c0_152 = arith.constant 0 : index
    %c0_153 = arith.constant 0 : index
    %335 = vector.load %arg2[%c63, %c0_152, %c0_153] : memref<424x8x128xf32, #tpu.memory_space<vmem>>, vector<1x8x128xf32>
    %336 = vector.shape_cast %335 : vector<1x8x128xf32> to vector<8x128xf32>
    %337 = vector.extract_strided_slice %336 {offsets = [0, 0], sizes = [2, 128], strides = [1, 1]} : vector<8x128xf32> to vector<2x128xf32>
    %338 = arith.addf %334, %337 : vector<2x128xf32>
    %cst_154 = arith.constant 1.000000e-01 : f32
    %339 = vector.broadcast %cst_154 : f32 to vector<2x128xf32>
    %340 = arith.mulf %339, %338 : vector<2x128xf32>
    %341 = arith.maximumf %338, %340 : vector<2x128xf32>
    %c64 = arith.constant 64 : index
    %c0_155 = arith.constant 0 : index
    %c0_156 = arith.constant 0 : index
    %342 = vector.load %arg2[%c64, %c0_155, %c0_156] : memref<424x8x128xf32, #tpu.memory_space<vmem>>, vector<1x8x128xf32>
    %343 = vector.shape_cast %342 : vector<1x8x128xf32> to vector<8x128xf32>
    %344 = vector.extract_strided_slice %343 {offsets = [0, 0], sizes = [2, 128], strides = [1, 1]} : vector<8x128xf32> to vector<2x128xf32>
    %345 = arith.mulf %344, %26 : vector<2x128xf32>
    %c65 = arith.constant 65 : index
    %c0_157 = arith.constant 0 : index
    %c0_158 = arith.constant 0 : index
    %346 = vector.load %arg2[%c65, %c0_157, %c0_158] : memref<424x8x128xf32, #tpu.memory_space<vmem>>, vector<1x8x128xf32>
    %347 = vector.shape_cast %346 : vector<1x8x128xf32> to vector<8x128xf32>
    %348 = vector.extract_strided_slice %347 {offsets = [0, 0], sizes = [2, 128], strides = [1, 1]} : vector<8x128xf32> to vector<2x128xf32>
    %349 = arith.mulf %348, %47 : vector<2x128xf32>
    %350 = arith.addf %345, %349 : vector<2x128xf32>
    %c66 = arith.constant 66 : index
    %c0_159 = arith.constant 0 : index
    %c0_160 = arith.constant 0 : index
    %351 = vector.load %arg2[%c66, %c0_159, %c0_160] : memref<424x8x128xf32, #tpu.memory_space<vmem>>, vector<1x8x128xf32>
    %352 = vector.shape_cast %351 : vector<1x8x128xf32> to vector<8x128xf32>
    %353 = vector.extract_strided_slice %352 {offsets = [0, 0], sizes = [2, 128], strides = [1, 1]} : vector<8x128xf32> to vector<2x128xf32>
    %354 = arith.mulf %353, %68 : vector<2x128xf32>
    %355 = arith.addf %350, %354 : vector<2x128xf32>
    %c67 = arith.constant 67 : index
    %c0_161 = arith.constant 0 : index
    %c0_162 = arith.constant 0 : index
    %356 = vector.load %arg2[%c67, %c0_161, %c0_162] : memref<424x8x128xf32, #tpu.memory_space<vmem>>, vector<1x8x128xf32>
    %357 = vector.shape_cast %356 : vector<1x8x128xf32> to vector<8x128xf32>
    %358 = vector.extract_strided_slice %357 {offsets = [0, 0], sizes = [2, 128], strides = [1, 1]} : vector<8x128xf32> to vector<2x128xf32>
    %359 = arith.mulf %358, %89 : vector<2x128xf32>
    %360 = arith.addf %355, %359 : vector<2x128xf32>
    %c68 = arith.constant 68 : index
    %c0_163 = arith.constant 0 : index
    %c0_164 = arith.constant 0 : index
    %361 = vector.load %arg2[%c68, %c0_163, %c0_164] : memref<424x8x128xf32, #tpu.memory_space<vmem>>, vector<1x8x128xf32>
    %362 = vector.shape_cast %361 : vector<1x8x128xf32> to vector<8x128xf32>
    %363 = vector.extract_strided_slice %362 {offsets = [0, 0], sizes = [2, 128], strides = [1, 1]} : vector<8x128xf32> to vector<2x128xf32>
    %364 = arith.mulf %363, %110 : vector<2x128xf32>
    %365 = arith.addf %360, %364 : vector<2x128xf32>
    %c69 = arith.constant 69 : index
    %c0_165 = arith.constant 0 : index
    %c0_166 = arith.constant 0 : index
    %366 = vector.load %arg2[%c69, %c0_165, %c0_166] : memref<424x8x128xf32, #tpu.memory_space<vmem>>, vector<1x8x128xf32>
    %367 = vector.shape_cast %366 : vector<1x8x128xf32> to vector<8x128xf32>
    %368 = vector.extract_strided_slice %367 {offsets = [0, 0], sizes = [2, 128], strides = [1, 1]} : vector<8x128xf32> to vector<2x128xf32>
    %369 = arith.mulf %368, %131 : vector<2x128xf32>
    %370 = arith.addf %365, %369 : vector<2x128xf32>
    %c70 = arith.constant 70 : index
    %c0_167 = arith.constant 0 : index
    %c0_168 = arith.constant 0 : index
    %371 = vector.load %arg2[%c70, %c0_167, %c0_168] : memref<424x8x128xf32, #tpu.memory_space<vmem>>, vector<1x8x128xf32>
    %372 = vector.shape_cast %371 : vector<1x8x128xf32> to vector<8x128xf32>
    %373 = vector.extract_strided_slice %372 {offsets = [0, 0], sizes = [2, 128], strides = [1, 1]} : vector<8x128xf32> to vector<2x128xf32>
    %374 = arith.mulf %373, %152 : vector<2x128xf32>
    %375 = arith.addf %370, %374 : vector<2x128xf32>
    %c71 = arith.constant 71 : index
    %c0_169 = arith.constant 0 : index
    %c0_170 = arith.constant 0 : index
    %376 = vector.load %arg2[%c71, %c0_169, %c0_170] : memref<424x8x128xf32, #tpu.memory_space<vmem>>, vector<1x8x128xf32>
    %377 = vector.shape_cast %376 : vector<1x8x128xf32> to vector<8x128xf32>
    %378 = vector.extract_strided_slice %377 {offsets = [0, 0], sizes = [2, 128], strides = [1, 1]} : vector<8x128xf32> to vector<2x128xf32>
    %379 = arith.mulf %378, %173 : vector<2x128xf32>
    %380 = arith.addf %375, %379 : vector<2x128xf32>
    %c72 = arith.constant 72 : index
    %c0_171 = arith.constant 0 : index
    %c0_172 = arith.constant 0 : index
    %381 = vector.load %arg2[%c72, %c0_171, %c0_172] : memref<424x8x128xf32, #tpu.memory_space<vmem>>, vector<1x8x128xf32>
    %382 = vector.shape_cast %381 : vector<1x8x128xf32> to vector<8x128xf32>
    %383 = vector.extract_strided_slice %382 {offsets = [0, 0], sizes = [2, 128], strides = [1, 1]} : vector<8x128xf32> to vector<2x128xf32>
    %384 = arith.mulf %383, %194 : vector<2x128xf32>
    %385 = arith.addf %380, %384 : vector<2x128xf32>
    %c73 = arith.constant 73 : index
    %c0_173 = arith.constant 0 : index
    %c0_174 = arith.constant 0 : index
    %386 = vector.load %arg2[%c73, %c0_173, %c0_174] : memref<424x8x128xf32, #tpu.memory_space<vmem>>, vector<1x8x128xf32>
    %387 = vector.shape_cast %386 : vector<1x8x128xf32> to vector<8x128xf32>
    %388 = vector.extract_strided_slice %387 {offsets = [0, 0], sizes = [2, 128], strides = [1, 1]} : vector<8x128xf32> to vector<2x128xf32>
    %389 = arith.mulf %388, %215 : vector<2x128xf32>
    %390 = arith.addf %385, %389 : vector<2x128xf32>
    %c74 = arith.constant 74 : index
    %c0_175 = arith.constant 0 : index
    %c0_176 = arith.constant 0 : index
    %391 = vector.load %arg2[%c74, %c0_175, %c0_176] : memref<424x8x128xf32, #tpu.memory_space<vmem>>, vector<1x8x128xf32>
    %392 = vector.shape_cast %391 : vector<1x8x128xf32> to vector<8x128xf32>
    %393 = vector.extract_strided_slice %392 {offsets = [0, 0], sizes = [2, 128], strides = [1, 1]} : vector<8x128xf32> to vector<2x128xf32>
    %394 = arith.mulf %393, %236 : vector<2x128xf32>
    %395 = arith.addf %390, %394 : vector<2x128xf32>
    %c75 = arith.constant 75 : index
    %c0_177 = arith.constant 0 : index
    %c0_178 = arith.constant 0 : index
    %396 = vector.load %arg2[%c75, %c0_177, %c0_178] : memref<424x8x128xf32, #tpu.memory_space<vmem>>, vector<1x8x128xf32>
    %397 = vector.shape_cast %396 : vector<1x8x128xf32> to vector<8x128xf32>
    %398 = vector.extract_strided_slice %397 {offsets = [0, 0], sizes = [2, 128], strides = [1, 1]} : vector<8x128xf32> to vector<2x128xf32>
    %399 = arith.mulf %398, %257 : vector<2x128xf32>
    %400 = arith.addf %395, %399 : vector<2x128xf32>
    %c76 = arith.constant 76 : index
    %c0_179 = arith.constant 0 : index
    %c0_180 = arith.constant 0 : index
    %401 = vector.load %arg2[%c76, %c0_179, %c0_180] : memref<424x8x128xf32, #tpu.memory_space<vmem>>, vector<1x8x128xf32>
    %402 = vector.shape_cast %401 : vector<1x8x128xf32> to vector<8x128xf32>
    %403 = vector.extract_strided_slice %402 {offsets = [0, 0], sizes = [2, 128], strides = [1, 1]} : vector<8x128xf32> to vector<2x128xf32>
    %404 = arith.mulf %403, %278 : vector<2x128xf32>
    %405 = arith.addf %400, %404 : vector<2x128xf32>
    %c77 = arith.constant 77 : index
    %c0_181 = arith.constant 0 : index
    %c0_182 = arith.constant 0 : index
    %406 = vector.load %arg2[%c77, %c0_181, %c0_182] : memref<424x8x128xf32, #tpu.memory_space<vmem>>, vector<1x8x128xf32>
    %407 = vector.shape_cast %406 : vector<1x8x128xf32> to vector<8x128xf32>
    %408 = vector.extract_strided_slice %407 {offsets = [0, 0], sizes = [2, 128], strides = [1, 1]} : vector<8x128xf32> to vector<2x128xf32>
    %409 = arith.mulf %408, %299 : vector<2x128xf32>
    %410 = arith.addf %405, %409 : vector<2x128xf32>
    %c78 = arith.constant 78 : index
    %c0_183 = arith.constant 0 : index
    %c0_184 = arith.constant 0 : index
    %411 = vector.load %arg2[%c78, %c0_183, %c0_184] : memref<424x8x128xf32, #tpu.memory_space<vmem>>, vector<1x8x128xf32>
    %412 = vector.shape_cast %411 : vector<1x8x128xf32> to vector<8x128xf32>
    %413 = vector.extract_strided_slice %412 {offsets = [0, 0], sizes = [2, 128], strides = [1, 1]} : vector<8x128xf32> to vector<2x128xf32>
    %414 = arith.mulf %413, %320 : vector<2x128xf32>
    %415 = arith.addf %410, %414 : vector<2x128xf32>
    %c79 = arith.constant 79 : index
    %c0_185 = arith.constant 0 : index
    %c0_186 = arith.constant 0 : index
    %416 = vector.load %arg2[%c79, %c0_185, %c0_186] : memref<424x8x128xf32, #tpu.memory_space<vmem>>, vector<1x8x128xf32>
    %417 = vector.shape_cast %416 : vector<1x8x128xf32> to vector<8x128xf32>
    %418 = vector.extract_strided_slice %417 {offsets = [0, 0], sizes = [2, 128], strides = [1, 1]} : vector<8x128xf32> to vector<2x128xf32>
    %419 = arith.mulf %418, %341 : vector<2x128xf32>
    %420 = arith.addf %415, %419 : vector<2x128xf32>
    %c320 = arith.constant 320 : index
    %c0_187 = arith.constant 0 : index
    %c0_188 = arith.constant 0 : index
    %421 = vector.load %arg2[%c320, %c0_187, %c0_188] : memref<424x8x128xf32, #tpu.memory_space<vmem>>, vector<1x8x128xf32>
    %422 = vector.shape_cast %421 : vector<1x8x128xf32> to vector<8x128xf32>
    %423 = vector.extract_strided_slice %422 {offsets = [0, 0], sizes = [2, 128], strides = [1, 1]} : vector<8x128xf32> to vector<2x128xf32>
    %424 = arith.addf %420, %423 : vector<2x128xf32>
    %cst_189 = arith.constant 1.000000e-01 : f32
    %425 = vector.broadcast %cst_189 : f32 to vector<2x128xf32>
    %426 = arith.mulf %425, %424 : vector<2x128xf32>
    %427 = arith.maximumf %424, %426 : vector<2x128xf32>
    %c80 = arith.constant 80 : index
    %c0_190 = arith.constant 0 : index
    %c0_191 = arith.constant 0 : index
    %428 = vector.load %arg2[%c80, %c0_190, %c0_191] : memref<424x8x128xf32, #tpu.memory_space<vmem>>, vector<1x8x128xf32>
    %429 = vector.shape_cast %428 : vector<1x8x128xf32> to vector<8x128xf32>
    %430 = vector.extract_strided_slice %429 {offsets = [0, 0], sizes = [2, 128], strides = [1, 1]} : vector<8x128xf32> to vector<2x128xf32>
    %431 = arith.mulf %430, %26 : vector<2x128xf32>
    %c81 = arith.constant 81 : index
    %c0_192 = arith.constant 0 : index
    %c0_193 = arith.constant 0 : index
    %432 = vector.load %arg2[%c81, %c0_192, %c0_193] : memref<424x8x128xf32, #tpu.memory_space<vmem>>, vector<1x8x128xf32>
    %433 = vector.shape_cast %432 : vector<1x8x128xf32> to vector<8x128xf32>
    %434 = vector.extract_strided_slice %433 {offsets = [0, 0], sizes = [2, 128], strides = [1, 1]} : vector<8x128xf32> to vector<2x128xf32>
    %435 = arith.mulf %434, %47 : vector<2x128xf32>
    %436 = arith.addf %431, %435 : vector<2x128xf32>
    %c82 = arith.constant 82 : index
    %c0_194 = arith.constant 0 : index
    %c0_195 = arith.constant 0 : index
    %437 = vector.load %arg2[%c82, %c0_194, %c0_195] : memref<424x8x128xf32, #tpu.memory_space<vmem>>, vector<1x8x128xf32>
    %438 = vector.shape_cast %437 : vector<1x8x128xf32> to vector<8x128xf32>
    %439 = vector.extract_strided_slice %438 {offsets = [0, 0], sizes = [2, 128], strides = [1, 1]} : vector<8x128xf32> to vector<2x128xf32>
    %440 = arith.mulf %439, %68 : vector<2x128xf32>
    %441 = arith.addf %436, %440 : vector<2x128xf32>
    %c83 = arith.constant 83 : index
    %c0_196 = arith.constant 0 : index
    %c0_197 = arith.constant 0 : index
    %442 = vector.load %arg2[%c83, %c0_196, %c0_197] : memref<424x8x128xf32, #tpu.memory_space<vmem>>, vector<1x8x128xf32>
    %443 = vector.shape_cast %442 : vector<1x8x128xf32> to vector<8x128xf32>
    %444 = vector.extract_strided_slice %443 {offsets = [0, 0], sizes = [2, 128], strides = [1, 1]} : vector<8x128xf32> to vector<2x128xf32>
    %445 = arith.mulf %444, %89 : vector<2x128xf32>
    %446 = arith.addf %441, %445 : vector<2x128xf32>
    %c84 = arith.constant 84 : index
    %c0_198 = arith.constant 0 : index
    %c0_199 = arith.constant 0 : index
    %447 = vector.load %arg2[%c84, %c0_198, %c0_199] : memref<424x8x128xf32, #tpu.memory_space<vmem>>, vector<1x8x128xf32>
    %448 = vector.shape_cast %447 : vector<1x8x128xf32> to vector<8x128xf32>
    %449 = vector.extract_strided_slice %448 {offsets = [0, 0], sizes = [2, 128], strides = [1, 1]} : vector<8x128xf32> to vector<2x128xf32>
    %450 = arith.mulf %449, %110 : vector<2x128xf32>
    %451 = arith.addf %446, %450 : vector<2x128xf32>
    %c85 = arith.constant 85 : index
    %c0_200 = arith.constant 0 : index
    %c0_201 = arith.constant 0 : index
    %452 = vector.load %arg2[%c85, %c0_200, %c0_201] : memref<424x8x128xf32, #tpu.memory_space<vmem>>, vector<1x8x128xf32>
    %453 = vector.shape_cast %452 : vector<1x8x128xf32> to vector<8x128xf32>
    %454 = vector.extract_strided_slice %453 {offsets = [0, 0], sizes = [2, 128], strides = [1, 1]} : vector<8x128xf32> to vector<2x128xf32>
    %455 = arith.mulf %454, %131 : vector<2x128xf32>
    %456 = arith.addf %451, %455 : vector<2x128xf32>
    %c86 = arith.constant 86 : index
    %c0_202 = arith.constant 0 : index
    %c0_203 = arith.constant 0 : index
    %457 = vector.load %arg2[%c86, %c0_202, %c0_203] : memref<424x8x128xf32, #tpu.memory_space<vmem>>, vector<1x8x128xf32>
    %458 = vector.shape_cast %457 : vector<1x8x128xf32> to vector<8x128xf32>
    %459 = vector.extract_strided_slice %458 {offsets = [0, 0], sizes = [2, 128], strides = [1, 1]} : vector<8x128xf32> to vector<2x128xf32>
    %460 = arith.mulf %459, %152 : vector<2x128xf32>
    %461 = arith.addf %456, %460 : vector<2x128xf32>
    %c87 = arith.constant 87 : index
    %c0_204 = arith.constant 0 : index
    %c0_205 = arith.constant 0 : index
    %462 = vector.load %arg2[%c87, %c0_204, %c0_205] : memref<424x8x128xf32, #tpu.memory_space<vmem>>, vector<1x8x128xf32>
    %463 = vector.shape_cast %462 : vector<1x8x128xf32> to vector<8x128xf32>
    %464 = vector.extract_strided_slice %463 {offsets = [0, 0], sizes = [2, 128], strides = [1, 1]} : vector<8x128xf32> to vector<2x128xf32>
    %465 = arith.mulf %464, %173 : vector<2x128xf32>
    %466 = arith.addf %461, %465 : vector<2x128xf32>
    %c88 = arith.constant 88 : index
    %c0_206 = arith.constant 0 : index
    %c0_207 = arith.constant 0 : index
    %467 = vector.load %arg2[%c88, %c0_206, %c0_207] : memref<424x8x128xf32, #tpu.memory_space<vmem>>, vector<1x8x128xf32>
    %468 = vector.shape_cast %467 : vector<1x8x128xf32> to vector<8x128xf32>
    %469 = vector.extract_strided_slice %468 {offsets = [0, 0], sizes = [2, 128], strides = [1, 1]} : vector<8x128xf32> to vector<2x128xf32>
    %470 = arith.mulf %469, %194 : vector<2x128xf32>
    %471 = arith.addf %466, %470 : vector<2x128xf32>
    %c89 = arith.constant 89 : index
    %c0_208 = arith.constant 0 : index
    %c0_209 = arith.constant 0 : index
    %472 = vector.load %arg2[%c89, %c0_208, %c0_209] : memref<424x8x128xf32, #tpu.memory_space<vmem>>, vector<1x8x128xf32>
    %473 = vector.shape_cast %472 : vector<1x8x128xf32> to vector<8x128xf32>
    %474 = vector.extract_strided_slice %473 {offsets = [0, 0], sizes = [2, 128], strides = [1, 1]} : vector<8x128xf32> to vector<2x128xf32>
    %475 = arith.mulf %474, %215 : vector<2x128xf32>
    %476 = arith.addf %471, %475 : vector<2x128xf32>
    %c90 = arith.constant 90 : index
    %c0_210 = arith.constant 0 : index
    %c0_211 = arith.constant 0 : index
    %477 = vector.load %arg2[%c90, %c0_210, %c0_211] : memref<424x8x128xf32, #tpu.memory_space<vmem>>, vector<1x8x128xf32>
    %478 = vector.shape_cast %477 : vector<1x8x128xf32> to vector<8x128xf32>
    %479 = vector.extract_strided_slice %478 {offsets = [0, 0], sizes = [2, 128], strides = [1, 1]} : vector<8x128xf32> to vector<2x128xf32>
    %480 = arith.mulf %479, %236 : vector<2x128xf32>
    %481 = arith.addf %476, %480 : vector<2x128xf32>
    %c91 = arith.constant 91 : index
    %c0_212 = arith.constant 0 : index
    %c0_213 = arith.constant 0 : index
    %482 = vector.load %arg2[%c91, %c0_212, %c0_213] : memref<424x8x128xf32, #tpu.memory_space<vmem>>, vector<1x8x128xf32>
    %483 = vector.shape_cast %482 : vector<1x8x128xf32> to vector<8x128xf32>
    %484 = vector.extract_strided_slice %483 {offsets = [0, 0], sizes = [2, 128], strides = [1, 1]} : vector<8x128xf32> to vector<2x128xf32>
    %485 = arith.mulf %484, %257 : vector<2x128xf32>
    %486 = arith.addf %481, %485 : vector<2x128xf32>
    %c92 = arith.constant 92 : index
    %c0_214 = arith.constant 0 : index
    %c0_215 = arith.constant 0 : index
    %487 = vector.load %arg2[%c92, %c0_214, %c0_215] : memref<424x8x128xf32, #tpu.memory_space<vmem>>, vector<1x8x128xf32>
    %488 = vector.shape_cast %487 : vector<1x8x128xf32> to vector<8x128xf32>
    %489 = vector.extract_strided_slice %488 {offsets = [0, 0], sizes = [2, 128], strides = [1, 1]} : vector<8x128xf32> to vector<2x128xf32>
    %490 = arith.mulf %489, %278 : vector<2x128xf32>
    %491 = arith.addf %486, %490 : vector<2x128xf32>
    %c93 = arith.constant 93 : index
    %c0_216 = arith.constant 0 : index
    %c0_217 = arith.constant 0 : index
    %492 = vector.load %arg2[%c93, %c0_216, %c0_217] : memref<424x8x128xf32, #tpu.memory_space<vmem>>, vector<1x8x128xf32>
    %493 = vector.shape_cast %492 : vector<1x8x128xf32> to vector<8x128xf32>
    %494 = vector.extract_strided_slice %493 {offsets = [0, 0], sizes = [2, 128], strides = [1, 1]} : vector<8x128xf32> to vector<2x128xf32>
    %495 = arith.mulf %494, %299 : vector<2x128xf32>
    %496 = arith.addf %491, %495 : vector<2x128xf32>
    %c94 = arith.constant 94 : index
    %c0_218 = arith.constant 0 : index
    %c0_219 = arith.constant 0 : index
    %497 = vector.load %arg2[%c94, %c0_218, %c0_219] : memref<424x8x128xf32, #tpu.memory_space<vmem>>, vector<1x8x128xf32>
    %498 = vector.shape_cast %497 : vector<1x8x128xf32> to vector<8x128xf32>
    %499 = vector.extract_strided_slice %498 {offsets = [0, 0], sizes = [2, 128], strides = [1, 1]} : vector<8x128xf32> to vector<2x128xf32>
    %500 = arith.mulf %499, %320 : vector<2x128xf32>
    %501 = arith.addf %496, %500 : vector<2x128xf32>
    %c95 = arith.constant 95 : index
    %c0_220 = arith.constant 0 : index
    %c0_221 = arith.constant 0 : index
    %502 = vector.load %arg2[%c95, %c0_220, %c0_221] : memref<424x8x128xf32, #tpu.memory_space<vmem>>, vector<1x8x128xf32>
    %503 = vector.shape_cast %502 : vector<1x8x128xf32> to vector<8x128xf32>
    %504 = vector.extract_strided_slice %503 {offsets = [0, 0], sizes = [2, 128], strides = [1, 1]} : vector<8x128xf32> to vector<2x128xf32>
    %505 = arith.mulf %504, %341 : vector<2x128xf32>
    %506 = arith.addf %501, %505 : vector<2x128xf32>
    %c321 = arith.constant 321 : index
    %c0_222 = arith.constant 0 : index
    %c0_223 = arith.constant 0 : index
    %507 = vector.load %arg2[%c321, %c0_222, %c0_223] : memref<424x8x128xf32, #tpu.memory_space<vmem>>, vector<1x8x128xf32>
    %508 = vector.shape_cast %507 : vector<1x8x128xf32> to vector<8x128xf32>
    %509 = vector.extract_strided_slice %508 {offsets = [0, 0], sizes = [2, 128], strides = [1, 1]} : vector<8x128xf32> to vector<2x128xf32>
    %510 = arith.addf %506, %509 : vector<2x128xf32>
    %cst_224 = arith.constant 1.000000e-01 : f32
    %511 = vector.broadcast %cst_224 : f32 to vector<2x128xf32>
    %512 = arith.mulf %511, %510 : vector<2x128xf32>
    %513 = arith.maximumf %510, %512 : vector<2x128xf32>
    %c96 = arith.constant 96 : index
    %c0_225 = arith.constant 0 : index
    %c0_226 = arith.constant 0 : index
    %514 = vector.load %arg2[%c96, %c0_225, %c0_226] : memref<424x8x128xf32, #tpu.memory_space<vmem>>, vector<1x8x128xf32>
    %515 = vector.shape_cast %514 : vector<1x8x128xf32> to vector<8x128xf32>
    %516 = vector.extract_strided_slice %515 {offsets = [0, 0], sizes = [2, 128], strides = [1, 1]} : vector<8x128xf32> to vector<2x128xf32>
    %517 = arith.mulf %516, %26 : vector<2x128xf32>
    %c97 = arith.constant 97 : index
    %c0_227 = arith.constant 0 : index
    %c0_228 = arith.constant 0 : index
    %518 = vector.load %arg2[%c97, %c0_227, %c0_228] : memref<424x8x128xf32, #tpu.memory_space<vmem>>, vector<1x8x128xf32>
    %519 = vector.shape_cast %518 : vector<1x8x128xf32> to vector<8x128xf32>
    %520 = vector.extract_strided_slice %519 {offsets = [0, 0], sizes = [2, 128], strides = [1, 1]} : vector<8x128xf32> to vector<2x128xf32>
    %521 = arith.mulf %520, %47 : vector<2x128xf32>
    %522 = arith.addf %517, %521 : vector<2x128xf32>
    %c98 = arith.constant 98 : index
    %c0_229 = arith.constant 0 : index
    %c0_230 = arith.constant 0 : index
    %523 = vector.load %arg2[%c98, %c0_229, %c0_230] : memref<424x8x128xf32, #tpu.memory_space<vmem>>, vector<1x8x128xf32>
    %524 = vector.shape_cast %523 : vector<1x8x128xf32> to vector<8x128xf32>
    %525 = vector.extract_strided_slice %524 {offsets = [0, 0], sizes = [2, 128], strides = [1, 1]} : vector<8x128xf32> to vector<2x128xf32>
    %526 = arith.mulf %525, %68 : vector<2x128xf32>
    %527 = arith.addf %522, %526 : vector<2x128xf32>
    %c99 = arith.constant 99 : index
    %c0_231 = arith.constant 0 : index
    %c0_232 = arith.constant 0 : index
    %528 = vector.load %arg2[%c99, %c0_231, %c0_232] : memref<424x8x128xf32, #tpu.memory_space<vmem>>, vector<1x8x128xf32>
    %529 = vector.shape_cast %528 : vector<1x8x128xf32> to vector<8x128xf32>
    %530 = vector.extract_strided_slice %529 {offsets = [0, 0], sizes = [2, 128], strides = [1, 1]} : vector<8x128xf32> to vector<2x128xf32>
    %531 = arith.mulf %530, %89 : vector<2x128xf32>
    %532 = arith.addf %527, %531 : vector<2x128xf32>
    %c100 = arith.constant 100 : index
    %c0_233 = arith.constant 0 : index
    %c0_234 = arith.constant 0 : index
    %533 = vector.load %arg2[%c100, %c0_233, %c0_234] : memref<424x8x128xf32, #tpu.memory_space<vmem>>, vector<1x8x128xf32>
    %534 = vector.shape_cast %533 : vector<1x8x128xf32> to vector<8x128xf32>
    %535 = vector.extract_strided_slice %534 {offsets = [0, 0], sizes = [2, 128], strides = [1, 1]} : vector<8x128xf32> to vector<2x128xf32>
    %536 = arith.mulf %535, %110 : vector<2x128xf32>
    %537 = arith.addf %532, %536 : vector<2x128xf32>
    %c101 = arith.constant 101 : index
    %c0_235 = arith.constant 0 : index
    %c0_236 = arith.constant 0 : index
    %538 = vector.load %arg2[%c101, %c0_235, %c0_236] : memref<424x8x128xf32, #tpu.memory_space<vmem>>, vector<1x8x128xf32>
    %539 = vector.shape_cast %538 : vector<1x8x128xf32> to vector<8x128xf32>
    %540 = vector.extract_strided_slice %539 {offsets = [0, 0], sizes = [2, 128], strides = [1, 1]} : vector<8x128xf32> to vector<2x128xf32>
    %541 = arith.mulf %540, %131 : vector<2x128xf32>
    %542 = arith.addf %537, %541 : vector<2x128xf32>
    %c102 = arith.constant 102 : index
    %c0_237 = arith.constant 0 : index
    %c0_238 = arith.constant 0 : index
    %543 = vector.load %arg2[%c102, %c0_237, %c0_238] : memref<424x8x128xf32, #tpu.memory_space<vmem>>, vector<1x8x128xf32>
    %544 = vector.shape_cast %543 : vector<1x8x128xf32> to vector<8x128xf32>
    %545 = vector.extract_strided_slice %544 {offsets = [0, 0], sizes = [2, 128], strides = [1, 1]} : vector<8x128xf32> to vector<2x128xf32>
    %546 = arith.mulf %545, %152 : vector<2x128xf32>
    %547 = arith.addf %542, %546 : vector<2x128xf32>
    %c103 = arith.constant 103 : index
    %c0_239 = arith.constant 0 : index
    %c0_240 = arith.constant 0 : index
    %548 = vector.load %arg2[%c103, %c0_239, %c0_240] : memref<424x8x128xf32, #tpu.memory_space<vmem>>, vector<1x8x128xf32>
    %549 = vector.shape_cast %548 : vector<1x8x128xf32> to vector<8x128xf32>
    %550 = vector.extract_strided_slice %549 {offsets = [0, 0], sizes = [2, 128], strides = [1, 1]} : vector<8x128xf32> to vector<2x128xf32>
    %551 = arith.mulf %550, %173 : vector<2x128xf32>
    %552 = arith.addf %547, %551 : vector<2x128xf32>
    %c104 = arith.constant 104 : index
    %c0_241 = arith.constant 0 : index
    %c0_242 = arith.constant 0 : index
    %553 = vector.load %arg2[%c104, %c0_241, %c0_242] : memref<424x8x128xf32, #tpu.memory_space<vmem>>, vector<1x8x128xf32>
    %554 = vector.shape_cast %553 : vector<1x8x128xf32> to vector<8x128xf32>
    %555 = vector.extract_strided_slice %554 {offsets = [0, 0], sizes = [2, 128], strides = [1, 1]} : vector<8x128xf32> to vector<2x128xf32>
    %556 = arith.mulf %555, %194 : vector<2x128xf32>
    %557 = arith.addf %552, %556 : vector<2x128xf32>
    %c105 = arith.constant 105 : index
    %c0_243 = arith.constant 0 : index
    %c0_244 = arith.constant 0 : index
    %558 = vector.load %arg2[%c105, %c0_243, %c0_244] : memref<424x8x128xf32, #tpu.memory_space<vmem>>, vector<1x8x128xf32>
    %559 = vector.shape_cast %558 : vector<1x8x128xf32> to vector<8x128xf32>
    %560 = vector.extract_strided_slice %559 {offsets = [0, 0], sizes = [2, 128], strides = [1, 1]} : vector<8x128xf32> to vector<2x128xf32>
    %561 = arith.mulf %560, %215 : vector<2x128xf32>
    %562 = arith.addf %557, %561 : vector<2x128xf32>
    %c106 = arith.constant 106 : index
    %c0_245 = arith.constant 0 : index
    %c0_246 = arith.constant 0 : index
    %563 = vector.load %arg2[%c106, %c0_245, %c0_246] : memref<424x8x128xf32, #tpu.memory_space<vmem>>, vector<1x8x128xf32>
    %564 = vector.shape_cast %563 : vector<1x8x128xf32> to vector<8x128xf32>
    %565 = vector.extract_strided_slice %564 {offsets = [0, 0], sizes = [2, 128], strides = [1, 1]} : vector<8x128xf32> to vector<2x128xf32>
    %566 = arith.mulf %565, %236 : vector<2x128xf32>
    %567 = arith.addf %562, %566 : vector<2x128xf32>
    %c107 = arith.constant 107 : index
    %c0_247 = arith.constant 0 : index
    %c0_248 = arith.constant 0 : index
    %568 = vector.load %arg2[%c107, %c0_247, %c0_248] : memref<424x8x128xf32, #tpu.memory_space<vmem>>, vector<1x8x128xf32>
    %569 = vector.shape_cast %568 : vector<1x8x128xf32> to vector<8x128xf32>
    %570 = vector.extract_strided_slice %569 {offsets = [0, 0], sizes = [2, 128], strides = [1, 1]} : vector<8x128xf32> to vector<2x128xf32>
    %571 = arith.mulf %570, %257 : vector<2x128xf32>
    %572 = arith.addf %567, %571 : vector<2x128xf32>
    %c108 = arith.constant 108 : index
    %c0_249 = arith.constant 0 : index
    %c0_250 = arith.constant 0 : index
    %573 = vector.load %arg2[%c108, %c0_249, %c0_250] : memref<424x8x128xf32, #tpu.memory_space<vmem>>, vector<1x8x128xf32>
    %574 = vector.shape_cast %573 : vector<1x8x128xf32> to vector<8x128xf32>
    %575 = vector.extract_strided_slice %574 {offsets = [0, 0], sizes = [2, 128], strides = [1, 1]} : vector<8x128xf32> to vector<2x128xf32>
    %576 = arith.mulf %575, %278 : vector<2x128xf32>
    %577 = arith.addf %572, %576 : vector<2x128xf32>
    %c109 = arith.constant 109 : index
    %c0_251 = arith.constant 0 : index
    %c0_252 = arith.constant 0 : index
    %578 = vector.load %arg2[%c109, %c0_251, %c0_252] : memref<424x8x128xf32, #tpu.memory_space<vmem>>, vector<1x8x128xf32>
    %579 = vector.shape_cast %578 : vector<1x8x128xf32> to vector<8x128xf32>
    %580 = vector.extract_strided_slice %579 {offsets = [0, 0], sizes = [2, 128], strides = [1, 1]} : vector<8x128xf32> to vector<2x128xf32>
    %581 = arith.mulf %580, %299 : vector<2x128xf32>
    %582 = arith.addf %577, %581 : vector<2x128xf32>
    %c110 = arith.constant 110 : index
    %c0_253 = arith.constant 0 : index
    %c0_254 = arith.constant 0 : index
    %583 = vector.load %arg2[%c110, %c0_253, %c0_254] : memref<424x8x128xf32, #tpu.memory_space<vmem>>, vector<1x8x128xf32>
    %584 = vector.shape_cast %583 : vector<1x8x128xf32> to vector<8x128xf32>
    %585 = vector.extract_strided_slice %584 {offsets = [0, 0], sizes = [2, 128], strides = [1, 1]} : vector<8x128xf32> to vector<2x128xf32>
    %586 = arith.mulf %585, %320 : vector<2x128xf32>
    %587 = arith.addf %582, %586 : vector<2x128xf32>
    %c111 = arith.constant 111 : index
    %c0_255 = arith.constant 0 : index
    %c0_256 = arith.constant 0 : index
    %588 = vector.load %arg2[%c111, %c0_255, %c0_256] : memref<424x8x128xf32, #tpu.memory_space<vmem>>, vector<1x8x128xf32>
    %589 = vector.shape_cast %588 : vector<1x8x128xf32> to vector<8x128xf32>
    %590 = vector.extract_strided_slice %589 {offsets = [0, 0], sizes = [2, 128], strides = [1, 1]} : vector<8x128xf32> to vector<2x128xf32>
    %591 = arith.mulf %590, %341 : vector<2x128xf32>
    %592 = arith.addf %587, %591 : vector<2x128xf32>
    %c322 = arith.constant 322 : index
    %c0_257 = arith.constant 0 : index
    %c0_258 = arith.constant 0 : index
    %593 = vector.load %arg2[%c322, %c0_257, %c0_258] : memref<424x8x128xf32, #tpu.memory_space<vmem>>, vector<1x8x128xf32>
    %594 = vector.shape_cast %593 : vector<1x8x128xf32> to vector<8x128xf32>
    %595 = vector.extract_strided_slice %594 {offsets = [0, 0], sizes = [2, 128], strides = [1, 1]} : vector<8x128xf32> to vector<2x128xf32>
    %596 = arith.addf %592, %595 : vector<2x128xf32>
    %cst_259 = arith.constant 1.000000e-01 : f32
    %597 = vector.broadcast %cst_259 : f32 to vector<2x128xf32>
    %598 = arith.mulf %597, %596 : vector<2x128xf32>
    %599 = arith.maximumf %596, %598 : vector<2x128xf32>
    %c112 = arith.constant 112 : index
    %c0_260 = arith.constant 0 : index
    %c0_261 = arith.constant 0 : index
    %600 = vector.load %arg2[%c112, %c0_260, %c0_261] : memref<424x8x128xf32, #tpu.memory_space<vmem>>, vector<1x8x128xf32>
    %601 = vector.shape_cast %600 : vector<1x8x128xf32> to vector<8x128xf32>
    %602 = vector.extract_strided_slice %601 {offsets = [0, 0], sizes = [2, 128], strides = [1, 1]} : vector<8x128xf32> to vector<2x128xf32>
    %603 = arith.mulf %602, %26 : vector<2x128xf32>
    %c113 = arith.constant 113 : index
    %c0_262 = arith.constant 0 : index
    %c0_263 = arith.constant 0 : index
    %604 = vector.load %arg2[%c113, %c0_262, %c0_263] : memref<424x8x128xf32, #tpu.memory_space<vmem>>, vector<1x8x128xf32>
    %605 = vector.shape_cast %604 : vector<1x8x128xf32> to vector<8x128xf32>
    %606 = vector.extract_strided_slice %605 {offsets = [0, 0], sizes = [2, 128], strides = [1, 1]} : vector<8x128xf32> to vector<2x128xf32>
    %607 = arith.mulf %606, %47 : vector<2x128xf32>
    %608 = arith.addf %603, %607 : vector<2x128xf32>
    %c114 = arith.constant 114 : index
    %c0_264 = arith.constant 0 : index
    %c0_265 = arith.constant 0 : index
    %609 = vector.load %arg2[%c114, %c0_264, %c0_265] : memref<424x8x128xf32, #tpu.memory_space<vmem>>, vector<1x8x128xf32>
    %610 = vector.shape_cast %609 : vector<1x8x128xf32> to vector<8x128xf32>
    %611 = vector.extract_strided_slice %610 {offsets = [0, 0], sizes = [2, 128], strides = [1, 1]} : vector<8x128xf32> to vector<2x128xf32>
    %612 = arith.mulf %611, %68 : vector<2x128xf32>
    %613 = arith.addf %608, %612 : vector<2x128xf32>
    %c115 = arith.constant 115 : index
    %c0_266 = arith.constant 0 : index
    %c0_267 = arith.constant 0 : index
    %614 = vector.load %arg2[%c115, %c0_266, %c0_267] : memref<424x8x128xf32, #tpu.memory_space<vmem>>, vector<1x8x128xf32>
    %615 = vector.shape_cast %614 : vector<1x8x128xf32> to vector<8x128xf32>
    %616 = vector.extract_strided_slice %615 {offsets = [0, 0], sizes = [2, 128], strides = [1, 1]} : vector<8x128xf32> to vector<2x128xf32>
    %617 = arith.mulf %616, %89 : vector<2x128xf32>
    %618 = arith.addf %613, %617 : vector<2x128xf32>
    %c116 = arith.constant 116 : index
    %c0_268 = arith.constant 0 : index
    %c0_269 = arith.constant 0 : index
    %619 = vector.load %arg2[%c116, %c0_268, %c0_269] : memref<424x8x128xf32, #tpu.memory_space<vmem>>, vector<1x8x128xf32>
    %620 = vector.shape_cast %619 : vector<1x8x128xf32> to vector<8x128xf32>
    %621 = vector.extract_strided_slice %620 {offsets = [0, 0], sizes = [2, 128], strides = [1, 1]} : vector<8x128xf32> to vector<2x128xf32>
    %622 = arith.mulf %621, %110 : vector<2x128xf32>
    %623 = arith.addf %618, %622 : vector<2x128xf32>
    %c117 = arith.constant 117 : index
    %c0_270 = arith.constant 0 : index
    %c0_271 = arith.constant 0 : index
    %624 = vector.load %arg2[%c117, %c0_270, %c0_271] : memref<424x8x128xf32, #tpu.memory_space<vmem>>, vector<1x8x128xf32>
    %625 = vector.shape_cast %624 : vector<1x8x128xf32> to vector<8x128xf32>
    %626 = vector.extract_strided_slice %625 {offsets = [0, 0], sizes = [2, 128], strides = [1, 1]} : vector<8x128xf32> to vector<2x128xf32>
    %627 = arith.mulf %626, %131 : vector<2x128xf32>
    %628 = arith.addf %623, %627 : vector<2x128xf32>
    %c118 = arith.constant 118 : index
    %c0_272 = arith.constant 0 : index
    %c0_273 = arith.constant 0 : index
    %629 = vector.load %arg2[%c118, %c0_272, %c0_273] : memref<424x8x128xf32, #tpu.memory_space<vmem>>, vector<1x8x128xf32>
    %630 = vector.shape_cast %629 : vector<1x8x128xf32> to vector<8x128xf32>
    %631 = vector.extract_strided_slice %630 {offsets = [0, 0], sizes = [2, 128], strides = [1, 1]} : vector<8x128xf32> to vector<2x128xf32>
    %632 = arith.mulf %631, %152 : vector<2x128xf32>
    %633 = arith.addf %628, %632 : vector<2x128xf32>
    %c119 = arith.constant 119 : index
    %c0_274 = arith.constant 0 : index
    %c0_275 = arith.constant 0 : index
    %634 = vector.load %arg2[%c119, %c0_274, %c0_275] : memref<424x8x128xf32, #tpu.memory_space<vmem>>, vector<1x8x128xf32>
    %635 = vector.shape_cast %634 : vector<1x8x128xf32> to vector<8x128xf32>
    %636 = vector.extract_strided_slice %635 {offsets = [0, 0], sizes = [2, 128], strides = [1, 1]} : vector<8x128xf32> to vector<2x128xf32>
    %637 = arith.mulf %636, %173 : vector<2x128xf32>
    %638 = arith.addf %633, %637 : vector<2x128xf32>
    %c120 = arith.constant 120 : index
    %c0_276 = arith.constant 0 : index
    %c0_277 = arith.constant 0 : index
    %639 = vector.load %arg2[%c120, %c0_276, %c0_277] : memref<424x8x128xf32, #tpu.memory_space<vmem>>, vector<1x8x128xf32>
    %640 = vector.shape_cast %639 : vector<1x8x128xf32> to vector<8x128xf32>
    %641 = vector.extract_strided_slice %640 {offsets = [0, 0], sizes = [2, 128], strides = [1, 1]} : vector<8x128xf32> to vector<2x128xf32>
    %642 = arith.mulf %641, %194 : vector<2x128xf32>
    %643 = arith.addf %638, %642 : vector<2x128xf32>
    %c121 = arith.constant 121 : index
    %c0_278 = arith.constant 0 : index
    %c0_279 = arith.constant 0 : index
    %644 = vector.load %arg2[%c121, %c0_278, %c0_279] : memref<424x8x128xf32, #tpu.memory_space<vmem>>, vector<1x8x128xf32>
    %645 = vector.shape_cast %644 : vector<1x8x128xf32> to vector<8x128xf32>
    %646 = vector.extract_strided_slice %645 {offsets = [0, 0], sizes = [2, 128], strides = [1, 1]} : vector<8x128xf32> to vector<2x128xf32>
    %647 = arith.mulf %646, %215 : vector<2x128xf32>
    %648 = arith.addf %643, %647 : vector<2x128xf32>
    %c122 = arith.constant 122 : index
    %c0_280 = arith.constant 0 : index
    %c0_281 = arith.constant 0 : index
    %649 = vector.load %arg2[%c122, %c0_280, %c0_281] : memref<424x8x128xf32, #tpu.memory_space<vmem>>, vector<1x8x128xf32>
    %650 = vector.shape_cast %649 : vector<1x8x128xf32> to vector<8x128xf32>
    %651 = vector.extract_strided_slice %650 {offsets = [0, 0], sizes = [2, 128], strides = [1, 1]} : vector<8x128xf32> to vector<2x128xf32>
    %652 = arith.mulf %651, %236 : vector<2x128xf32>
    %653 = arith.addf %648, %652 : vector<2x128xf32>
    %c123 = arith.constant 123 : index
    %c0_282 = arith.constant 0 : index
    %c0_283 = arith.constant 0 : index
    %654 = vector.load %arg2[%c123, %c0_282, %c0_283] : memref<424x8x128xf32, #tpu.memory_space<vmem>>, vector<1x8x128xf32>
    %655 = vector.shape_cast %654 : vector<1x8x128xf32> to vector<8x128xf32>
    %656 = vector.extract_strided_slice %655 {offsets = [0, 0], sizes = [2, 128], strides = [1, 1]} : vector<8x128xf32> to vector<2x128xf32>
    %657 = arith.mulf %656, %257 : vector<2x128xf32>
    %658 = arith.addf %653, %657 : vector<2x128xf32>
    %c124 = arith.constant 124 : index
    %c0_284 = arith.constant 0 : index
    %c0_285 = arith.constant 0 : index
    %659 = vector.load %arg2[%c124, %c0_284, %c0_285] : memref<424x8x128xf32, #tpu.memory_space<vmem>>, vector<1x8x128xf32>
    %660 = vector.shape_cast %659 : vector<1x8x128xf32> to vector<8x128xf32>
    %661 = vector.extract_strided_slice %660 {offsets = [0, 0], sizes = [2, 128], strides = [1, 1]} : vector<8x128xf32> to vector<2x128xf32>
    %662 = arith.mulf %661, %278 : vector<2x128xf32>
    %663 = arith.addf %658, %662 : vector<2x128xf32>
    %c125 = arith.constant 125 : index
    %c0_286 = arith.constant 0 : index
    %c0_287 = arith.constant 0 : index
    %664 = vector.load %arg2[%c125, %c0_286, %c0_287] : memref<424x8x128xf32, #tpu.memory_space<vmem>>, vector<1x8x128xf32>
    %665 = vector.shape_cast %664 : vector<1x8x128xf32> to vector<8x128xf32>
    %666 = vector.extract_strided_slice %665 {offsets = [0, 0], sizes = [2, 128], strides = [1, 1]} : vector<8x128xf32> to vector<2x128xf32>
    %667 = arith.mulf %666, %299 : vector<2x128xf32>
    %668 = arith.addf %663, %667 : vector<2x128xf32>
    %c126 = arith.constant 126 : index
    %c0_288 = arith.constant 0 : index
    %c0_289 = arith.constant 0 : index
    %669 = vector.load %arg2[%c126, %c0_288, %c0_289] : memref<424x8x128xf32, #tpu.memory_space<vmem>>, vector<1x8x128xf32>
    %670 = vector.shape_cast %669 : vector<1x8x128xf32> to vector<8x128xf32>
    %671 = vector.extract_strided_slice %670 {offsets = [0, 0], sizes = [2, 128], strides = [1, 1]} : vector<8x128xf32> to vector<2x128xf32>
    %672 = arith.mulf %671, %320 : vector<2x128xf32>
    %673 = arith.addf %668, %672 : vector<2x128xf32>
    %c127 = arith.constant 127 : index
    %c0_290 = arith.constant 0 : index
    %c0_291 = arith.constant 0 : index
    %674 = vector.load %arg2[%c127, %c0_290, %c0_291] : memref<424x8x128xf32, #tpu.memory_space<vmem>>, vector<1x8x128xf32>
    %675 = vector.shape_cast %674 : vector<1x8x128xf32> to vector<8x128xf32>
    %676 = vector.extract_strided_slice %675 {offsets = [0, 0], sizes = [2, 128], strides = [1, 1]} : vector<8x128xf32> to vector<2x128xf32>
    %677 = arith.mulf %676, %341 : vector<2x128xf32>
    %678 = arith.addf %673, %677 : vector<2x128xf32>
    %c323 = arith.constant 323 : index
    %c0_292 = arith.constant 0 : index
    %c0_293 = arith.constant 0 : index
    %679 = vector.load %arg2[%c323, %c0_292, %c0_293] : memref<424x8x128xf32, #tpu.memory_space<vmem>>, vector<1x8x128xf32>
    %680 = vector.shape_cast %679 : vector<1x8x128xf32> to vector<8x128xf32>
    %681 = vector.extract_strided_slice %680 {offsets = [0, 0], sizes = [2, 128], strides = [1, 1]} : vector<8x128xf32> to vector<2x128xf32>
    %682 = arith.addf %678, %681 : vector<2x128xf32>
    %cst_294 = arith.constant 1.000000e-01 : f32
    %683 = vector.broadcast %cst_294 : f32 to vector<2x128xf32>
    %684 = arith.mulf %683, %682 : vector<2x128xf32>
    %685 = arith.maximumf %682, %684 : vector<2x128xf32>
    %c128 = arith.constant 128 : index
    %c0_295 = arith.constant 0 : index
    %c0_296 = arith.constant 0 : index
    %686 = vector.load %arg2[%c128, %c0_295, %c0_296] : memref<424x8x128xf32, #tpu.memory_space<vmem>>, vector<1x8x128xf32>
    %687 = vector.shape_cast %686 : vector<1x8x128xf32> to vector<8x128xf32>
    %688 = vector.extract_strided_slice %687 {offsets = [0, 0], sizes = [2, 128], strides = [1, 1]} : vector<8x128xf32> to vector<2x128xf32>
    %689 = arith.mulf %688, %26 : vector<2x128xf32>
    %c129 = arith.constant 129 : index
    %c0_297 = arith.constant 0 : index
    %c0_298 = arith.constant 0 : index
    %690 = vector.load %arg2[%c129, %c0_297, %c0_298] : memref<424x8x128xf32, #tpu.memory_space<vmem>>, vector<1x8x128xf32>
    %691 = vector.shape_cast %690 : vector<1x8x128xf32> to vector<8x128xf32>
    %692 = vector.extract_strided_slice %691 {offsets = [0, 0], sizes = [2, 128], strides = [1, 1]} : vector<8x128xf32> to vector<2x128xf32>
    %693 = arith.mulf %692, %47 : vector<2x128xf32>
    %694 = arith.addf %689, %693 : vector<2x128xf32>
    %c130 = arith.constant 130 : index
    %c0_299 = arith.constant 0 : index
    %c0_300 = arith.constant 0 : index
    %695 = vector.load %arg2[%c130, %c0_299, %c0_300] : memref<424x8x128xf32, #tpu.memory_space<vmem>>, vector<1x8x128xf32>
    %696 = vector.shape_cast %695 : vector<1x8x128xf32> to vector<8x128xf32>
    %697 = vector.extract_strided_slice %696 {offsets = [0, 0], sizes = [2, 128], strides = [1, 1]} : vector<8x128xf32> to vector<2x128xf32>
    %698 = arith.mulf %697, %68 : vector<2x128xf32>
    %699 = arith.addf %694, %698 : vector<2x128xf32>
    %c131 = arith.constant 131 : index
    %c0_301 = arith.constant 0 : index
    %c0_302 = arith.constant 0 : index
    %700 = vector.load %arg2[%c131, %c0_301, %c0_302] : memref<424x8x128xf32, #tpu.memory_space<vmem>>, vector<1x8x128xf32>
    %701 = vector.shape_cast %700 : vector<1x8x128xf32> to vector<8x128xf32>
    %702 = vector.extract_strided_slice %701 {offsets = [0, 0], sizes = [2, 128], strides = [1, 1]} : vector<8x128xf32> to vector<2x128xf32>
    %703 = arith.mulf %702, %89 : vector<2x128xf32>
    %704 = arith.addf %699, %703 : vector<2x128xf32>
    %c132 = arith.constant 132 : index
    %c0_303 = arith.constant 0 : index
    %c0_304 = arith.constant 0 : index
    %705 = vector.load %arg2[%c132, %c0_303, %c0_304] : memref<424x8x128xf32, #tpu.memory_space<vmem>>, vector<1x8x128xf32>
    %706 = vector.shape_cast %705 : vector<1x8x128xf32> to vector<8x128xf32>
    %707 = vector.extract_strided_slice %706 {offsets = [0, 0], sizes = [2, 128], strides = [1, 1]} : vector<8x128xf32> to vector<2x128xf32>
    %708 = arith.mulf %707, %110 : vector<2x128xf32>
    %709 = arith.addf %704, %708 : vector<2x128xf32>
    %c133 = arith.constant 133 : index
    %c0_305 = arith.constant 0 : index
    %c0_306 = arith.constant 0 : index
    %710 = vector.load %arg2[%c133, %c0_305, %c0_306] : memref<424x8x128xf32, #tpu.memory_space<vmem>>, vector<1x8x128xf32>
    %711 = vector.shape_cast %710 : vector<1x8x128xf32> to vector<8x128xf32>
    %712 = vector.extract_strided_slice %711 {offsets = [0, 0], sizes = [2, 128], strides = [1, 1]} : vector<8x128xf32> to vector<2x128xf32>
    %713 = arith.mulf %712, %131 : vector<2x128xf32>
    %714 = arith.addf %709, %713 : vector<2x128xf32>
    %c134 = arith.constant 134 : index
    %c0_307 = arith.constant 0 : index
    %c0_308 = arith.constant 0 : index
    %715 = vector.load %arg2[%c134, %c0_307, %c0_308] : memref<424x8x128xf32, #tpu.memory_space<vmem>>, vector<1x8x128xf32>
    %716 = vector.shape_cast %715 : vector<1x8x128xf32> to vector<8x128xf32>
    %717 = vector.extract_strided_slice %716 {offsets = [0, 0], sizes = [2, 128], strides = [1, 1]} : vector<8x128xf32> to vector<2x128xf32>
    %718 = arith.mulf %717, %152 : vector<2x128xf32>
    %719 = arith.addf %714, %718 : vector<2x128xf32>
    %c135 = arith.constant 135 : index
    %c0_309 = arith.constant 0 : index
    %c0_310 = arith.constant 0 : index
    %720 = vector.load %arg2[%c135, %c0_309, %c0_310] : memref<424x8x128xf32, #tpu.memory_space<vmem>>, vector<1x8x128xf32>
    %721 = vector.shape_cast %720 : vector<1x8x128xf32> to vector<8x128xf32>
    %722 = vector.extract_strided_slice %721 {offsets = [0, 0], sizes = [2, 128], strides = [1, 1]} : vector<8x128xf32> to vector<2x128xf32>
    %723 = arith.mulf %722, %173 : vector<2x128xf32>
    %724 = arith.addf %719, %723 : vector<2x128xf32>
    %c136 = arith.constant 136 : index
    %c0_311 = arith.constant 0 : index
    %c0_312 = arith.constant 0 : index
    %725 = vector.load %arg2[%c136, %c0_311, %c0_312] : memref<424x8x128xf32, #tpu.memory_space<vmem>>, vector<1x8x128xf32>
    %726 = vector.shape_cast %725 : vector<1x8x128xf32> to vector<8x128xf32>
    %727 = vector.extract_strided_slice %726 {offsets = [0, 0], sizes = [2, 128], strides = [1, 1]} : vector<8x128xf32> to vector<2x128xf32>
    %728 = arith.mulf %727, %194 : vector<2x128xf32>
    %729 = arith.addf %724, %728 : vector<2x128xf32>
    %c137 = arith.constant 137 : index
    %c0_313 = arith.constant 0 : index
    %c0_314 = arith.constant 0 : index
    %730 = vector.load %arg2[%c137, %c0_313, %c0_314] : memref<424x8x128xf32, #tpu.memory_space<vmem>>, vector<1x8x128xf32>
    %731 = vector.shape_cast %730 : vector<1x8x128xf32> to vector<8x128xf32>
    %732 = vector.extract_strided_slice %731 {offsets = [0, 0], sizes = [2, 128], strides = [1, 1]} : vector<8x128xf32> to vector<2x128xf32>
    %733 = arith.mulf %732, %215 : vector<2x128xf32>
    %734 = arith.addf %729, %733 : vector<2x128xf32>
    %c138 = arith.constant 138 : index
    %c0_315 = arith.constant 0 : index
    %c0_316 = arith.constant 0 : index
    %735 = vector.load %arg2[%c138, %c0_315, %c0_316] : memref<424x8x128xf32, #tpu.memory_space<vmem>>, vector<1x8x128xf32>
    %736 = vector.shape_cast %735 : vector<1x8x128xf32> to vector<8x128xf32>
    %737 = vector.extract_strided_slice %736 {offsets = [0, 0], sizes = [2, 128], strides = [1, 1]} : vector<8x128xf32> to vector<2x128xf32>
    %738 = arith.mulf %737, %236 : vector<2x128xf32>
    %739 = arith.addf %734, %738 : vector<2x128xf32>
    %c139 = arith.constant 139 : index
    %c0_317 = arith.constant 0 : index
    %c0_318 = arith.constant 0 : index
    %740 = vector.load %arg2[%c139, %c0_317, %c0_318] : memref<424x8x128xf32, #tpu.memory_space<vmem>>, vector<1x8x128xf32>
    %741 = vector.shape_cast %740 : vector<1x8x128xf32> to vector<8x128xf32>
    %742 = vector.extract_strided_slice %741 {offsets = [0, 0], sizes = [2, 128], strides = [1, 1]} : vector<8x128xf32> to vector<2x128xf32>
    %743 = arith.mulf %742, %257 : vector<2x128xf32>
    %744 = arith.addf %739, %743 : vector<2x128xf32>
    %c140 = arith.constant 140 : index
    %c0_319 = arith.constant 0 : index
    %c0_320 = arith.constant 0 : index
    %745 = vector.load %arg2[%c140, %c0_319, %c0_320] : memref<424x8x128xf32, #tpu.memory_space<vmem>>, vector<1x8x128xf32>
    %746 = vector.shape_cast %745 : vector<1x8x128xf32> to vector<8x128xf32>
    %747 = vector.extract_strided_slice %746 {offsets = [0, 0], sizes = [2, 128], strides = [1, 1]} : vector<8x128xf32> to vector<2x128xf32>
    %748 = arith.mulf %747, %278 : vector<2x128xf32>
    %749 = arith.addf %744, %748 : vector<2x128xf32>
    %c141 = arith.constant 141 : index
    %c0_321 = arith.constant 0 : index
    %c0_322 = arith.constant 0 : index
    %750 = vector.load %arg2[%c141, %c0_321, %c0_322] : memref<424x8x128xf32, #tpu.memory_space<vmem>>, vector<1x8x128xf32>
    %751 = vector.shape_cast %750 : vector<1x8x128xf32> to vector<8x128xf32>
    %752 = vector.extract_strided_slice %751 {offsets = [0, 0], sizes = [2, 128], strides = [1, 1]} : vector<8x128xf32> to vector<2x128xf32>
    %753 = arith.mulf %752, %299 : vector<2x128xf32>
    %754 = arith.addf %749, %753 : vector<2x128xf32>
    %c142 = arith.constant 142 : index
    %c0_323 = arith.constant 0 : index
    %c0_324 = arith.constant 0 : index
    %755 = vector.load %arg2[%c142, %c0_323, %c0_324] : memref<424x8x128xf32, #tpu.memory_space<vmem>>, vector<1x8x128xf32>
    %756 = vector.shape_cast %755 : vector<1x8x128xf32> to vector<8x128xf32>
    %757 = vector.extract_strided_slice %756 {offsets = [0, 0], sizes = [2, 128], strides = [1, 1]} : vector<8x128xf32> to vector<2x128xf32>
    %758 = arith.mulf %757, %320 : vector<2x128xf32>
    %759 = arith.addf %754, %758 : vector<2x128xf32>
    %c143 = arith.constant 143 : index
    %c0_325 = arith.constant 0 : index
    %c0_326 = arith.constant 0 : index
    %760 = vector.load %arg2[%c143, %c0_325, %c0_326] : memref<424x8x128xf32, #tpu.memory_space<vmem>>, vector<1x8x128xf32>
    %761 = vector.shape_cast %760 : vector<1x8x128xf32> to vector<8x128xf32>
    %762 = vector.extract_strided_slice %761 {offsets = [0, 0], sizes = [2, 128], strides = [1, 1]} : vector<8x128xf32> to vector<2x128xf32>
    %763 = arith.mulf %762, %341 : vector<2x128xf32>
    %764 = arith.addf %759, %763 : vector<2x128xf32>
    %c324 = arith.constant 324 : index
    %c0_327 = arith.constant 0 : index
    %c0_328 = arith.constant 0 : index
    %765 = vector.load %arg2[%c324, %c0_327, %c0_328] : memref<424x8x128xf32, #tpu.memory_space<vmem>>, vector<1x8x128xf32>
    %766 = vector.shape_cast %765 : vector<1x8x128xf32> to vector<8x128xf32>
    %767 = vector.extract_strided_slice %766 {offsets = [0, 0], sizes = [2, 128], strides = [1, 1]} : vector<8x128xf32> to vector<2x128xf32>
    %768 = arith.addf %764, %767 : vector<2x128xf32>
    %cst_329 = arith.constant 1.000000e-01 : f32
    %769 = vector.broadcast %cst_329 : f32 to vector<2x128xf32>
    %770 = arith.mulf %769, %768 : vector<2x128xf32>
    %771 = arith.maximumf %768, %770 : vector<2x128xf32>
    %c144 = arith.constant 144 : index
    %c0_330 = arith.constant 0 : index
    %c0_331 = arith.constant 0 : index
    %772 = vector.load %arg2[%c144, %c0_330, %c0_331] : memref<424x8x128xf32, #tpu.memory_space<vmem>>, vector<1x8x128xf32>
    %773 = vector.shape_cast %772 : vector<1x8x128xf32> to vector<8x128xf32>
    %774 = vector.extract_strided_slice %773 {offsets = [0, 0], sizes = [2, 128], strides = [1, 1]} : vector<8x128xf32> to vector<2x128xf32>
    %775 = arith.mulf %774, %26 : vector<2x128xf32>
    %c145 = arith.constant 145 : index
    %c0_332 = arith.constant 0 : index
    %c0_333 = arith.constant 0 : index
    %776 = vector.load %arg2[%c145, %c0_332, %c0_333] : memref<424x8x128xf32, #tpu.memory_space<vmem>>, vector<1x8x128xf32>
    %777 = vector.shape_cast %776 : vector<1x8x128xf32> to vector<8x128xf32>
    %778 = vector.extract_strided_slice %777 {offsets = [0, 0], sizes = [2, 128], strides = [1, 1]} : vector<8x128xf32> to vector<2x128xf32>
    %779 = arith.mulf %778, %47 : vector<2x128xf32>
    %780 = arith.addf %775, %779 : vector<2x128xf32>
    %c146 = arith.constant 146 : index
    %c0_334 = arith.constant 0 : index
    %c0_335 = arith.constant 0 : index
    %781 = vector.load %arg2[%c146, %c0_334, %c0_335] : memref<424x8x128xf32, #tpu.memory_space<vmem>>, vector<1x8x128xf32>
    %782 = vector.shape_cast %781 : vector<1x8x128xf32> to vector<8x128xf32>
    %783 = vector.extract_strided_slice %782 {offsets = [0, 0], sizes = [2, 128], strides = [1, 1]} : vector<8x128xf32> to vector<2x128xf32>
    %784 = arith.mulf %783, %68 : vector<2x128xf32>
    %785 = arith.addf %780, %784 : vector<2x128xf32>
    %c147 = arith.constant 147 : index
    %c0_336 = arith.constant 0 : index
    %c0_337 = arith.constant 0 : index
    %786 = vector.load %arg2[%c147, %c0_336, %c0_337] : memref<424x8x128xf32, #tpu.memory_space<vmem>>, vector<1x8x128xf32>
    %787 = vector.shape_cast %786 : vector<1x8x128xf32> to vector<8x128xf32>
    %788 = vector.extract_strided_slice %787 {offsets = [0, 0], sizes = [2, 128], strides = [1, 1]} : vector<8x128xf32> to vector<2x128xf32>
    %789 = arith.mulf %788, %89 : vector<2x128xf32>
    %790 = arith.addf %785, %789 : vector<2x128xf32>
    %c148 = arith.constant 148 : index
    %c0_338 = arith.constant 0 : index
    %c0_339 = arith.constant 0 : index
    %791 = vector.load %arg2[%c148, %c0_338, %c0_339] : memref<424x8x128xf32, #tpu.memory_space<vmem>>, vector<1x8x128xf32>
    %792 = vector.shape_cast %791 : vector<1x8x128xf32> to vector<8x128xf32>
    %793 = vector.extract_strided_slice %792 {offsets = [0, 0], sizes = [2, 128], strides = [1, 1]} : vector<8x128xf32> to vector<2x128xf32>
    %794 = arith.mulf %793, %110 : vector<2x128xf32>
    %795 = arith.addf %790, %794 : vector<2x128xf32>
    %c149 = arith.constant 149 : index
    %c0_340 = arith.constant 0 : index
    %c0_341 = arith.constant 0 : index
    %796 = vector.load %arg2[%c149, %c0_340, %c0_341] : memref<424x8x128xf32, #tpu.memory_space<vmem>>, vector<1x8x128xf32>
    %797 = vector.shape_cast %796 : vector<1x8x128xf32> to vector<8x128xf32>
    %798 = vector.extract_strided_slice %797 {offsets = [0, 0], sizes = [2, 128], strides = [1, 1]} : vector<8x128xf32> to vector<2x128xf32>
    %799 = arith.mulf %798, %131 : vector<2x128xf32>
    %800 = arith.addf %795, %799 : vector<2x128xf32>
    %c150 = arith.constant 150 : index
    %c0_342 = arith.constant 0 : index
    %c0_343 = arith.constant 0 : index
    %801 = vector.load %arg2[%c150, %c0_342, %c0_343] : memref<424x8x128xf32, #tpu.memory_space<vmem>>, vector<1x8x128xf32>
    %802 = vector.shape_cast %801 : vector<1x8x128xf32> to vector<8x128xf32>
    %803 = vector.extract_strided_slice %802 {offsets = [0, 0], sizes = [2, 128], strides = [1, 1]} : vector<8x128xf32> to vector<2x128xf32>
    %804 = arith.mulf %803, %152 : vector<2x128xf32>
    %805 = arith.addf %800, %804 : vector<2x128xf32>
    %c151 = arith.constant 151 : index
    %c0_344 = arith.constant 0 : index
    %c0_345 = arith.constant 0 : index
    %806 = vector.load %arg2[%c151, %c0_344, %c0_345] : memref<424x8x128xf32, #tpu.memory_space<vmem>>, vector<1x8x128xf32>
    %807 = vector.shape_cast %806 : vector<1x8x128xf32> to vector<8x128xf32>
    %808 = vector.extract_strided_slice %807 {offsets = [0, 0], sizes = [2, 128], strides = [1, 1]} : vector<8x128xf32> to vector<2x128xf32>
    %809 = arith.mulf %808, %173 : vector<2x128xf32>
    %810 = arith.addf %805, %809 : vector<2x128xf32>
    %c152 = arith.constant 152 : index
    %c0_346 = arith.constant 0 : index
    %c0_347 = arith.constant 0 : index
    %811 = vector.load %arg2[%c152, %c0_346, %c0_347] : memref<424x8x128xf32, #tpu.memory_space<vmem>>, vector<1x8x128xf32>
    %812 = vector.shape_cast %811 : vector<1x8x128xf32> to vector<8x128xf32>
    %813 = vector.extract_strided_slice %812 {offsets = [0, 0], sizes = [2, 128], strides = [1, 1]} : vector<8x128xf32> to vector<2x128xf32>
    %814 = arith.mulf %813, %194 : vector<2x128xf32>
    %815 = arith.addf %810, %814 : vector<2x128xf32>
    %c153 = arith.constant 153 : index
    %c0_348 = arith.constant 0 : index
    %c0_349 = arith.constant 0 : index
    %816 = vector.load %arg2[%c153, %c0_348, %c0_349] : memref<424x8x128xf32, #tpu.memory_space<vmem>>, vector<1x8x128xf32>
    %817 = vector.shape_cast %816 : vector<1x8x128xf32> to vector<8x128xf32>
    %818 = vector.extract_strided_slice %817 {offsets = [0, 0], sizes = [2, 128], strides = [1, 1]} : vector<8x128xf32> to vector<2x128xf32>
    %819 = arith.mulf %818, %215 : vector<2x128xf32>
    %820 = arith.addf %815, %819 : vector<2x128xf32>
    %c154 = arith.constant 154 : index
    %c0_350 = arith.constant 0 : index
    %c0_351 = arith.constant 0 : index
    %821 = vector.load %arg2[%c154, %c0_350, %c0_351] : memref<424x8x128xf32, #tpu.memory_space<vmem>>, vector<1x8x128xf32>
    %822 = vector.shape_cast %821 : vector<1x8x128xf32> to vector<8x128xf32>
    %823 = vector.extract_strided_slice %822 {offsets = [0, 0], sizes = [2, 128], strides = [1, 1]} : vector<8x128xf32> to vector<2x128xf32>
    %824 = arith.mulf %823, %236 : vector<2x128xf32>
    %825 = arith.addf %820, %824 : vector<2x128xf32>
    %c155 = arith.constant 155 : index
    %c0_352 = arith.constant 0 : index
    %c0_353 = arith.constant 0 : index
    %826 = vector.load %arg2[%c155, %c0_352, %c0_353] : memref<424x8x128xf32, #tpu.memory_space<vmem>>, vector<1x8x128xf32>
    %827 = vector.shape_cast %826 : vector<1x8x128xf32> to vector<8x128xf32>
    %828 = vector.extract_strided_slice %827 {offsets = [0, 0], sizes = [2, 128], strides = [1, 1]} : vector<8x128xf32> to vector<2x128xf32>
    %829 = arith.mulf %828, %257 : vector<2x128xf32>
    %830 = arith.addf %825, %829 : vector<2x128xf32>
    %c156 = arith.constant 156 : index
    %c0_354 = arith.constant 0 : index
    %c0_355 = arith.constant 0 : index
    %831 = vector.load %arg2[%c156, %c0_354, %c0_355] : memref<424x8x128xf32, #tpu.memory_space<vmem>>, vector<1x8x128xf32>
    %832 = vector.shape_cast %831 : vector<1x8x128xf32> to vector<8x128xf32>
    %833 = vector.extract_strided_slice %832 {offsets = [0, 0], sizes = [2, 128], strides = [1, 1]} : vector<8x128xf32> to vector<2x128xf32>
    %834 = arith.mulf %833, %278 : vector<2x128xf32>
    %835 = arith.addf %830, %834 : vector<2x128xf32>
    %c157 = arith.constant 157 : index
    %c0_356 = arith.constant 0 : index
    %c0_357 = arith.constant 0 : index
    %836 = vector.load %arg2[%c157, %c0_356, %c0_357] : memref<424x8x128xf32, #tpu.memory_space<vmem>>, vector<1x8x128xf32>
    %837 = vector.shape_cast %836 : vector<1x8x128xf32> to vector<8x128xf32>
    %838 = vector.extract_strided_slice %837 {offsets = [0, 0], sizes = [2, 128], strides = [1, 1]} : vector<8x128xf32> to vector<2x128xf32>
    %839 = arith.mulf %838, %299 : vector<2x128xf32>
    %840 = arith.addf %835, %839 : vector<2x128xf32>
    %c158 = arith.constant 158 : index
    %c0_358 = arith.constant 0 : index
    %c0_359 = arith.constant 0 : index
    %841 = vector.load %arg2[%c158, %c0_358, %c0_359] : memref<424x8x128xf32, #tpu.memory_space<vmem>>, vector<1x8x128xf32>
    %842 = vector.shape_cast %841 : vector<1x8x128xf32> to vector<8x128xf32>
    %843 = vector.extract_strided_slice %842 {offsets = [0, 0], sizes = [2, 128], strides = [1, 1]} : vector<8x128xf32> to vector<2x128xf32>
    %844 = arith.mulf %843, %320 : vector<2x128xf32>
    %845 = arith.addf %840, %844 : vector<2x128xf32>
    %c159 = arith.constant 159 : index
    %c0_360 = arith.constant 0 : index
    %c0_361 = arith.constant 0 : index
    %846 = vector.load %arg2[%c159, %c0_360, %c0_361] : memref<424x8x128xf32, #tpu.memory_space<vmem>>, vector<1x8x128xf32>
    %847 = vector.shape_cast %846 : vector<1x8x128xf32> to vector<8x128xf32>
    %848 = vector.extract_strided_slice %847 {offsets = [0, 0], sizes = [2, 128], strides = [1, 1]} : vector<8x128xf32> to vector<2x128xf32>
    %849 = arith.mulf %848, %341 : vector<2x128xf32>
    %850 = arith.addf %845, %849 : vector<2x128xf32>
    %c325 = arith.constant 325 : index
    %c0_362 = arith.constant 0 : index
    %c0_363 = arith.constant 0 : index
    %851 = vector.load %arg2[%c325, %c0_362, %c0_363] : memref<424x8x128xf32, #tpu.memory_space<vmem>>, vector<1x8x128xf32>
    %852 = vector.shape_cast %851 : vector<1x8x128xf32> to vector<8x128xf32>
    %853 = vector.extract_strided_slice %852 {offsets = [0, 0], sizes = [2, 128], strides = [1, 1]} : vector<8x128xf32> to vector<2x128xf32>
    %854 = arith.addf %850, %853 : vector<2x128xf32>
    %cst_364 = arith.constant 1.000000e-01 : f32
    %855 = vector.broadcast %cst_364 : f32 to vector<2x128xf32>
    %856 = arith.mulf %855, %854 : vector<2x128xf32>
    %857 = arith.maximumf %854, %856 : vector<2x128xf32>
    %c160 = arith.constant 160 : index
    %c0_365 = arith.constant 0 : index
    %c0_366 = arith.constant 0 : index
    %858 = vector.load %arg2[%c160, %c0_365, %c0_366] : memref<424x8x128xf32, #tpu.memory_space<vmem>>, vector<1x8x128xf32>
    %859 = vector.shape_cast %858 : vector<1x8x128xf32> to vector<8x128xf32>
    %860 = vector.extract_strided_slice %859 {offsets = [0, 0], sizes = [2, 128], strides = [1, 1]} : vector<8x128xf32> to vector<2x128xf32>
    %861 = arith.mulf %860, %26 : vector<2x128xf32>
    %c161 = arith.constant 161 : index
    %c0_367 = arith.constant 0 : index
    %c0_368 = arith.constant 0 : index
    %862 = vector.load %arg2[%c161, %c0_367, %c0_368] : memref<424x8x128xf32, #tpu.memory_space<vmem>>, vector<1x8x128xf32>
    %863 = vector.shape_cast %862 : vector<1x8x128xf32> to vector<8x128xf32>
    %864 = vector.extract_strided_slice %863 {offsets = [0, 0], sizes = [2, 128], strides = [1, 1]} : vector<8x128xf32> to vector<2x128xf32>
    %865 = arith.mulf %864, %47 : vector<2x128xf32>
    %866 = arith.addf %861, %865 : vector<2x128xf32>
    %c162 = arith.constant 162 : index
    %c0_369 = arith.constant 0 : index
    %c0_370 = arith.constant 0 : index
    %867 = vector.load %arg2[%c162, %c0_369, %c0_370] : memref<424x8x128xf32, #tpu.memory_space<vmem>>, vector<1x8x128xf32>
    %868 = vector.shape_cast %867 : vector<1x8x128xf32> to vector<8x128xf32>
    %869 = vector.extract_strided_slice %868 {offsets = [0, 0], sizes = [2, 128], strides = [1, 1]} : vector<8x128xf32> to vector<2x128xf32>
    %870 = arith.mulf %869, %68 : vector<2x128xf32>
    %871 = arith.addf %866, %870 : vector<2x128xf32>
    %c163 = arith.constant 163 : index
    %c0_371 = arith.constant 0 : index
    %c0_372 = arith.constant 0 : index
    %872 = vector.load %arg2[%c163, %c0_371, %c0_372] : memref<424x8x128xf32, #tpu.memory_space<vmem>>, vector<1x8x128xf32>
    %873 = vector.shape_cast %872 : vector<1x8x128xf32> to vector<8x128xf32>
    %874 = vector.extract_strided_slice %873 {offsets = [0, 0], sizes = [2, 128], strides = [1, 1]} : vector<8x128xf32> to vector<2x128xf32>
    %875 = arith.mulf %874, %89 : vector<2x128xf32>
    %876 = arith.addf %871, %875 : vector<2x128xf32>
    %c164 = arith.constant 164 : index
    %c0_373 = arith.constant 0 : index
    %c0_374 = arith.constant 0 : index
    %877 = vector.load %arg2[%c164, %c0_373, %c0_374] : memref<424x8x128xf32, #tpu.memory_space<vmem>>, vector<1x8x128xf32>
    %878 = vector.shape_cast %877 : vector<1x8x128xf32> to vector<8x128xf32>
    %879 = vector.extract_strided_slice %878 {offsets = [0, 0], sizes = [2, 128], strides = [1, 1]} : vector<8x128xf32> to vector<2x128xf32>
    %880 = arith.mulf %879, %110 : vector<2x128xf32>
    %881 = arith.addf %876, %880 : vector<2x128xf32>
    %c165 = arith.constant 165 : index
    %c0_375 = arith.constant 0 : index
    %c0_376 = arith.constant 0 : index
    %882 = vector.load %arg2[%c165, %c0_375, %c0_376] : memref<424x8x128xf32, #tpu.memory_space<vmem>>, vector<1x8x128xf32>
    %883 = vector.shape_cast %882 : vector<1x8x128xf32> to vector<8x128xf32>
    %884 = vector.extract_strided_slice %883 {offsets = [0, 0], sizes = [2, 128], strides = [1, 1]} : vector<8x128xf32> to vector<2x128xf32>
    %885 = arith.mulf %884, %131 : vector<2x128xf32>
    %886 = arith.addf %881, %885 : vector<2x128xf32>
    %c166 = arith.constant 166 : index
    %c0_377 = arith.constant 0 : index
    %c0_378 = arith.constant 0 : index
    %887 = vector.load %arg2[%c166, %c0_377, %c0_378] : memref<424x8x128xf32, #tpu.memory_space<vmem>>, vector<1x8x128xf32>
    %888 = vector.shape_cast %887 : vector<1x8x128xf32> to vector<8x128xf32>
    %889 = vector.extract_strided_slice %888 {offsets = [0, 0], sizes = [2, 128], strides = [1, 1]} : vector<8x128xf32> to vector<2x128xf32>
    %890 = arith.mulf %889, %152 : vector<2x128xf32>
    %891 = arith.addf %886, %890 : vector<2x128xf32>
    %c167 = arith.constant 167 : index
    %c0_379 = arith.constant 0 : index
    %c0_380 = arith.constant 0 : index
    %892 = vector.load %arg2[%c167, %c0_379, %c0_380] : memref<424x8x128xf32, #tpu.memory_space<vmem>>, vector<1x8x128xf32>
    %893 = vector.shape_cast %892 : vector<1x8x128xf32> to vector<8x128xf32>
    %894 = vector.extract_strided_slice %893 {offsets = [0, 0], sizes = [2, 128], strides = [1, 1]} : vector<8x128xf32> to vector<2x128xf32>
    %895 = arith.mulf %894, %173 : vector<2x128xf32>
    %896 = arith.addf %891, %895 : vector<2x128xf32>
    %c168 = arith.constant 168 : index
    %c0_381 = arith.constant 0 : index
    %c0_382 = arith.constant 0 : index
    %897 = vector.load %arg2[%c168, %c0_381, %c0_382] : memref<424x8x128xf32, #tpu.memory_space<vmem>>, vector<1x8x128xf32>
    %898 = vector.shape_cast %897 : vector<1x8x128xf32> to vector<8x128xf32>
    %899 = vector.extract_strided_slice %898 {offsets = [0, 0], sizes = [2, 128], strides = [1, 1]} : vector<8x128xf32> to vector<2x128xf32>
    %900 = arith.mulf %899, %194 : vector<2x128xf32>
    %901 = arith.addf %896, %900 : vector<2x128xf32>
    %c169 = arith.constant 169 : index
    %c0_383 = arith.constant 0 : index
    %c0_384 = arith.constant 0 : index
    %902 = vector.load %arg2[%c169, %c0_383, %c0_384] : memref<424x8x128xf32, #tpu.memory_space<vmem>>, vector<1x8x128xf32>
    %903 = vector.shape_cast %902 : vector<1x8x128xf32> to vector<8x128xf32>
    %904 = vector.extract_strided_slice %903 {offsets = [0, 0], sizes = [2, 128], strides = [1, 1]} : vector<8x128xf32> to vector<2x128xf32>
    %905 = arith.mulf %904, %215 : vector<2x128xf32>
    %906 = arith.addf %901, %905 : vector<2x128xf32>
    %c170 = arith.constant 170 : index
    %c0_385 = arith.constant 0 : index
    %c0_386 = arith.constant 0 : index
    %907 = vector.load %arg2[%c170, %c0_385, %c0_386] : memref<424x8x128xf32, #tpu.memory_space<vmem>>, vector<1x8x128xf32>
    %908 = vector.shape_cast %907 : vector<1x8x128xf32> to vector<8x128xf32>
    %909 = vector.extract_strided_slice %908 {offsets = [0, 0], sizes = [2, 128], strides = [1, 1]} : vector<8x128xf32> to vector<2x128xf32>
    %910 = arith.mulf %909, %236 : vector<2x128xf32>
    %911 = arith.addf %906, %910 : vector<2x128xf32>
    %c171 = arith.constant 171 : index
    %c0_387 = arith.constant 0 : index
    %c0_388 = arith.constant 0 : index
    %912 = vector.load %arg2[%c171, %c0_387, %c0_388] : memref<424x8x128xf32, #tpu.memory_space<vmem>>, vector<1x8x128xf32>
    %913 = vector.shape_cast %912 : vector<1x8x128xf32> to vector<8x128xf32>
    %914 = vector.extract_strided_slice %913 {offsets = [0, 0], sizes = [2, 128], strides = [1, 1]} : vector<8x128xf32> to vector<2x128xf32>
    %915 = arith.mulf %914, %257 : vector<2x128xf32>
    %916 = arith.addf %911, %915 : vector<2x128xf32>
    %c172 = arith.constant 172 : index
    %c0_389 = arith.constant 0 : index
    %c0_390 = arith.constant 0 : index
    %917 = vector.load %arg2[%c172, %c0_389, %c0_390] : memref<424x8x128xf32, #tpu.memory_space<vmem>>, vector<1x8x128xf32>
    %918 = vector.shape_cast %917 : vector<1x8x128xf32> to vector<8x128xf32>
    %919 = vector.extract_strided_slice %918 {offsets = [0, 0], sizes = [2, 128], strides = [1, 1]} : vector<8x128xf32> to vector<2x128xf32>
    %920 = arith.mulf %919, %278 : vector<2x128xf32>
    %921 = arith.addf %916, %920 : vector<2x128xf32>
    %c173 = arith.constant 173 : index
    %c0_391 = arith.constant 0 : index
    %c0_392 = arith.constant 0 : index
    %922 = vector.load %arg2[%c173, %c0_391, %c0_392] : memref<424x8x128xf32, #tpu.memory_space<vmem>>, vector<1x8x128xf32>
    %923 = vector.shape_cast %922 : vector<1x8x128xf32> to vector<8x128xf32>
    %924 = vector.extract_strided_slice %923 {offsets = [0, 0], sizes = [2, 128], strides = [1, 1]} : vector<8x128xf32> to vector<2x128xf32>
    %925 = arith.mulf %924, %299 : vector<2x128xf32>
    %926 = arith.addf %921, %925 : vector<2x128xf32>
    %c174 = arith.constant 174 : index
    %c0_393 = arith.constant 0 : index
    %c0_394 = arith.constant 0 : index
    %927 = vector.load %arg2[%c174, %c0_393, %c0_394] : memref<424x8x128xf32, #tpu.memory_space<vmem>>, vector<1x8x128xf32>
    %928 = vector.shape_cast %927 : vector<1x8x128xf32> to vector<8x128xf32>
    %929 = vector.extract_strided_slice %928 {offsets = [0, 0], sizes = [2, 128], strides = [1, 1]} : vector<8x128xf32> to vector<2x128xf32>
    %930 = arith.mulf %929, %320 : vector<2x128xf32>
    %931 = arith.addf %926, %930 : vector<2x128xf32>
    %c175 = arith.constant 175 : index
    %c0_395 = arith.constant 0 : index
    %c0_396 = arith.constant 0 : index
    %932 = vector.load %arg2[%c175, %c0_395, %c0_396] : memref<424x8x128xf32, #tpu.memory_space<vmem>>, vector<1x8x128xf32>
    %933 = vector.shape_cast %932 : vector<1x8x128xf32> to vector<8x128xf32>
    %934 = vector.extract_strided_slice %933 {offsets = [0, 0], sizes = [2, 128], strides = [1, 1]} : vector<8x128xf32> to vector<2x128xf32>
    %935 = arith.mulf %934, %341 : vector<2x128xf32>
    %936 = arith.addf %931, %935 : vector<2x128xf32>
    %c326 = arith.constant 326 : index
    %c0_397 = arith.constant 0 : index
    %c0_398 = arith.constant 0 : index
    %937 = vector.load %arg2[%c326, %c0_397, %c0_398] : memref<424x8x128xf32, #tpu.memory_space<vmem>>, vector<1x8x128xf32>
    %938 = vector.shape_cast %937 : vector<1x8x128xf32> to vector<8x128xf32>
    %939 = vector.extract_strided_slice %938 {offsets = [0, 0], sizes = [2, 128], strides = [1, 1]} : vector<8x128xf32> to vector<2x128xf32>
    %940 = arith.addf %936, %939 : vector<2x128xf32>
    %cst_399 = arith.constant 1.000000e-01 : f32
    %941 = vector.broadcast %cst_399 : f32 to vector<2x128xf32>
    %942 = arith.mulf %941, %940 : vector<2x128xf32>
    %943 = arith.maximumf %940, %942 : vector<2x128xf32>
    %c176 = arith.constant 176 : index
    %c0_400 = arith.constant 0 : index
    %c0_401 = arith.constant 0 : index
    %944 = vector.load %arg2[%c176, %c0_400, %c0_401] : memref<424x8x128xf32, #tpu.memory_space<vmem>>, vector<1x8x128xf32>
    %945 = vector.shape_cast %944 : vector<1x8x128xf32> to vector<8x128xf32>
    %946 = vector.extract_strided_slice %945 {offsets = [0, 0], sizes = [2, 128], strides = [1, 1]} : vector<8x128xf32> to vector<2x128xf32>
    %947 = arith.mulf %946, %26 : vector<2x128xf32>
    %c177 = arith.constant 177 : index
    %c0_402 = arith.constant 0 : index
    %c0_403 = arith.constant 0 : index
    %948 = vector.load %arg2[%c177, %c0_402, %c0_403] : memref<424x8x128xf32, #tpu.memory_space<vmem>>, vector<1x8x128xf32>
    %949 = vector.shape_cast %948 : vector<1x8x128xf32> to vector<8x128xf32>
    %950 = vector.extract_strided_slice %949 {offsets = [0, 0], sizes = [2, 128], strides = [1, 1]} : vector<8x128xf32> to vector<2x128xf32>
    %951 = arith.mulf %950, %47 : vector<2x128xf32>
    %952 = arith.addf %947, %951 : vector<2x128xf32>
    %c178 = arith.constant 178 : index
    %c0_404 = arith.constant 0 : index
    %c0_405 = arith.constant 0 : index
    %953 = vector.load %arg2[%c178, %c0_404, %c0_405] : memref<424x8x128xf32, #tpu.memory_space<vmem>>, vector<1x8x128xf32>
    %954 = vector.shape_cast %953 : vector<1x8x128xf32> to vector<8x128xf32>
    %955 = vector.extract_strided_slice %954 {offsets = [0, 0], sizes = [2, 128], strides = [1, 1]} : vector<8x128xf32> to vector<2x128xf32>
    %956 = arith.mulf %955, %68 : vector<2x128xf32>
    %957 = arith.addf %952, %956 : vector<2x128xf32>
    %c179 = arith.constant 179 : index
    %c0_406 = arith.constant 0 : index
    %c0_407 = arith.constant 0 : index
    %958 = vector.load %arg2[%c179, %c0_406, %c0_407] : memref<424x8x128xf32, #tpu.memory_space<vmem>>, vector<1x8x128xf32>
    %959 = vector.shape_cast %958 : vector<1x8x128xf32> to vector<8x128xf32>
    %960 = vector.extract_strided_slice %959 {offsets = [0, 0], sizes = [2, 128], strides = [1, 1]} : vector<8x128xf32> to vector<2x128xf32>
    %961 = arith.mulf %960, %89 : vector<2x128xf32>
    %962 = arith.addf %957, %961 : vector<2x128xf32>
    %c180 = arith.constant 180 : index
    %c0_408 = arith.constant 0 : index
    %c0_409 = arith.constant 0 : index
    %963 = vector.load %arg2[%c180, %c0_408, %c0_409] : memref<424x8x128xf32, #tpu.memory_space<vmem>>, vector<1x8x128xf32>
    %964 = vector.shape_cast %963 : vector<1x8x128xf32> to vector<8x128xf32>
    %965 = vector.extract_strided_slice %964 {offsets = [0, 0], sizes = [2, 128], strides = [1, 1]} : vector<8x128xf32> to vector<2x128xf32>
    %966 = arith.mulf %965, %110 : vector<2x128xf32>
    %967 = arith.addf %962, %966 : vector<2x128xf32>
    %c181 = arith.constant 181 : index
    %c0_410 = arith.constant 0 : index
    %c0_411 = arith.constant 0 : index
    %968 = vector.load %arg2[%c181, %c0_410, %c0_411] : memref<424x8x128xf32, #tpu.memory_space<vmem>>, vector<1x8x128xf32>
    %969 = vector.shape_cast %968 : vector<1x8x128xf32> to vector<8x128xf32>
    %970 = vector.extract_strided_slice %969 {offsets = [0, 0], sizes = [2, 128], strides = [1, 1]} : vector<8x128xf32> to vector<2x128xf32>
    %971 = arith.mulf %970, %131 : vector<2x128xf32>
    %972 = arith.addf %967, %971 : vector<2x128xf32>
    %c182 = arith.constant 182 : index
    %c0_412 = arith.constant 0 : index
    %c0_413 = arith.constant 0 : index
    %973 = vector.load %arg2[%c182, %c0_412, %c0_413] : memref<424x8x128xf32, #tpu.memory_space<vmem>>, vector<1x8x128xf32>
    %974 = vector.shape_cast %973 : vector<1x8x128xf32> to vector<8x128xf32>
    %975 = vector.extract_strided_slice %974 {offsets = [0, 0], sizes = [2, 128], strides = [1, 1]} : vector<8x128xf32> to vector<2x128xf32>
    %976 = arith.mulf %975, %152 : vector<2x128xf32>
    %977 = arith.addf %972, %976 : vector<2x128xf32>
    %c183 = arith.constant 183 : index
    %c0_414 = arith.constant 0 : index
    %c0_415 = arith.constant 0 : index
    %978 = vector.load %arg2[%c183, %c0_414, %c0_415] : memref<424x8x128xf32, #tpu.memory_space<vmem>>, vector<1x8x128xf32>
    %979 = vector.shape_cast %978 : vector<1x8x128xf32> to vector<8x128xf32>
    %980 = vector.extract_strided_slice %979 {offsets = [0, 0], sizes = [2, 128], strides = [1, 1]} : vector<8x128xf32> to vector<2x128xf32>
    %981 = arith.mulf %980, %173 : vector<2x128xf32>
    %982 = arith.addf %977, %981 : vector<2x128xf32>
    %c184 = arith.constant 184 : index
    %c0_416 = arith.constant 0 : index
    %c0_417 = arith.constant 0 : index
    %983 = vector.load %arg2[%c184, %c0_416, %c0_417] : memref<424x8x128xf32, #tpu.memory_space<vmem>>, vector<1x8x128xf32>
    %984 = vector.shape_cast %983 : vector<1x8x128xf32> to vector<8x128xf32>
    %985 = vector.extract_strided_slice %984 {offsets = [0, 0], sizes = [2, 128], strides = [1, 1]} : vector<8x128xf32> to vector<2x128xf32>
    %986 = arith.mulf %985, %194 : vector<2x128xf32>
    %987 = arith.addf %982, %986 : vector<2x128xf32>
    %c185 = arith.constant 185 : index
    %c0_418 = arith.constant 0 : index
    %c0_419 = arith.constant 0 : index
    %988 = vector.load %arg2[%c185, %c0_418, %c0_419] : memref<424x8x128xf32, #tpu.memory_space<vmem>>, vector<1x8x128xf32>
    %989 = vector.shape_cast %988 : vector<1x8x128xf32> to vector<8x128xf32>
    %990 = vector.extract_strided_slice %989 {offsets = [0, 0], sizes = [2, 128], strides = [1, 1]} : vector<8x128xf32> to vector<2x128xf32>
    %991 = arith.mulf %990, %215 : vector<2x128xf32>
    %992 = arith.addf %987, %991 : vector<2x128xf32>
    %c186 = arith.constant 186 : index
    %c0_420 = arith.constant 0 : index
    %c0_421 = arith.constant 0 : index
    %993 = vector.load %arg2[%c186, %c0_420, %c0_421] : memref<424x8x128xf32, #tpu.memory_space<vmem>>, vector<1x8x128xf32>
    %994 = vector.shape_cast %993 : vector<1x8x128xf32> to vector<8x128xf32>
    %995 = vector.extract_strided_slice %994 {offsets = [0, 0], sizes = [2, 128], strides = [1, 1]} : vector<8x128xf32> to vector<2x128xf32>
    %996 = arith.mulf %995, %236 : vector<2x128xf32>
    %997 = arith.addf %992, %996 : vector<2x128xf32>
    %c187 = arith.constant 187 : index
    %c0_422 = arith.constant 0 : index
    %c0_423 = arith.constant 0 : index
    %998 = vector.load %arg2[%c187, %c0_422, %c0_423] : memref<424x8x128xf32, #tpu.memory_space<vmem>>, vector<1x8x128xf32>
    %999 = vector.shape_cast %998 : vector<1x8x128xf32> to vector<8x128xf32>
    %1000 = vector.extract_strided_slice %999 {offsets = [0, 0], sizes = [2, 128], strides = [1, 1]} : vector<8x128xf32> to vector<2x128xf32>
    %1001 = arith.mulf %1000, %257 : vector<2x128xf32>
    %1002 = arith.addf %997, %1001 : vector<2x128xf32>
    %c188 = arith.constant 188 : index
    %c0_424 = arith.constant 0 : index
    %c0_425 = arith.constant 0 : index
    %1003 = vector.load %arg2[%c188, %c0_424, %c0_425] : memref<424x8x128xf32, #tpu.memory_space<vmem>>, vector<1x8x128xf32>
    %1004 = vector.shape_cast %1003 : vector<1x8x128xf32> to vector<8x128xf32>
    %1005 = vector.extract_strided_slice %1004 {offsets = [0, 0], sizes = [2, 128], strides = [1, 1]} : vector<8x128xf32> to vector<2x128xf32>
    %1006 = arith.mulf %1005, %278 : vector<2x128xf32>
    %1007 = arith.addf %1002, %1006 : vector<2x128xf32>
    %c189 = arith.constant 189 : index
    %c0_426 = arith.constant 0 : index
    %c0_427 = arith.constant 0 : index
    %1008 = vector.load %arg2[%c189, %c0_426, %c0_427] : memref<424x8x128xf32, #tpu.memory_space<vmem>>, vector<1x8x128xf32>
    %1009 = vector.shape_cast %1008 : vector<1x8x128xf32> to vector<8x128xf32>
    %1010 = vector.extract_strided_slice %1009 {offsets = [0, 0], sizes = [2, 128], strides = [1, 1]} : vector<8x128xf32> to vector<2x128xf32>
    %1011 = arith.mulf %1010, %299 : vector<2x128xf32>
    %1012 = arith.addf %1007, %1011 : vector<2x128xf32>
    %c190 = arith.constant 190 : index
    %c0_428 = arith.constant 0 : index
    %c0_429 = arith.constant 0 : index
    %1013 = vector.load %arg2[%c190, %c0_428, %c0_429] : memref<424x8x128xf32, #tpu.memory_space<vmem>>, vector<1x8x128xf32>
    %1014 = vector.shape_cast %1013 : vector<1x8x128xf32> to vector<8x128xf32>
    %1015 = vector.extract_strided_slice %1014 {offsets = [0, 0], sizes = [2, 128], strides = [1, 1]} : vector<8x128xf32> to vector<2x128xf32>
    %1016 = arith.mulf %1015, %320 : vector<2x128xf32>
    %1017 = arith.addf %1012, %1016 : vector<2x128xf32>
    %c191 = arith.constant 191 : index
    %c0_430 = arith.constant 0 : index
    %c0_431 = arith.constant 0 : index
    %1018 = vector.load %arg2[%c191, %c0_430, %c0_431] : memref<424x8x128xf32, #tpu.memory_space<vmem>>, vector<1x8x128xf32>
    %1019 = vector.shape_cast %1018 : vector<1x8x128xf32> to vector<8x128xf32>
    %1020 = vector.extract_strided_slice %1019 {offsets = [0, 0], sizes = [2, 128], strides = [1, 1]} : vector<8x128xf32> to vector<2x128xf32>
    %1021 = arith.mulf %1020, %341 : vector<2x128xf32>
    %1022 = arith.addf %1017, %1021 : vector<2x128xf32>
    %c327 = arith.constant 327 : index
    %c0_432 = arith.constant 0 : index
    %c0_433 = arith.constant 0 : index
    %1023 = vector.load %arg2[%c327, %c0_432, %c0_433] : memref<424x8x128xf32, #tpu.memory_space<vmem>>, vector<1x8x128xf32>
    %1024 = vector.shape_cast %1023 : vector<1x8x128xf32> to vector<8x128xf32>
    %1025 = vector.extract_strided_slice %1024 {offsets = [0, 0], sizes = [2, 128], strides = [1, 1]} : vector<8x128xf32> to vector<2x128xf32>
    %1026 = arith.addf %1022, %1025 : vector<2x128xf32>
    %cst_434 = arith.constant 1.000000e-01 : f32
    %1027 = vector.broadcast %cst_434 : f32 to vector<2x128xf32>
    %1028 = arith.mulf %1027, %1026 : vector<2x128xf32>
    %1029 = arith.maximumf %1026, %1028 : vector<2x128xf32>
    %c192 = arith.constant 192 : index
    %c0_435 = arith.constant 0 : index
    %c0_436 = arith.constant 0 : index
    %1030 = vector.load %arg2[%c192, %c0_435, %c0_436] : memref<424x8x128xf32, #tpu.memory_space<vmem>>, vector<1x8x128xf32>
    %1031 = vector.shape_cast %1030 : vector<1x8x128xf32> to vector<8x128xf32>
    %1032 = vector.extract_strided_slice %1031 {offsets = [0, 0], sizes = [2, 128], strides = [1, 1]} : vector<8x128xf32> to vector<2x128xf32>
    %1033 = arith.mulf %1032, %26 : vector<2x128xf32>
    %c193 = arith.constant 193 : index
    %c0_437 = arith.constant 0 : index
    %c0_438 = arith.constant 0 : index
    %1034 = vector.load %arg2[%c193, %c0_437, %c0_438] : memref<424x8x128xf32, #tpu.memory_space<vmem>>, vector<1x8x128xf32>
    %1035 = vector.shape_cast %1034 : vector<1x8x128xf32> to vector<8x128xf32>
    %1036 = vector.extract_strided_slice %1035 {offsets = [0, 0], sizes = [2, 128], strides = [1, 1]} : vector<8x128xf32> to vector<2x128xf32>
    %1037 = arith.mulf %1036, %47 : vector<2x128xf32>
    %1038 = arith.addf %1033, %1037 : vector<2x128xf32>
    %c194 = arith.constant 194 : index
    %c0_439 = arith.constant 0 : index
    %c0_440 = arith.constant 0 : index
    %1039 = vector.load %arg2[%c194, %c0_439, %c0_440] : memref<424x8x128xf32, #tpu.memory_space<vmem>>, vector<1x8x128xf32>
    %1040 = vector.shape_cast %1039 : vector<1x8x128xf32> to vector<8x128xf32>
    %1041 = vector.extract_strided_slice %1040 {offsets = [0, 0], sizes = [2, 128], strides = [1, 1]} : vector<8x128xf32> to vector<2x128xf32>
    %1042 = arith.mulf %1041, %68 : vector<2x128xf32>
    %1043 = arith.addf %1038, %1042 : vector<2x128xf32>
    %c195 = arith.constant 195 : index
    %c0_441 = arith.constant 0 : index
    %c0_442 = arith.constant 0 : index
    %1044 = vector.load %arg2[%c195, %c0_441, %c0_442] : memref<424x8x128xf32, #tpu.memory_space<vmem>>, vector<1x8x128xf32>
    %1045 = vector.shape_cast %1044 : vector<1x8x128xf32> to vector<8x128xf32>
    %1046 = vector.extract_strided_slice %1045 {offsets = [0, 0], sizes = [2, 128], strides = [1, 1]} : vector<8x128xf32> to vector<2x128xf32>
    %1047 = arith.mulf %1046, %89 : vector<2x128xf32>
    %1048 = arith.addf %1043, %1047 : vector<2x128xf32>
    %c196 = arith.constant 196 : index
    %c0_443 = arith.constant 0 : index
    %c0_444 = arith.constant 0 : index
    %1049 = vector.load %arg2[%c196, %c0_443, %c0_444] : memref<424x8x128xf32, #tpu.memory_space<vmem>>, vector<1x8x128xf32>
    %1050 = vector.shape_cast %1049 : vector<1x8x128xf32> to vector<8x128xf32>
    %1051 = vector.extract_strided_slice %1050 {offsets = [0, 0], sizes = [2, 128], strides = [1, 1]} : vector<8x128xf32> to vector<2x128xf32>
    %1052 = arith.mulf %1051, %110 : vector<2x128xf32>
    %1053 = arith.addf %1048, %1052 : vector<2x128xf32>
    %c197 = arith.constant 197 : index
    %c0_445 = arith.constant 0 : index
    %c0_446 = arith.constant 0 : index
    %1054 = vector.load %arg2[%c197, %c0_445, %c0_446] : memref<424x8x128xf32, #tpu.memory_space<vmem>>, vector<1x8x128xf32>
    %1055 = vector.shape_cast %1054 : vector<1x8x128xf32> to vector<8x128xf32>
    %1056 = vector.extract_strided_slice %1055 {offsets = [0, 0], sizes = [2, 128], strides = [1, 1]} : vector<8x128xf32> to vector<2x128xf32>
    %1057 = arith.mulf %1056, %131 : vector<2x128xf32>
    %1058 = arith.addf %1053, %1057 : vector<2x128xf32>
    %c198 = arith.constant 198 : index
    %c0_447 = arith.constant 0 : index
    %c0_448 = arith.constant 0 : index
    %1059 = vector.load %arg2[%c198, %c0_447, %c0_448] : memref<424x8x128xf32, #tpu.memory_space<vmem>>, vector<1x8x128xf32>
    %1060 = vector.shape_cast %1059 : vector<1x8x128xf32> to vector<8x128xf32>
    %1061 = vector.extract_strided_slice %1060 {offsets = [0, 0], sizes = [2, 128], strides = [1, 1]} : vector<8x128xf32> to vector<2x128xf32>
    %1062 = arith.mulf %1061, %152 : vector<2x128xf32>
    %1063 = arith.addf %1058, %1062 : vector<2x128xf32>
    %c199 = arith.constant 199 : index
    %c0_449 = arith.constant 0 : index
    %c0_450 = arith.constant 0 : index
    %1064 = vector.load %arg2[%c199, %c0_449, %c0_450] : memref<424x8x128xf32, #tpu.memory_space<vmem>>, vector<1x8x128xf32>
    %1065 = vector.shape_cast %1064 : vector<1x8x128xf32> to vector<8x128xf32>
    %1066 = vector.extract_strided_slice %1065 {offsets = [0, 0], sizes = [2, 128], strides = [1, 1]} : vector<8x128xf32> to vector<2x128xf32>
    %1067 = arith.mulf %1066, %173 : vector<2x128xf32>
    %1068 = arith.addf %1063, %1067 : vector<2x128xf32>
    %c200 = arith.constant 200 : index
    %c0_451 = arith.constant 0 : index
    %c0_452 = arith.constant 0 : index
    %1069 = vector.load %arg2[%c200, %c0_451, %c0_452] : memref<424x8x128xf32, #tpu.memory_space<vmem>>, vector<1x8x128xf32>
    %1070 = vector.shape_cast %1069 : vector<1x8x128xf32> to vector<8x128xf32>
    %1071 = vector.extract_strided_slice %1070 {offsets = [0, 0], sizes = [2, 128], strides = [1, 1]} : vector<8x128xf32> to vector<2x128xf32>
    %1072 = arith.mulf %1071, %194 : vector<2x128xf32>
    %1073 = arith.addf %1068, %1072 : vector<2x128xf32>
    %c201 = arith.constant 201 : index
    %c0_453 = arith.constant 0 : index
    %c0_454 = arith.constant 0 : index
    %1074 = vector.load %arg2[%c201, %c0_453, %c0_454] : memref<424x8x128xf32, #tpu.memory_space<vmem>>, vector<1x8x128xf32>
    %1075 = vector.shape_cast %1074 : vector<1x8x128xf32> to vector<8x128xf32>
    %1076 = vector.extract_strided_slice %1075 {offsets = [0, 0], sizes = [2, 128], strides = [1, 1]} : vector<8x128xf32> to vector<2x128xf32>
    %1077 = arith.mulf %1076, %215 : vector<2x128xf32>
    %1078 = arith.addf %1073, %1077 : vector<2x128xf32>
    %c202 = arith.constant 202 : index
    %c0_455 = arith.constant 0 : index
    %c0_456 = arith.constant 0 : index
    %1079 = vector.load %arg2[%c202, %c0_455, %c0_456] : memref<424x8x128xf32, #tpu.memory_space<vmem>>, vector<1x8x128xf32>
    %1080 = vector.shape_cast %1079 : vector<1x8x128xf32> to vector<8x128xf32>
    %1081 = vector.extract_strided_slice %1080 {offsets = [0, 0], sizes = [2, 128], strides = [1, 1]} : vector<8x128xf32> to vector<2x128xf32>
    %1082 = arith.mulf %1081, %236 : vector<2x128xf32>
    %1083 = arith.addf %1078, %1082 : vector<2x128xf32>
    %c203 = arith.constant 203 : index
    %c0_457 = arith.constant 0 : index
    %c0_458 = arith.constant 0 : index
    %1084 = vector.load %arg2[%c203, %c0_457, %c0_458] : memref<424x8x128xf32, #tpu.memory_space<vmem>>, vector<1x8x128xf32>
    %1085 = vector.shape_cast %1084 : vector<1x8x128xf32> to vector<8x128xf32>
    %1086 = vector.extract_strided_slice %1085 {offsets = [0, 0], sizes = [2, 128], strides = [1, 1]} : vector<8x128xf32> to vector<2x128xf32>
    %1087 = arith.mulf %1086, %257 : vector<2x128xf32>
    %1088 = arith.addf %1083, %1087 : vector<2x128xf32>
    %c204 = arith.constant 204 : index
    %c0_459 = arith.constant 0 : index
    %c0_460 = arith.constant 0 : index
    %1089 = vector.load %arg2[%c204, %c0_459, %c0_460] : memref<424x8x128xf32, #tpu.memory_space<vmem>>, vector<1x8x128xf32>
    %1090 = vector.shape_cast %1089 : vector<1x8x128xf32> to vector<8x128xf32>
    %1091 = vector.extract_strided_slice %1090 {offsets = [0, 0], sizes = [2, 128], strides = [1, 1]} : vector<8x128xf32> to vector<2x128xf32>
    %1092 = arith.mulf %1091, %278 : vector<2x128xf32>
    %1093 = arith.addf %1088, %1092 : vector<2x128xf32>
    %c205 = arith.constant 205 : index
    %c0_461 = arith.constant 0 : index
    %c0_462 = arith.constant 0 : index
    %1094 = vector.load %arg2[%c205, %c0_461, %c0_462] : memref<424x8x128xf32, #tpu.memory_space<vmem>>, vector<1x8x128xf32>
    %1095 = vector.shape_cast %1094 : vector<1x8x128xf32> to vector<8x128xf32>
    %1096 = vector.extract_strided_slice %1095 {offsets = [0, 0], sizes = [2, 128], strides = [1, 1]} : vector<8x128xf32> to vector<2x128xf32>
    %1097 = arith.mulf %1096, %299 : vector<2x128xf32>
    %1098 = arith.addf %1093, %1097 : vector<2x128xf32>
    %c206 = arith.constant 206 : index
    %c0_463 = arith.constant 0 : index
    %c0_464 = arith.constant 0 : index
    %1099 = vector.load %arg2[%c206, %c0_463, %c0_464] : memref<424x8x128xf32, #tpu.memory_space<vmem>>, vector<1x8x128xf32>
    %1100 = vector.shape_cast %1099 : vector<1x8x128xf32> to vector<8x128xf32>
    %1101 = vector.extract_strided_slice %1100 {offsets = [0, 0], sizes = [2, 128], strides = [1, 1]} : vector<8x128xf32> to vector<2x128xf32>
    %1102 = arith.mulf %1101, %320 : vector<2x128xf32>
    %1103 = arith.addf %1098, %1102 : vector<2x128xf32>
    %c207 = arith.constant 207 : index
    %c0_465 = arith.constant 0 : index
    %c0_466 = arith.constant 0 : index
    %1104 = vector.load %arg2[%c207, %c0_465, %c0_466] : memref<424x8x128xf32, #tpu.memory_space<vmem>>, vector<1x8x128xf32>
    %1105 = vector.shape_cast %1104 : vector<1x8x128xf32> to vector<8x128xf32>
    %1106 = vector.extract_strided_slice %1105 {offsets = [0, 0], sizes = [2, 128], strides = [1, 1]} : vector<8x128xf32> to vector<2x128xf32>
    %1107 = arith.mulf %1106, %341 : vector<2x128xf32>
    %1108 = arith.addf %1103, %1107 : vector<2x128xf32>
    %c328 = arith.constant 328 : index
    %c0_467 = arith.constant 0 : index
    %c0_468 = arith.constant 0 : index
    %1109 = vector.load %arg2[%c328, %c0_467, %c0_468] : memref<424x8x128xf32, #tpu.memory_space<vmem>>, vector<1x8x128xf32>
    %1110 = vector.shape_cast %1109 : vector<1x8x128xf32> to vector<8x128xf32>
    %1111 = vector.extract_strided_slice %1110 {offsets = [0, 0], sizes = [2, 128], strides = [1, 1]} : vector<8x128xf32> to vector<2x128xf32>
    %1112 = arith.addf %1108, %1111 : vector<2x128xf32>
    %cst_469 = arith.constant 1.000000e-01 : f32
    %1113 = vector.broadcast %cst_469 : f32 to vector<2x128xf32>
    %1114 = arith.mulf %1113, %1112 : vector<2x128xf32>
    %1115 = arith.maximumf %1112, %1114 : vector<2x128xf32>
    %c208 = arith.constant 208 : index
    %c0_470 = arith.constant 0 : index
    %c0_471 = arith.constant 0 : index
    %1116 = vector.load %arg2[%c208, %c0_470, %c0_471] : memref<424x8x128xf32, #tpu.memory_space<vmem>>, vector<1x8x128xf32>
    %1117 = vector.shape_cast %1116 : vector<1x8x128xf32> to vector<8x128xf32>
    %1118 = vector.extract_strided_slice %1117 {offsets = [0, 0], sizes = [2, 128], strides = [1, 1]} : vector<8x128xf32> to vector<2x128xf32>
    %1119 = arith.mulf %1118, %26 : vector<2x128xf32>
    %c209 = arith.constant 209 : index
    %c0_472 = arith.constant 0 : index
    %c0_473 = arith.constant 0 : index
    %1120 = vector.load %arg2[%c209, %c0_472, %c0_473] : memref<424x8x128xf32, #tpu.memory_space<vmem>>, vector<1x8x128xf32>
    %1121 = vector.shape_cast %1120 : vector<1x8x128xf32> to vector<8x128xf32>
    %1122 = vector.extract_strided_slice %1121 {offsets = [0, 0], sizes = [2, 128], strides = [1, 1]} : vector<8x128xf32> to vector<2x128xf32>
    %1123 = arith.mulf %1122, %47 : vector<2x128xf32>
    %1124 = arith.addf %1119, %1123 : vector<2x128xf32>
    %c210 = arith.constant 210 : index
    %c0_474 = arith.constant 0 : index
    %c0_475 = arith.constant 0 : index
    %1125 = vector.load %arg2[%c210, %c0_474, %c0_475] : memref<424x8x128xf32, #tpu.memory_space<vmem>>, vector<1x8x128xf32>
    %1126 = vector.shape_cast %1125 : vector<1x8x128xf32> to vector<8x128xf32>
    %1127 = vector.extract_strided_slice %1126 {offsets = [0, 0], sizes = [2, 128], strides = [1, 1]} : vector<8x128xf32> to vector<2x128xf32>
    %1128 = arith.mulf %1127, %68 : vector<2x128xf32>
    %1129 = arith.addf %1124, %1128 : vector<2x128xf32>
    %c211 = arith.constant 211 : index
    %c0_476 = arith.constant 0 : index
    %c0_477 = arith.constant 0 : index
    %1130 = vector.load %arg2[%c211, %c0_476, %c0_477] : memref<424x8x128xf32, #tpu.memory_space<vmem>>, vector<1x8x128xf32>
    %1131 = vector.shape_cast %1130 : vector<1x8x128xf32> to vector<8x128xf32>
    %1132 = vector.extract_strided_slice %1131 {offsets = [0, 0], sizes = [2, 128], strides = [1, 1]} : vector<8x128xf32> to vector<2x128xf32>
    %1133 = arith.mulf %1132, %89 : vector<2x128xf32>
    %1134 = arith.addf %1129, %1133 : vector<2x128xf32>
    %c212 = arith.constant 212 : index
    %c0_478 = arith.constant 0 : index
    %c0_479 = arith.constant 0 : index
    %1135 = vector.load %arg2[%c212, %c0_478, %c0_479] : memref<424x8x128xf32, #tpu.memory_space<vmem>>, vector<1x8x128xf32>
    %1136 = vector.shape_cast %1135 : vector<1x8x128xf32> to vector<8x128xf32>
    %1137 = vector.extract_strided_slice %1136 {offsets = [0, 0], sizes = [2, 128], strides = [1, 1]} : vector<8x128xf32> to vector<2x128xf32>
    %1138 = arith.mulf %1137, %110 : vector<2x128xf32>
    %1139 = arith.addf %1134, %1138 : vector<2x128xf32>
    %c213 = arith.constant 213 : index
    %c0_480 = arith.constant 0 : index
    %c0_481 = arith.constant 0 : index
    %1140 = vector.load %arg2[%c213, %c0_480, %c0_481] : memref<424x8x128xf32, #tpu.memory_space<vmem>>, vector<1x8x128xf32>
    %1141 = vector.shape_cast %1140 : vector<1x8x128xf32> to vector<8x128xf32>
    %1142 = vector.extract_strided_slice %1141 {offsets = [0, 0], sizes = [2, 128], strides = [1, 1]} : vector<8x128xf32> to vector<2x128xf32>
    %1143 = arith.mulf %1142, %131 : vector<2x128xf32>
    %1144 = arith.addf %1139, %1143 : vector<2x128xf32>
    %c214 = arith.constant 214 : index
    %c0_482 = arith.constant 0 : index
    %c0_483 = arith.constant 0 : index
    %1145 = vector.load %arg2[%c214, %c0_482, %c0_483] : memref<424x8x128xf32, #tpu.memory_space<vmem>>, vector<1x8x128xf32>
    %1146 = vector.shape_cast %1145 : vector<1x8x128xf32> to vector<8x128xf32>
    %1147 = vector.extract_strided_slice %1146 {offsets = [0, 0], sizes = [2, 128], strides = [1, 1]} : vector<8x128xf32> to vector<2x128xf32>
    %1148 = arith.mulf %1147, %152 : vector<2x128xf32>
    %1149 = arith.addf %1144, %1148 : vector<2x128xf32>
    %c215 = arith.constant 215 : index
    %c0_484 = arith.constant 0 : index
    %c0_485 = arith.constant 0 : index
    %1150 = vector.load %arg2[%c215, %c0_484, %c0_485] : memref<424x8x128xf32, #tpu.memory_space<vmem>>, vector<1x8x128xf32>
    %1151 = vector.shape_cast %1150 : vector<1x8x128xf32> to vector<8x128xf32>
    %1152 = vector.extract_strided_slice %1151 {offsets = [0, 0], sizes = [2, 128], strides = [1, 1]} : vector<8x128xf32> to vector<2x128xf32>
    %1153 = arith.mulf %1152, %173 : vector<2x128xf32>
    %1154 = arith.addf %1149, %1153 : vector<2x128xf32>
    %c216 = arith.constant 216 : index
    %c0_486 = arith.constant 0 : index
    %c0_487 = arith.constant 0 : index
    %1155 = vector.load %arg2[%c216, %c0_486, %c0_487] : memref<424x8x128xf32, #tpu.memory_space<vmem>>, vector<1x8x128xf32>
    %1156 = vector.shape_cast %1155 : vector<1x8x128xf32> to vector<8x128xf32>
    %1157 = vector.extract_strided_slice %1156 {offsets = [0, 0], sizes = [2, 128], strides = [1, 1]} : vector<8x128xf32> to vector<2x128xf32>
    %1158 = arith.mulf %1157, %194 : vector<2x128xf32>
    %1159 = arith.addf %1154, %1158 : vector<2x128xf32>
    %c217 = arith.constant 217 : index
    %c0_488 = arith.constant 0 : index
    %c0_489 = arith.constant 0 : index
    %1160 = vector.load %arg2[%c217, %c0_488, %c0_489] : memref<424x8x128xf32, #tpu.memory_space<vmem>>, vector<1x8x128xf32>
    %1161 = vector.shape_cast %1160 : vector<1x8x128xf32> to vector<8x128xf32>
    %1162 = vector.extract_strided_slice %1161 {offsets = [0, 0], sizes = [2, 128], strides = [1, 1]} : vector<8x128xf32> to vector<2x128xf32>
    %1163 = arith.mulf %1162, %215 : vector<2x128xf32>
    %1164 = arith.addf %1159, %1163 : vector<2x128xf32>
    %c218 = arith.constant 218 : index
    %c0_490 = arith.constant 0 : index
    %c0_491 = arith.constant 0 : index
    %1165 = vector.load %arg2[%c218, %c0_490, %c0_491] : memref<424x8x128xf32, #tpu.memory_space<vmem>>, vector<1x8x128xf32>
    %1166 = vector.shape_cast %1165 : vector<1x8x128xf32> to vector<8x128xf32>
    %1167 = vector.extract_strided_slice %1166 {offsets = [0, 0], sizes = [2, 128], strides = [1, 1]} : vector<8x128xf32> to vector<2x128xf32>
    %1168 = arith.mulf %1167, %236 : vector<2x128xf32>
    %1169 = arith.addf %1164, %1168 : vector<2x128xf32>
    %c219 = arith.constant 219 : index
    %c0_492 = arith.constant 0 : index
    %c0_493 = arith.constant 0 : index
    %1170 = vector.load %arg2[%c219, %c0_492, %c0_493] : memref<424x8x128xf32, #tpu.memory_space<vmem>>, vector<1x8x128xf32>
    %1171 = vector.shape_cast %1170 : vector<1x8x128xf32> to vector<8x128xf32>
    %1172 = vector.extract_strided_slice %1171 {offsets = [0, 0], sizes = [2, 128], strides = [1, 1]} : vector<8x128xf32> to vector<2x128xf32>
    %1173 = arith.mulf %1172, %257 : vector<2x128xf32>
    %1174 = arith.addf %1169, %1173 : vector<2x128xf32>
    %c220 = arith.constant 220 : index
    %c0_494 = arith.constant 0 : index
    %c0_495 = arith.constant 0 : index
    %1175 = vector.load %arg2[%c220, %c0_494, %c0_495] : memref<424x8x128xf32, #tpu.memory_space<vmem>>, vector<1x8x128xf32>
    %1176 = vector.shape_cast %1175 : vector<1x8x128xf32> to vector<8x128xf32>
    %1177 = vector.extract_strided_slice %1176 {offsets = [0, 0], sizes = [2, 128], strides = [1, 1]} : vector<8x128xf32> to vector<2x128xf32>
    %1178 = arith.mulf %1177, %278 : vector<2x128xf32>
    %1179 = arith.addf %1174, %1178 : vector<2x128xf32>
    %c221 = arith.constant 221 : index
    %c0_496 = arith.constant 0 : index
    %c0_497 = arith.constant 0 : index
    %1180 = vector.load %arg2[%c221, %c0_496, %c0_497] : memref<424x8x128xf32, #tpu.memory_space<vmem>>, vector<1x8x128xf32>
    %1181 = vector.shape_cast %1180 : vector<1x8x128xf32> to vector<8x128xf32>
    %1182 = vector.extract_strided_slice %1181 {offsets = [0, 0], sizes = [2, 128], strides = [1, 1]} : vector<8x128xf32> to vector<2x128xf32>
    %1183 = arith.mulf %1182, %299 : vector<2x128xf32>
    %1184 = arith.addf %1179, %1183 : vector<2x128xf32>
    %c222 = arith.constant 222 : index
    %c0_498 = arith.constant 0 : index
    %c0_499 = arith.constant 0 : index
    %1185 = vector.load %arg2[%c222, %c0_498, %c0_499] : memref<424x8x128xf32, #tpu.memory_space<vmem>>, vector<1x8x128xf32>
    %1186 = vector.shape_cast %1185 : vector<1x8x128xf32> to vector<8x128xf32>
    %1187 = vector.extract_strided_slice %1186 {offsets = [0, 0], sizes = [2, 128], strides = [1, 1]} : vector<8x128xf32> to vector<2x128xf32>
    %1188 = arith.mulf %1187, %320 : vector<2x128xf32>
    %1189 = arith.addf %1184, %1188 : vector<2x128xf32>
    %c223 = arith.constant 223 : index
    %c0_500 = arith.constant 0 : index
    %c0_501 = arith.constant 0 : index
    %1190 = vector.load %arg2[%c223, %c0_500, %c0_501] : memref<424x8x128xf32, #tpu.memory_space<vmem>>, vector<1x8x128xf32>
    %1191 = vector.shape_cast %1190 : vector<1x8x128xf32> to vector<8x128xf32>
    %1192 = vector.extract_strided_slice %1191 {offsets = [0, 0], sizes = [2, 128], strides = [1, 1]} : vector<8x128xf32> to vector<2x128xf32>
    %1193 = arith.mulf %1192, %341 : vector<2x128xf32>
    %1194 = arith.addf %1189, %1193 : vector<2x128xf32>
    %c329 = arith.constant 329 : index
    %c0_502 = arith.constant 0 : index
    %c0_503 = arith.constant 0 : index
    %1195 = vector.load %arg2[%c329, %c0_502, %c0_503] : memref<424x8x128xf32, #tpu.memory_space<vmem>>, vector<1x8x128xf32>
    %1196 = vector.shape_cast %1195 : vector<1x8x128xf32> to vector<8x128xf32>
    %1197 = vector.extract_strided_slice %1196 {offsets = [0, 0], sizes = [2, 128], strides = [1, 1]} : vector<8x128xf32> to vector<2x128xf32>
    %1198 = arith.addf %1194, %1197 : vector<2x128xf32>
    %cst_504 = arith.constant 1.000000e-01 : f32
    %1199 = vector.broadcast %cst_504 : f32 to vector<2x128xf32>
    %1200 = arith.mulf %1199, %1198 : vector<2x128xf32>
    %1201 = arith.maximumf %1198, %1200 : vector<2x128xf32>
    %c224 = arith.constant 224 : index
    %c0_505 = arith.constant 0 : index
    %c0_506 = arith.constant 0 : index
    %1202 = vector.load %arg2[%c224, %c0_505, %c0_506] : memref<424x8x128xf32, #tpu.memory_space<vmem>>, vector<1x8x128xf32>
    %1203 = vector.shape_cast %1202 : vector<1x8x128xf32> to vector<8x128xf32>
    %1204 = vector.extract_strided_slice %1203 {offsets = [0, 0], sizes = [2, 128], strides = [1, 1]} : vector<8x128xf32> to vector<2x128xf32>
    %1205 = arith.mulf %1204, %26 : vector<2x128xf32>
    %c225 = arith.constant 225 : index
    %c0_507 = arith.constant 0 : index
    %c0_508 = arith.constant 0 : index
    %1206 = vector.load %arg2[%c225, %c0_507, %c0_508] : memref<424x8x128xf32, #tpu.memory_space<vmem>>, vector<1x8x128xf32>
    %1207 = vector.shape_cast %1206 : vector<1x8x128xf32> to vector<8x128xf32>
    %1208 = vector.extract_strided_slice %1207 {offsets = [0, 0], sizes = [2, 128], strides = [1, 1]} : vector<8x128xf32> to vector<2x128xf32>
    %1209 = arith.mulf %1208, %47 : vector<2x128xf32>
    %1210 = arith.addf %1205, %1209 : vector<2x128xf32>
    %c226 = arith.constant 226 : index
    %c0_509 = arith.constant 0 : index
    %c0_510 = arith.constant 0 : index
    %1211 = vector.load %arg2[%c226, %c0_509, %c0_510] : memref<424x8x128xf32, #tpu.memory_space<vmem>>, vector<1x8x128xf32>
    %1212 = vector.shape_cast %1211 : vector<1x8x128xf32> to vector<8x128xf32>
    %1213 = vector.extract_strided_slice %1212 {offsets = [0, 0], sizes = [2, 128], strides = [1, 1]} : vector<8x128xf32> to vector<2x128xf32>
    %1214 = arith.mulf %1213, %68 : vector<2x128xf32>
    %1215 = arith.addf %1210, %1214 : vector<2x128xf32>
    %c227 = arith.constant 227 : index
    %c0_511 = arith.constant 0 : index
    %c0_512 = arith.constant 0 : index
    %1216 = vector.load %arg2[%c227, %c0_511, %c0_512] : memref<424x8x128xf32, #tpu.memory_space<vmem>>, vector<1x8x128xf32>
    %1217 = vector.shape_cast %1216 : vector<1x8x128xf32> to vector<8x128xf32>
    %1218 = vector.extract_strided_slice %1217 {offsets = [0, 0], sizes = [2, 128], strides = [1, 1]} : vector<8x128xf32> to vector<2x128xf32>
    %1219 = arith.mulf %1218, %89 : vector<2x128xf32>
    %1220 = arith.addf %1215, %1219 : vector<2x128xf32>
    %c228 = arith.constant 228 : index
    %c0_513 = arith.constant 0 : index
    %c0_514 = arith.constant 0 : index
    %1221 = vector.load %arg2[%c228, %c0_513, %c0_514] : memref<424x8x128xf32, #tpu.memory_space<vmem>>, vector<1x8x128xf32>
    %1222 = vector.shape_cast %1221 : vector<1x8x128xf32> to vector<8x128xf32>
    %1223 = vector.extract_strided_slice %1222 {offsets = [0, 0], sizes = [2, 128], strides = [1, 1]} : vector<8x128xf32> to vector<2x128xf32>
    %1224 = arith.mulf %1223, %110 : vector<2x128xf32>
    %1225 = arith.addf %1220, %1224 : vector<2x128xf32>
    %c229 = arith.constant 229 : index
    %c0_515 = arith.constant 0 : index
    %c0_516 = arith.constant 0 : index
    %1226 = vector.load %arg2[%c229, %c0_515, %c0_516] : memref<424x8x128xf32, #tpu.memory_space<vmem>>, vector<1x8x128xf32>
    %1227 = vector.shape_cast %1226 : vector<1x8x128xf32> to vector<8x128xf32>
    %1228 = vector.extract_strided_slice %1227 {offsets = [0, 0], sizes = [2, 128], strides = [1, 1]} : vector<8x128xf32> to vector<2x128xf32>
    %1229 = arith.mulf %1228, %131 : vector<2x128xf32>
    %1230 = arith.addf %1225, %1229 : vector<2x128xf32>
    %c230 = arith.constant 230 : index
    %c0_517 = arith.constant 0 : index
    %c0_518 = arith.constant 0 : index
    %1231 = vector.load %arg2[%c230, %c0_517, %c0_518] : memref<424x8x128xf32, #tpu.memory_space<vmem>>, vector<1x8x128xf32>
    %1232 = vector.shape_cast %1231 : vector<1x8x128xf32> to vector<8x128xf32>
    %1233 = vector.extract_strided_slice %1232 {offsets = [0, 0], sizes = [2, 128], strides = [1, 1]} : vector<8x128xf32> to vector<2x128xf32>
    %1234 = arith.mulf %1233, %152 : vector<2x128xf32>
    %1235 = arith.addf %1230, %1234 : vector<2x128xf32>
    %c231 = arith.constant 231 : index
    %c0_519 = arith.constant 0 : index
    %c0_520 = arith.constant 0 : index
    %1236 = vector.load %arg2[%c231, %c0_519, %c0_520] : memref<424x8x128xf32, #tpu.memory_space<vmem>>, vector<1x8x128xf32>
    %1237 = vector.shape_cast %1236 : vector<1x8x128xf32> to vector<8x128xf32>
    %1238 = vector.extract_strided_slice %1237 {offsets = [0, 0], sizes = [2, 128], strides = [1, 1]} : vector<8x128xf32> to vector<2x128xf32>
    %1239 = arith.mulf %1238, %173 : vector<2x128xf32>
    %1240 = arith.addf %1235, %1239 : vector<2x128xf32>
    %c232 = arith.constant 232 : index
    %c0_521 = arith.constant 0 : index
    %c0_522 = arith.constant 0 : index
    %1241 = vector.load %arg2[%c232, %c0_521, %c0_522] : memref<424x8x128xf32, #tpu.memory_space<vmem>>, vector<1x8x128xf32>
    %1242 = vector.shape_cast %1241 : vector<1x8x128xf32> to vector<8x128xf32>
    %1243 = vector.extract_strided_slice %1242 {offsets = [0, 0], sizes = [2, 128], strides = [1, 1]} : vector<8x128xf32> to vector<2x128xf32>
    %1244 = arith.mulf %1243, %194 : vector<2x128xf32>
    %1245 = arith.addf %1240, %1244 : vector<2x128xf32>
    %c233 = arith.constant 233 : index
    %c0_523 = arith.constant 0 : index
    %c0_524 = arith.constant 0 : index
    %1246 = vector.load %arg2[%c233, %c0_523, %c0_524] : memref<424x8x128xf32, #tpu.memory_space<vmem>>, vector<1x8x128xf32>
    %1247 = vector.shape_cast %1246 : vector<1x8x128xf32> to vector<8x128xf32>
    %1248 = vector.extract_strided_slice %1247 {offsets = [0, 0], sizes = [2, 128], strides = [1, 1]} : vector<8x128xf32> to vector<2x128xf32>
    %1249 = arith.mulf %1248, %215 : vector<2x128xf32>
    %1250 = arith.addf %1245, %1249 : vector<2x128xf32>
    %c234 = arith.constant 234 : index
    %c0_525 = arith.constant 0 : index
    %c0_526 = arith.constant 0 : index
    %1251 = vector.load %arg2[%c234, %c0_525, %c0_526] : memref<424x8x128xf32, #tpu.memory_space<vmem>>, vector<1x8x128xf32>
    %1252 = vector.shape_cast %1251 : vector<1x8x128xf32> to vector<8x128xf32>
    %1253 = vector.extract_strided_slice %1252 {offsets = [0, 0], sizes = [2, 128], strides = [1, 1]} : vector<8x128xf32> to vector<2x128xf32>
    %1254 = arith.mulf %1253, %236 : vector<2x128xf32>
    %1255 = arith.addf %1250, %1254 : vector<2x128xf32>
    %c235 = arith.constant 235 : index
    %c0_527 = arith.constant 0 : index
    %c0_528 = arith.constant 0 : index
    %1256 = vector.load %arg2[%c235, %c0_527, %c0_528] : memref<424x8x128xf32, #tpu.memory_space<vmem>>, vector<1x8x128xf32>
    %1257 = vector.shape_cast %1256 : vector<1x8x128xf32> to vector<8x128xf32>
    %1258 = vector.extract_strided_slice %1257 {offsets = [0, 0], sizes = [2, 128], strides = [1, 1]} : vector<8x128xf32> to vector<2x128xf32>
    %1259 = arith.mulf %1258, %257 : vector<2x128xf32>
    %1260 = arith.addf %1255, %1259 : vector<2x128xf32>
    %c236 = arith.constant 236 : index
    %c0_529 = arith.constant 0 : index
    %c0_530 = arith.constant 0 : index
    %1261 = vector.load %arg2[%c236, %c0_529, %c0_530] : memref<424x8x128xf32, #tpu.memory_space<vmem>>, vector<1x8x128xf32>
    %1262 = vector.shape_cast %1261 : vector<1x8x128xf32> to vector<8x128xf32>
    %1263 = vector.extract_strided_slice %1262 {offsets = [0, 0], sizes = [2, 128], strides = [1, 1]} : vector<8x128xf32> to vector<2x128xf32>
    %1264 = arith.mulf %1263, %278 : vector<2x128xf32>
    %1265 = arith.addf %1260, %1264 : vector<2x128xf32>
    %c237 = arith.constant 237 : index
    %c0_531 = arith.constant 0 : index
    %c0_532 = arith.constant 0 : index
    %1266 = vector.load %arg2[%c237, %c0_531, %c0_532] : memref<424x8x128xf32, #tpu.memory_space<vmem>>, vector<1x8x128xf32>
    %1267 = vector.shape_cast %1266 : vector<1x8x128xf32> to vector<8x128xf32>
    %1268 = vector.extract_strided_slice %1267 {offsets = [0, 0], sizes = [2, 128], strides = [1, 1]} : vector<8x128xf32> to vector<2x128xf32>
    %1269 = arith.mulf %1268, %299 : vector<2x128xf32>
    %1270 = arith.addf %1265, %1269 : vector<2x128xf32>
    %c238 = arith.constant 238 : index
    %c0_533 = arith.constant 0 : index
    %c0_534 = arith.constant 0 : index
    %1271 = vector.load %arg2[%c238, %c0_533, %c0_534] : memref<424x8x128xf32, #tpu.memory_space<vmem>>, vector<1x8x128xf32>
    %1272 = vector.shape_cast %1271 : vector<1x8x128xf32> to vector<8x128xf32>
    %1273 = vector.extract_strided_slice %1272 {offsets = [0, 0], sizes = [2, 128], strides = [1, 1]} : vector<8x128xf32> to vector<2x128xf32>
    %1274 = arith.mulf %1273, %320 : vector<2x128xf32>
    %1275 = arith.addf %1270, %1274 : vector<2x128xf32>
    %c239 = arith.constant 239 : index
    %c0_535 = arith.constant 0 : index
    %c0_536 = arith.constant 0 : index
    %1276 = vector.load %arg2[%c239, %c0_535, %c0_536] : memref<424x8x128xf32, #tpu.memory_space<vmem>>, vector<1x8x128xf32>
    %1277 = vector.shape_cast %1276 : vector<1x8x128xf32> to vector<8x128xf32>
    %1278 = vector.extract_strided_slice %1277 {offsets = [0, 0], sizes = [2, 128], strides = [1, 1]} : vector<8x128xf32> to vector<2x128xf32>
    %1279 = arith.mulf %1278, %341 : vector<2x128xf32>
    %1280 = arith.addf %1275, %1279 : vector<2x128xf32>
    %c330 = arith.constant 330 : index
    %c0_537 = arith.constant 0 : index
    %c0_538 = arith.constant 0 : index
    %1281 = vector.load %arg2[%c330, %c0_537, %c0_538] : memref<424x8x128xf32, #tpu.memory_space<vmem>>, vector<1x8x128xf32>
    %1282 = vector.shape_cast %1281 : vector<1x8x128xf32> to vector<8x128xf32>
    %1283 = vector.extract_strided_slice %1282 {offsets = [0, 0], sizes = [2, 128], strides = [1, 1]} : vector<8x128xf32> to vector<2x128xf32>
    %1284 = arith.addf %1280, %1283 : vector<2x128xf32>
    %cst_539 = arith.constant 1.000000e-01 : f32
    %1285 = vector.broadcast %cst_539 : f32 to vector<2x128xf32>
    %1286 = arith.mulf %1285, %1284 : vector<2x128xf32>
    %1287 = arith.maximumf %1284, %1286 : vector<2x128xf32>
    %c240 = arith.constant 240 : index
    %c0_540 = arith.constant 0 : index
    %c0_541 = arith.constant 0 : index
    %1288 = vector.load %arg2[%c240, %c0_540, %c0_541] : memref<424x8x128xf32, #tpu.memory_space<vmem>>, vector<1x8x128xf32>
    %1289 = vector.shape_cast %1288 : vector<1x8x128xf32> to vector<8x128xf32>
    %1290 = vector.extract_strided_slice %1289 {offsets = [0, 0], sizes = [2, 128], strides = [1, 1]} : vector<8x128xf32> to vector<2x128xf32>
    %1291 = arith.mulf %1290, %26 : vector<2x128xf32>
    %c241 = arith.constant 241 : index
    %c0_542 = arith.constant 0 : index
    %c0_543 = arith.constant 0 : index
    %1292 = vector.load %arg2[%c241, %c0_542, %c0_543] : memref<424x8x128xf32, #tpu.memory_space<vmem>>, vector<1x8x128xf32>
    %1293 = vector.shape_cast %1292 : vector<1x8x128xf32> to vector<8x128xf32>
    %1294 = vector.extract_strided_slice %1293 {offsets = [0, 0], sizes = [2, 128], strides = [1, 1]} : vector<8x128xf32> to vector<2x128xf32>
    %1295 = arith.mulf %1294, %47 : vector<2x128xf32>
    %1296 = arith.addf %1291, %1295 : vector<2x128xf32>
    %c242 = arith.constant 242 : index
    %c0_544 = arith.constant 0 : index
    %c0_545 = arith.constant 0 : index
    %1297 = vector.load %arg2[%c242, %c0_544, %c0_545] : memref<424x8x128xf32, #tpu.memory_space<vmem>>, vector<1x8x128xf32>
    %1298 = vector.shape_cast %1297 : vector<1x8x128xf32> to vector<8x128xf32>
    %1299 = vector.extract_strided_slice %1298 {offsets = [0, 0], sizes = [2, 128], strides = [1, 1]} : vector<8x128xf32> to vector<2x128xf32>
    %1300 = arith.mulf %1299, %68 : vector<2x128xf32>
    %1301 = arith.addf %1296, %1300 : vector<2x128xf32>
    %c243 = arith.constant 243 : index
    %c0_546 = arith.constant 0 : index
    %c0_547 = arith.constant 0 : index
    %1302 = vector.load %arg2[%c243, %c0_546, %c0_547] : memref<424x8x128xf32, #tpu.memory_space<vmem>>, vector<1x8x128xf32>
    %1303 = vector.shape_cast %1302 : vector<1x8x128xf32> to vector<8x128xf32>
    %1304 = vector.extract_strided_slice %1303 {offsets = [0, 0], sizes = [2, 128], strides = [1, 1]} : vector<8x128xf32> to vector<2x128xf32>
    %1305 = arith.mulf %1304, %89 : vector<2x128xf32>
    %1306 = arith.addf %1301, %1305 : vector<2x128xf32>
    %c244 = arith.constant 244 : index
    %c0_548 = arith.constant 0 : index
    %c0_549 = arith.constant 0 : index
    %1307 = vector.load %arg2[%c244, %c0_548, %c0_549] : memref<424x8x128xf32, #tpu.memory_space<vmem>>, vector<1x8x128xf32>
    %1308 = vector.shape_cast %1307 : vector<1x8x128xf32> to vector<8x128xf32>
    %1309 = vector.extract_strided_slice %1308 {offsets = [0, 0], sizes = [2, 128], strides = [1, 1]} : vector<8x128xf32> to vector<2x128xf32>
    %1310 = arith.mulf %1309, %110 : vector<2x128xf32>
    %1311 = arith.addf %1306, %1310 : vector<2x128xf32>
    %c245 = arith.constant 245 : index
    %c0_550 = arith.constant 0 : index
    %c0_551 = arith.constant 0 : index
    %1312 = vector.load %arg2[%c245, %c0_550, %c0_551] : memref<424x8x128xf32, #tpu.memory_space<vmem>>, vector<1x8x128xf32>
    %1313 = vector.shape_cast %1312 : vector<1x8x128xf32> to vector<8x128xf32>
    %1314 = vector.extract_strided_slice %1313 {offsets = [0, 0], sizes = [2, 128], strides = [1, 1]} : vector<8x128xf32> to vector<2x128xf32>
    %1315 = arith.mulf %1314, %131 : vector<2x128xf32>
    %1316 = arith.addf %1311, %1315 : vector<2x128xf32>
    %c246 = arith.constant 246 : index
    %c0_552 = arith.constant 0 : index
    %c0_553 = arith.constant 0 : index
    %1317 = vector.load %arg2[%c246, %c0_552, %c0_553] : memref<424x8x128xf32, #tpu.memory_space<vmem>>, vector<1x8x128xf32>
    %1318 = vector.shape_cast %1317 : vector<1x8x128xf32> to vector<8x128xf32>
    %1319 = vector.extract_strided_slice %1318 {offsets = [0, 0], sizes = [2, 128], strides = [1, 1]} : vector<8x128xf32> to vector<2x128xf32>
    %1320 = arith.mulf %1319, %152 : vector<2x128xf32>
    %1321 = arith.addf %1316, %1320 : vector<2x128xf32>
    %c247 = arith.constant 247 : index
    %c0_554 = arith.constant 0 : index
    %c0_555 = arith.constant 0 : index
    %1322 = vector.load %arg2[%c247, %c0_554, %c0_555] : memref<424x8x128xf32, #tpu.memory_space<vmem>>, vector<1x8x128xf32>
    %1323 = vector.shape_cast %1322 : vector<1x8x128xf32> to vector<8x128xf32>
    %1324 = vector.extract_strided_slice %1323 {offsets = [0, 0], sizes = [2, 128], strides = [1, 1]} : vector<8x128xf32> to vector<2x128xf32>
    %1325 = arith.mulf %1324, %173 : vector<2x128xf32>
    %1326 = arith.addf %1321, %1325 : vector<2x128xf32>
    %c248 = arith.constant 248 : index
    %c0_556 = arith.constant 0 : index
    %c0_557 = arith.constant 0 : index
    %1327 = vector.load %arg2[%c248, %c0_556, %c0_557] : memref<424x8x128xf32, #tpu.memory_space<vmem>>, vector<1x8x128xf32>
    %1328 = vector.shape_cast %1327 : vector<1x8x128xf32> to vector<8x128xf32>
    %1329 = vector.extract_strided_slice %1328 {offsets = [0, 0], sizes = [2, 128], strides = [1, 1]} : vector<8x128xf32> to vector<2x128xf32>
    %1330 = arith.mulf %1329, %194 : vector<2x128xf32>
    %1331 = arith.addf %1326, %1330 : vector<2x128xf32>
    %c249 = arith.constant 249 : index
    %c0_558 = arith.constant 0 : index
    %c0_559 = arith.constant 0 : index
    %1332 = vector.load %arg2[%c249, %c0_558, %c0_559] : memref<424x8x128xf32, #tpu.memory_space<vmem>>, vector<1x8x128xf32>
    %1333 = vector.shape_cast %1332 : vector<1x8x128xf32> to vector<8x128xf32>
    %1334 = vector.extract_strided_slice %1333 {offsets = [0, 0], sizes = [2, 128], strides = [1, 1]} : vector<8x128xf32> to vector<2x128xf32>
    %1335 = arith.mulf %1334, %215 : vector<2x128xf32>
    %1336 = arith.addf %1331, %1335 : vector<2x128xf32>
    %c250 = arith.constant 250 : index
    %c0_560 = arith.constant 0 : index
    %c0_561 = arith.constant 0 : index
    %1337 = vector.load %arg2[%c250, %c0_560, %c0_561] : memref<424x8x128xf32, #tpu.memory_space<vmem>>, vector<1x8x128xf32>
    %1338 = vector.shape_cast %1337 : vector<1x8x128xf32> to vector<8x128xf32>
    %1339 = vector.extract_strided_slice %1338 {offsets = [0, 0], sizes = [2, 128], strides = [1, 1]} : vector<8x128xf32> to vector<2x128xf32>
    %1340 = arith.mulf %1339, %236 : vector<2x128xf32>
    %1341 = arith.addf %1336, %1340 : vector<2x128xf32>
    %c251 = arith.constant 251 : index
    %c0_562 = arith.constant 0 : index
    %c0_563 = arith.constant 0 : index
    %1342 = vector.load %arg2[%c251, %c0_562, %c0_563] : memref<424x8x128xf32, #tpu.memory_space<vmem>>, vector<1x8x128xf32>
    %1343 = vector.shape_cast %1342 : vector<1x8x128xf32> to vector<8x128xf32>
    %1344 = vector.extract_strided_slice %1343 {offsets = [0, 0], sizes = [2, 128], strides = [1, 1]} : vector<8x128xf32> to vector<2x128xf32>
    %1345 = arith.mulf %1344, %257 : vector<2x128xf32>
    %1346 = arith.addf %1341, %1345 : vector<2x128xf32>
    %c252 = arith.constant 252 : index
    %c0_564 = arith.constant 0 : index
    %c0_565 = arith.constant 0 : index
    %1347 = vector.load %arg2[%c252, %c0_564, %c0_565] : memref<424x8x128xf32, #tpu.memory_space<vmem>>, vector<1x8x128xf32>
    %1348 = vector.shape_cast %1347 : vector<1x8x128xf32> to vector<8x128xf32>
    %1349 = vector.extract_strided_slice %1348 {offsets = [0, 0], sizes = [2, 128], strides = [1, 1]} : vector<8x128xf32> to vector<2x128xf32>
    %1350 = arith.mulf %1349, %278 : vector<2x128xf32>
    %1351 = arith.addf %1346, %1350 : vector<2x128xf32>
    %c253 = arith.constant 253 : index
    %c0_566 = arith.constant 0 : index
    %c0_567 = arith.constant 0 : index
    %1352 = vector.load %arg2[%c253, %c0_566, %c0_567] : memref<424x8x128xf32, #tpu.memory_space<vmem>>, vector<1x8x128xf32>
    %1353 = vector.shape_cast %1352 : vector<1x8x128xf32> to vector<8x128xf32>
    %1354 = vector.extract_strided_slice %1353 {offsets = [0, 0], sizes = [2, 128], strides = [1, 1]} : vector<8x128xf32> to vector<2x128xf32>
    %1355 = arith.mulf %1354, %299 : vector<2x128xf32>
    %1356 = arith.addf %1351, %1355 : vector<2x128xf32>
    %c254 = arith.constant 254 : index
    %c0_568 = arith.constant 0 : index
    %c0_569 = arith.constant 0 : index
    %1357 = vector.load %arg2[%c254, %c0_568, %c0_569] : memref<424x8x128xf32, #tpu.memory_space<vmem>>, vector<1x8x128xf32>
    %1358 = vector.shape_cast %1357 : vector<1x8x128xf32> to vector<8x128xf32>
    %1359 = vector.extract_strided_slice %1358 {offsets = [0, 0], sizes = [2, 128], strides = [1, 1]} : vector<8x128xf32> to vector<2x128xf32>
    %1360 = arith.mulf %1359, %320 : vector<2x128xf32>
    %1361 = arith.addf %1356, %1360 : vector<2x128xf32>
    %c255 = arith.constant 255 : index
    %c0_570 = arith.constant 0 : index
    %c0_571 = arith.constant 0 : index
    %1362 = vector.load %arg2[%c255, %c0_570, %c0_571] : memref<424x8x128xf32, #tpu.memory_space<vmem>>, vector<1x8x128xf32>
    %1363 = vector.shape_cast %1362 : vector<1x8x128xf32> to vector<8x128xf32>
    %1364 = vector.extract_strided_slice %1363 {offsets = [0, 0], sizes = [2, 128], strides = [1, 1]} : vector<8x128xf32> to vector<2x128xf32>
    %1365 = arith.mulf %1364, %341 : vector<2x128xf32>
    %1366 = arith.addf %1361, %1365 : vector<2x128xf32>
    %c331 = arith.constant 331 : index
    %c0_572 = arith.constant 0 : index
    %c0_573 = arith.constant 0 : index
    %1367 = vector.load %arg2[%c331, %c0_572, %c0_573] : memref<424x8x128xf32, #tpu.memory_space<vmem>>, vector<1x8x128xf32>
    %1368 = vector.shape_cast %1367 : vector<1x8x128xf32> to vector<8x128xf32>
    %1369 = vector.extract_strided_slice %1368 {offsets = [0, 0], sizes = [2, 128], strides = [1, 1]} : vector<8x128xf32> to vector<2x128xf32>
    %1370 = arith.addf %1366, %1369 : vector<2x128xf32>
    %cst_574 = arith.constant 1.000000e-01 : f32
    %1371 = vector.broadcast %cst_574 : f32 to vector<2x128xf32>
    %1372 = arith.mulf %1371, %1370 : vector<2x128xf32>
    %1373 = arith.maximumf %1370, %1372 : vector<2x128xf32>
    %c256 = arith.constant 256 : index
    %c0_575 = arith.constant 0 : index
    %c0_576 = arith.constant 0 : index
    %1374 = vector.load %arg2[%c256, %c0_575, %c0_576] : memref<424x8x128xf32, #tpu.memory_space<vmem>>, vector<1x8x128xf32>
    %1375 = vector.shape_cast %1374 : vector<1x8x128xf32> to vector<8x128xf32>
    %1376 = vector.extract_strided_slice %1375 {offsets = [0, 0], sizes = [2, 128], strides = [1, 1]} : vector<8x128xf32> to vector<2x128xf32>
    %1377 = arith.mulf %1376, %26 : vector<2x128xf32>
    %c257 = arith.constant 257 : index
    %c0_577 = arith.constant 0 : index
    %c0_578 = arith.constant 0 : index
    %1378 = vector.load %arg2[%c257, %c0_577, %c0_578] : memref<424x8x128xf32, #tpu.memory_space<vmem>>, vector<1x8x128xf32>
    %1379 = vector.shape_cast %1378 : vector<1x8x128xf32> to vector<8x128xf32>
    %1380 = vector.extract_strided_slice %1379 {offsets = [0, 0], sizes = [2, 128], strides = [1, 1]} : vector<8x128xf32> to vector<2x128xf32>
    %1381 = arith.mulf %1380, %47 : vector<2x128xf32>
    %1382 = arith.addf %1377, %1381 : vector<2x128xf32>
    %c258 = arith.constant 258 : index
    %c0_579 = arith.constant 0 : index
    %c0_580 = arith.constant 0 : index
    %1383 = vector.load %arg2[%c258, %c0_579, %c0_580] : memref<424x8x128xf32, #tpu.memory_space<vmem>>, vector<1x8x128xf32>
    %1384 = vector.shape_cast %1383 : vector<1x8x128xf32> to vector<8x128xf32>
    %1385 = vector.extract_strided_slice %1384 {offsets = [0, 0], sizes = [2, 128], strides = [1, 1]} : vector<8x128xf32> to vector<2x128xf32>
    %1386 = arith.mulf %1385, %68 : vector<2x128xf32>
    %1387 = arith.addf %1382, %1386 : vector<2x128xf32>
    %c259 = arith.constant 259 : index
    %c0_581 = arith.constant 0 : index
    %c0_582 = arith.constant 0 : index
    %1388 = vector.load %arg2[%c259, %c0_581, %c0_582] : memref<424x8x128xf32, #tpu.memory_space<vmem>>, vector<1x8x128xf32>
    %1389 = vector.shape_cast %1388 : vector<1x8x128xf32> to vector<8x128xf32>
    %1390 = vector.extract_strided_slice %1389 {offsets = [0, 0], sizes = [2, 128], strides = [1, 1]} : vector<8x128xf32> to vector<2x128xf32>
    %1391 = arith.mulf %1390, %89 : vector<2x128xf32>
    %1392 = arith.addf %1387, %1391 : vector<2x128xf32>
    %c260 = arith.constant 260 : index
    %c0_583 = arith.constant 0 : index
    %c0_584 = arith.constant 0 : index
    %1393 = vector.load %arg2[%c260, %c0_583, %c0_584] : memref<424x8x128xf32, #tpu.memory_space<vmem>>, vector<1x8x128xf32>
    %1394 = vector.shape_cast %1393 : vector<1x8x128xf32> to vector<8x128xf32>
    %1395 = vector.extract_strided_slice %1394 {offsets = [0, 0], sizes = [2, 128], strides = [1, 1]} : vector<8x128xf32> to vector<2x128xf32>
    %1396 = arith.mulf %1395, %110 : vector<2x128xf32>
    %1397 = arith.addf %1392, %1396 : vector<2x128xf32>
    %c261 = arith.constant 261 : index
    %c0_585 = arith.constant 0 : index
    %c0_586 = arith.constant 0 : index
    %1398 = vector.load %arg2[%c261, %c0_585, %c0_586] : memref<424x8x128xf32, #tpu.memory_space<vmem>>, vector<1x8x128xf32>
    %1399 = vector.shape_cast %1398 : vector<1x8x128xf32> to vector<8x128xf32>
    %1400 = vector.extract_strided_slice %1399 {offsets = [0, 0], sizes = [2, 128], strides = [1, 1]} : vector<8x128xf32> to vector<2x128xf32>
    %1401 = arith.mulf %1400, %131 : vector<2x128xf32>
    %1402 = arith.addf %1397, %1401 : vector<2x128xf32>
    %c262 = arith.constant 262 : index
    %c0_587 = arith.constant 0 : index
    %c0_588 = arith.constant 0 : index
    %1403 = vector.load %arg2[%c262, %c0_587, %c0_588] : memref<424x8x128xf32, #tpu.memory_space<vmem>>, vector<1x8x128xf32>
    %1404 = vector.shape_cast %1403 : vector<1x8x128xf32> to vector<8x128xf32>
    %1405 = vector.extract_strided_slice %1404 {offsets = [0, 0], sizes = [2, 128], strides = [1, 1]} : vector<8x128xf32> to vector<2x128xf32>
    %1406 = arith.mulf %1405, %152 : vector<2x128xf32>
    %1407 = arith.addf %1402, %1406 : vector<2x128xf32>
    %c263 = arith.constant 263 : index
    %c0_589 = arith.constant 0 : index
    %c0_590 = arith.constant 0 : index
    %1408 = vector.load %arg2[%c263, %c0_589, %c0_590] : memref<424x8x128xf32, #tpu.memory_space<vmem>>, vector<1x8x128xf32>
    %1409 = vector.shape_cast %1408 : vector<1x8x128xf32> to vector<8x128xf32>
    %1410 = vector.extract_strided_slice %1409 {offsets = [0, 0], sizes = [2, 128], strides = [1, 1]} : vector<8x128xf32> to vector<2x128xf32>
    %1411 = arith.mulf %1410, %173 : vector<2x128xf32>
    %1412 = arith.addf %1407, %1411 : vector<2x128xf32>
    %c264 = arith.constant 264 : index
    %c0_591 = arith.constant 0 : index
    %c0_592 = arith.constant 0 : index
    %1413 = vector.load %arg2[%c264, %c0_591, %c0_592] : memref<424x8x128xf32, #tpu.memory_space<vmem>>, vector<1x8x128xf32>
    %1414 = vector.shape_cast %1413 : vector<1x8x128xf32> to vector<8x128xf32>
    %1415 = vector.extract_strided_slice %1414 {offsets = [0, 0], sizes = [2, 128], strides = [1, 1]} : vector<8x128xf32> to vector<2x128xf32>
    %1416 = arith.mulf %1415, %194 : vector<2x128xf32>
    %1417 = arith.addf %1412, %1416 : vector<2x128xf32>
    %c265 = arith.constant 265 : index
    %c0_593 = arith.constant 0 : index
    %c0_594 = arith.constant 0 : index
    %1418 = vector.load %arg2[%c265, %c0_593, %c0_594] : memref<424x8x128xf32, #tpu.memory_space<vmem>>, vector<1x8x128xf32>
    %1419 = vector.shape_cast %1418 : vector<1x8x128xf32> to vector<8x128xf32>
    %1420 = vector.extract_strided_slice %1419 {offsets = [0, 0], sizes = [2, 128], strides = [1, 1]} : vector<8x128xf32> to vector<2x128xf32>
    %1421 = arith.mulf %1420, %215 : vector<2x128xf32>
    %1422 = arith.addf %1417, %1421 : vector<2x128xf32>
    %c266 = arith.constant 266 : index
    %c0_595 = arith.constant 0 : index
    %c0_596 = arith.constant 0 : index
    %1423 = vector.load %arg2[%c266, %c0_595, %c0_596] : memref<424x8x128xf32, #tpu.memory_space<vmem>>, vector<1x8x128xf32>
    %1424 = vector.shape_cast %1423 : vector<1x8x128xf32> to vector<8x128xf32>
    %1425 = vector.extract_strided_slice %1424 {offsets = [0, 0], sizes = [2, 128], strides = [1, 1]} : vector<8x128xf32> to vector<2x128xf32>
    %1426 = arith.mulf %1425, %236 : vector<2x128xf32>
    %1427 = arith.addf %1422, %1426 : vector<2x128xf32>
    %c267 = arith.constant 267 : index
    %c0_597 = arith.constant 0 : index
    %c0_598 = arith.constant 0 : index
    %1428 = vector.load %arg2[%c267, %c0_597, %c0_598] : memref<424x8x128xf32, #tpu.memory_space<vmem>>, vector<1x8x128xf32>
    %1429 = vector.shape_cast %1428 : vector<1x8x128xf32> to vector<8x128xf32>
    %1430 = vector.extract_strided_slice %1429 {offsets = [0, 0], sizes = [2, 128], strides = [1, 1]} : vector<8x128xf32> to vector<2x128xf32>
    %1431 = arith.mulf %1430, %257 : vector<2x128xf32>
    %1432 = arith.addf %1427, %1431 : vector<2x128xf32>
    %c268 = arith.constant 268 : index
    %c0_599 = arith.constant 0 : index
    %c0_600 = arith.constant 0 : index
    %1433 = vector.load %arg2[%c268, %c0_599, %c0_600] : memref<424x8x128xf32, #tpu.memory_space<vmem>>, vector<1x8x128xf32>
    %1434 = vector.shape_cast %1433 : vector<1x8x128xf32> to vector<8x128xf32>
    %1435 = vector.extract_strided_slice %1434 {offsets = [0, 0], sizes = [2, 128], strides = [1, 1]} : vector<8x128xf32> to vector<2x128xf32>
    %1436 = arith.mulf %1435, %278 : vector<2x128xf32>
    %1437 = arith.addf %1432, %1436 : vector<2x128xf32>
    %c269 = arith.constant 269 : index
    %c0_601 = arith.constant 0 : index
    %c0_602 = arith.constant 0 : index
    %1438 = vector.load %arg2[%c269, %c0_601, %c0_602] : memref<424x8x128xf32, #tpu.memory_space<vmem>>, vector<1x8x128xf32>
    %1439 = vector.shape_cast %1438 : vector<1x8x128xf32> to vector<8x128xf32>
    %1440 = vector.extract_strided_slice %1439 {offsets = [0, 0], sizes = [2, 128], strides = [1, 1]} : vector<8x128xf32> to vector<2x128xf32>
    %1441 = arith.mulf %1440, %299 : vector<2x128xf32>
    %1442 = arith.addf %1437, %1441 : vector<2x128xf32>
    %c270 = arith.constant 270 : index
    %c0_603 = arith.constant 0 : index
    %c0_604 = arith.constant 0 : index
    %1443 = vector.load %arg2[%c270, %c0_603, %c0_604] : memref<424x8x128xf32, #tpu.memory_space<vmem>>, vector<1x8x128xf32>
    %1444 = vector.shape_cast %1443 : vector<1x8x128xf32> to vector<8x128xf32>
    %1445 = vector.extract_strided_slice %1444 {offsets = [0, 0], sizes = [2, 128], strides = [1, 1]} : vector<8x128xf32> to vector<2x128xf32>
    %1446 = arith.mulf %1445, %320 : vector<2x128xf32>
    %1447 = arith.addf %1442, %1446 : vector<2x128xf32>
    %c271 = arith.constant 271 : index
    %c0_605 = arith.constant 0 : index
    %c0_606 = arith.constant 0 : index
    %1448 = vector.load %arg2[%c271, %c0_605, %c0_606] : memref<424x8x128xf32, #tpu.memory_space<vmem>>, vector<1x8x128xf32>
    %1449 = vector.shape_cast %1448 : vector<1x8x128xf32> to vector<8x128xf32>
    %1450 = vector.extract_strided_slice %1449 {offsets = [0, 0], sizes = [2, 128], strides = [1, 1]} : vector<8x128xf32> to vector<2x128xf32>
    %1451 = arith.mulf %1450, %341 : vector<2x128xf32>
    %1452 = arith.addf %1447, %1451 : vector<2x128xf32>
    %c332 = arith.constant 332 : index
    %c0_607 = arith.constant 0 : index
    %c0_608 = arith.constant 0 : index
    %1453 = vector.load %arg2[%c332, %c0_607, %c0_608] : memref<424x8x128xf32, #tpu.memory_space<vmem>>, vector<1x8x128xf32>
    %1454 = vector.shape_cast %1453 : vector<1x8x128xf32> to vector<8x128xf32>
    %1455 = vector.extract_strided_slice %1454 {offsets = [0, 0], sizes = [2, 128], strides = [1, 1]} : vector<8x128xf32> to vector<2x128xf32>
    %1456 = arith.addf %1452, %1455 : vector<2x128xf32>
    %cst_609 = arith.constant 1.000000e-01 : f32
    %1457 = vector.broadcast %cst_609 : f32 to vector<2x128xf32>
    %1458 = arith.mulf %1457, %1456 : vector<2x128xf32>
    %1459 = arith.maximumf %1456, %1458 : vector<2x128xf32>
    %c272 = arith.constant 272 : index
    %c0_610 = arith.constant 0 : index
    %c0_611 = arith.constant 0 : index
    %1460 = vector.load %arg2[%c272, %c0_610, %c0_611] : memref<424x8x128xf32, #tpu.memory_space<vmem>>, vector<1x8x128xf32>
    %1461 = vector.shape_cast %1460 : vector<1x8x128xf32> to vector<8x128xf32>
    %1462 = vector.extract_strided_slice %1461 {offsets = [0, 0], sizes = [2, 128], strides = [1, 1]} : vector<8x128xf32> to vector<2x128xf32>
    %1463 = arith.mulf %1462, %26 : vector<2x128xf32>
    %c273 = arith.constant 273 : index
    %c0_612 = arith.constant 0 : index
    %c0_613 = arith.constant 0 : index
    %1464 = vector.load %arg2[%c273, %c0_612, %c0_613] : memref<424x8x128xf32, #tpu.memory_space<vmem>>, vector<1x8x128xf32>
    %1465 = vector.shape_cast %1464 : vector<1x8x128xf32> to vector<8x128xf32>
    %1466 = vector.extract_strided_slice %1465 {offsets = [0, 0], sizes = [2, 128], strides = [1, 1]} : vector<8x128xf32> to vector<2x128xf32>
    %1467 = arith.mulf %1466, %47 : vector<2x128xf32>
    %1468 = arith.addf %1463, %1467 : vector<2x128xf32>
    %c274 = arith.constant 274 : index
    %c0_614 = arith.constant 0 : index
    %c0_615 = arith.constant 0 : index
    %1469 = vector.load %arg2[%c274, %c0_614, %c0_615] : memref<424x8x128xf32, #tpu.memory_space<vmem>>, vector<1x8x128xf32>
    %1470 = vector.shape_cast %1469 : vector<1x8x128xf32> to vector<8x128xf32>
    %1471 = vector.extract_strided_slice %1470 {offsets = [0, 0], sizes = [2, 128], strides = [1, 1]} : vector<8x128xf32> to vector<2x128xf32>
    %1472 = arith.mulf %1471, %68 : vector<2x128xf32>
    %1473 = arith.addf %1468, %1472 : vector<2x128xf32>
    %c275 = arith.constant 275 : index
    %c0_616 = arith.constant 0 : index
    %c0_617 = arith.constant 0 : index
    %1474 = vector.load %arg2[%c275, %c0_616, %c0_617] : memref<424x8x128xf32, #tpu.memory_space<vmem>>, vector<1x8x128xf32>
    %1475 = vector.shape_cast %1474 : vector<1x8x128xf32> to vector<8x128xf32>
    %1476 = vector.extract_strided_slice %1475 {offsets = [0, 0], sizes = [2, 128], strides = [1, 1]} : vector<8x128xf32> to vector<2x128xf32>
    %1477 = arith.mulf %1476, %89 : vector<2x128xf32>
    %1478 = arith.addf %1473, %1477 : vector<2x128xf32>
    %c276 = arith.constant 276 : index
    %c0_618 = arith.constant 0 : index
    %c0_619 = arith.constant 0 : index
    %1479 = vector.load %arg2[%c276, %c0_618, %c0_619] : memref<424x8x128xf32, #tpu.memory_space<vmem>>, vector<1x8x128xf32>
    %1480 = vector.shape_cast %1479 : vector<1x8x128xf32> to vector<8x128xf32>
    %1481 = vector.extract_strided_slice %1480 {offsets = [0, 0], sizes = [2, 128], strides = [1, 1]} : vector<8x128xf32> to vector<2x128xf32>
    %1482 = arith.mulf %1481, %110 : vector<2x128xf32>
    %1483 = arith.addf %1478, %1482 : vector<2x128xf32>
    %c277 = arith.constant 277 : index
    %c0_620 = arith.constant 0 : index
    %c0_621 = arith.constant 0 : index
    %1484 = vector.load %arg2[%c277, %c0_620, %c0_621] : memref<424x8x128xf32, #tpu.memory_space<vmem>>, vector<1x8x128xf32>
    %1485 = vector.shape_cast %1484 : vector<1x8x128xf32> to vector<8x128xf32>
    %1486 = vector.extract_strided_slice %1485 {offsets = [0, 0], sizes = [2, 128], strides = [1, 1]} : vector<8x128xf32> to vector<2x128xf32>
    %1487 = arith.mulf %1486, %131 : vector<2x128xf32>
    %1488 = arith.addf %1483, %1487 : vector<2x128xf32>
    %c278 = arith.constant 278 : index
    %c0_622 = arith.constant 0 : index
    %c0_623 = arith.constant 0 : index
    %1489 = vector.load %arg2[%c278, %c0_622, %c0_623] : memref<424x8x128xf32, #tpu.memory_space<vmem>>, vector<1x8x128xf32>
    %1490 = vector.shape_cast %1489 : vector<1x8x128xf32> to vector<8x128xf32>
    %1491 = vector.extract_strided_slice %1490 {offsets = [0, 0], sizes = [2, 128], strides = [1, 1]} : vector<8x128xf32> to vector<2x128xf32>
    %1492 = arith.mulf %1491, %152 : vector<2x128xf32>
    %1493 = arith.addf %1488, %1492 : vector<2x128xf32>
    %c279 = arith.constant 279 : index
    %c0_624 = arith.constant 0 : index
    %c0_625 = arith.constant 0 : index
    %1494 = vector.load %arg2[%c279, %c0_624, %c0_625] : memref<424x8x128xf32, #tpu.memory_space<vmem>>, vector<1x8x128xf32>
    %1495 = vector.shape_cast %1494 : vector<1x8x128xf32> to vector<8x128xf32>
    %1496 = vector.extract_strided_slice %1495 {offsets = [0, 0], sizes = [2, 128], strides = [1, 1]} : vector<8x128xf32> to vector<2x128xf32>
    %1497 = arith.mulf %1496, %173 : vector<2x128xf32>
    %1498 = arith.addf %1493, %1497 : vector<2x128xf32>
    %c280 = arith.constant 280 : index
    %c0_626 = arith.constant 0 : index
    %c0_627 = arith.constant 0 : index
    %1499 = vector.load %arg2[%c280, %c0_626, %c0_627] : memref<424x8x128xf32, #tpu.memory_space<vmem>>, vector<1x8x128xf32>
    %1500 = vector.shape_cast %1499 : vector<1x8x128xf32> to vector<8x128xf32>
    %1501 = vector.extract_strided_slice %1500 {offsets = [0, 0], sizes = [2, 128], strides = [1, 1]} : vector<8x128xf32> to vector<2x128xf32>
    %1502 = arith.mulf %1501, %194 : vector<2x128xf32>
    %1503 = arith.addf %1498, %1502 : vector<2x128xf32>
    %c281 = arith.constant 281 : index
    %c0_628 = arith.constant 0 : index
    %c0_629 = arith.constant 0 : index
    %1504 = vector.load %arg2[%c281, %c0_628, %c0_629] : memref<424x8x128xf32, #tpu.memory_space<vmem>>, vector<1x8x128xf32>
    %1505 = vector.shape_cast %1504 : vector<1x8x128xf32> to vector<8x128xf32>
    %1506 = vector.extract_strided_slice %1505 {offsets = [0, 0], sizes = [2, 128], strides = [1, 1]} : vector<8x128xf32> to vector<2x128xf32>
    %1507 = arith.mulf %1506, %215 : vector<2x128xf32>
    %1508 = arith.addf %1503, %1507 : vector<2x128xf32>
    %c282 = arith.constant 282 : index
    %c0_630 = arith.constant 0 : index
    %c0_631 = arith.constant 0 : index
    %1509 = vector.load %arg2[%c282, %c0_630, %c0_631] : memref<424x8x128xf32, #tpu.memory_space<vmem>>, vector<1x8x128xf32>
    %1510 = vector.shape_cast %1509 : vector<1x8x128xf32> to vector<8x128xf32>
    %1511 = vector.extract_strided_slice %1510 {offsets = [0, 0], sizes = [2, 128], strides = [1, 1]} : vector<8x128xf32> to vector<2x128xf32>
    %1512 = arith.mulf %1511, %236 : vector<2x128xf32>
    %1513 = arith.addf %1508, %1512 : vector<2x128xf32>
    %c283 = arith.constant 283 : index
    %c0_632 = arith.constant 0 : index
    %c0_633 = arith.constant 0 : index
    %1514 = vector.load %arg2[%c283, %c0_632, %c0_633] : memref<424x8x128xf32, #tpu.memory_space<vmem>>, vector<1x8x128xf32>
    %1515 = vector.shape_cast %1514 : vector<1x8x128xf32> to vector<8x128xf32>
    %1516 = vector.extract_strided_slice %1515 {offsets = [0, 0], sizes = [2, 128], strides = [1, 1]} : vector<8x128xf32> to vector<2x128xf32>
    %1517 = arith.mulf %1516, %257 : vector<2x128xf32>
    %1518 = arith.addf %1513, %1517 : vector<2x128xf32>
    %c284 = arith.constant 284 : index
    %c0_634 = arith.constant 0 : index
    %c0_635 = arith.constant 0 : index
    %1519 = vector.load %arg2[%c284, %c0_634, %c0_635] : memref<424x8x128xf32, #tpu.memory_space<vmem>>, vector<1x8x128xf32>
    %1520 = vector.shape_cast %1519 : vector<1x8x128xf32> to vector<8x128xf32>
    %1521 = vector.extract_strided_slice %1520 {offsets = [0, 0], sizes = [2, 128], strides = [1, 1]} : vector<8x128xf32> to vector<2x128xf32>
    %1522 = arith.mulf %1521, %278 : vector<2x128xf32>
    %1523 = arith.addf %1518, %1522 : vector<2x128xf32>
    %c285 = arith.constant 285 : index
    %c0_636 = arith.constant 0 : index
    %c0_637 = arith.constant 0 : index
    %1524 = vector.load %arg2[%c285, %c0_636, %c0_637] : memref<424x8x128xf32, #tpu.memory_space<vmem>>, vector<1x8x128xf32>
    %1525 = vector.shape_cast %1524 : vector<1x8x128xf32> to vector<8x128xf32>
    %1526 = vector.extract_strided_slice %1525 {offsets = [0, 0], sizes = [2, 128], strides = [1, 1]} : vector<8x128xf32> to vector<2x128xf32>
    %1527 = arith.mulf %1526, %299 : vector<2x128xf32>
    %1528 = arith.addf %1523, %1527 : vector<2x128xf32>
    %c286 = arith.constant 286 : index
    %c0_638 = arith.constant 0 : index
    %c0_639 = arith.constant 0 : index
    %1529 = vector.load %arg2[%c286, %c0_638, %c0_639] : memref<424x8x128xf32, #tpu.memory_space<vmem>>, vector<1x8x128xf32>
    %1530 = vector.shape_cast %1529 : vector<1x8x128xf32> to vector<8x128xf32>
    %1531 = vector.extract_strided_slice %1530 {offsets = [0, 0], sizes = [2, 128], strides = [1, 1]} : vector<8x128xf32> to vector<2x128xf32>
    %1532 = arith.mulf %1531, %320 : vector<2x128xf32>
    %1533 = arith.addf %1528, %1532 : vector<2x128xf32>
    %c287 = arith.constant 287 : index
    %c0_640 = arith.constant 0 : index
    %c0_641 = arith.constant 0 : index
    %1534 = vector.load %arg2[%c287, %c0_640, %c0_641] : memref<424x8x128xf32, #tpu.memory_space<vmem>>, vector<1x8x128xf32>
    %1535 = vector.shape_cast %1534 : vector<1x8x128xf32> to vector<8x128xf32>
    %1536 = vector.extract_strided_slice %1535 {offsets = [0, 0], sizes = [2, 128], strides = [1, 1]} : vector<8x128xf32> to vector<2x128xf32>
    %1537 = arith.mulf %1536, %341 : vector<2x128xf32>
    %1538 = arith.addf %1533, %1537 : vector<2x128xf32>
    %c333 = arith.constant 333 : index
    %c0_642 = arith.constant 0 : index
    %c0_643 = arith.constant 0 : index
    %1539 = vector.load %arg2[%c333, %c0_642, %c0_643] : memref<424x8x128xf32, #tpu.memory_space<vmem>>, vector<1x8x128xf32>
    %1540 = vector.shape_cast %1539 : vector<1x8x128xf32> to vector<8x128xf32>
    %1541 = vector.extract_strided_slice %1540 {offsets = [0, 0], sizes = [2, 128], strides = [1, 1]} : vector<8x128xf32> to vector<2x128xf32>
    %1542 = arith.addf %1538, %1541 : vector<2x128xf32>
    %cst_644 = arith.constant 1.000000e-01 : f32
    %1543 = vector.broadcast %cst_644 : f32 to vector<2x128xf32>
    %1544 = arith.mulf %1543, %1542 : vector<2x128xf32>
    %1545 = arith.maximumf %1542, %1544 : vector<2x128xf32>
    %c288 = arith.constant 288 : index
    %c0_645 = arith.constant 0 : index
    %c0_646 = arith.constant 0 : index
    %1546 = vector.load %arg2[%c288, %c0_645, %c0_646] : memref<424x8x128xf32, #tpu.memory_space<vmem>>, vector<1x8x128xf32>
    %1547 = vector.shape_cast %1546 : vector<1x8x128xf32> to vector<8x128xf32>
    %1548 = vector.extract_strided_slice %1547 {offsets = [0, 0], sizes = [2, 128], strides = [1, 1]} : vector<8x128xf32> to vector<2x128xf32>
    %1549 = arith.mulf %1548, %26 : vector<2x128xf32>
    %c289 = arith.constant 289 : index
    %c0_647 = arith.constant 0 : index
    %c0_648 = arith.constant 0 : index
    %1550 = vector.load %arg2[%c289, %c0_647, %c0_648] : memref<424x8x128xf32, #tpu.memory_space<vmem>>, vector<1x8x128xf32>
    %1551 = vector.shape_cast %1550 : vector<1x8x128xf32> to vector<8x128xf32>
    %1552 = vector.extract_strided_slice %1551 {offsets = [0, 0], sizes = [2, 128], strides = [1, 1]} : vector<8x128xf32> to vector<2x128xf32>
    %1553 = arith.mulf %1552, %47 : vector<2x128xf32>
    %1554 = arith.addf %1549, %1553 : vector<2x128xf32>
    %c290 = arith.constant 290 : index
    %c0_649 = arith.constant 0 : index
    %c0_650 = arith.constant 0 : index
    %1555 = vector.load %arg2[%c290, %c0_649, %c0_650] : memref<424x8x128xf32, #tpu.memory_space<vmem>>, vector<1x8x128xf32>
    %1556 = vector.shape_cast %1555 : vector<1x8x128xf32> to vector<8x128xf32>
    %1557 = vector.extract_strided_slice %1556 {offsets = [0, 0], sizes = [2, 128], strides = [1, 1]} : vector<8x128xf32> to vector<2x128xf32>
    %1558 = arith.mulf %1557, %68 : vector<2x128xf32>
    %1559 = arith.addf %1554, %1558 : vector<2x128xf32>
    %c291 = arith.constant 291 : index
    %c0_651 = arith.constant 0 : index
    %c0_652 = arith.constant 0 : index
    %1560 = vector.load %arg2[%c291, %c0_651, %c0_652] : memref<424x8x128xf32, #tpu.memory_space<vmem>>, vector<1x8x128xf32>
    %1561 = vector.shape_cast %1560 : vector<1x8x128xf32> to vector<8x128xf32>
    %1562 = vector.extract_strided_slice %1561 {offsets = [0, 0], sizes = [2, 128], strides = [1, 1]} : vector<8x128xf32> to vector<2x128xf32>
    %1563 = arith.mulf %1562, %89 : vector<2x128xf32>
    %1564 = arith.addf %1559, %1563 : vector<2x128xf32>
    %c292 = arith.constant 292 : index
    %c0_653 = arith.constant 0 : index
    %c0_654 = arith.constant 0 : index
    %1565 = vector.load %arg2[%c292, %c0_653, %c0_654] : memref<424x8x128xf32, #tpu.memory_space<vmem>>, vector<1x8x128xf32>
    %1566 = vector.shape_cast %1565 : vector<1x8x128xf32> to vector<8x128xf32>
    %1567 = vector.extract_strided_slice %1566 {offsets = [0, 0], sizes = [2, 128], strides = [1, 1]} : vector<8x128xf32> to vector<2x128xf32>
    %1568 = arith.mulf %1567, %110 : vector<2x128xf32>
    %1569 = arith.addf %1564, %1568 : vector<2x128xf32>
    %c293 = arith.constant 293 : index
    %c0_655 = arith.constant 0 : index
    %c0_656 = arith.constant 0 : index
    %1570 = vector.load %arg2[%c293, %c0_655, %c0_656] : memref<424x8x128xf32, #tpu.memory_space<vmem>>, vector<1x8x128xf32>
    %1571 = vector.shape_cast %1570 : vector<1x8x128xf32> to vector<8x128xf32>
    %1572 = vector.extract_strided_slice %1571 {offsets = [0, 0], sizes = [2, 128], strides = [1, 1]} : vector<8x128xf32> to vector<2x128xf32>
    %1573 = arith.mulf %1572, %131 : vector<2x128xf32>
    %1574 = arith.addf %1569, %1573 : vector<2x128xf32>
    %c294 = arith.constant 294 : index
    %c0_657 = arith.constant 0 : index
    %c0_658 = arith.constant 0 : index
    %1575 = vector.load %arg2[%c294, %c0_657, %c0_658] : memref<424x8x128xf32, #tpu.memory_space<vmem>>, vector<1x8x128xf32>
    %1576 = vector.shape_cast %1575 : vector<1x8x128xf32> to vector<8x128xf32>
    %1577 = vector.extract_strided_slice %1576 {offsets = [0, 0], sizes = [2, 128], strides = [1, 1]} : vector<8x128xf32> to vector<2x128xf32>
    %1578 = arith.mulf %1577, %152 : vector<2x128xf32>
    %1579 = arith.addf %1574, %1578 : vector<2x128xf32>
    %c295 = arith.constant 295 : index
    %c0_659 = arith.constant 0 : index
    %c0_660 = arith.constant 0 : index
    %1580 = vector.load %arg2[%c295, %c0_659, %c0_660] : memref<424x8x128xf32, #tpu.memory_space<vmem>>, vector<1x8x128xf32>
    %1581 = vector.shape_cast %1580 : vector<1x8x128xf32> to vector<8x128xf32>
    %1582 = vector.extract_strided_slice %1581 {offsets = [0, 0], sizes = [2, 128], strides = [1, 1]} : vector<8x128xf32> to vector<2x128xf32>
    %1583 = arith.mulf %1582, %173 : vector<2x128xf32>
    %1584 = arith.addf %1579, %1583 : vector<2x128xf32>
    %c296 = arith.constant 296 : index
    %c0_661 = arith.constant 0 : index
    %c0_662 = arith.constant 0 : index
    %1585 = vector.load %arg2[%c296, %c0_661, %c0_662] : memref<424x8x128xf32, #tpu.memory_space<vmem>>, vector<1x8x128xf32>
    %1586 = vector.shape_cast %1585 : vector<1x8x128xf32> to vector<8x128xf32>
    %1587 = vector.extract_strided_slice %1586 {offsets = [0, 0], sizes = [2, 128], strides = [1, 1]} : vector<8x128xf32> to vector<2x128xf32>
    %1588 = arith.mulf %1587, %194 : vector<2x128xf32>
    %1589 = arith.addf %1584, %1588 : vector<2x128xf32>
    %c297 = arith.constant 297 : index
    %c0_663 = arith.constant 0 : index
    %c0_664 = arith.constant 0 : index
    %1590 = vector.load %arg2[%c297, %c0_663, %c0_664] : memref<424x8x128xf32, #tpu.memory_space<vmem>>, vector<1x8x128xf32>
    %1591 = vector.shape_cast %1590 : vector<1x8x128xf32> to vector<8x128xf32>
    %1592 = vector.extract_strided_slice %1591 {offsets = [0, 0], sizes = [2, 128], strides = [1, 1]} : vector<8x128xf32> to vector<2x128xf32>
    %1593 = arith.mulf %1592, %215 : vector<2x128xf32>
    %1594 = arith.addf %1589, %1593 : vector<2x128xf32>
    %c298 = arith.constant 298 : index
    %c0_665 = arith.constant 0 : index
    %c0_666 = arith.constant 0 : index
    %1595 = vector.load %arg2[%c298, %c0_665, %c0_666] : memref<424x8x128xf32, #tpu.memory_space<vmem>>, vector<1x8x128xf32>
    %1596 = vector.shape_cast %1595 : vector<1x8x128xf32> to vector<8x128xf32>
    %1597 = vector.extract_strided_slice %1596 {offsets = [0, 0], sizes = [2, 128], strides = [1, 1]} : vector<8x128xf32> to vector<2x128xf32>
    %1598 = arith.mulf %1597, %236 : vector<2x128xf32>
    %1599 = arith.addf %1594, %1598 : vector<2x128xf32>
    %c299 = arith.constant 299 : index
    %c0_667 = arith.constant 0 : index
    %c0_668 = arith.constant 0 : index
    %1600 = vector.load %arg2[%c299, %c0_667, %c0_668] : memref<424x8x128xf32, #tpu.memory_space<vmem>>, vector<1x8x128xf32>
    %1601 = vector.shape_cast %1600 : vector<1x8x128xf32> to vector<8x128xf32>
    %1602 = vector.extract_strided_slice %1601 {offsets = [0, 0], sizes = [2, 128], strides = [1, 1]} : vector<8x128xf32> to vector<2x128xf32>
    %1603 = arith.mulf %1602, %257 : vector<2x128xf32>
    %1604 = arith.addf %1599, %1603 : vector<2x128xf32>
    %c300 = arith.constant 300 : index
    %c0_669 = arith.constant 0 : index
    %c0_670 = arith.constant 0 : index
    %1605 = vector.load %arg2[%c300, %c0_669, %c0_670] : memref<424x8x128xf32, #tpu.memory_space<vmem>>, vector<1x8x128xf32>
    %1606 = vector.shape_cast %1605 : vector<1x8x128xf32> to vector<8x128xf32>
    %1607 = vector.extract_strided_slice %1606 {offsets = [0, 0], sizes = [2, 128], strides = [1, 1]} : vector<8x128xf32> to vector<2x128xf32>
    %1608 = arith.mulf %1607, %278 : vector<2x128xf32>
    %1609 = arith.addf %1604, %1608 : vector<2x128xf32>
    %c301 = arith.constant 301 : index
    %c0_671 = arith.constant 0 : index
    %c0_672 = arith.constant 0 : index
    %1610 = vector.load %arg2[%c301, %c0_671, %c0_672] : memref<424x8x128xf32, #tpu.memory_space<vmem>>, vector<1x8x128xf32>
    %1611 = vector.shape_cast %1610 : vector<1x8x128xf32> to vector<8x128xf32>
    %1612 = vector.extract_strided_slice %1611 {offsets = [0, 0], sizes = [2, 128], strides = [1, 1]} : vector<8x128xf32> to vector<2x128xf32>
    %1613 = arith.mulf %1612, %299 : vector<2x128xf32>
    %1614 = arith.addf %1609, %1613 : vector<2x128xf32>
    %c302 = arith.constant 302 : index
    %c0_673 = arith.constant 0 : index
    %c0_674 = arith.constant 0 : index
    %1615 = vector.load %arg2[%c302, %c0_673, %c0_674] : memref<424x8x128xf32, #tpu.memory_space<vmem>>, vector<1x8x128xf32>
    %1616 = vector.shape_cast %1615 : vector<1x8x128xf32> to vector<8x128xf32>
    %1617 = vector.extract_strided_slice %1616 {offsets = [0, 0], sizes = [2, 128], strides = [1, 1]} : vector<8x128xf32> to vector<2x128xf32>
    %1618 = arith.mulf %1617, %320 : vector<2x128xf32>
    %1619 = arith.addf %1614, %1618 : vector<2x128xf32>
    %c303 = arith.constant 303 : index
    %c0_675 = arith.constant 0 : index
    %c0_676 = arith.constant 0 : index
    %1620 = vector.load %arg2[%c303, %c0_675, %c0_676] : memref<424x8x128xf32, #tpu.memory_space<vmem>>, vector<1x8x128xf32>
    %1621 = vector.shape_cast %1620 : vector<1x8x128xf32> to vector<8x128xf32>
    %1622 = vector.extract_strided_slice %1621 {offsets = [0, 0], sizes = [2, 128], strides = [1, 1]} : vector<8x128xf32> to vector<2x128xf32>
    %1623 = arith.mulf %1622, %341 : vector<2x128xf32>
    %1624 = arith.addf %1619, %1623 : vector<2x128xf32>
    %c334 = arith.constant 334 : index
    %c0_677 = arith.constant 0 : index
    %c0_678 = arith.constant 0 : index
    %1625 = vector.load %arg2[%c334, %c0_677, %c0_678] : memref<424x8x128xf32, #tpu.memory_space<vmem>>, vector<1x8x128xf32>
    %1626 = vector.shape_cast %1625 : vector<1x8x128xf32> to vector<8x128xf32>
    %1627 = vector.extract_strided_slice %1626 {offsets = [0, 0], sizes = [2, 128], strides = [1, 1]} : vector<8x128xf32> to vector<2x128xf32>
    %1628 = arith.addf %1624, %1627 : vector<2x128xf32>
    %cst_679 = arith.constant 1.000000e-01 : f32
    %1629 = vector.broadcast %cst_679 : f32 to vector<2x128xf32>
    %1630 = arith.mulf %1629, %1628 : vector<2x128xf32>
    %1631 = arith.maximumf %1628, %1630 : vector<2x128xf32>
    %c304 = arith.constant 304 : index
    %c0_680 = arith.constant 0 : index
    %c0_681 = arith.constant 0 : index
    %1632 = vector.load %arg2[%c304, %c0_680, %c0_681] : memref<424x8x128xf32, #tpu.memory_space<vmem>>, vector<1x8x128xf32>
    %1633 = vector.shape_cast %1632 : vector<1x8x128xf32> to vector<8x128xf32>
    %1634 = vector.extract_strided_slice %1633 {offsets = [0, 0], sizes = [2, 128], strides = [1, 1]} : vector<8x128xf32> to vector<2x128xf32>
    %1635 = arith.mulf %1634, %26 : vector<2x128xf32>
    %c305 = arith.constant 305 : index
    %c0_682 = arith.constant 0 : index
    %c0_683 = arith.constant 0 : index
    %1636 = vector.load %arg2[%c305, %c0_682, %c0_683] : memref<424x8x128xf32, #tpu.memory_space<vmem>>, vector<1x8x128xf32>
    %1637 = vector.shape_cast %1636 : vector<1x8x128xf32> to vector<8x128xf32>
    %1638 = vector.extract_strided_slice %1637 {offsets = [0, 0], sizes = [2, 128], strides = [1, 1]} : vector<8x128xf32> to vector<2x128xf32>
    %1639 = arith.mulf %1638, %47 : vector<2x128xf32>
    %1640 = arith.addf %1635, %1639 : vector<2x128xf32>
    %c306 = arith.constant 306 : index
    %c0_684 = arith.constant 0 : index
    %c0_685 = arith.constant 0 : index
    %1641 = vector.load %arg2[%c306, %c0_684, %c0_685] : memref<424x8x128xf32, #tpu.memory_space<vmem>>, vector<1x8x128xf32>
    %1642 = vector.shape_cast %1641 : vector<1x8x128xf32> to vector<8x128xf32>
    %1643 = vector.extract_strided_slice %1642 {offsets = [0, 0], sizes = [2, 128], strides = [1, 1]} : vector<8x128xf32> to vector<2x128xf32>
    %1644 = arith.mulf %1643, %68 : vector<2x128xf32>
    %1645 = arith.addf %1640, %1644 : vector<2x128xf32>
    %c307 = arith.constant 307 : index
    %c0_686 = arith.constant 0 : index
    %c0_687 = arith.constant 0 : index
    %1646 = vector.load %arg2[%c307, %c0_686, %c0_687] : memref<424x8x128xf32, #tpu.memory_space<vmem>>, vector<1x8x128xf32>
    %1647 = vector.shape_cast %1646 : vector<1x8x128xf32> to vector<8x128xf32>
    %1648 = vector.extract_strided_slice %1647 {offsets = [0, 0], sizes = [2, 128], strides = [1, 1]} : vector<8x128xf32> to vector<2x128xf32>
    %1649 = arith.mulf %1648, %89 : vector<2x128xf32>
    %1650 = arith.addf %1645, %1649 : vector<2x128xf32>
    %c308 = arith.constant 308 : index
    %c0_688 = arith.constant 0 : index
    %c0_689 = arith.constant 0 : index
    %1651 = vector.load %arg2[%c308, %c0_688, %c0_689] : memref<424x8x128xf32, #tpu.memory_space<vmem>>, vector<1x8x128xf32>
    %1652 = vector.shape_cast %1651 : vector<1x8x128xf32> to vector<8x128xf32>
    %1653 = vector.extract_strided_slice %1652 {offsets = [0, 0], sizes = [2, 128], strides = [1, 1]} : vector<8x128xf32> to vector<2x128xf32>
    %1654 = arith.mulf %1653, %110 : vector<2x128xf32>
    %1655 = arith.addf %1650, %1654 : vector<2x128xf32>
    %c309 = arith.constant 309 : index
    %c0_690 = arith.constant 0 : index
    %c0_691 = arith.constant 0 : index
    %1656 = vector.load %arg2[%c309, %c0_690, %c0_691] : memref<424x8x128xf32, #tpu.memory_space<vmem>>, vector<1x8x128xf32>
    %1657 = vector.shape_cast %1656 : vector<1x8x128xf32> to vector<8x128xf32>
    %1658 = vector.extract_strided_slice %1657 {offsets = [0, 0], sizes = [2, 128], strides = [1, 1]} : vector<8x128xf32> to vector<2x128xf32>
    %1659 = arith.mulf %1658, %131 : vector<2x128xf32>
    %1660 = arith.addf %1655, %1659 : vector<2x128xf32>
    %c310 = arith.constant 310 : index
    %c0_692 = arith.constant 0 : index
    %c0_693 = arith.constant 0 : index
    %1661 = vector.load %arg2[%c310, %c0_692, %c0_693] : memref<424x8x128xf32, #tpu.memory_space<vmem>>, vector<1x8x128xf32>
    %1662 = vector.shape_cast %1661 : vector<1x8x128xf32> to vector<8x128xf32>
    %1663 = vector.extract_strided_slice %1662 {offsets = [0, 0], sizes = [2, 128], strides = [1, 1]} : vector<8x128xf32> to vector<2x128xf32>
    %1664 = arith.mulf %1663, %152 : vector<2x128xf32>
    %1665 = arith.addf %1660, %1664 : vector<2x128xf32>
    %c311 = arith.constant 311 : index
    %c0_694 = arith.constant 0 : index
    %c0_695 = arith.constant 0 : index
    %1666 = vector.load %arg2[%c311, %c0_694, %c0_695] : memref<424x8x128xf32, #tpu.memory_space<vmem>>, vector<1x8x128xf32>
    %1667 = vector.shape_cast %1666 : vector<1x8x128xf32> to vector<8x128xf32>
    %1668 = vector.extract_strided_slice %1667 {offsets = [0, 0], sizes = [2, 128], strides = [1, 1]} : vector<8x128xf32> to vector<2x128xf32>
    %1669 = arith.mulf %1668, %173 : vector<2x128xf32>
    %1670 = arith.addf %1665, %1669 : vector<2x128xf32>
    %c312 = arith.constant 312 : index
    %c0_696 = arith.constant 0 : index
    %c0_697 = arith.constant 0 : index
    %1671 = vector.load %arg2[%c312, %c0_696, %c0_697] : memref<424x8x128xf32, #tpu.memory_space<vmem>>, vector<1x8x128xf32>
    %1672 = vector.shape_cast %1671 : vector<1x8x128xf32> to vector<8x128xf32>
    %1673 = vector.extract_strided_slice %1672 {offsets = [0, 0], sizes = [2, 128], strides = [1, 1]} : vector<8x128xf32> to vector<2x128xf32>
    %1674 = arith.mulf %1673, %194 : vector<2x128xf32>
    %1675 = arith.addf %1670, %1674 : vector<2x128xf32>
    %c313 = arith.constant 313 : index
    %c0_698 = arith.constant 0 : index
    %c0_699 = arith.constant 0 : index
    %1676 = vector.load %arg2[%c313, %c0_698, %c0_699] : memref<424x8x128xf32, #tpu.memory_space<vmem>>, vector<1x8x128xf32>
    %1677 = vector.shape_cast %1676 : vector<1x8x128xf32> to vector<8x128xf32>
    %1678 = vector.extract_strided_slice %1677 {offsets = [0, 0], sizes = [2, 128], strides = [1, 1]} : vector<8x128xf32> to vector<2x128xf32>
    %1679 = arith.mulf %1678, %215 : vector<2x128xf32>
    %1680 = arith.addf %1675, %1679 : vector<2x128xf32>
    %c314 = arith.constant 314 : index
    %c0_700 = arith.constant 0 : index
    %c0_701 = arith.constant 0 : index
    %1681 = vector.load %arg2[%c314, %c0_700, %c0_701] : memref<424x8x128xf32, #tpu.memory_space<vmem>>, vector<1x8x128xf32>
    %1682 = vector.shape_cast %1681 : vector<1x8x128xf32> to vector<8x128xf32>
    %1683 = vector.extract_strided_slice %1682 {offsets = [0, 0], sizes = [2, 128], strides = [1, 1]} : vector<8x128xf32> to vector<2x128xf32>
    %1684 = arith.mulf %1683, %236 : vector<2x128xf32>
    %1685 = arith.addf %1680, %1684 : vector<2x128xf32>
    %c315 = arith.constant 315 : index
    %c0_702 = arith.constant 0 : index
    %c0_703 = arith.constant 0 : index
    %1686 = vector.load %arg2[%c315, %c0_702, %c0_703] : memref<424x8x128xf32, #tpu.memory_space<vmem>>, vector<1x8x128xf32>
    %1687 = vector.shape_cast %1686 : vector<1x8x128xf32> to vector<8x128xf32>
    %1688 = vector.extract_strided_slice %1687 {offsets = [0, 0], sizes = [2, 128], strides = [1, 1]} : vector<8x128xf32> to vector<2x128xf32>
    %1689 = arith.mulf %1688, %257 : vector<2x128xf32>
    %1690 = arith.addf %1685, %1689 : vector<2x128xf32>
    %c316 = arith.constant 316 : index
    %c0_704 = arith.constant 0 : index
    %c0_705 = arith.constant 0 : index
    %1691 = vector.load %arg2[%c316, %c0_704, %c0_705] : memref<424x8x128xf32, #tpu.memory_space<vmem>>, vector<1x8x128xf32>
    %1692 = vector.shape_cast %1691 : vector<1x8x128xf32> to vector<8x128xf32>
    %1693 = vector.extract_strided_slice %1692 {offsets = [0, 0], sizes = [2, 128], strides = [1, 1]} : vector<8x128xf32> to vector<2x128xf32>
    %1694 = arith.mulf %1693, %278 : vector<2x128xf32>
    %1695 = arith.addf %1690, %1694 : vector<2x128xf32>
    %c317 = arith.constant 317 : index
    %c0_706 = arith.constant 0 : index
    %c0_707 = arith.constant 0 : index
    %1696 = vector.load %arg2[%c317, %c0_706, %c0_707] : memref<424x8x128xf32, #tpu.memory_space<vmem>>, vector<1x8x128xf32>
    %1697 = vector.shape_cast %1696 : vector<1x8x128xf32> to vector<8x128xf32>
    %1698 = vector.extract_strided_slice %1697 {offsets = [0, 0], sizes = [2, 128], strides = [1, 1]} : vector<8x128xf32> to vector<2x128xf32>
    %1699 = arith.mulf %1698, %299 : vector<2x128xf32>
    %1700 = arith.addf %1695, %1699 : vector<2x128xf32>
    %c318 = arith.constant 318 : index
    %c0_708 = arith.constant 0 : index
    %c0_709 = arith.constant 0 : index
    %1701 = vector.load %arg2[%c318, %c0_708, %c0_709] : memref<424x8x128xf32, #tpu.memory_space<vmem>>, vector<1x8x128xf32>
    %1702 = vector.shape_cast %1701 : vector<1x8x128xf32> to vector<8x128xf32>
    %1703 = vector.extract_strided_slice %1702 {offsets = [0, 0], sizes = [2, 128], strides = [1, 1]} : vector<8x128xf32> to vector<2x128xf32>
    %1704 = arith.mulf %1703, %320 : vector<2x128xf32>
    %1705 = arith.addf %1700, %1704 : vector<2x128xf32>
    %c319 = arith.constant 319 : index
    %c0_710 = arith.constant 0 : index
    %c0_711 = arith.constant 0 : index
    %1706 = vector.load %arg2[%c319, %c0_710, %c0_711] : memref<424x8x128xf32, #tpu.memory_space<vmem>>, vector<1x8x128xf32>
    %1707 = vector.shape_cast %1706 : vector<1x8x128xf32> to vector<8x128xf32>
    %1708 = vector.extract_strided_slice %1707 {offsets = [0, 0], sizes = [2, 128], strides = [1, 1]} : vector<8x128xf32> to vector<2x128xf32>
    %1709 = arith.mulf %1708, %341 : vector<2x128xf32>
    %1710 = arith.addf %1705, %1709 : vector<2x128xf32>
    %c335 = arith.constant 335 : index
    %c0_712 = arith.constant 0 : index
    %c0_713 = arith.constant 0 : index
    %1711 = vector.load %arg2[%c335, %c0_712, %c0_713] : memref<424x8x128xf32, #tpu.memory_space<vmem>>, vector<1x8x128xf32>
    %1712 = vector.shape_cast %1711 : vector<1x8x128xf32> to vector<8x128xf32>
    %1713 = vector.extract_strided_slice %1712 {offsets = [0, 0], sizes = [2, 128], strides = [1, 1]} : vector<8x128xf32> to vector<2x128xf32>
    %1714 = arith.addf %1710, %1713 : vector<2x128xf32>
    %cst_714 = arith.constant 1.000000e-01 : f32
    %1715 = vector.broadcast %cst_714 : f32 to vector<2x128xf32>
    %1716 = arith.mulf %1715, %1714 : vector<2x128xf32>
    %1717 = arith.maximumf %1714, %1716 : vector<2x128xf32>
    %c336 = arith.constant 336 : index
    %c0_715 = arith.constant 0 : index
    %c0_716 = arith.constant 0 : index
    %1718 = vector.load %arg2[%c336, %c0_715, %c0_716] : memref<424x8x128xf32, #tpu.memory_space<vmem>>, vector<1x8x128xf32>
    %1719 = vector.shape_cast %1718 : vector<1x8x128xf32> to vector<8x128xf32>
    %1720 = vector.extract_strided_slice %1719 {offsets = [0, 0], sizes = [2, 128], strides = [1, 1]} : vector<8x128xf32> to vector<2x128xf32>
    %1721 = arith.mulf %1720, %427 : vector<2x128xf32>
    %c337 = arith.constant 337 : index
    %c0_717 = arith.constant 0 : index
    %c0_718 = arith.constant 0 : index
    %1722 = vector.load %arg2[%c337, %c0_717, %c0_718] : memref<424x8x128xf32, #tpu.memory_space<vmem>>, vector<1x8x128xf32>
    %1723 = vector.shape_cast %1722 : vector<1x8x128xf32> to vector<8x128xf32>
    %1724 = vector.extract_strided_slice %1723 {offsets = [0, 0], sizes = [2, 128], strides = [1, 1]} : vector<8x128xf32> to vector<2x128xf32>
    %1725 = arith.mulf %1724, %513 : vector<2x128xf32>
    %1726 = arith.addf %1721, %1725 : vector<2x128xf32>
    %c338 = arith.constant 338 : index
    %c0_719 = arith.constant 0 : index
    %c0_720 = arith.constant 0 : index
    %1727 = vector.load %arg2[%c338, %c0_719, %c0_720] : memref<424x8x128xf32, #tpu.memory_space<vmem>>, vector<1x8x128xf32>
    %1728 = vector.shape_cast %1727 : vector<1x8x128xf32> to vector<8x128xf32>
    %1729 = vector.extract_strided_slice %1728 {offsets = [0, 0], sizes = [2, 128], strides = [1, 1]} : vector<8x128xf32> to vector<2x128xf32>
    %1730 = arith.mulf %1729, %599 : vector<2x128xf32>
    %1731 = arith.addf %1726, %1730 : vector<2x128xf32>
    %c339 = arith.constant 339 : index
    %c0_721 = arith.constant 0 : index
    %c0_722 = arith.constant 0 : index
    %1732 = vector.load %arg2[%c339, %c0_721, %c0_722] : memref<424x8x128xf32, #tpu.memory_space<vmem>>, vector<1x8x128xf32>
    %1733 = vector.shape_cast %1732 : vector<1x8x128xf32> to vector<8x128xf32>
    %1734 = vector.extract_strided_slice %1733 {offsets = [0, 0], sizes = [2, 128], strides = [1, 1]} : vector<8x128xf32> to vector<2x128xf32>
    %1735 = arith.mulf %1734, %685 : vector<2x128xf32>
    %1736 = arith.addf %1731, %1735 : vector<2x128xf32>
    %c340 = arith.constant 340 : index
    %c0_723 = arith.constant 0 : index
    %c0_724 = arith.constant 0 : index
    %1737 = vector.load %arg2[%c340, %c0_723, %c0_724] : memref<424x8x128xf32, #tpu.memory_space<vmem>>, vector<1x8x128xf32>
    %1738 = vector.shape_cast %1737 : vector<1x8x128xf32> to vector<8x128xf32>
    %1739 = vector.extract_strided_slice %1738 {offsets = [0, 0], sizes = [2, 128], strides = [1, 1]} : vector<8x128xf32> to vector<2x128xf32>
    %1740 = arith.mulf %1739, %771 : vector<2x128xf32>
    %1741 = arith.addf %1736, %1740 : vector<2x128xf32>
    %c341 = arith.constant 341 : index
    %c0_725 = arith.constant 0 : index
    %c0_726 = arith.constant 0 : index
    %1742 = vector.load %arg2[%c341, %c0_725, %c0_726] : memref<424x8x128xf32, #tpu.memory_space<vmem>>, vector<1x8x128xf32>
    %1743 = vector.shape_cast %1742 : vector<1x8x128xf32> to vector<8x128xf32>
    %1744 = vector.extract_strided_slice %1743 {offsets = [0, 0], sizes = [2, 128], strides = [1, 1]} : vector<8x128xf32> to vector<2x128xf32>
    %1745 = arith.mulf %1744, %857 : vector<2x128xf32>
    %1746 = arith.addf %1741, %1745 : vector<2x128xf32>
    %c342 = arith.constant 342 : index
    %c0_727 = arith.constant 0 : index
    %c0_728 = arith.constant 0 : index
    %1747 = vector.load %arg2[%c342, %c0_727, %c0_728] : memref<424x8x128xf32, #tpu.memory_space<vmem>>, vector<1x8x128xf32>
    %1748 = vector.shape_cast %1747 : vector<1x8x128xf32> to vector<8x128xf32>
    %1749 = vector.extract_strided_slice %1748 {offsets = [0, 0], sizes = [2, 128], strides = [1, 1]} : vector<8x128xf32> to vector<2x128xf32>
    %1750 = arith.mulf %1749, %943 : vector<2x128xf32>
    %1751 = arith.addf %1746, %1750 : vector<2x128xf32>
    %c343 = arith.constant 343 : index
    %c0_729 = arith.constant 0 : index
    %c0_730 = arith.constant 0 : index
    %1752 = vector.load %arg2[%c343, %c0_729, %c0_730] : memref<424x8x128xf32, #tpu.memory_space<vmem>>, vector<1x8x128xf32>
    %1753 = vector.shape_cast %1752 : vector<1x8x128xf32> to vector<8x128xf32>
    %1754 = vector.extract_strided_slice %1753 {offsets = [0, 0], sizes = [2, 128], strides = [1, 1]} : vector<8x128xf32> to vector<2x128xf32>
    %1755 = arith.mulf %1754, %1029 : vector<2x128xf32>
    %1756 = arith.addf %1751, %1755 : vector<2x128xf32>
    %c344 = arith.constant 344 : index
    %c0_731 = arith.constant 0 : index
    %c0_732 = arith.constant 0 : index
    %1757 = vector.load %arg2[%c344, %c0_731, %c0_732] : memref<424x8x128xf32, #tpu.memory_space<vmem>>, vector<1x8x128xf32>
    %1758 = vector.shape_cast %1757 : vector<1x8x128xf32> to vector<8x128xf32>
    %1759 = vector.extract_strided_slice %1758 {offsets = [0, 0], sizes = [2, 128], strides = [1, 1]} : vector<8x128xf32> to vector<2x128xf32>
    %1760 = arith.mulf %1759, %1115 : vector<2x128xf32>
    %1761 = arith.addf %1756, %1760 : vector<2x128xf32>
    %c345 = arith.constant 345 : index
    %c0_733 = arith.constant 0 : index
    %c0_734 = arith.constant 0 : index
    %1762 = vector.load %arg2[%c345, %c0_733, %c0_734] : memref<424x8x128xf32, #tpu.memory_space<vmem>>, vector<1x8x128xf32>
    %1763 = vector.shape_cast %1762 : vector<1x8x128xf32> to vector<8x128xf32>
    %1764 = vector.extract_strided_slice %1763 {offsets = [0, 0], sizes = [2, 128], strides = [1, 1]} : vector<8x128xf32> to vector<2x128xf32>
    %1765 = arith.mulf %1764, %1201 : vector<2x128xf32>
    %1766 = arith.addf %1761, %1765 : vector<2x128xf32>
    %c346 = arith.constant 346 : index
    %c0_735 = arith.constant 0 : index
    %c0_736 = arith.constant 0 : index
    %1767 = vector.load %arg2[%c346, %c0_735, %c0_736] : memref<424x8x128xf32, #tpu.memory_space<vmem>>, vector<1x8x128xf32>
    %1768 = vector.shape_cast %1767 : vector<1x8x128xf32> to vector<8x128xf32>
    %1769 = vector.extract_strided_slice %1768 {offsets = [0, 0], sizes = [2, 128], strides = [1, 1]} : vector<8x128xf32> to vector<2x128xf32>
    %1770 = arith.mulf %1769, %1287 : vector<2x128xf32>
    %1771 = arith.addf %1766, %1770 : vector<2x128xf32>
    %c347 = arith.constant 347 : index
    %c0_737 = arith.constant 0 : index
    %c0_738 = arith.constant 0 : index
    %1772 = vector.load %arg2[%c347, %c0_737, %c0_738] : memref<424x8x128xf32, #tpu.memory_space<vmem>>, vector<1x8x128xf32>
    %1773 = vector.shape_cast %1772 : vector<1x8x128xf32> to vector<8x128xf32>
    %1774 = vector.extract_strided_slice %1773 {offsets = [0, 0], sizes = [2, 128], strides = [1, 1]} : vector<8x128xf32> to vector<2x128xf32>
    %1775 = arith.mulf %1774, %1373 : vector<2x128xf32>
    %1776 = arith.addf %1771, %1775 : vector<2x128xf32>
    %c348 = arith.constant 348 : index
    %c0_739 = arith.constant 0 : index
    %c0_740 = arith.constant 0 : index
    %1777 = vector.load %arg2[%c348, %c0_739, %c0_740] : memref<424x8x128xf32, #tpu.memory_space<vmem>>, vector<1x8x128xf32>
    %1778 = vector.shape_cast %1777 : vector<1x8x128xf32> to vector<8x128xf32>
    %1779 = vector.extract_strided_slice %1778 {offsets = [0, 0], sizes = [2, 128], strides = [1, 1]} : vector<8x128xf32> to vector<2x128xf32>
    %1780 = arith.mulf %1779, %1459 : vector<2x128xf32>
    %1781 = arith.addf %1776, %1780 : vector<2x128xf32>
    %c349 = arith.constant 349 : index
    %c0_741 = arith.constant 0 : index
    %c0_742 = arith.constant 0 : index
    %1782 = vector.load %arg2[%c349, %c0_741, %c0_742] : memref<424x8x128xf32, #tpu.memory_space<vmem>>, vector<1x8x128xf32>
    %1783 = vector.shape_cast %1782 : vector<1x8x128xf32> to vector<8x128xf32>
    %1784 = vector.extract_strided_slice %1783 {offsets = [0, 0], sizes = [2, 128], strides = [1, 1]} : vector<8x128xf32> to vector<2x128xf32>
    %1785 = arith.mulf %1784, %1545 : vector<2x128xf32>
    %1786 = arith.addf %1781, %1785 : vector<2x128xf32>
    %c350 = arith.constant 350 : index
    %c0_743 = arith.constant 0 : index
    %c0_744 = arith.constant 0 : index
    %1787 = vector.load %arg2[%c350, %c0_743, %c0_744] : memref<424x8x128xf32, #tpu.memory_space<vmem>>, vector<1x8x128xf32>
    %1788 = vector.shape_cast %1787 : vector<1x8x128xf32> to vector<8x128xf32>
    %1789 = vector.extract_strided_slice %1788 {offsets = [0, 0], sizes = [2, 128], strides = [1, 1]} : vector<8x128xf32> to vector<2x128xf32>
    %1790 = arith.mulf %1789, %1631 : vector<2x128xf32>
    %1791 = arith.addf %1786, %1790 : vector<2x128xf32>
    %c351 = arith.constant 351 : index
    %c0_745 = arith.constant 0 : index
    %c0_746 = arith.constant 0 : index
    %1792 = vector.load %arg2[%c351, %c0_745, %c0_746] : memref<424x8x128xf32, #tpu.memory_space<vmem>>, vector<1x8x128xf32>
    %1793 = vector.shape_cast %1792 : vector<1x8x128xf32> to vector<8x128xf32>
    %1794 = vector.extract_strided_slice %1793 {offsets = [0, 0], sizes = [2, 128], strides = [1, 1]} : vector<8x128xf32> to vector<2x128xf32>
    %1795 = arith.mulf %1794, %1717 : vector<2x128xf32>
    %1796 = arith.addf %1791, %1795 : vector<2x128xf32>
    %c400 = arith.constant 400 : index
    %c0_747 = arith.constant 0 : index
    %c0_748 = arith.constant 0 : index
    %1797 = vector.load %arg2[%c400, %c0_747, %c0_748] : memref<424x8x128xf32, #tpu.memory_space<vmem>>, vector<1x8x128xf32>
    %1798 = vector.shape_cast %1797 : vector<1x8x128xf32> to vector<8x128xf32>
    %1799 = vector.extract_strided_slice %1798 {offsets = [0, 0], sizes = [2, 128], strides = [1, 1]} : vector<8x128xf32> to vector<2x128xf32>
    %1800 = arith.addf %1796, %1799 : vector<2x128xf32>
    %cst_749 = arith.constant 1.000000e-01 : f32
    %1801 = vector.broadcast %cst_749 : f32 to vector<2x128xf32>
    %1802 = arith.mulf %1801, %1800 : vector<2x128xf32>
    %1803 = arith.maximumf %1800, %1802 : vector<2x128xf32>
    %c352 = arith.constant 352 : index
    %c0_750 = arith.constant 0 : index
    %c0_751 = arith.constant 0 : index
    %1804 = vector.load %arg2[%c352, %c0_750, %c0_751] : memref<424x8x128xf32, #tpu.memory_space<vmem>>, vector<1x8x128xf32>
    %1805 = vector.shape_cast %1804 : vector<1x8x128xf32> to vector<8x128xf32>
    %1806 = vector.extract_strided_slice %1805 {offsets = [0, 0], sizes = [2, 128], strides = [1, 1]} : vector<8x128xf32> to vector<2x128xf32>
    %1807 = arith.mulf %1806, %427 : vector<2x128xf32>
    %c353 = arith.constant 353 : index
    %c0_752 = arith.constant 0 : index
    %c0_753 = arith.constant 0 : index
    %1808 = vector.load %arg2[%c353, %c0_752, %c0_753] : memref<424x8x128xf32, #tpu.memory_space<vmem>>, vector<1x8x128xf32>
    %1809 = vector.shape_cast %1808 : vector<1x8x128xf32> to vector<8x128xf32>
    %1810 = vector.extract_strided_slice %1809 {offsets = [0, 0], sizes = [2, 128], strides = [1, 1]} : vector<8x128xf32> to vector<2x128xf32>
    %1811 = arith.mulf %1810, %513 : vector<2x128xf32>
    %1812 = arith.addf %1807, %1811 : vector<2x128xf32>
    %c354 = arith.constant 354 : index
    %c0_754 = arith.constant 0 : index
    %c0_755 = arith.constant 0 : index
    %1813 = vector.load %arg2[%c354, %c0_754, %c0_755] : memref<424x8x128xf32, #tpu.memory_space<vmem>>, vector<1x8x128xf32>
    %1814 = vector.shape_cast %1813 : vector<1x8x128xf32> to vector<8x128xf32>
    %1815 = vector.extract_strided_slice %1814 {offsets = [0, 0], sizes = [2, 128], strides = [1, 1]} : vector<8x128xf32> to vector<2x128xf32>
    %1816 = arith.mulf %1815, %599 : vector<2x128xf32>
    %1817 = arith.addf %1812, %1816 : vector<2x128xf32>
    %c355 = arith.constant 355 : index
    %c0_756 = arith.constant 0 : index
    %c0_757 = arith.constant 0 : index
    %1818 = vector.load %arg2[%c355, %c0_756, %c0_757] : memref<424x8x128xf32, #tpu.memory_space<vmem>>, vector<1x8x128xf32>
    %1819 = vector.shape_cast %1818 : vector<1x8x128xf32> to vector<8x128xf32>
    %1820 = vector.extract_strided_slice %1819 {offsets = [0, 0], sizes = [2, 128], strides = [1, 1]} : vector<8x128xf32> to vector<2x128xf32>
    %1821 = arith.mulf %1820, %685 : vector<2x128xf32>
    %1822 = arith.addf %1817, %1821 : vector<2x128xf32>
    %c356 = arith.constant 356 : index
    %c0_758 = arith.constant 0 : index
    %c0_759 = arith.constant 0 : index
    %1823 = vector.load %arg2[%c356, %c0_758, %c0_759] : memref<424x8x128xf32, #tpu.memory_space<vmem>>, vector<1x8x128xf32>
    %1824 = vector.shape_cast %1823 : vector<1x8x128xf32> to vector<8x128xf32>
    %1825 = vector.extract_strided_slice %1824 {offsets = [0, 0], sizes = [2, 128], strides = [1, 1]} : vector<8x128xf32> to vector<2x128xf32>
    %1826 = arith.mulf %1825, %771 : vector<2x128xf32>
    %1827 = arith.addf %1822, %1826 : vector<2x128xf32>
    %c357 = arith.constant 357 : index
    %c0_760 = arith.constant 0 : index
    %c0_761 = arith.constant 0 : index
    %1828 = vector.load %arg2[%c357, %c0_760, %c0_761] : memref<424x8x128xf32, #tpu.memory_space<vmem>>, vector<1x8x128xf32>
    %1829 = vector.shape_cast %1828 : vector<1x8x128xf32> to vector<8x128xf32>
    %1830 = vector.extract_strided_slice %1829 {offsets = [0, 0], sizes = [2, 128], strides = [1, 1]} : vector<8x128xf32> to vector<2x128xf32>
    %1831 = arith.mulf %1830, %857 : vector<2x128xf32>
    %1832 = arith.addf %1827, %1831 : vector<2x128xf32>
    %c358 = arith.constant 358 : index
    %c0_762 = arith.constant 0 : index
    %c0_763 = arith.constant 0 : index
    %1833 = vector.load %arg2[%c358, %c0_762, %c0_763] : memref<424x8x128xf32, #tpu.memory_space<vmem>>, vector<1x8x128xf32>
    %1834 = vector.shape_cast %1833 : vector<1x8x128xf32> to vector<8x128xf32>
    %1835 = vector.extract_strided_slice %1834 {offsets = [0, 0], sizes = [2, 128], strides = [1, 1]} : vector<8x128xf32> to vector<2x128xf32>
    %1836 = arith.mulf %1835, %943 : vector<2x128xf32>
    %1837 = arith.addf %1832, %1836 : vector<2x128xf32>
    %c359 = arith.constant 359 : index
    %c0_764 = arith.constant 0 : index
    %c0_765 = arith.constant 0 : index
    %1838 = vector.load %arg2[%c359, %c0_764, %c0_765] : memref<424x8x128xf32, #tpu.memory_space<vmem>>, vector<1x8x128xf32>
    %1839 = vector.shape_cast %1838 : vector<1x8x128xf32> to vector<8x128xf32>
    %1840 = vector.extract_strided_slice %1839 {offsets = [0, 0], sizes = [2, 128], strides = [1, 1]} : vector<8x128xf32> to vector<2x128xf32>
    %1841 = arith.mulf %1840, %1029 : vector<2x128xf32>
    %1842 = arith.addf %1837, %1841 : vector<2x128xf32>
    %c360 = arith.constant 360 : index
    %c0_766 = arith.constant 0 : index
    %c0_767 = arith.constant 0 : index
    %1843 = vector.load %arg2[%c360, %c0_766, %c0_767] : memref<424x8x128xf32, #tpu.memory_space<vmem>>, vector<1x8x128xf32>
    %1844 = vector.shape_cast %1843 : vector<1x8x128xf32> to vector<8x128xf32>
    %1845 = vector.extract_strided_slice %1844 {offsets = [0, 0], sizes = [2, 128], strides = [1, 1]} : vector<8x128xf32> to vector<2x128xf32>
    %1846 = arith.mulf %1845, %1115 : vector<2x128xf32>
    %1847 = arith.addf %1842, %1846 : vector<2x128xf32>
    %c361 = arith.constant 361 : index
    %c0_768 = arith.constant 0 : index
    %c0_769 = arith.constant 0 : index
    %1848 = vector.load %arg2[%c361, %c0_768, %c0_769] : memref<424x8x128xf32, #tpu.memory_space<vmem>>, vector<1x8x128xf32>
    %1849 = vector.shape_cast %1848 : vector<1x8x128xf32> to vector<8x128xf32>
    %1850 = vector.extract_strided_slice %1849 {offsets = [0, 0], sizes = [2, 128], strides = [1, 1]} : vector<8x128xf32> to vector<2x128xf32>
    %1851 = arith.mulf %1850, %1201 : vector<2x128xf32>
    %1852 = arith.addf %1847, %1851 : vector<2x128xf32>
    %c362 = arith.constant 362 : index
    %c0_770 = arith.constant 0 : index
    %c0_771 = arith.constant 0 : index
    %1853 = vector.load %arg2[%c362, %c0_770, %c0_771] : memref<424x8x128xf32, #tpu.memory_space<vmem>>, vector<1x8x128xf32>
    %1854 = vector.shape_cast %1853 : vector<1x8x128xf32> to vector<8x128xf32>
    %1855 = vector.extract_strided_slice %1854 {offsets = [0, 0], sizes = [2, 128], strides = [1, 1]} : vector<8x128xf32> to vector<2x128xf32>
    %1856 = arith.mulf %1855, %1287 : vector<2x128xf32>
    %1857 = arith.addf %1852, %1856 : vector<2x128xf32>
    %c363 = arith.constant 363 : index
    %c0_772 = arith.constant 0 : index
    %c0_773 = arith.constant 0 : index
    %1858 = vector.load %arg2[%c363, %c0_772, %c0_773] : memref<424x8x128xf32, #tpu.memory_space<vmem>>, vector<1x8x128xf32>
    %1859 = vector.shape_cast %1858 : vector<1x8x128xf32> to vector<8x128xf32>
    %1860 = vector.extract_strided_slice %1859 {offsets = [0, 0], sizes = [2, 128], strides = [1, 1]} : vector<8x128xf32> to vector<2x128xf32>
    %1861 = arith.mulf %1860, %1373 : vector<2x128xf32>
    %1862 = arith.addf %1857, %1861 : vector<2x128xf32>
    %c364 = arith.constant 364 : index
    %c0_774 = arith.constant 0 : index
    %c0_775 = arith.constant 0 : index
    %1863 = vector.load %arg2[%c364, %c0_774, %c0_775] : memref<424x8x128xf32, #tpu.memory_space<vmem>>, vector<1x8x128xf32>
    %1864 = vector.shape_cast %1863 : vector<1x8x128xf32> to vector<8x128xf32>
    %1865 = vector.extract_strided_slice %1864 {offsets = [0, 0], sizes = [2, 128], strides = [1, 1]} : vector<8x128xf32> to vector<2x128xf32>
    %1866 = arith.mulf %1865, %1459 : vector<2x128xf32>
    %1867 = arith.addf %1862, %1866 : vector<2x128xf32>
    %c365 = arith.constant 365 : index
    %c0_776 = arith.constant 0 : index
    %c0_777 = arith.constant 0 : index
    %1868 = vector.load %arg2[%c365, %c0_776, %c0_777] : memref<424x8x128xf32, #tpu.memory_space<vmem>>, vector<1x8x128xf32>
    %1869 = vector.shape_cast %1868 : vector<1x8x128xf32> to vector<8x128xf32>
    %1870 = vector.extract_strided_slice %1869 {offsets = [0, 0], sizes = [2, 128], strides = [1, 1]} : vector<8x128xf32> to vector<2x128xf32>
    %1871 = arith.mulf %1870, %1545 : vector<2x128xf32>
    %1872 = arith.addf %1867, %1871 : vector<2x128xf32>
    %c366 = arith.constant 366 : index
    %c0_778 = arith.constant 0 : index
    %c0_779 = arith.constant 0 : index
    %1873 = vector.load %arg2[%c366, %c0_778, %c0_779] : memref<424x8x128xf32, #tpu.memory_space<vmem>>, vector<1x8x128xf32>
    %1874 = vector.shape_cast %1873 : vector<1x8x128xf32> to vector<8x128xf32>
    %1875 = vector.extract_strided_slice %1874 {offsets = [0, 0], sizes = [2, 128], strides = [1, 1]} : vector<8x128xf32> to vector<2x128xf32>
    %1876 = arith.mulf %1875, %1631 : vector<2x128xf32>
    %1877 = arith.addf %1872, %1876 : vector<2x128xf32>
    %c367 = arith.constant 367 : index
    %c0_780 = arith.constant 0 : index
    %c0_781 = arith.constant 0 : index
    %1878 = vector.load %arg2[%c367, %c0_780, %c0_781] : memref<424x8x128xf32, #tpu.memory_space<vmem>>, vector<1x8x128xf32>
    %1879 = vector.shape_cast %1878 : vector<1x8x128xf32> to vector<8x128xf32>
    %1880 = vector.extract_strided_slice %1879 {offsets = [0, 0], sizes = [2, 128], strides = [1, 1]} : vector<8x128xf32> to vector<2x128xf32>
    %1881 = arith.mulf %1880, %1717 : vector<2x128xf32>
    %1882 = arith.addf %1877, %1881 : vector<2x128xf32>
    %c401 = arith.constant 401 : index
    %c0_782 = arith.constant 0 : index
    %c0_783 = arith.constant 0 : index
    %1883 = vector.load %arg2[%c401, %c0_782, %c0_783] : memref<424x8x128xf32, #tpu.memory_space<vmem>>, vector<1x8x128xf32>
    %1884 = vector.shape_cast %1883 : vector<1x8x128xf32> to vector<8x128xf32>
    %1885 = vector.extract_strided_slice %1884 {offsets = [0, 0], sizes = [2, 128], strides = [1, 1]} : vector<8x128xf32> to vector<2x128xf32>
    %1886 = arith.addf %1882, %1885 : vector<2x128xf32>
    %cst_784 = arith.constant 1.000000e-01 : f32
    %1887 = vector.broadcast %cst_784 : f32 to vector<2x128xf32>
    %1888 = arith.mulf %1887, %1886 : vector<2x128xf32>
    %1889 = arith.maximumf %1886, %1888 : vector<2x128xf32>
    %c368 = arith.constant 368 : index
    %c0_785 = arith.constant 0 : index
    %c0_786 = arith.constant 0 : index
    %1890 = vector.load %arg2[%c368, %c0_785, %c0_786] : memref<424x8x128xf32, #tpu.memory_space<vmem>>, vector<1x8x128xf32>
    %1891 = vector.shape_cast %1890 : vector<1x8x128xf32> to vector<8x128xf32>
    %1892 = vector.extract_strided_slice %1891 {offsets = [0, 0], sizes = [2, 128], strides = [1, 1]} : vector<8x128xf32> to vector<2x128xf32>
    %1893 = arith.mulf %1892, %427 : vector<2x128xf32>
    %c369 = arith.constant 369 : index
    %c0_787 = arith.constant 0 : index
    %c0_788 = arith.constant 0 : index
    %1894 = vector.load %arg2[%c369, %c0_787, %c0_788] : memref<424x8x128xf32, #tpu.memory_space<vmem>>, vector<1x8x128xf32>
    %1895 = vector.shape_cast %1894 : vector<1x8x128xf32> to vector<8x128xf32>
    %1896 = vector.extract_strided_slice %1895 {offsets = [0, 0], sizes = [2, 128], strides = [1, 1]} : vector<8x128xf32> to vector<2x128xf32>
    %1897 = arith.mulf %1896, %513 : vector<2x128xf32>
    %1898 = arith.addf %1893, %1897 : vector<2x128xf32>
    %c370 = arith.constant 370 : index
    %c0_789 = arith.constant 0 : index
    %c0_790 = arith.constant 0 : index
    %1899 = vector.load %arg2[%c370, %c0_789, %c0_790] : memref<424x8x128xf32, #tpu.memory_space<vmem>>, vector<1x8x128xf32>
    %1900 = vector.shape_cast %1899 : vector<1x8x128xf32> to vector<8x128xf32>
    %1901 = vector.extract_strided_slice %1900 {offsets = [0, 0], sizes = [2, 128], strides = [1, 1]} : vector<8x128xf32> to vector<2x128xf32>
    %1902 = arith.mulf %1901, %599 : vector<2x128xf32>
    %1903 = arith.addf %1898, %1902 : vector<2x128xf32>
    %c371 = arith.constant 371 : index
    %c0_791 = arith.constant 0 : index
    %c0_792 = arith.constant 0 : index
    %1904 = vector.load %arg2[%c371, %c0_791, %c0_792] : memref<424x8x128xf32, #tpu.memory_space<vmem>>, vector<1x8x128xf32>
    %1905 = vector.shape_cast %1904 : vector<1x8x128xf32> to vector<8x128xf32>
    %1906 = vector.extract_strided_slice %1905 {offsets = [0, 0], sizes = [2, 128], strides = [1, 1]} : vector<8x128xf32> to vector<2x128xf32>
    %1907 = arith.mulf %1906, %685 : vector<2x128xf32>
    %1908 = arith.addf %1903, %1907 : vector<2x128xf32>
    %c372 = arith.constant 372 : index
    %c0_793 = arith.constant 0 : index
    %c0_794 = arith.constant 0 : index
    %1909 = vector.load %arg2[%c372, %c0_793, %c0_794] : memref<424x8x128xf32, #tpu.memory_space<vmem>>, vector<1x8x128xf32>
    %1910 = vector.shape_cast %1909 : vector<1x8x128xf32> to vector<8x128xf32>
    %1911 = vector.extract_strided_slice %1910 {offsets = [0, 0], sizes = [2, 128], strides = [1, 1]} : vector<8x128xf32> to vector<2x128xf32>
    %1912 = arith.mulf %1911, %771 : vector<2x128xf32>
    %1913 = arith.addf %1908, %1912 : vector<2x128xf32>
    %c373 = arith.constant 373 : index
    %c0_795 = arith.constant 0 : index
    %c0_796 = arith.constant 0 : index
    %1914 = vector.load %arg2[%c373, %c0_795, %c0_796] : memref<424x8x128xf32, #tpu.memory_space<vmem>>, vector<1x8x128xf32>
    %1915 = vector.shape_cast %1914 : vector<1x8x128xf32> to vector<8x128xf32>
    %1916 = vector.extract_strided_slice %1915 {offsets = [0, 0], sizes = [2, 128], strides = [1, 1]} : vector<8x128xf32> to vector<2x128xf32>
    %1917 = arith.mulf %1916, %857 : vector<2x128xf32>
    %1918 = arith.addf %1913, %1917 : vector<2x128xf32>
    %c374 = arith.constant 374 : index
    %c0_797 = arith.constant 0 : index
    %c0_798 = arith.constant 0 : index
    %1919 = vector.load %arg2[%c374, %c0_797, %c0_798] : memref<424x8x128xf32, #tpu.memory_space<vmem>>, vector<1x8x128xf32>
    %1920 = vector.shape_cast %1919 : vector<1x8x128xf32> to vector<8x128xf32>
    %1921 = vector.extract_strided_slice %1920 {offsets = [0, 0], sizes = [2, 128], strides = [1, 1]} : vector<8x128xf32> to vector<2x128xf32>
    %1922 = arith.mulf %1921, %943 : vector<2x128xf32>
    %1923 = arith.addf %1918, %1922 : vector<2x128xf32>
    %c375 = arith.constant 375 : index
    %c0_799 = arith.constant 0 : index
    %c0_800 = arith.constant 0 : index
    %1924 = vector.load %arg2[%c375, %c0_799, %c0_800] : memref<424x8x128xf32, #tpu.memory_space<vmem>>, vector<1x8x128xf32>
    %1925 = vector.shape_cast %1924 : vector<1x8x128xf32> to vector<8x128xf32>
    %1926 = vector.extract_strided_slice %1925 {offsets = [0, 0], sizes = [2, 128], strides = [1, 1]} : vector<8x128xf32> to vector<2x128xf32>
    %1927 = arith.mulf %1926, %1029 : vector<2x128xf32>
    %1928 = arith.addf %1923, %1927 : vector<2x128xf32>
    %c376 = arith.constant 376 : index
    %c0_801 = arith.constant 0 : index
    %c0_802 = arith.constant 0 : index
    %1929 = vector.load %arg2[%c376, %c0_801, %c0_802] : memref<424x8x128xf32, #tpu.memory_space<vmem>>, vector<1x8x128xf32>
    %1930 = vector.shape_cast %1929 : vector<1x8x128xf32> to vector<8x128xf32>
    %1931 = vector.extract_strided_slice %1930 {offsets = [0, 0], sizes = [2, 128], strides = [1, 1]} : vector<8x128xf32> to vector<2x128xf32>
    %1932 = arith.mulf %1931, %1115 : vector<2x128xf32>
    %1933 = arith.addf %1928, %1932 : vector<2x128xf32>
    %c377 = arith.constant 377 : index
    %c0_803 = arith.constant 0 : index
    %c0_804 = arith.constant 0 : index
    %1934 = vector.load %arg2[%c377, %c0_803, %c0_804] : memref<424x8x128xf32, #tpu.memory_space<vmem>>, vector<1x8x128xf32>
    %1935 = vector.shape_cast %1934 : vector<1x8x128xf32> to vector<8x128xf32>
    %1936 = vector.extract_strided_slice %1935 {offsets = [0, 0], sizes = [2, 128], strides = [1, 1]} : vector<8x128xf32> to vector<2x128xf32>
    %1937 = arith.mulf %1936, %1201 : vector<2x128xf32>
    %1938 = arith.addf %1933, %1937 : vector<2x128xf32>
    %c378 = arith.constant 378 : index
    %c0_805 = arith.constant 0 : index
    %c0_806 = arith.constant 0 : index
    %1939 = vector.load %arg2[%c378, %c0_805, %c0_806] : memref<424x8x128xf32, #tpu.memory_space<vmem>>, vector<1x8x128xf32>
    %1940 = vector.shape_cast %1939 : vector<1x8x128xf32> to vector<8x128xf32>
    %1941 = vector.extract_strided_slice %1940 {offsets = [0, 0], sizes = [2, 128], strides = [1, 1]} : vector<8x128xf32> to vector<2x128xf32>
    %1942 = arith.mulf %1941, %1287 : vector<2x128xf32>
    %1943 = arith.addf %1938, %1942 : vector<2x128xf32>
    %c379 = arith.constant 379 : index
    %c0_807 = arith.constant 0 : index
    %c0_808 = arith.constant 0 : index
    %1944 = vector.load %arg2[%c379, %c0_807, %c0_808] : memref<424x8x128xf32, #tpu.memory_space<vmem>>, vector<1x8x128xf32>
    %1945 = vector.shape_cast %1944 : vector<1x8x128xf32> to vector<8x128xf32>
    %1946 = vector.extract_strided_slice %1945 {offsets = [0, 0], sizes = [2, 128], strides = [1, 1]} : vector<8x128xf32> to vector<2x128xf32>
    %1947 = arith.mulf %1946, %1373 : vector<2x128xf32>
    %1948 = arith.addf %1943, %1947 : vector<2x128xf32>
    %c380 = arith.constant 380 : index
    %c0_809 = arith.constant 0 : index
    %c0_810 = arith.constant 0 : index
    %1949 = vector.load %arg2[%c380, %c0_809, %c0_810] : memref<424x8x128xf32, #tpu.memory_space<vmem>>, vector<1x8x128xf32>
    %1950 = vector.shape_cast %1949 : vector<1x8x128xf32> to vector<8x128xf32>
    %1951 = vector.extract_strided_slice %1950 {offsets = [0, 0], sizes = [2, 128], strides = [1, 1]} : vector<8x128xf32> to vector<2x128xf32>
    %1952 = arith.mulf %1951, %1459 : vector<2x128xf32>
    %1953 = arith.addf %1948, %1952 : vector<2x128xf32>
    %c381 = arith.constant 381 : index
    %c0_811 = arith.constant 0 : index
    %c0_812 = arith.constant 0 : index
    %1954 = vector.load %arg2[%c381, %c0_811, %c0_812] : memref<424x8x128xf32, #tpu.memory_space<vmem>>, vector<1x8x128xf32>
    %1955 = vector.shape_cast %1954 : vector<1x8x128xf32> to vector<8x128xf32>
    %1956 = vector.extract_strided_slice %1955 {offsets = [0, 0], sizes = [2, 128], strides = [1, 1]} : vector<8x128xf32> to vector<2x128xf32>
    %1957 = arith.mulf %1956, %1545 : vector<2x128xf32>
    %1958 = arith.addf %1953, %1957 : vector<2x128xf32>
    %c382 = arith.constant 382 : index
    %c0_813 = arith.constant 0 : index
    %c0_814 = arith.constant 0 : index
    %1959 = vector.load %arg2[%c382, %c0_813, %c0_814] : memref<424x8x128xf32, #tpu.memory_space<vmem>>, vector<1x8x128xf32>
    %1960 = vector.shape_cast %1959 : vector<1x8x128xf32> to vector<8x128xf32>
    %1961 = vector.extract_strided_slice %1960 {offsets = [0, 0], sizes = [2, 128], strides = [1, 1]} : vector<8x128xf32> to vector<2x128xf32>
    %1962 = arith.mulf %1961, %1631 : vector<2x128xf32>
    %1963 = arith.addf %1958, %1962 : vector<2x128xf32>
    %c383 = arith.constant 383 : index
    %c0_815 = arith.constant 0 : index
    %c0_816 = arith.constant 0 : index
    %1964 = vector.load %arg2[%c383, %c0_815, %c0_816] : memref<424x8x128xf32, #tpu.memory_space<vmem>>, vector<1x8x128xf32>
    %1965 = vector.shape_cast %1964 : vector<1x8x128xf32> to vector<8x128xf32>
    %1966 = vector.extract_strided_slice %1965 {offsets = [0, 0], sizes = [2, 128], strides = [1, 1]} : vector<8x128xf32> to vector<2x128xf32>
    %1967 = arith.mulf %1966, %1717 : vector<2x128xf32>
    %1968 = arith.addf %1963, %1967 : vector<2x128xf32>
    %c402 = arith.constant 402 : index
    %c0_817 = arith.constant 0 : index
    %c0_818 = arith.constant 0 : index
    %1969 = vector.load %arg2[%c402, %c0_817, %c0_818] : memref<424x8x128xf32, #tpu.memory_space<vmem>>, vector<1x8x128xf32>
    %1970 = vector.shape_cast %1969 : vector<1x8x128xf32> to vector<8x128xf32>
    %1971 = vector.extract_strided_slice %1970 {offsets = [0, 0], sizes = [2, 128], strides = [1, 1]} : vector<8x128xf32> to vector<2x128xf32>
    %1972 = arith.addf %1968, %1971 : vector<2x128xf32>
    %cst_819 = arith.constant 1.000000e-01 : f32
    %1973 = vector.broadcast %cst_819 : f32 to vector<2x128xf32>
    %1974 = arith.mulf %1973, %1972 : vector<2x128xf32>
    %1975 = arith.maximumf %1972, %1974 : vector<2x128xf32>
    %c384 = arith.constant 384 : index
    %c0_820 = arith.constant 0 : index
    %c0_821 = arith.constant 0 : index
    %1976 = vector.load %arg2[%c384, %c0_820, %c0_821] : memref<424x8x128xf32, #tpu.memory_space<vmem>>, vector<1x8x128xf32>
    %1977 = vector.shape_cast %1976 : vector<1x8x128xf32> to vector<8x128xf32>
    %1978 = vector.extract_strided_slice %1977 {offsets = [0, 0], sizes = [2, 128], strides = [1, 1]} : vector<8x128xf32> to vector<2x128xf32>
    %1979 = arith.mulf %1978, %427 : vector<2x128xf32>
    %c385 = arith.constant 385 : index
    %c0_822 = arith.constant 0 : index
    %c0_823 = arith.constant 0 : index
    %1980 = vector.load %arg2[%c385, %c0_822, %c0_823] : memref<424x8x128xf32, #tpu.memory_space<vmem>>, vector<1x8x128xf32>
    %1981 = vector.shape_cast %1980 : vector<1x8x128xf32> to vector<8x128xf32>
    %1982 = vector.extract_strided_slice %1981 {offsets = [0, 0], sizes = [2, 128], strides = [1, 1]} : vector<8x128xf32> to vector<2x128xf32>
    %1983 = arith.mulf %1982, %513 : vector<2x128xf32>
    %1984 = arith.addf %1979, %1983 : vector<2x128xf32>
    %c386 = arith.constant 386 : index
    %c0_824 = arith.constant 0 : index
    %c0_825 = arith.constant 0 : index
    %1985 = vector.load %arg2[%c386, %c0_824, %c0_825] : memref<424x8x128xf32, #tpu.memory_space<vmem>>, vector<1x8x128xf32>
    %1986 = vector.shape_cast %1985 : vector<1x8x128xf32> to vector<8x128xf32>
    %1987 = vector.extract_strided_slice %1986 {offsets = [0, 0], sizes = [2, 128], strides = [1, 1]} : vector<8x128xf32> to vector<2x128xf32>
    %1988 = arith.mulf %1987, %599 : vector<2x128xf32>
    %1989 = arith.addf %1984, %1988 : vector<2x128xf32>
    %c387 = arith.constant 387 : index
    %c0_826 = arith.constant 0 : index
    %c0_827 = arith.constant 0 : index
    %1990 = vector.load %arg2[%c387, %c0_826, %c0_827] : memref<424x8x128xf32, #tpu.memory_space<vmem>>, vector<1x8x128xf32>
    %1991 = vector.shape_cast %1990 : vector<1x8x128xf32> to vector<8x128xf32>
    %1992 = vector.extract_strided_slice %1991 {offsets = [0, 0], sizes = [2, 128], strides = [1, 1]} : vector<8x128xf32> to vector<2x128xf32>
    %1993 = arith.mulf %1992, %685 : vector<2x128xf32>
    %1994 = arith.addf %1989, %1993 : vector<2x128xf32>
    %c388 = arith.constant 388 : index
    %c0_828 = arith.constant 0 : index
    %c0_829 = arith.constant 0 : index
    %1995 = vector.load %arg2[%c388, %c0_828, %c0_829] : memref<424x8x128xf32, #tpu.memory_space<vmem>>, vector<1x8x128xf32>
    %1996 = vector.shape_cast %1995 : vector<1x8x128xf32> to vector<8x128xf32>
    %1997 = vector.extract_strided_slice %1996 {offsets = [0, 0], sizes = [2, 128], strides = [1, 1]} : vector<8x128xf32> to vector<2x128xf32>
    %1998 = arith.mulf %1997, %771 : vector<2x128xf32>
    %1999 = arith.addf %1994, %1998 : vector<2x128xf32>
    %c389 = arith.constant 389 : index
    %c0_830 = arith.constant 0 : index
    %c0_831 = arith.constant 0 : index
    %2000 = vector.load %arg2[%c389, %c0_830, %c0_831] : memref<424x8x128xf32, #tpu.memory_space<vmem>>, vector<1x8x128xf32>
    %2001 = vector.shape_cast %2000 : vector<1x8x128xf32> to vector<8x128xf32>
    %2002 = vector.extract_strided_slice %2001 {offsets = [0, 0], sizes = [2, 128], strides = [1, 1]} : vector<8x128xf32> to vector<2x128xf32>
    %2003 = arith.mulf %2002, %857 : vector<2x128xf32>
    %2004 = arith.addf %1999, %2003 : vector<2x128xf32>
    %c390 = arith.constant 390 : index
    %c0_832 = arith.constant 0 : index
    %c0_833 = arith.constant 0 : index
    %2005 = vector.load %arg2[%c390, %c0_832, %c0_833] : memref<424x8x128xf32, #tpu.memory_space<vmem>>, vector<1x8x128xf32>
    %2006 = vector.shape_cast %2005 : vector<1x8x128xf32> to vector<8x128xf32>
    %2007 = vector.extract_strided_slice %2006 {offsets = [0, 0], sizes = [2, 128], strides = [1, 1]} : vector<8x128xf32> to vector<2x128xf32>
    %2008 = arith.mulf %2007, %943 : vector<2x128xf32>
    %2009 = arith.addf %2004, %2008 : vector<2x128xf32>
    %c391 = arith.constant 391 : index
    %c0_834 = arith.constant 0 : index
    %c0_835 = arith.constant 0 : index
    %2010 = vector.load %arg2[%c391, %c0_834, %c0_835] : memref<424x8x128xf32, #tpu.memory_space<vmem>>, vector<1x8x128xf32>
    %2011 = vector.shape_cast %2010 : vector<1x8x128xf32> to vector<8x128xf32>
    %2012 = vector.extract_strided_slice %2011 {offsets = [0, 0], sizes = [2, 128], strides = [1, 1]} : vector<8x128xf32> to vector<2x128xf32>
    %2013 = arith.mulf %2012, %1029 : vector<2x128xf32>
    %2014 = arith.addf %2009, %2013 : vector<2x128xf32>
    %c392 = arith.constant 392 : index
    %c0_836 = arith.constant 0 : index
    %c0_837 = arith.constant 0 : index
    %2015 = vector.load %arg2[%c392, %c0_836, %c0_837] : memref<424x8x128xf32, #tpu.memory_space<vmem>>, vector<1x8x128xf32>
    %2016 = vector.shape_cast %2015 : vector<1x8x128xf32> to vector<8x128xf32>
    %2017 = vector.extract_strided_slice %2016 {offsets = [0, 0], sizes = [2, 128], strides = [1, 1]} : vector<8x128xf32> to vector<2x128xf32>
    %2018 = arith.mulf %2017, %1115 : vector<2x128xf32>
    %2019 = arith.addf %2014, %2018 : vector<2x128xf32>
    %c393 = arith.constant 393 : index
    %c0_838 = arith.constant 0 : index
    %c0_839 = arith.constant 0 : index
    %2020 = vector.load %arg2[%c393, %c0_838, %c0_839] : memref<424x8x128xf32, #tpu.memory_space<vmem>>, vector<1x8x128xf32>
    %2021 = vector.shape_cast %2020 : vector<1x8x128xf32> to vector<8x128xf32>
    %2022 = vector.extract_strided_slice %2021 {offsets = [0, 0], sizes = [2, 128], strides = [1, 1]} : vector<8x128xf32> to vector<2x128xf32>
    %2023 = arith.mulf %2022, %1201 : vector<2x128xf32>
    %2024 = arith.addf %2019, %2023 : vector<2x128xf32>
    %c394 = arith.constant 394 : index
    %c0_840 = arith.constant 0 : index
    %c0_841 = arith.constant 0 : index
    %2025 = vector.load %arg2[%c394, %c0_840, %c0_841] : memref<424x8x128xf32, #tpu.memory_space<vmem>>, vector<1x8x128xf32>
    %2026 = vector.shape_cast %2025 : vector<1x8x128xf32> to vector<8x128xf32>
    %2027 = vector.extract_strided_slice %2026 {offsets = [0, 0], sizes = [2, 128], strides = [1, 1]} : vector<8x128xf32> to vector<2x128xf32>
    %2028 = arith.mulf %2027, %1287 : vector<2x128xf32>
    %2029 = arith.addf %2024, %2028 : vector<2x128xf32>
    %c395 = arith.constant 395 : index
    %c0_842 = arith.constant 0 : index
    %c0_843 = arith.constant 0 : index
    %2030 = vector.load %arg2[%c395, %c0_842, %c0_843] : memref<424x8x128xf32, #tpu.memory_space<vmem>>, vector<1x8x128xf32>
    %2031 = vector.shape_cast %2030 : vector<1x8x128xf32> to vector<8x128xf32>
    %2032 = vector.extract_strided_slice %2031 {offsets = [0, 0], sizes = [2, 128], strides = [1, 1]} : vector<8x128xf32> to vector<2x128xf32>
    %2033 = arith.mulf %2032, %1373 : vector<2x128xf32>
    %2034 = arith.addf %2029, %2033 : vector<2x128xf32>
    %c396 = arith.constant 396 : index
    %c0_844 = arith.constant 0 : index
    %c0_845 = arith.constant 0 : index
    %2035 = vector.load %arg2[%c396, %c0_844, %c0_845] : memref<424x8x128xf32, #tpu.memory_space<vmem>>, vector<1x8x128xf32>
    %2036 = vector.shape_cast %2035 : vector<1x8x128xf32> to vector<8x128xf32>
    %2037 = vector.extract_strided_slice %2036 {offsets = [0, 0], sizes = [2, 128], strides = [1, 1]} : vector<8x128xf32> to vector<2x128xf32>
    %2038 = arith.mulf %2037, %1459 : vector<2x128xf32>
    %2039 = arith.addf %2034, %2038 : vector<2x128xf32>
    %c397 = arith.constant 397 : index
    %c0_846 = arith.constant 0 : index
    %c0_847 = arith.constant 0 : index
    %2040 = vector.load %arg2[%c397, %c0_846, %c0_847] : memref<424x8x128xf32, #tpu.memory_space<vmem>>, vector<1x8x128xf32>
    %2041 = vector.shape_cast %2040 : vector<1x8x128xf32> to vector<8x128xf32>
    %2042 = vector.extract_strided_slice %2041 {offsets = [0, 0], sizes = [2, 128], strides = [1, 1]} : vector<8x128xf32> to vector<2x128xf32>
    %2043 = arith.mulf %2042, %1545 : vector<2x128xf32>
    %2044 = arith.addf %2039, %2043 : vector<2x128xf32>
    %c398 = arith.constant 398 : index
    %c0_848 = arith.constant 0 : index
    %c0_849 = arith.constant 0 : index
    %2045 = vector.load %arg2[%c398, %c0_848, %c0_849] : memref<424x8x128xf32, #tpu.memory_space<vmem>>, vector<1x8x128xf32>
    %2046 = vector.shape_cast %2045 : vector<1x8x128xf32> to vector<8x128xf32>
    %2047 = vector.extract_strided_slice %2046 {offsets = [0, 0], sizes = [2, 128], strides = [1, 1]} : vector<8x128xf32> to vector<2x128xf32>
    %2048 = arith.mulf %2047, %1631 : vector<2x128xf32>
    %2049 = arith.addf %2044, %2048 : vector<2x128xf32>
    %c399 = arith.constant 399 : index
    %c0_850 = arith.constant 0 : index
    %c0_851 = arith.constant 0 : index
    %2050 = vector.load %arg2[%c399, %c0_850, %c0_851] : memref<424x8x128xf32, #tpu.memory_space<vmem>>, vector<1x8x128xf32>
    %2051 = vector.shape_cast %2050 : vector<1x8x128xf32> to vector<8x128xf32>
    %2052 = vector.extract_strided_slice %2051 {offsets = [0, 0], sizes = [2, 128], strides = [1, 1]} : vector<8x128xf32> to vector<2x128xf32>
    %2053 = arith.mulf %2052, %1717 : vector<2x128xf32>
    %2054 = arith.addf %2049, %2053 : vector<2x128xf32>
    %c403 = arith.constant 403 : index
    %c0_852 = arith.constant 0 : index
    %c0_853 = arith.constant 0 : index
    %2055 = vector.load %arg2[%c403, %c0_852, %c0_853] : memref<424x8x128xf32, #tpu.memory_space<vmem>>, vector<1x8x128xf32>
    %2056 = vector.shape_cast %2055 : vector<1x8x128xf32> to vector<8x128xf32>
    %2057 = vector.extract_strided_slice %2056 {offsets = [0, 0], sizes = [2, 128], strides = [1, 1]} : vector<8x128xf32> to vector<2x128xf32>
    %2058 = arith.addf %2054, %2057 : vector<2x128xf32>
    %cst_854 = arith.constant 1.000000e-01 : f32
    %2059 = vector.broadcast %cst_854 : f32 to vector<2x128xf32>
    %2060 = arith.mulf %2059, %2058 : vector<2x128xf32>
    %2061 = arith.maximumf %2058, %2060 : vector<2x128xf32>
    %c404 = arith.constant 404 : index
    %c0_855 = arith.constant 0 : index
    %c0_856 = arith.constant 0 : index
    %2062 = vector.load %arg2[%c404, %c0_855, %c0_856] : memref<424x8x128xf32, #tpu.memory_space<vmem>>, vector<1x8x128xf32>
    %2063 = vector.shape_cast %2062 : vector<1x8x128xf32> to vector<8x128xf32>
    %2064 = vector.extract_strided_slice %2063 {offsets = [0, 0], sizes = [2, 128], strides = [1, 1]} : vector<8x128xf32> to vector<2x128xf32>
    %2065 = arith.mulf %2064, %1803 : vector<2x128xf32>
    %c405 = arith.constant 405 : index
    %c0_857 = arith.constant 0 : index
    %c0_858 = arith.constant 0 : index
    %2066 = vector.load %arg2[%c405, %c0_857, %c0_858] : memref<424x8x128xf32, #tpu.memory_space<vmem>>, vector<1x8x128xf32>
    %2067 = vector.shape_cast %2066 : vector<1x8x128xf32> to vector<8x128xf32>
    %2068 = vector.extract_strided_slice %2067 {offsets = [0, 0], sizes = [2, 128], strides = [1, 1]} : vector<8x128xf32> to vector<2x128xf32>
    %2069 = arith.mulf %2068, %1889 : vector<2x128xf32>
    %2070 = arith.addf %2065, %2069 : vector<2x128xf32>
    %c406 = arith.constant 406 : index
    %c0_859 = arith.constant 0 : index
    %c0_860 = arith.constant 0 : index
    %2071 = vector.load %arg2[%c406, %c0_859, %c0_860] : memref<424x8x128xf32, #tpu.memory_space<vmem>>, vector<1x8x128xf32>
    %2072 = vector.shape_cast %2071 : vector<1x8x128xf32> to vector<8x128xf32>
    %2073 = vector.extract_strided_slice %2072 {offsets = [0, 0], sizes = [2, 128], strides = [1, 1]} : vector<8x128xf32> to vector<2x128xf32>
    %2074 = arith.mulf %2073, %1975 : vector<2x128xf32>
    %2075 = arith.addf %2070, %2074 : vector<2x128xf32>
    %c407 = arith.constant 407 : index
    %c0_861 = arith.constant 0 : index
    %c0_862 = arith.constant 0 : index
    %2076 = vector.load %arg2[%c407, %c0_861, %c0_862] : memref<424x8x128xf32, #tpu.memory_space<vmem>>, vector<1x8x128xf32>
    %2077 = vector.shape_cast %2076 : vector<1x8x128xf32> to vector<8x128xf32>
    %2078 = vector.extract_strided_slice %2077 {offsets = [0, 0], sizes = [2, 128], strides = [1, 1]} : vector<8x128xf32> to vector<2x128xf32>
    %2079 = arith.mulf %2078, %2061 : vector<2x128xf32>
    %2080 = arith.addf %2075, %2079 : vector<2x128xf32>
    %c420 = arith.constant 420 : index
    %c0_863 = arith.constant 0 : index
    %c0_864 = arith.constant 0 : index
    %2081 = vector.load %arg2[%c420, %c0_863, %c0_864] : memref<424x8x128xf32, #tpu.memory_space<vmem>>, vector<1x8x128xf32>
    %2082 = vector.shape_cast %2081 : vector<1x8x128xf32> to vector<8x128xf32>
    %2083 = vector.extract_strided_slice %2082 {offsets = [0, 0], sizes = [2, 128], strides = [1, 1]} : vector<8x128xf32> to vector<2x128xf32>
    %2084 = arith.addf %2080, %2083 : vector<2x128xf32>
    %c408 = arith.constant 408 : index
    %c0_865 = arith.constant 0 : index
    %c0_866 = arith.constant 0 : index
    %2085 = vector.load %arg2[%c408, %c0_865, %c0_866] : memref<424x8x128xf32, #tpu.memory_space<vmem>>, vector<1x8x128xf32>
    %2086 = vector.shape_cast %2085 : vector<1x8x128xf32> to vector<8x128xf32>
    %2087 = vector.extract_strided_slice %2086 {offsets = [0, 0], sizes = [2, 128], strides = [1, 1]} : vector<8x128xf32> to vector<2x128xf32>
    %2088 = arith.mulf %2087, %1803 : vector<2x128xf32>
    %c409 = arith.constant 409 : index
    %c0_867 = arith.constant 0 : index
    %c0_868 = arith.constant 0 : index
    %2089 = vector.load %arg2[%c409, %c0_867, %c0_868] : memref<424x8x128xf32, #tpu.memory_space<vmem>>, vector<1x8x128xf32>
    %2090 = vector.shape_cast %2089 : vector<1x8x128xf32> to vector<8x128xf32>
    %2091 = vector.extract_strided_slice %2090 {offsets = [0, 0], sizes = [2, 128], strides = [1, 1]} : vector<8x128xf32> to vector<2x128xf32>
    %2092 = arith.mulf %2091, %1889 : vector<2x128xf32>
    %2093 = arith.addf %2088, %2092 : vector<2x128xf32>
    %c410 = arith.constant 410 : index
    %c0_869 = arith.constant 0 : index
    %c0_870 = arith.constant 0 : index
    %2094 = vector.load %arg2[%c410, %c0_869, %c0_870] : memref<424x8x128xf32, #tpu.memory_space<vmem>>, vector<1x8x128xf32>
    %2095 = vector.shape_cast %2094 : vector<1x8x128xf32> to vector<8x128xf32>
    %2096 = vector.extract_strided_slice %2095 {offsets = [0, 0], sizes = [2, 128], strides = [1, 1]} : vector<8x128xf32> to vector<2x128xf32>
    %2097 = arith.mulf %2096, %1975 : vector<2x128xf32>
    %2098 = arith.addf %2093, %2097 : vector<2x128xf32>
    %c411 = arith.constant 411 : index
    %c0_871 = arith.constant 0 : index
    %c0_872 = arith.constant 0 : index
    %2099 = vector.load %arg2[%c411, %c0_871, %c0_872] : memref<424x8x128xf32, #tpu.memory_space<vmem>>, vector<1x8x128xf32>
    %2100 = vector.shape_cast %2099 : vector<1x8x128xf32> to vector<8x128xf32>
    %2101 = vector.extract_strided_slice %2100 {offsets = [0, 0], sizes = [2, 128], strides = [1, 1]} : vector<8x128xf32> to vector<2x128xf32>
    %2102 = arith.mulf %2101, %2061 : vector<2x128xf32>
    %2103 = arith.addf %2098, %2102 : vector<2x128xf32>
    %c421 = arith.constant 421 : index
    %c0_873 = arith.constant 0 : index
    %c0_874 = arith.constant 0 : index
    %2104 = vector.load %arg2[%c421, %c0_873, %c0_874] : memref<424x8x128xf32, #tpu.memory_space<vmem>>, vector<1x8x128xf32>
    %2105 = vector.shape_cast %2104 : vector<1x8x128xf32> to vector<8x128xf32>
    %2106 = vector.extract_strided_slice %2105 {offsets = [0, 0], sizes = [2, 128], strides = [1, 1]} : vector<8x128xf32> to vector<2x128xf32>
    %2107 = arith.addf %2103, %2106 : vector<2x128xf32>
    %c412 = arith.constant 412 : index
    %c0_875 = arith.constant 0 : index
    %c0_876 = arith.constant 0 : index
    %2108 = vector.load %arg2[%c412, %c0_875, %c0_876] : memref<424x8x128xf32, #tpu.memory_space<vmem>>, vector<1x8x128xf32>
    %2109 = vector.shape_cast %2108 : vector<1x8x128xf32> to vector<8x128xf32>
    %2110 = vector.extract_strided_slice %2109 {offsets = [0, 0], sizes = [2, 128], strides = [1, 1]} : vector<8x128xf32> to vector<2x128xf32>
    %2111 = arith.mulf %2110, %1803 : vector<2x128xf32>
    %c413 = arith.constant 413 : index
    %c0_877 = arith.constant 0 : index
    %c0_878 = arith.constant 0 : index
    %2112 = vector.load %arg2[%c413, %c0_877, %c0_878] : memref<424x8x128xf32, #tpu.memory_space<vmem>>, vector<1x8x128xf32>
    %2113 = vector.shape_cast %2112 : vector<1x8x128xf32> to vector<8x128xf32>
    %2114 = vector.extract_strided_slice %2113 {offsets = [0, 0], sizes = [2, 128], strides = [1, 1]} : vector<8x128xf32> to vector<2x128xf32>
    %2115 = arith.mulf %2114, %1889 : vector<2x128xf32>
    %2116 = arith.addf %2111, %2115 : vector<2x128xf32>
    %c414 = arith.constant 414 : index
    %c0_879 = arith.constant 0 : index
    %c0_880 = arith.constant 0 : index
    %2117 = vector.load %arg2[%c414, %c0_879, %c0_880] : memref<424x8x128xf32, #tpu.memory_space<vmem>>, vector<1x8x128xf32>
    %2118 = vector.shape_cast %2117 : vector<1x8x128xf32> to vector<8x128xf32>
    %2119 = vector.extract_strided_slice %2118 {offsets = [0, 0], sizes = [2, 128], strides = [1, 1]} : vector<8x128xf32> to vector<2x128xf32>
    %2120 = arith.mulf %2119, %1975 : vector<2x128xf32>
    %2121 = arith.addf %2116, %2120 : vector<2x128xf32>
    %c415 = arith.constant 415 : index
    %c0_881 = arith.constant 0 : index
    %c0_882 = arith.constant 0 : index
    %2122 = vector.load %arg2[%c415, %c0_881, %c0_882] : memref<424x8x128xf32, #tpu.memory_space<vmem>>, vector<1x8x128xf32>
    %2123 = vector.shape_cast %2122 : vector<1x8x128xf32> to vector<8x128xf32>
    %2124 = vector.extract_strided_slice %2123 {offsets = [0, 0], sizes = [2, 128], strides = [1, 1]} : vector<8x128xf32> to vector<2x128xf32>
    %2125 = arith.mulf %2124, %2061 : vector<2x128xf32>
    %2126 = arith.addf %2121, %2125 : vector<2x128xf32>
    %c422 = arith.constant 422 : index
    %c0_883 = arith.constant 0 : index
    %c0_884 = arith.constant 0 : index
    %2127 = vector.load %arg2[%c422, %c0_883, %c0_884] : memref<424x8x128xf32, #tpu.memory_space<vmem>>, vector<1x8x128xf32>
    %2128 = vector.shape_cast %2127 : vector<1x8x128xf32> to vector<8x128xf32>
    %2129 = vector.extract_strided_slice %2128 {offsets = [0, 0], sizes = [2, 128], strides = [1, 1]} : vector<8x128xf32> to vector<2x128xf32>
    %2130 = arith.addf %2126, %2129 : vector<2x128xf32>
    %c416 = arith.constant 416 : index
    %c0_885 = arith.constant 0 : index
    %c0_886 = arith.constant 0 : index
    %2131 = vector.load %arg2[%c416, %c0_885, %c0_886] : memref<424x8x128xf32, #tpu.memory_space<vmem>>, vector<1x8x128xf32>
    %2132 = vector.shape_cast %2131 : vector<1x8x128xf32> to vector<8x128xf32>
    %2133 = vector.extract_strided_slice %2132 {offsets = [0, 0], sizes = [2, 128], strides = [1, 1]} : vector<8x128xf32> to vector<2x128xf32>
    %2134 = arith.mulf %2133, %1803 : vector<2x128xf32>
    %c417 = arith.constant 417 : index
    %c0_887 = arith.constant 0 : index
    %c0_888 = arith.constant 0 : index
    %2135 = vector.load %arg2[%c417, %c0_887, %c0_888] : memref<424x8x128xf32, #tpu.memory_space<vmem>>, vector<1x8x128xf32>
    %2136 = vector.shape_cast %2135 : vector<1x8x128xf32> to vector<8x128xf32>
    %2137 = vector.extract_strided_slice %2136 {offsets = [0, 0], sizes = [2, 128], strides = [1, 1]} : vector<8x128xf32> to vector<2x128xf32>
    %2138 = arith.mulf %2137, %1889 : vector<2x128xf32>
    %2139 = arith.addf %2134, %2138 : vector<2x128xf32>
    %c418 = arith.constant 418 : index
    %c0_889 = arith.constant 0 : index
    %c0_890 = arith.constant 0 : index
    %2140 = vector.load %arg2[%c418, %c0_889, %c0_890] : memref<424x8x128xf32, #tpu.memory_space<vmem>>, vector<1x8x128xf32>
    %2141 = vector.shape_cast %2140 : vector<1x8x128xf32> to vector<8x128xf32>
    %2142 = vector.extract_strided_slice %2141 {offsets = [0, 0], sizes = [2, 128], strides = [1, 1]} : vector<8x128xf32> to vector<2x128xf32>
    %2143 = arith.mulf %2142, %1975 : vector<2x128xf32>
    %2144 = arith.addf %2139, %2143 : vector<2x128xf32>
    %c419 = arith.constant 419 : index
    %c0_891 = arith.constant 0 : index
    %c0_892 = arith.constant 0 : index
    %2145 = vector.load %arg2[%c419, %c0_891, %c0_892] : memref<424x8x128xf32, #tpu.memory_space<vmem>>, vector<1x8x128xf32>
    %2146 = vector.shape_cast %2145 : vector<1x8x128xf32> to vector<8x128xf32>
    %2147 = vector.extract_strided_slice %2146 {offsets = [0, 0], sizes = [2, 128], strides = [1, 1]} : vector<8x128xf32> to vector<2x128xf32>
    %2148 = arith.mulf %2147, %2061 : vector<2x128xf32>
    %2149 = arith.addf %2144, %2148 : vector<2x128xf32>
    %c423 = arith.constant 423 : index
    %c0_893 = arith.constant 0 : index
    %c0_894 = arith.constant 0 : index
    %2150 = vector.load %arg2[%c423, %c0_893, %c0_894] : memref<424x8x128xf32, #tpu.memory_space<vmem>>, vector<1x8x128xf32>
    %2151 = vector.shape_cast %2150 : vector<1x8x128xf32> to vector<8x128xf32>
    %2152 = vector.extract_strided_slice %2151 {offsets = [0, 0], sizes = [2, 128], strides = [1, 1]} : vector<8x128xf32> to vector<2x128xf32>
    %2153 = arith.addf %2149, %2152 : vector<2x128xf32>
    %c0_895 = arith.constant 0 : index
    %c0_896 = arith.constant 0 : index
    %c0_897 = arith.constant 0 : index
    %c0_898 = arith.constant 0 : index
    %2154 = vector.load %arg4[%c0_895, %c0_896, %c0_897, %c0_898] : memref<1x4x2x128xf32, #tpu.memory_space<vmem>>, vector<1x1x2x128xf32>
    %2155 = vector.shape_cast %2154 : vector<1x1x2x128xf32> to vector<2x128xf32>
    %2156 = vector.shape_cast %2084 : vector<2x128xf32> to vector<1x1x2x128xf32>
    tpu.vector_store %arg4[%c0_895, %c0_896, %c0_897, %c0_898], %2156 {strides = array<i32>} : memref<1x4x2x128xf32, #tpu.memory_space<vmem>>, vector<1x1x2x128xf32>,
    %c0_899 = arith.constant 0 : index
    %c1_900 = arith.constant 1 : index
    %c0_901 = arith.constant 0 : index
    %c0_902 = arith.constant 0 : index
    %2157 = vector.load %arg4[%c0_899, %c1_900, %c0_901, %c0_902] : memref<1x4x2x128xf32, #tpu.memory_space<vmem>>, vector<1x1x2x128xf32>
    %2158 = vector.shape_cast %2157 : vector<1x1x2x128xf32> to vector<2x128xf32>
    %2159 = vector.shape_cast %2107 : vector<2x128xf32> to vector<1x1x2x128xf32>
    tpu.vector_store %arg4[%c0_899, %c1_900, %c0_901, %c0_902], %2159 {strides = array<i32>} : memref<1x4x2x128xf32, #tpu.memory_space<vmem>>, vector<1x1x2x128xf32>,
    %c0_903 = arith.constant 0 : index
    %c2_904 = arith.constant 2 : index
    %c0_905 = arith.constant 0 : index
    %c0_906 = arith.constant 0 : index
    %2160 = vector.load %arg4[%c0_903, %c2_904, %c0_905, %c0_906] : memref<1x4x2x128xf32, #tpu.memory_space<vmem>>, vector<1x1x2x128xf32>
    %2161 = vector.shape_cast %2160 : vector<1x1x2x128xf32> to vector<2x128xf32>
    %2162 = vector.shape_cast %2130 : vector<2x128xf32> to vector<1x1x2x128xf32>
    tpu.vector_store %arg4[%c0_903, %c2_904, %c0_905, %c0_906], %2162 {strides = array<i32>} : memref<1x4x2x128xf32, #tpu.memory_space<vmem>>, vector<1x1x2x128xf32>,
    %c0_907 = arith.constant 0 : index
    %c3_908 = arith.constant 3 : index
    %c0_909 = arith.constant 0 : index
    %c0_910 = arith.constant 0 : index
    %2163 = vector.load %arg4[%c0_907, %c3_908, %c0_909, %c0_910] : memref<1x4x2x128xf32, #tpu.memory_space<vmem>>, vector<1x1x2x128xf32>
    %2164 = vector.shape_cast %2163 : vector<1x1x2x128xf32> to vector<2x128xf32>
    %2165 = vector.shape_cast %2153 : vector<2x128xf32> to vector<1x1x2x128xf32>
    tpu.vector_store %arg4[%c0_907, %c3_908, %c0_909, %c0_910], %2165 {strides = array<i32>} : memref<1x4x2x128xf32, #tpu.memory_space<vmem>>, vector<1x1x2x128xf32>,
    return
  }
  func.func @transform_0(%arg0: i32, %arg1: i32) -> (i32, i32, i32) {
    %c0_i32 = arith.constant 0 : i32
    %c0_i32_0 = arith.constant 0 : i32
    %c0_i32_1 = arith.constant 0 : i32
    %c0_i32_2 = arith.constant 0 : i32
    return %c0_i32, %c0_i32_0, %c0_i32_1 : i32, i32, i32
  }
  func.func @transform_1(%arg0: i32, %arg1: i32) -> (i32, i32, i32, i32) {
    %c0_i32 = arith.constant 0 : i32
    %c0_i32_0 = arith.constant 0 : i32
    %c0_i32_1 = arith.constant 0 : i32
    return %arg0, %c0_i32, %arg1, %c0_i32_0 : i32, i32, i32, i32
  }
  func.func @transform_2(%arg0: i32, %arg1: i32) -> (i32, i32, i32, i32) {
    %c0_i32 = arith.constant 0 : i32
    %c0_i32_0 = arith.constant 0 : i32
    %c0_i32_1 = arith.constant 0 : i32
    return %arg0, %c0_i32, %arg1, %c0_i32_0 : i32, i32, i32, i32
  }
}

</mosaic_0001>

<llo_original>
// kernel: pkernel_forward.1
$region0: #{pkernel_forward.1}
  #allocation0 [shape = 'u32[]', space=smem, size = 0x4, offset = 0x4, fixed_abs, tag = 'smem constant byte address 0x4 - core index']
  #allocation1 [shape = 'u32[72,128]{1,0:T(1,128)}', space=vmem, size = 0x9000, scoped, tag = 'internal scratch']
  %s0 = inlined_call_operand.vmem [shape: f32[424,8,128], index: 0, kind: input, shape index: {}]
  %s1 = inlined_call_operand.vmem [shape: f32[2,3,2,128], index: 1, kind: input, shape index: {}]
  %s2 = inlined_call_operand.vmem [shape: f32[2,4,2,128], index: 2, kind: output, shape index: {}]
  %s3 = sld [smem:[#allocation0]]
  $region41: #{pkernel_forward.1} parent=0
    _
  %s5 = ssub.s32 1, %s3
  %s6 = scalar_select 0, %s5, %s3
  loop: start=0, step=1, limit=4
  $region2: #{pkernel_forward.1} parent=0 // loop_pre_header
    _
  $region3: #{pkernel_forward.1} parent=0 // loop_header
    %s8 = sphi 0, %s12
    %p9 = scmp.ge.s32.totalorder %s8, 4
    %s15 = sphi 0, %s27
    %s16 = sphi 0, %s23
    %s17 = sphi 0, %s15
    %s18 = sphi 0, %s16
    %s19 = sphi 0, %s17
    %s20 = sphi 0, %s18
    %s28 = sphi 0, %s28
    %s30 = sphi 0, %s28
    %s31 = sphi 0, %s30
    %s45 = sphi 0, %s31
    %s53 = sphi 0, %s55
    %s56 = sphi 0, %s53
    %s57 = sphi 0, %s56
    %s73 = sphi 0, %s57
    %s81 = sphi 0, %s83
    %s84 = sphi 0, %s81
    %s85 = sphi 0, %s84
    %s101 = sphi 0, %s85
  $region4: #{pkernel_forward.1} parent=0 // loop_header_branch
    %11 = sbr.rel (%p9) target = $region8
  $region5: #{pkernel_forward.1} parent=0 // loop_body
    %s13 = ssub.s32 %s8, 1
    %s14 = ssub.s32 %s8, 2
    %s21 = sadd.s32 1, %s16
    %p22 = scmp.ge.s32.totalorder %s21, 1
    %s23 = scalar_select %p22, 0, %s21
    %s24 = sadd.s32 1, %s15
    %s25 = scalar_select %p22, %s24, %s15
    %p26 = scmp.ge.s32.totalorder %s25, 2
    %s27 = scalar_select %p26, 0, %s25
    %s29 = sadd.s32 %s28, 1
    %p32 = scmp.eq.s32.totalorder %s8, 1
    %p33 = scmp.ne.s32.totalorder %s28, %s30
    %p34 = scmp.eq.s32.totalorder %s8, 0
    %p35 = por %p33, %p34
    %p36 = scmp.ne.s32.totalorder %s28, %s30
    %p37 = scmp.eq.s32.totalorder %s13, 1
    %p38 = por %p36, %p37
    %p39 = scmp.ne.s32.totalorder %s30, %s31
    %p40 = scmp.eq.s32.totalorder %s13, 0
    %p41 = por %p39, %p40
    %p42 = scmp.ne.s32.totalorder %s30, %s31
    %p43 = scmp.eq.s32.totalorder %s14, 1
    %p44 = por %p42, %p43
    %p46 = scmp.ne.s32.totalorder %s31, %s45
    %p47 = scmp.eq.s32.totalorder %s14, 0
    %p48 = por %p46, %p47
    %s49 = ssub.s32 %s15, %s27
    %s50 = ssub.s32 %s16, %s23
    %s51 = sor.u32 %s49, %s50
    %p52 = scmp.eq.s32.totalorder %s51, 0
    %s54 = sadd.s32 %s53, 1
    %s55 = scalar_select %p52, %s53, %s54
    %p58 = pneg %p52
    %p59 = scmp.eq.s32.totalorder %s8, 1
    %p60 = por %p58, %p59
    %p61 = scmp.ne.s32.totalorder %s53, %s56
    %p62 = scmp.eq.s32.totalorder %s8, 0
    %p63 = por %p61, %p62
    %p64 = scmp.ne.s32.totalorder %s53, %s56
    %p65 = scmp.eq.s32.totalorder %s13, 1
    %p66 = por %p64, %p65
    %p67 = scmp.ne.s32.totalorder %s56, %s57
    %p68 = scmp.eq.s32.totalorder %s13, 0
    %p69 = por %p67, %p68
    %p70 = scmp.ne.s32.totalorder %s56, %s57
    %p71 = scmp.eq.s32.totalorder %s14, 1
    %p72 = por %p70, %p71
    %p74 = scmp.ne.s32.totalorder %s57, %s73
    %p75 = scmp.eq.s32.totalorder %s14, 0
    %p76 = por %p74, %p75
    %s77 = ssub.s32 %s15, %s27
    %s78 = ssub.s32 %s16, %s23
    %s79 = sor.u32 %s77, %s78
    %p80 = scmp.eq.s32.totalorder %s79, 0
    %s82 = sadd.s32 %s81, 1
    %s83 = scalar_select %p80, %s81, %s82
    %p86 = pneg %p80
    %p87 = scmp.eq.s32.totalorder %s8, 1
    %p88 = por %p86, %p87
    %p89 = scmp.ne.s32.totalorder %s81, %s84
    %p90 = scmp.eq.s32.totalorder %s8, 0
    %p91 = por %p89, %p90
    %p92 = scmp.ne.s32.totalorder %s81, %s84
    %p93 = scmp.eq.s32.totalorder %s13, 1
    %p94 = por %p92, %p93
    %p95 = scmp.ne.s32.totalorder %s84, %s85
    %p96 = scmp.eq.s32.totalorder %s13, 0
    %p97 = por %p95, %p96
    %p98 = scmp.ne.s32.totalorder %s84, %s85
    %p99 = scmp.eq.s32.totalorder %s14, 1
    %p100 = por %p98, %p99
    %p102 = scmp.ne.s32.totalorder %s85, %s101
    %p103 = scmp.eq.s32.totalorder %s14, 0
    %p104 = por %p102, %p103
    %p105 = scmp.le.s32.totalorder 1, %s8
    %p106 = scmp.lt.s32.totalorder %s8, 3
    %p107 = pnand %p105, %p106
    %p108 = pneg %p107
    // Predicated region
    $region9: #{pkernel_forward.1} parent=5 // pred_check
      _
    $region10: #{pkernel_forward.1} parent=5 // pred_check_branch
      %110 = sbr.rel (%p107) target = $region12
    $region11: #{pkernel_forward.1} parent=5 // pred_region
      %s111 = ssub.s32 %s8, 1
      // Predicated region
      $region13: #{pkernel_forward.1} parent=11 // pred_check
        %p112 = pneg %p41
      $region14: #{pkernel_forward.1} parent=11 // pred_check_branch
        %114 = sbr.rel (%p112) target = $region16
      $region15: #{pkernel_forward.1} parent=11 // pred_region
        _
      $region16: #{pkernel_forward.1} parent=11 // pred_fallthru
        _
    $region12: #{pkernel_forward.1} parent=5 // pred_fallthru
      _
    %p115 = scmp.lt.s32.totalorder %s8, 2
    // Predicated region
    $region17: #{pkernel_forward.1} parent=5 // pred_check
      %p116 = pneg %p115
    $region18: #{pkernel_forward.1} parent=5 // pred_check_branch
      %118 = sbr.rel (%p116) target = $region20
    $region19: #{pkernel_forward.1} parent=5 // pred_region
      // Predicated region
      $region21: #{pkernel_forward.1} parent=19 // pred_check
        %p119 = pneg %p63
      $region22: #{pkernel_forward.1} parent=19 // pred_check_branch
        %121 = sbr.rel (%p119) target = $region24
      $region23: #{pkernel_forward.1} parent=19 // pred_region
        %p122 = scmp.lt.s32.totalorder %s15, 1
        %s123 = scalar_select %p122, %s15, 1
        %p124 = scmp.lt.s32.totalorder %s16, 0
        %s125 = scalar_select %p124, %s16, 0
        %s126 = smul.addr %s123, 3
        %s127 = sadd.s32 %s125, %s126
        %s128 = smul.addr %s127, 2
        %s129 = scalar_lea.vmem %s1, %s128
      $region24: #{pkernel_forward.1} parent=19 // pred_fallthru
        _
    $region20: #{pkernel_forward.1} parent=5 // pred_fallthru
      _
    %p130 = scmp.le.s32.totalorder 1, %s8
    %p131 = scmp.lt.s32.totalorder %s8, 3
    %p132 = pnand %p130, %p131
    %p133 = pneg %p132
    // Predicated region
    $region25: #{pkernel_forward.1} parent=5 // pred_check
      _
    $region26: #{pkernel_forward.1} parent=5 // pred_check_branch
      %135 = sbr.rel (%p132) target = $region28
    $region27: #{pkernel_forward.1} parent=5 // pred_region
      %s136 = ssub.s32 %s8, 1
      %p137 = pneg %p41
      %p138 = pneg %p38
      %p139 = scmp.lt.s32.totalorder %s17, 1
      %s140 = scalar_select %p139, %s17, 1
      %p141 = scmp.lt.s32.totalorder %s18, 0
      %s142 = scalar_select %p141, %s18, 0
      %s143 = smul.addr %s140, 3
      %s144 = sadd.s32 %s142, %s143
      %s145 = smul.addr %s144, 2
      %s146 = scalar_lea.vmem %s1, %s145
      %p147 = pneg %p69
      %p148 = pneg %p66
      %p149 = pneg %p97
      %p150 = pneg %p94
      %p151 = scmp.lt.s32.totalorder %s17, 1
      %s152 = scalar_select %p151, %s17, 1
      %p153 = scmp.lt.s32.totalorder %s18, 0
      %s154 = scalar_select %p153, %s18, 0
      %s155 = smul.addr %s152, 4
      %s156 = sadd.s32 %s154, %s155
      %s157 = smul.addr %s156, 2
      %s158 = scalar_lea.vmem %s2, %s157
      %p159 = scmp.lt.s32.totalorder %s17, 1
      %s160 = scalar_select %p159, %s17, 1
      %p161 = scmp.lt.s32.totalorder %s18, 0
      %s162 = scalar_select %p161, %s18, 0
      %s163 = smul.addr %s160, 3
      %s164 = sadd.s32 %s162, %s163
      %s165 = smul.addr %s164, 2
      %s166 = scalar_lea.vmem %s1, %s165
      %p167 = scmp.lt.s32.totalorder %s17, 1
      %s168 = scalar_select %p167, %s17, 1
      %p169 = scmp.lt.s32.totalorder %s18, 0
      %s170 = scalar_select %p169, %s18, 0
      %s171 = smul.addr %s168, 4
      %s172 = sadd.s32 %s170, %s171
      %s173 = smul.addr %s172, 2
      %s174 = scalar_lea.vmem %s2, %s173
      %v175 = vld [vmem:[%s166] sm:$0x3]
      %s176 = scalar_lea.vmem %s166, 2
      %v177 = vld [vmem:[%s176] sm:$0x3]
      %s178 = scalar_lea.vmem %s166, 4
      %v179 = vld [vmem:[%s178] sm:$0x3]
      %v180 = vld [vmem:[%s0] sm:$0xff]
      %v181 = vmul.f32 %v180, %v175
      %s182 = scalar_lea.vmem %s0, 8
      %v183 = vld [vmem:[%s182] sm:$0xff]
      %v184 = vmul.f32 %v183, %v177
      %v185 = vadd.f32 %v181, %v184
      %s186 = scalar_lea.vmem %s0, 16
      %v187 = vld [vmem:[%s186] sm:$0xff]
      %v188 = vmul.f32 %v187, %v179
      %v189 = vadd.f32 %v185, %v188
      %s190 = scalar_lea.vmem %s0, 384
      %v191 = vld [vmem:[%s190] sm:$0xff]
      %v192 = vadd.f32 %v189, %v191
      %v193 = vmul.f32 %v192, 0.1
      %v194 = vmax.f32 %v192, %v193
      %s195 = scalar_lea.vmem %s0, 24
      %v196 = vld [vmem:[%s195] sm:$0xff]
      %v197 = vmul.f32 %v196, %v175
      %s198 = scalar_lea.vmem %s0, 32
      %v199 = vld [vmem:[%s198] sm:$0xff]
      %v200 = vmul.f32 %v199, %v177
      %v201 = vadd.f32 %v197, %v200
      %s202 = scalar_lea.vmem %s0, 40
      %v203 = vld [vmem:[%s202] sm:$0xff]
      %v204 = vmul.f32 %v203, %v179
      %v205 = vadd.f32 %v201, %v204
      %s206 = scalar_lea.vmem %s0, 392
      %v207 = vld [vmem:[%s206] sm:$0xff]
      %v208 = vadd.f32 %v205, %v207
      %v209 = vmul.f32 %v208, 0.1
      %v210 = vmax.f32 %v208, %v209
      %s211 = scalar_lea.vmem %s0, 48
      %v212 = vld [vmem:[%s211] sm:$0xff]
      %v213 = vmul.f32 %v212, %v175
      %s214 = scalar_lea.vmem %s0, 56
      %v215 = vld [vmem:[%s214] sm:$0xff]
      %v216 = vmul.f32 %v215, %v177
      %v217 = vadd.f32 %v213, %v216
      %s218 = scalar_lea.vmem %s0, 64
      %v219 = vld [vmem:[%s218] sm:$0xff]
      %v220 = vmul.f32 %v219, %v179
      %v221 = vadd.f32 %v217, %v220
      %s222 = scalar_lea.vmem %s0, 400
      %v223 = vld [vmem:[%s222] sm:$0xff]
      %v224 = vadd.f32 %v221, %v223
      %v225 = vmul.f32 %v224, 0.1
      %v226 = vmax.f32 %v224, %v225
      %s227 = scalar_lea.vmem %s0, 72
      %v228 = vld [vmem:[%s227] sm:$0xff]
      %v229 = vmul.f32 %v228, %v175
      %s230 = scalar_lea.vmem %s0, 80
      %v231 = vld [vmem:[%s230] sm:$0xff]
      %v232 = vmul.f32 %v231, %v177
      %v233 = vadd.f32 %v229, %v232
      %s234 = scalar_lea.vmem %s0, 88
      %v235 = vld [vmem:[%s234] sm:$0xff]
      %v236 = vmul.f32 %v235, %v179
      %v237 = vadd.f32 %v233, %v236
      %s238 = scalar_lea.vmem %s0, 408
      %v239 = vld [vmem:[%s238] sm:$0xff]
      %v240 = vadd.f32 %v237, %v239
      %v241 = vmul.f32 %v240, 0.1
      %v242 = vmax.f32 %v240, %v241
      %s243 = scalar_lea.vmem %s0, 96
      %v244 = vld [vmem:[%s243] sm:$0xff]
      %v245 = vmul.f32 %v244, %v175
      %s246 = scalar_lea.vmem %s0, 104
      %v247 = vld [vmem:[%s246] sm:$0xff]
      %v248 = vmul.f32 %v247, %v177
      %v249 = vadd.f32 %v245, %v248
      %s250 = scalar_lea.vmem %s0, 112
      %v251 = vld [vmem:[%s250] sm:$0xff]
      %v252 = vmul.f32 %v251, %v179
      %v253 = vadd.f32 %v249, %v252
      %s254 = scalar_lea.vmem %s0, 416
      %v255 = vld [vmem:[%s254] sm:$0xff]
      %v256 = vadd.f32 %v253, %v255
      %v257 = vmul.f32 %v256, 0.1
      %v258 = vmax.f32 %v256, %v257
      %s259 = scalar_lea.vmem %s0, 120
      %v260 = vld [vmem:[%s259] sm:$0xff]
      %v261 = vmul.f32 %v260, %v175
      %s262 = scalar_lea.vmem %s0, 128
      %v263 = vld [vmem:[%s262] sm:$0xff]
      %v264 = vmul.f32 %v263, %v177
      %v265 = vadd.f32 %v261, %v264
      %s266 = scalar_lea.vmem %s0, 136
      %v267 = vld [vmem:[%s266] sm:$0xff]
      %v268 = vmul.f32 %v267, %v179
      %v269 = vadd.f32 %v265, %v268
      %s270 = scalar_lea.vmem %s0, 424
      %v271 = vld [vmem:[%s270] sm:$0xff]
      %v272 = vadd.f32 %v269, %v271
      %v273 = vmul.f32 %v272, 0.1
      %v274 = vmax.f32 %v272, %v273
      %s275 = scalar_lea.vmem %s0, 144
      %v276 = vld [vmem:[%s275] sm:$0xff]
      %v277 = vmul.f32 %v276, %v175
      %s278 = scalar_lea.vmem %s0, 152
      %v279 = vld [vmem:[%s278] sm:$0xff]
      %v280 = vmul.f32 %v279, %v177
      %v281 = vadd.f32 %v277, %v280
      %s282 = scalar_lea.vmem %s0, 160
      %v283 = vld [vmem:[%s282] sm:$0xff]
      %v284 = vmul.f32 %v283, %v179
      %v285 = vadd.f32 %v281, %v284
      %s286 = scalar_lea.vmem %s0, 432
      %v287 = vld [vmem:[%s286] sm:$0xff]
      %v288 = vadd.f32 %v285, %v287
      %v289 = vmul.f32 %v288, 0.1
      %v290 = vmax.f32 %v288, %v289
      %s291 = scalar_lea.vmem %s0, 168
      %v292 = vld [vmem:[%s291] sm:$0xff]
      %v293 = vmul.f32 %v292, %v175
      %s294 = scalar_lea.vmem %s0, 176
      %v295 = vld [vmem:[%s294] sm:$0xff]
      %v296 = vmul.f32 %v295, %v177
      %v297 = vadd.f32 %v293, %v296
      %s298 = scalar_lea.vmem %s0, 184
      %v299 = vld [vmem:[%s298] sm:$0xff]
      %v300 = vmul.f32 %v299, %v179
      %v301 = vadd.f32 %v297, %v300
      %s302 = scalar_lea.vmem %s0, 440
      %v303 = vld [vmem:[%s302] sm:$0xff]
      %v304 = vadd.f32 %v301, %v303
      %v305 = vmul.f32 %v304, 0.1
      %v306 = vmax.f32 %v304, %v305
      %s307 = scalar_lea.vmem %s0, 192
      %v308 = vld [vmem:[%s307] sm:$0xff]
      %v309 = vmul.f32 %v308, %v175
      %s310 = scalar_lea.vmem %s0, 200
      %v311 = vld [vmem:[%s310] sm:$0xff]
      %v312 = vmul.f32 %v311, %v177
      %v313 = vadd.f32 %v309, %v312
      %s314 = scalar_lea.vmem %s0, 208
      %v315 = vld [vmem:[%s314] sm:$0xff]
      %v316 = vmul.f32 %v315, %v179
      %v317 = vadd.f32 %v313, %v316
      %s318 = scalar_lea.vmem %s0, 448
      %v319 = vld [vmem:[%s318] sm:$0xff]
      %v320 = vadd.f32 %v317, %v319
      %v321 = vmul.f32 %v320, 0.1
      %v322 = vmax.f32 %v320, %v321
      %s323 = scalar_lea.vmem %s0, 216
      %v324 = vld [vmem:[%s323] sm:$0xff]
      %v325 = vmul.f32 %v324, %v175
      %s326 = scalar_lea.vmem %s0, 224
      %v327 = vld [vmem:[%s326] sm:$0xff]
      %v328 = vmul.f32 %v327, %v177
      %v329 = vadd.f32 %v325, %v328
      %s330 = scalar_lea.vmem %s0, 232
      %v331 = vld [vmem:[%s330] sm:$0xff]
      %v332 = vmul.f32 %v331, %v179
      %v333 = vadd.f32 %v329, %v332
      %s334 = scalar_lea.vmem %s0, 456
      %v335 = vld [vmem:[%s334] sm:$0xff]
      %v336 = vadd.f32 %v333, %v335
      %v337 = vmul.f32 %v336, 0.1
      %v338 = vmax.f32 %v336, %v337
      %s339 = scalar_lea.vmem %s0, 240
      %v340 = vld [vmem:[%s339] sm:$0xff]
      %v341 = vmul.f32 %v340, %v175
      %s342 = scalar_lea.vmem %s0, 248
      %v343 = vld [vmem:[%s342] sm:$0xff]
      %v344 = vmul.f32 %v343, %v177
      %v345 = vadd.f32 %v341, %v344
      %s346 = scalar_lea.vmem %s0, 256
      %v347 = vld [vmem:[%s346] sm:$0xff]
      %v348 = vmul.f32 %v347, %v179
      %v349 = vadd.f32 %v345, %v348
      %s350 = scalar_lea.vmem %s0, 464
      %v351 = vld [vmem:[%s350] sm:$0xff]
      %v352 = vadd.f32 %v349, %v351
      %v353 = vmul.f32 %v352, 0.1
      %v354 = vmax.f32 %v352, %v353
      %s355 = scalar_lea.vmem %s0, 264
      %v356 = vld [vmem:[%s355] sm:$0xff]
      %v357 = vmul.f32 %v356, %v175
      %s358 = scalar_lea.vmem %s0, 272
      %v359 = vld [vmem:[%s358] sm:$0xff]
      %v360 = vmul.f32 %v359, %v177
      %v361 = vadd.f32 %v357, %v360
      %s362 = scalar_lea.vmem %s0, 280
      %v363 = vld [vmem:[%s362] sm:$0xff]
      %v364 = vmul.f32 %v363, %v179
      %v365 = vadd.f32 %v361, %v364
      %s366 = scalar_lea.vmem %s0, 472
      %v367 = vld [vmem:[%s366] sm:$0xff]
      %v368 = vadd.f32 %v365, %v367
      %v369 = vmul.f32 %v368, 0.1
      %v370 = vmax.f32 %v368, %v369
      %s371 = scalar_lea.vmem %s0, 288
      %v372 = vld [vmem:[%s371] sm:$0xff]
      %v373 = vmul.f32 %v372, %v175
      %s374 = scalar_lea.vmem %s0, 296
      %v375 = vld [vmem:[%s374] sm:$0xff]
      %v376 = vmul.f32 %v375, %v177
      %v377 = vadd.f32 %v373, %v376
      %s378 = scalar_lea.vmem %s0, 304
      %v379 = vld [vmem:[%s378] sm:$0xff]
      %v380 = vmul.f32 %v379, %v179
      %v381 = vadd.f32 %v377, %v380
      %s382 = scalar_lea.vmem %s0, 480
      %v383 = vld [vmem:[%s382] sm:$0xff]
      %v384 = vadd.f32 %v381, %v383
      %v385 = vmul.f32 %v384, 0.1
      %v386 = vmax.f32 %v384, %v385
      %s387 = scalar_lea.vmem %s0, 312
      %v388 = vld [vmem:[%s387] sm:$0xff]
      %v389 = vmul.f32 %v388, %v175
      %s390 = scalar_lea.vmem %s0, 320
      %v391 = vld [vmem:[%s390] sm:$0xff]
      %v392 = vmul.f32 %v391, %v177
      %v393 = vadd.f32 %v389, %v392
      %s394 = scalar_lea.vmem %s0, 328
      %v395 = vld [vmem:[%s394] sm:$0xff]
      %v396 = vmul.f32 %v395, %v179
      %v397 = vadd.f32 %v393, %v396
      %s398 = scalar_lea.vmem %s0, 488
      %v399 = vld [vmem:[%s398] sm:$0xff]
      %v400 = vadd.f32 %v397, %v399
      %v401 = vmul.f32 %v400, 0.1
      %v402 = vmax.f32 %v400, %v401
      %s403 = scalar_lea.vmem %s0, 336
      %v404 = vld [vmem:[%s403] sm:$0xff]
      %v405 = vmul.f32 %v404, %v175
      %s406 = scalar_lea.vmem %s0, 344
      %v407 = vld [vmem:[%s406] sm:$0xff]
      %v408 = vmul.f32 %v407, %v177
      %v409 = vadd.f32 %v405, %v408
      %s410 = scalar_lea.vmem %s0, 352
      %v411 = vld [vmem:[%s410] sm:$0xff]
      %v412 = vmul.f32 %v411, %v179
      %v413 = vadd.f32 %v409, %v412
      %s414 = scalar_lea.vmem %s0, 496
      %v415 = vld [vmem:[%s414] sm:$0xff]
      %v416 = vadd.f32 %v413, %v415
      %v417 = vmul.f32 %v416, 0.1
      %v418 = vmax.f32 %v416, %v417
      %s419 = scalar_lea.vmem %s0, 360
      %v420 = vld [vmem:[%s419] sm:$0xff]
      %v421 = vmul.f32 %v420, %v175
      %s422 = scalar_lea.vmem %s0, 368
      %v423 = vld [vmem:[%s422] sm:$0xff]
      %v424 = vmul.f32 %v423, %v177
      %v425 = vadd.f32 %v421, %v424
      %s426 = scalar_lea.vmem %s0, 376
      %v427 = vld [vmem:[%s426] sm:$0xff]
      %v428 = vmul.f32 %v427, %v179
      %v429 = vadd.f32 %v425, %v428
      %s430 = scalar_lea.vmem %s0, 504
      %v431 = vld [vmem:[%s430] sm:$0xff]
      %v432 = vadd.f32 %v429, %v431
      %v433 = vmul.f32 %v432, 0.1
      %v434 = vmax.f32 %v432, %v433
      %s435 = scalar_lea.vmem %s0, 512
      %v436 = vld [vmem:[%s435] sm:$0xff]
      %v437 = vmul.f32 %v436, %v194
      %s438 = scalar_lea.vmem %s0, 520
      %v439 = vld [vmem:[%s438] sm:$0xff]
      %v440 = vmul.f32 %v439, %v210
      %v441 = vadd.f32 %v437, %v440
      %s442 = scalar_lea.vmem %s0, 528
      %v443 = vld [vmem:[%s442] sm:$0xff]
      %v444 = vmul.f32 %v443, %v226
      %v445 = vadd.f32 %v441, %v444
      %s446 = scalar_lea.vmem %s0, 536
      %v447 = vld [vmem:[%s446] sm:$0xff]
      %v448 = vmul.f32 %v447, %v242
      %v449 = vadd.f32 %v445, %v448
      %s450 = scalar_lea.vmem %s0, 544
      %v451 = vld [vmem:[%s450] sm:$0xff]
      %v452 = vmul.f32 %v451, %v258
      %v453 = vadd.f32 %v449, %v452
      %s454 = scalar_lea.vmem %s0, 552
      %v455 = vld [vmem:[%s454] sm:$0xff]
      %v456 = vmul.f32 %v455, %v274
      %v457 = vadd.f32 %v453, %v456
      %s458 = scalar_lea.vmem %s0, 560
      %v459 = vld [vmem:[%s458] sm:$0xff]
      %v460 = vmul.f32 %v459, %v290
      %v461 = vadd.f32 %v457, %v460
      %s462 = scalar_lea.vmem %s0, 568
      %v463 = vld [vmem:[%s462] sm:$0xff]
      %v464 = vmul.f32 %v463, %v306
      %v465 = vadd.f32 %v461, %v464
      %s466 = scalar_lea.vmem %s0, 576
      %v467 = vld [vmem:[%s466] sm:$0xff]
      %v468 = vmul.f32 %v467, %v322
      %v469 = vadd.f32 %v465, %v468
      %s470 = scalar_lea.vmem %s0, 584
      %v471 = vld [vmem:[%s470] sm:$0xff]
      %v472 = vmul.f32 %v471, %v338
      %v473 = vadd.f32 %v469, %v472
      %s474 = scalar_lea.vmem %s0, 592
      %v475 = vld [vmem:[%s474] sm:$0xff]
      %v476 = vmul.f32 %v475, %v354
      %v477 = vadd.f32 %v473, %v476
      %s478 = scalar_lea.vmem %s0, 600
      %v479 = vld [vmem:[%s478] sm:$0xff]
      %v480 = vmul.f32 %v479, %v370
      %v481 = vadd.f32 %v477, %v480
      %s482 = scalar_lea.vmem %s0, 608
      %v483 = vld [vmem:[%s482] sm:$0xff]
      %v484 = vmul.f32 %v483, %v386
      %v485 = vadd.f32 %v481, %v484
      %s486 = scalar_lea.vmem %s0, 616
      %v487 = vld [vmem:[%s486] sm:$0xff]
      %v488 = vmul.f32 %v487, %v402
      %v489 = vadd.f32 %v485, %v488
      %s490 = scalar_lea.vmem %s0, 624
      %v491 = vld [vmem:[%s490] sm:$0xff]
      %v492 = vmul.f32 %v491, %v418
      %v493 = vadd.f32 %v489, %v492
      %s494 = scalar_lea.vmem %s0, 632
      %v495 = vld [vmem:[%s494] sm:$0xff]
      %v496 = vmul.f32 %v495, %v434
      %v497 = vadd.f32 %v493, %v496
      %s498 = scalar_lea.vmem %s0, 2560
      %v499 = vld [vmem:[%s498] sm:$0xff]
      %v500 = vadd.f32 %v497, %v499
      %v501 = vmul.f32 %v500, 0.1
      %v502 = vmax.f32 %v500, %v501
      %s503 = scalar_lea.vmem %s0, 640
      %v504 = vld [vmem:[%s503] sm:$0xff]
      %v505 = vmul.f32 %v504, %v194
      %s506 = scalar_lea.vmem %s0, 648
      %v507 = vld [vmem:[%s506] sm:$0xff]
      %v508 = vmul.f32 %v507, %v210
      %v509 = vadd.f32 %v505, %v508
      %s510 = scalar_lea.vmem %s0, 656
      %v511 = vld [vmem:[%s510] sm:$0xff]
      %v512 = vmul.f32 %v511, %v226
      %v513 = vadd.f32 %v509, %v512
      %s514 = scalar_lea.vmem %s0, 664
      %v515 = vld [vmem:[%s514] sm:$0xff]
      %v516 = vmul.f32 %v515, %v242
      %v517 = vadd.f32 %v513, %v516
      %s518 = scalar_lea.vmem %s0, 672
      %v519 = vld [vmem:[%s518] sm:$0xff]
      %v520 = vmul.f32 %v519, %v258
      %v521 = vadd.f32 %v517, %v520
      %s522 = scalar_lea.vmem %s0, 680
      %v523 = vld [vmem:[%s522] sm:$0xff]
      %v524 = vmul.f32 %v523, %v274
      %v525 = vadd.f32 %v521, %v524
      %s526 = scalar_lea.vmem %s0, 688
      %v527 = vld [vmem:[%s526] sm:$0xff]
      %v528 = vmul.f32 %v527, %v290
      %v529 = vadd.f32 %v525, %v528
      %s530 = scalar_lea.vmem %s0, 696
      %v531 = vld [vmem:[%s530] sm:$0xff]
      %v532 = vmul.f32 %v531, %v306
      %v533 = vadd.f32 %v529, %v532
      %s534 = scalar_lea.vmem %s0, 704
      %v535 = vld [vmem:[%s534] sm:$0xff]
      %v536 = vmul.f32 %v535, %v322
      %v537 = vadd.f32 %v533, %v536
      %s538 = scalar_lea.vmem %s0, 712
      %v539 = vld [vmem:[%s538] sm:$0xff]
      %v540 = vmul.f32 %v539, %v338
      %v541 = vadd.f32 %v537, %v540
      %s542 = scalar_lea.vmem %s0, 720
      %v543 = vld [vmem:[%s542] sm:$0xff]
      %v544 = vmul.f32 %v543, %v354
      %v545 = vadd.f32 %v541, %v544
      %s546 = scalar_lea.vmem %s0, 728
      %v547 = vld [vmem:[%s546] sm:$0xff]
      %v548 = vmul.f32 %v547, %v370
      %v549 = vadd.f32 %v545, %v548
      %s550 = scalar_lea.vmem %s0, 736
      %v551 = vld [vmem:[%s550] sm:$0xff]
      %v552 = vmul.f32 %v551, %v386
      %v553 = vadd.f32 %v549, %v552
      %s554 = scalar_lea.vmem %s0, 744
      %v555 = vld [vmem:[%s554] sm:$0xff]
      %v556 = vmul.f32 %v555, %v402
      %v557 = vadd.f32 %v553, %v556
      %s558 = scalar_lea.vmem %s0, 752
      %v559 = vld [vmem:[%s558] sm:$0xff]
      %v560 = vmul.f32 %v559, %v418
      %v561 = vadd.f32 %v557, %v560
      %s562 = scalar_lea.vmem %s0, 760
      %v563 = vld [vmem:[%s562] sm:$0xff]
      %v564 = vmul.f32 %v563, %v434
      %v565 = vadd.f32 %v561, %v564
      %s566 = scalar_lea.vmem %s0, 2568
      %v567 = vld [vmem:[%s566] sm:$0xff]
      %v568 = vadd.f32 %v565, %v567
      %v569 = vmul.f32 %v568, 0.1
      %v570 = vmax.f32 %v568, %v569
      %s571 = scalar_lea.vmem %s0, 768
      %v572 = vld [vmem:[%s571] sm:$0xff]
      %v573 = vmul.f32 %v572, %v194
      %s574 = scalar_lea.vmem %s0, 776
      %v575 = vld [vmem:[%s574] sm:$0xff]
      %v576 = vmul.f32 %v575, %v210
      %v577 = vadd.f32 %v573, %v576
      %s578 = scalar_lea.vmem %s0, 784
      %v579 = vld [vmem:[%s578] sm:$0xff]
      %v580 = vmul.f32 %v579, %v226
      %v581 = vadd.f32 %v577, %v580
      %s582 = scalar_lea.vmem %s0, 792
      %v583 = vld [vmem:[%s582] sm:$0xff]
      %v584 = vmul.f32 %v583, %v242
      %v585 = vadd.f32 %v581, %v584
      %s586 = scalar_lea.vmem %s0, 800
      %v587 = vld [vmem:[%s586] sm:$0xff]
      %v588 = vmul.f32 %v587, %v258
      %v589 = vadd.f32 %v585, %v588
      %s590 = scalar_lea.vmem %s0, 808
      %v591 = vld [vmem:[%s590] sm:$0xff]
      %v592 = vmul.f32 %v591, %v274
      %v593 = vadd.f32 %v589, %v592
      %s594 = scalar_lea.vmem %s0, 816
      %v595 = vld [vmem:[%s594] sm:$0xff]
      %v596 = vmul.f32 %v595, %v290
      %v597 = vadd.f32 %v593, %v596
      %s598 = scalar_lea.vmem %s0, 824
      %v599 = vld [vmem:[%s598] sm:$0xff]
      %v600 = vmul.f32 %v599, %v306
      %v601 = vadd.f32 %v597, %v600
      %s602 = scalar_lea.vmem %s0, 832
      %v603 = vld [vmem:[%s602] sm:$0xff]
      %v604 = vmul.f32 %v603, %v322
      %v605 = vadd.f32 %v601, %v604
      %s606 = scalar_lea.vmem %s0, 840
      %v607 = vld [vmem:[%s606] sm:$0xff]
      %v608 = vmul.f32 %v607, %v338
      %v609 = vadd.f32 %v605, %v608
      %s610 = scalar_lea.vmem %s0, 848
      %v611 = vld [vmem:[%s610] sm:$0xff]
      %v612 = vmul.f32 %v611, %v354
      %v613 = vadd.f32 %v609, %v612
      %s614 = scalar_lea.vmem %s0, 856
      %v615 = vld [vmem:[%s614] sm:$0xff]
      %v616 = vmul.f32 %v615, %v370
      %v617 = vadd.f32 %v613, %v616
      %s618 = scalar_lea.vmem %s0, 864
      %v619 = vld [vmem:[%s618] sm:$0xff]
      %v620 = vmul.f32 %v619, %v386
      %v621 = vadd.f32 %v617, %v620
      %s622 = scalar_lea.vmem %s0, 872
      %v623 = vld [vmem:[%s622] sm:$0xff]
      %v624 = vmul.f32 %v623, %v402
      %v625 = vadd.f32 %v621, %v624
      %s626 = scalar_lea.vmem %s0, 880
      %v627 = vld [vmem:[%s626] sm:$0xff]
      %v628 = vmul.f32 %v627, %v418
      %v629 = vadd.f32 %v625, %v628
      %s630 = scalar_lea.vmem %s0, 888
      %v631 = vld [vmem:[%s630] sm:$0xff]
      %v632 = vmul.f32 %v631, %v434
      %v633 = vadd.f32 %v629, %v632
      %s634 = scalar_lea.vmem %s0, 2576
      %v635 = vld [vmem:[%s634] sm:$0xff]
      %v636 = vadd.f32 %v633, %v635
      %v637 = vmul.f32 %v636, 0.1
      %v638 = vmax.f32 %v636, %v637
      %s639 = scalar_lea.vmem %s0, 896
      %v640 = vld [vmem:[%s639] sm:$0xff]
      %v641 = vmul.f32 %v640, %v194
      %s642 = scalar_lea.vmem %s0, 904
      %v643 = vld [vmem:[%s642] sm:$0xff]
      %v644 = vmul.f32 %v643, %v210
      %v645 = vadd.f32 %v641, %v644
      %s646 = scalar_lea.vmem %s0, 912
      %v647 = vld [vmem:[%s646] sm:$0xff]
      %v648 = vmul.f32 %v647, %v226
      %v649 = vadd.f32 %v645, %v648
      %s650 = scalar_lea.vmem %s0, 920
      %v651 = vld [vmem:[%s650] sm:$0xff]
      %v652 = vmul.f32 %v651, %v242
      %v653 = vadd.f32 %v649, %v652
      %s654 = scalar_lea.vmem %s0, 928
      %v655 = vld [vmem:[%s654] sm:$0xff]
      %v656 = vmul.f32 %v655, %v258
      %v657 = vadd.f32 %v653, %v656
      %s658 = scalar_lea.vmem %s0, 936
      %v659 = vld [vmem:[%s658] sm:$0xff]
      %v660 = vmul.f32 %v659, %v274
      %v661 = vadd.f32 %v657, %v660
      %s662 = scalar_lea.vmem %s0, 944
      %v663 = vld [vmem:[%s662] sm:$0xff]
      %v664 = vmul.f32 %v663, %v290
      %v665 = vadd.f32 %v661, %v664
      %s666 = scalar_lea.vmem %s0, 952
      %v667 = vld [vmem:[%s666] sm:$0xff]
      %v668 = vmul.f32 %v667, %v306
      %v669 = vadd.f32 %v665, %v668
      %s670 = scalar_lea.vmem %s0, 960
      %v671 = vld [vmem:[%s670] sm:$0xff]
      %v672 = vmul.f32 %v671, %v322
      %v673 = vadd.f32 %v669, %v672
      %s674 = scalar_lea.vmem %s0, 968
      %v675 = vld [vmem:[%s674] sm:$0xff]
      %v676 = vmul.f32 %v675, %v338
      %v677 = vadd.f32 %v673, %v676
      %s678 = scalar_lea.vmem %s0, 976
      %v679 = vld [vmem:[%s678] sm:$0xff]
      %v680 = vmul.f32 %v679, %v354
      %v681 = vadd.f32 %v677, %v680
      %s682 = scalar_lea.vmem %s0, 984
      %v683 = vld [vmem:[%s682] sm:$0xff]
      %v684 = vmul.f32 %v683, %v370
      %v685 = vadd.f32 %v681, %v684
      %s686 = scalar_lea.vmem %s0, 992
      %v687 = vld [vmem:[%s686] sm:$0xff]
      %v688 = vmul.f32 %v687, %v386
      %v689 = vadd.f32 %v685, %v688
      %s690 = scalar_lea.vmem %s0, 1000
      %v691 = vld [vmem:[%s690] sm:$0xff]
      %v692 = vmul.f32 %v691, %v402
      %v693 = vadd.f32 %v689, %v692
      %s694 = scalar_lea.vmem %s0, 1008
      %v695 = vld [vmem:[%s694] sm:$0xff]
      %v696 = vmul.f32 %v695, %v418
      %v697 = vadd.f32 %v693, %v696
      %s698 = scalar_lea.vmem %s0, 1016
      %v699 = vld [vmem:[%s698] sm:$0xff]
      %v700 = vmul.f32 %v699, %v434
      %v701 = vadd.f32 %v697, %v700
      %s702 = scalar_lea.vmem %s0, 2584
      %v703 = vld [vmem:[%s702] sm:$0xff]
      %v704 = vadd.f32 %v701, %v703
      %v705 = vmul.f32 %v704, 0.1
      %v706 = vmax.f32 %v704, %v705
      %s707 = scalar_lea.vmem %s0, 1024
      %v708 = vld [vmem:[%s707] sm:$0xff]
      %v709 = vmul.f32 %v708, %v194
      %s710 = scalar_lea.vmem %s0, 1032
      %v711 = vld [vmem:[%s710] sm:$0xff]
      %v712 = vmul.f32 %v711, %v210
      %v713 = vadd.f32 %v709, %v712
      %s714 = scalar_lea.vmem %s0, 1040
      %v715 = vld [vmem:[%s714] sm:$0xff]
      %v716 = vmul.f32 %v715, %v226
      %v717 = vadd.f32 %v713, %v716
      %s718 = scalar_lea.vmem %s0, 1048
      %v719 = vld [vmem:[%s718] sm:$0xff]
      %v720 = vmul.f32 %v719, %v242
      %v721 = vadd.f32 %v717, %v720
      %s722 = scalar_lea.vmem %s0, 1056
      %v723 = vld [vmem:[%s722] sm:$0xff]
      %v724 = vmul.f32 %v723, %v258
      %v725 = vadd.f32 %v721, %v724
      %s726 = scalar_lea.vmem %s0, 1064
      %v727 = vld [vmem:[%s726] sm:$0xff]
      %v728 = vmul.f32 %v727, %v274
      %v729 = vadd.f32 %v725, %v728
      %s730 = scalar_lea.vmem %s0, 1072
      %v731 = vld [vmem:[%s730] sm:$0xff]
      %v732 = vmul.f32 %v731, %v290
      %v733 = vadd.f32 %v729, %v732
      %s734 = scalar_lea.vmem %s0, 1080
      %v735 = vld [vmem:[%s734] sm:$0xff]
      %v736 = vmul.f32 %v735, %v306
      %v737 = vadd.f32 %v733, %v736
      %s738 = scalar_lea.vmem %s0, 1088
      %v739 = vld [vmem:[%s738] sm:$0xff]
      %v740 = vmul.f32 %v739, %v322
      %v741 = vadd.f32 %v737, %v740
      %s742 = scalar_lea.vmem %s0, 1096
      %v743 = vld [vmem:[%s742] sm:$0xff]
      %v744 = vmul.f32 %v743, %v338
      %v745 = vadd.f32 %v741, %v744
      %s746 = scalar_lea.vmem %s0, 1104
      %v747 = vld [vmem:[%s746] sm:$0xff]
      %v748 = vmul.f32 %v747, %v354
      %v749 = vadd.f32 %v745, %v748
      %s750 = scalar_lea.vmem %s0, 1112
      %v751 = vld [vmem:[%s750] sm:$0xff]
      %v752 = vmul.f32 %v751, %v370
      %v753 = vadd.f32 %v749, %v752
      %s754 = scalar_lea.vmem %s0, 1120
      %v755 = vld [vmem:[%s754] sm:$0xff]
      %v756 = vmul.f32 %v755, %v386
      %v757 = vadd.f32 %v753, %v756
      %s758 = scalar_lea.vmem %s0, 1128
      %v759 = vld [vmem:[%s758] sm:$0xff]
      %v760 = vmul.f32 %v759, %v402
      %v761 = vadd.f32 %v757, %v760
      %s762 = scalar_lea.vmem %s0, 1136
      %v763 = vld [vmem:[%s762] sm:$0xff]
      %v764 = vmul.f32 %v763, %v418
      %v765 = vadd.f32 %v761, %v764
      %s766 = scalar_lea.vmem %s0, 1144
      %v767 = vld [vmem:[%s766] sm:$0xff]
      %v768 = vmul.f32 %v767, %v434
      %v769 = vadd.f32 %v765, %v768
      %s770 = scalar_lea.vmem %s0, 2592
      %v771 = vld [vmem:[%s770] sm:$0xff]
      %v772 = vadd.f32 %v769, %v771
      %v773 = vmul.f32 %v772, 0.1
      %v774 = vmax.f32 %v772, %v773
      %s775 = scalar_lea.vmem %s0, 1152
      %v776 = vld [vmem:[%s775] sm:$0xff]
      %v777 = vmul.f32 %v776, %v194
      %s778 = scalar_lea.vmem %s0, 1160
      %v779 = vld [vmem:[%s778] sm:$0xff]
      %v780 = vmul.f32 %v779, %v210
      %v781 = vadd.f32 %v777, %v780
      %s782 = scalar_lea.vmem %s0, 1168
      %v783 = vld [vmem:[%s782] sm:$0xff]
      %v784 = vmul.f32 %v783, %v226
      %v785 = vadd.f32 %v781, %v784
      %s786 = scalar_lea.vmem %s0, 1176
      %v787 = vld [vmem:[%s786] sm:$0xff]
      %v788 = vmul.f32 %v787, %v242
      %v789 = vadd.f32 %v785, %v788
      %s790 = scalar_lea.vmem %s0, 1184
      %v791 = vld [vmem:[%s790] sm:$0xff]
      %v792 = vmul.f32 %v791, %v258
      %v793 = vadd.f32 %v789, %v792
      %s794 = scalar_lea.vmem %s0, 1192
      %v795 = vld [vmem:[%s794] sm:$0xff]
      %v796 = vmul.f32 %v795, %v274
      %v797 = vadd.f32 %v793, %v796
      %s798 = scalar_lea.vmem %s0, 1200
      %v799 = vld [vmem:[%s798] sm:$0xff]
      %v800 = vmul.f32 %v799, %v290
      %v801 = vadd.f32 %v797, %v800
      %s802 = scalar_lea.vmem %s0, 1208
      %v803 = vld [vmem:[%s802] sm:$0xff]
      %v804 = vmul.f32 %v803, %v306
      %v805 = vadd.f32 %v801, %v804
      %s806 = scalar_lea.vmem %s0, 1216
      %v807 = vld [vmem:[%s806] sm:$0xff]
      %v808 = vmul.f32 %v807, %v322
      %v809 = vadd.f32 %v805, %v808
      %s810 = scalar_lea.vmem %s0, 1224
      %v811 = vld [vmem:[%s810] sm:$0xff]
      %v812 = vmul.f32 %v811, %v338
      %v813 = vadd.f32 %v809, %v812
      %s814 = scalar_lea.vmem %s0, 1232
      %v815 = vld [vmem:[%s814] sm:$0xff]
      %v816 = vmul.f32 %v815, %v354
      %v817 = vadd.f32 %v813, %v816
      %s818 = scalar_lea.vmem %s0, 1240
      %v819 = vld [vmem:[%s818] sm:$0xff]
      %v820 = vmul.f32 %v819, %v370
      %v821 = vadd.f32 %v817, %v820
      %s822 = scalar_lea.vmem %s0, 1248
      %v823 = vld [vmem:[%s822] sm:$0xff]
      %v824 = vmul.f32 %v823, %v386
      %v825 = vadd.f32 %v821, %v824
      %s826 = scalar_lea.vmem %s0, 1256
      %v827 = vld [vmem:[%s826] sm:$0xff]
      %v828 = vmul.f32 %v827, %v402
      %v829 = vadd.f32 %v825, %v828
      %s830 = scalar_lea.vmem %s0, 1264
      %v831 = vld [vmem:[%s830] sm:$0xff]
      %v832 = vmul.f32 %v831, %v418
      %v833 = vadd.f32 %v829, %v832
      %s834 = scalar_lea.vmem %s0, 1272
      %v835 = vld [vmem:[%s834] sm:$0xff]
      %v836 = vmul.f32 %v835, %v434
      %v837 = vadd.f32 %v833, %v836
      %s838 = scalar_lea.vmem %s0, 2600
      %v839 = vld [vmem:[%s838] sm:$0xff]
      %v840 = vadd.f32 %v837, %v839
      %v841 = vmul.f32 %v840, 0.1
      %v842 = vmax.f32 %v840, %v841
      %s843 = scalar_lea.vmem %s0, 1280
      %v844 = vld [vmem:[%s843] sm:$0xff]
      %v845 = vmul.f32 %v844, %v194
      %s846 = scalar_lea.vmem %s0, 1288
      %v847 = vld [vmem:[%s846] sm:$0xff]
      %v848 = vmul.f32 %v847, %v210
      %v849 = vadd.f32 %v845, %v848
      %s850 = scalar_lea.vmem %s0, 1296
      %v851 = vld [vmem:[%s850] sm:$0xff]
      %v852 = vmul.f32 %v851, %v226
      %v853 = vadd.f32 %v849, %v852
      %s854 = scalar_lea.vmem %s0, 1304
      %v855 = vld [vmem:[%s854] sm:$0xff]
      %v856 = vmul.f32 %v855, %v242
      %v857 = vadd.f32 %v853, %v856
      %s858 = scalar_lea.vmem %s0, 1312
      %v859 = vld [vmem:[%s858] sm:$0xff]
      %v860 = vmul.f32 %v859, %v258
      %v861 = vadd.f32 %v857, %v860
      %s862 = scalar_lea.vmem %s0, 1320
      %v863 = vld [vmem:[%s862] sm:$0xff]
      %v864 = vmul.f32 %v863, %v274
      %v865 = vadd.f32 %v861, %v864
      %s866 = scalar_lea.vmem %s0, 1328
      %v867 = vld [vmem:[%s866] sm:$0xff]
      %v868 = vmul.f32 %v867, %v290
      %v869 = vadd.f32 %v865, %v868
      %s870 = scalar_lea.vmem %s0, 1336
      %v871 = vld [vmem:[%s870] sm:$0xff]
      %v872 = vmul.f32 %v871, %v306
      %v873 = vadd.f32 %v869, %v872
      %s874 = scalar_lea.vmem %s0, 1344
      %v875 = vld [vmem:[%s874] sm:$0xff]
      %v876 = vmul.f32 %v875, %v322
      %v877 = vadd.f32 %v873, %v876
      %s878 = scalar_lea.vmem %s0, 1352
      %v879 = vld [vmem:[%s878] sm:$0xff]
      %v880 = vmul.f32 %v879, %v338
      %v881 = vadd.f32 %v877, %v880
      %s882 = scalar_lea.vmem %s0, 1360
      %v883 = vld [vmem:[%s882] sm:$0xff]
      %v884 = vmul.f32 %v883, %v354
      %v885 = vadd.f32 %v881, %v884
      %s886 = scalar_lea.vmem %s0, 1368
      %v887 = vld [vmem:[%s886] sm:$0xff]
      %v888 = vmul.f32 %v887, %v370
      %v889 = vadd.f32 %v885, %v888
      %s890 = scalar_lea.vmem %s0, 1376
      %v891 = vld [vmem:[%s890] sm:$0xff]
      %v892 = vmul.f32 %v891, %v386
      %v893 = vadd.f32 %v889, %v892
      %s894 = scalar_lea.vmem %s0, 1384
      %v895 = vld [vmem:[%s894] sm:$0xff]
      %v896 = vmul.f32 %v895, %v402
      %v897 = vadd.f32 %v893, %v896
      %s898 = scalar_lea.vmem %s0, 1392
      %v899 = vld [vmem:[%s898] sm:$0xff]
      %v900 = vmul.f32 %v899, %v418
      %v901 = vadd.f32 %v897, %v900
      %s902 = scalar_lea.vmem %s0, 1400
      %v903 = vld [vmem:[%s902] sm:$0xff]
      %v904 = vmul.f32 %v903, %v434
      %v905 = vadd.f32 %v901, %v904
      %s906 = scalar_lea.vmem %s0, 2608
      %v907 = vld [vmem:[%s906] sm:$0xff]
      %v908 = vadd.f32 %v905, %v907
      %v909 = vmul.f32 %v908, 0.1
      %v910 = vmax.f32 %v908, %v909
      %s911 = scalar_lea.vmem %s0, 1408
      %v912 = vld [vmem:[%s911] sm:$0xff]
      %v913 = vmul.f32 %v912, %v194
      %s914 = scalar_lea.vmem %s0, 1416
      %v915 = vld [vmem:[%s914] sm:$0xff]
      %v916 = vmul.f32 %v915, %v210
      %v917 = vadd.f32 %v913, %v916
      %s918 = scalar_lea.vmem %s0, 1424
      %v919 = vld [vmem:[%s918] sm:$0xff]
      %v920 = vmul.f32 %v919, %v226
      %v921 = vadd.f32 %v917, %v920
      %s922 = scalar_lea.vmem %s0, 1432
      %v923 = vld [vmem:[%s922] sm:$0xff]
      %v924 = vmul.f32 %v923, %v242
      %v925 = vadd.f32 %v921, %v924
      %s926 = scalar_lea.vmem %s0, 1440
      %v927 = vld [vmem:[%s926] sm:$0xff]
      %v928 = vmul.f32 %v927, %v258
      %v929 = vadd.f32 %v925, %v928
      %s930 = scalar_lea.vmem %s0, 1448
      %v931 = vld [vmem:[%s930] sm:$0xff]
      %v932 = vmul.f32 %v931, %v274
      %v933 = vadd.f32 %v929, %v932
      %s934 = scalar_lea.vmem %s0, 1456
      %v935 = vld [vmem:[%s934] sm:$0xff]
      %v936 = vmul.f32 %v935, %v290
      %v937 = vadd.f32 %v933, %v936
      %s938 = scalar_lea.vmem %s0, 1464
      %v939 = vld [vmem:[%s938] sm:$0xff]
      %v940 = vmul.f32 %v939, %v306
      %v941 = vadd.f32 %v937, %v940
      %s942 = scalar_lea.vmem %s0, 1472
      %v943 = vld [vmem:[%s942] sm:$0xff]
      %v944 = vmul.f32 %v943, %v322
      %v945 = vadd.f32 %v941, %v944
      %s946 = scalar_lea.vmem %s0, 1480
      %v947 = vld [vmem:[%s946] sm:$0xff]
      %v948 = vmul.f32 %v947, %v338
      %v949 = vadd.f32 %v945, %v948
      %s950 = scalar_lea.vmem %s0, 1488
      %v951 = vld [vmem:[%s950] sm:$0xff]
      %v952 = vmul.f32 %v951, %v354
      %v953 = vadd.f32 %v949, %v952
      %s954 = scalar_lea.vmem %s0, 1496
      %v955 = vld [vmem:[%s954] sm:$0xff]
      %v956 = vmul.f32 %v955, %v370
      %v957 = vadd.f32 %v953, %v956
      %s958 = scalar_lea.vmem %s0, 1504
      %v959 = vld [vmem:[%s958] sm:$0xff]
      %v960 = vmul.f32 %v959, %v386
      %v961 = vadd.f32 %v957, %v960
      %s962 = scalar_lea.vmem %s0, 1512
      %v963 = vld [vmem:[%s962] sm:$0xff]
      %v964 = vmul.f32 %v963, %v402
      %v965 = vadd.f32 %v961, %v964
      %s966 = scalar_lea.vmem %s0, 1520
      %v967 = vld [vmem:[%s966] sm:$0xff]
      %v968 = vmul.f32 %v967, %v418
      %v969 = vadd.f32 %v965, %v968
      %s970 = scalar_lea.vmem %s0, 1528
      %v971 = vld [vmem:[%s970] sm:$0xff]
      %v972 = vmul.f32 %v971, %v434
      %v973 = vadd.f32 %v969, %v972
      %s974 = scalar_lea.vmem %s0, 2616
      %v975 = vld [vmem:[%s974] sm:$0xff]
      %v976 = vadd.f32 %v973, %v975
      %v977 = vmul.f32 %v976, 0.1
      %v978 = vmax.f32 %v976, %v977
      %s979 = scalar_lea.vmem %s0, 1536
      %v980 = vld [vmem:[%s979] sm:$0xff]
      %v981 = vmul.f32 %v980, %v194
      %s982 = scalar_lea.vmem %s0, 1544
      %v983 = vld [vmem:[%s982] sm:$0xff]
      %v984 = vmul.f32 %v983, %v210
      %v985 = vadd.f32 %v981, %v984
      %s986 = scalar_lea.vmem %s0, 1552
      %v987 = vld [vmem:[%s986] sm:$0xff]
      %v988 = vmul.f32 %v987, %v226
      %v989 = vadd.f32 %v985, %v988
      %s990 = scalar_lea.vmem %s0, 1560
      %v991 = vld [vmem:[%s990] sm:$0xff]
      %v992 = vmul.f32 %v991, %v242
      %v993 = vadd.f32 %v989, %v992
      %s994 = scalar_lea.vmem %s0, 1568
      %v995 = vld [vmem:[%s994] sm:$0xff]
      %v996 = vmul.f32 %v995, %v258
      %v997 = vadd.f32 %v993, %v996
      %s998 = scalar_lea.vmem %s0, 1576
      %v999 = vld [vmem:[%s998] sm:$0xff]
      %v1000 = vmul.f32 %v999, %v274
      %v1001 = vadd.f32 %v997, %v1000
      %s1002 = scalar_lea.vmem %s0, 1584
      %v1003 = vld [vmem:[%s1002] sm:$0xff]
      %v1004 = vmul.f32 %v1003, %v290
      %v1005 = vadd.f32 %v1001, %v1004
      %s1006 = scalar_lea.vmem %s0, 1592
      %v1007 = vld [vmem:[%s1006] sm:$0xff]
      %v1008 = vmul.f32 %v1007, %v306
      %v1009 = vadd.f32 %v1005, %v1008
      %s1010 = scalar_lea.vmem %s0, 1600
      %v1011 = vld [vmem:[%s1010] sm:$0xff]
      %v1012 = vmul.f32 %v1011, %v322
      %v1013 = vadd.f32 %v1009, %v1012
      %s1014 = scalar_lea.vmem %s0, 1608
      %v1015 = vld [vmem:[%s1014] sm:$0xff]
      %v1016 = vmul.f32 %v1015, %v338
      %v1017 = vadd.f32 %v1013, %v1016
      %s1018 = scalar_lea.vmem %s0, 1616
      %v1019 = vld [vmem:[%s1018] sm:$0xff]
      %v1020 = vmul.f32 %v1019, %v354
      %v1021 = vadd.f32 %v1017, %v1020
      %s1022 = scalar_lea.vmem %s0, 1624
      %v1023 = vld [vmem:[%s1022] sm:$0xff]
      %v1024 = vmul.f32 %v1023, %v370
      %v1025 = vadd.f32 %v1021, %v1024
      %s1026 = scalar_lea.vmem %s0, 1632
      %v1027 = vld [vmem:[%s1026] sm:$0xff]
      %v1028 = vmul.f32 %v1027, %v386
      %v1029 = vadd.f32 %v1025, %v1028
      %s1030 = scalar_lea.vmem %s0, 1640
      %v1031 = vld [vmem:[%s1030] sm:$0xff]
      %v1032 = vmul.f32 %v1031, %v402
      %v1033 = vadd.f32 %v1029, %v1032
      %s1034 = scalar_lea.vmem %s0, 1648
      %v1035 = vld [vmem:[%s1034] sm:$0xff]
      %v1036 = vmul.f32 %v1035, %v418
      %v1037 = vadd.f32 %v1033, %v1036
      %s1038 = scalar_lea.vmem %s0, 1656
      %v1039 = vld [vmem:[%s1038] sm:$0xff]
      %v1040 = vmul.f32 %v1039, %v434
      %v1041 = vadd.f32 %v1037, %v1040
      %s1042 = scalar_lea.vmem %s0, 2624
      %v1043 = vld [vmem:[%s1042] sm:$0xff]
      %v1044 = vadd.f32 %v1041, %v1043
      %v1045 = vmul.f32 %v1044, 0.1
      %v1046 = vmax.f32 %v1044, %v1045
      %s1047 = scalar_lea.vmem %s0, 1664
      %v1048 = vld [vmem:[%s1047] sm:$0xff]
      %v1049 = vmul.f32 %v1048, %v194
      %s1050 = scalar_lea.vmem %s0, 1672
      %v1051 = vld [vmem:[%s1050] sm:$0xff]
      %v1052 = vmul.f32 %v1051, %v210
      %v1053 = vadd.f32 %v1049, %v1052
      %s1054 = scalar_lea.vmem %s0, 1680
      %v1055 = vld [vmem:[%s1054] sm:$0xff]
      %v1056 = vmul.f32 %v1055, %v226
      %v1057 = vadd.f32 %v1053, %v1056
      %s1058 = scalar_lea.vmem %s0, 1688
      %v1059 = vld [vmem:[%s1058] sm:$0xff]
      %v1060 = vmul.f32 %v1059, %v242
      %v1061 = vadd.f32 %v1057, %v1060
      %s1062 = scalar_lea.vmem %s0, 1696
      %v1063 = vld [vmem:[%s1062] sm:$0xff]
      %v1064 = vmul.f32 %v1063, %v258
      %v1065 = vadd.f32 %v1061, %v1064
      %s1066 = scalar_lea.vmem %s0, 1704
      %v1067 = vld [vmem:[%s1066] sm:$0xff]
      %v1068 = vmul.f32 %v1067, %v274
      %v1069 = vadd.f32 %v1065, %v1068
      %s1070 = scalar_lea.vmem %s0, 1712
      %v1071 = vld [vmem:[%s1070] sm:$0xff]
      %v1072 = vmul.f32 %v1071, %v290
      %v1073 = vadd.f32 %v1069, %v1072
      %s1074 = scalar_lea.vmem %s0, 1720
      %v1075 = vld [vmem:[%s1074] sm:$0xff]
      %v1076 = vmul.f32 %v1075, %v306
      %v1077 = vadd.f32 %v1073, %v1076
      %s1078 = scalar_lea.vmem %s0, 1728
      %v1079 = vld [vmem:[%s1078] sm:$0xff]
      %v1080 = vmul.f32 %v1079, %v322
      %v1081 = vadd.f32 %v1077, %v1080
      %s1082 = scalar_lea.vmem %s0, 1736
      %v1083 = vld [vmem:[%s1082] sm:$0xff]
      %v1084 = vmul.f32 %v1083, %v338
      %v1085 = vadd.f32 %v1081, %v1084
      %s1086 = scalar_lea.vmem %s0, 1744
      %v1087 = vld [vmem:[%s1086] sm:$0xff]
      %v1088 = vmul.f32 %v1087, %v354
      %v1089 = vadd.f32 %v1085, %v1088
      %s1090 = scalar_lea.vmem %s0, 1752
      %v1091 = vld [vmem:[%s1090] sm:$0xff]
      %v1092 = vmul.f32 %v1091, %v370
      %v1093 = vadd.f32 %v1089, %v1092
      %s1094 = scalar_lea.vmem %s0, 1760
      %v1095 = vld [vmem:[%s1094] sm:$0xff]
      %v1096 = vmul.f32 %v1095, %v386
      %v1097 = vadd.f32 %v1093, %v1096
      %s1098 = scalar_lea.vmem %s0, 1768
      %v1099 = vld [vmem:[%s1098] sm:$0xff]
      %v1100 = vmul.f32 %v1099, %v402
      %v1101 = vadd.f32 %v1097, %v1100
      %s1102 = scalar_lea.vmem %s0, 1776
      %v1103 = vld [vmem:[%s1102] sm:$0xff]
      %v1104 = vmul.f32 %v1103, %v418
      %v1105 = vadd.f32 %v1101, %v1104
      %s1106 = scalar_lea.vmem %s0, 1784
      %v1107 = vld [vmem:[%s1106] sm:$0xff]
      %v1108 = vmul.f32 %v1107, %v434
      %v1109 = vadd.f32 %v1105, %v1108
      %s1110 = scalar_lea.vmem %s0, 2632
      %v1111 = vld [vmem:[%s1110] sm:$0xff]
      %v1112 = vadd.f32 %v1109, %v1111
      %v1113 = vmul.f32 %v1112, 0.1
      %v1114 = vmax.f32 %v1112, %v1113
      %s1115 = scalar_lea.vmem %s0, 1792
      %v1116 = vld [vmem:[%s1115] sm:$0xff]
      %v1117 = vmul.f32 %v1116, %v194
      %s1118 = scalar_lea.vmem %s0, 1800
      %v1119 = vld [vmem:[%s1118] sm:$0xff]
      %v1120 = vmul.f32 %v1119, %v210
      %v1121 = vadd.f32 %v1117, %v1120
      %s1122 = scalar_lea.vmem %s0, 1808
      %v1123 = vld [vmem:[%s1122] sm:$0xff]
      %v1124 = vmul.f32 %v1123, %v226
      %v1125 = vadd.f32 %v1121, %v1124
      %s1126 = scalar_lea.vmem %s0, 1816
      %v1127 = vld [vmem:[%s1126] sm:$0xff]
      %v1128 = vmul.f32 %v1127, %v242
      %v1129 = vadd.f32 %v1125, %v1128
      %s1130 = scalar_lea.vmem %s0, 1824
      %v1131 = vld [vmem:[%s1130] sm:$0xff]
      %v1132 = vmul.f32 %v1131, %v258
      %v1133 = vadd.f32 %v1129, %v1132
      %s1134 = scalar_lea.vmem %s0, 1832
      %v1135 = vld [vmem:[%s1134] sm:$0xff]
      %v1136 = vmul.f32 %v1135, %v274
      %v1137 = vadd.f32 %v1133, %v1136
      %s1138 = scalar_lea.vmem %s0, 1840
      %v1139 = vld [vmem:[%s1138] sm:$0xff]
      %v1140 = vmul.f32 %v1139, %v290
      %v1141 = vadd.f32 %v1137, %v1140
      %s1142 = scalar_lea.vmem %s0, 1848
      %v1143 = vld [vmem:[%s1142] sm:$0xff]
      %v1144 = vmul.f32 %v1143, %v306
      %v1145 = vadd.f32 %v1141, %v1144
      %s1146 = scalar_lea.vmem %s0, 1856
      %v1147 = vld [vmem:[%s1146] sm:$0xff]
      %v1148 = vmul.f32 %v1147, %v322
      %v1149 = vadd.f32 %v1145, %v1148
      %s1150 = scalar_lea.vmem %s0, 1864
      %v1151 = vld [vmem:[%s1150] sm:$0xff]
      %v1152 = vmul.f32 %v1151, %v338
      %v1153 = vadd.f32 %v1149, %v1152
      %s1154 = scalar_lea.vmem %s0, 1872
      %v1155 = vld [vmem:[%s1154] sm:$0xff]
      %v1156 = vmul.f32 %v1155, %v354
      %v1157 = vadd.f32 %v1153, %v1156
      %s1158 = scalar_lea.vmem %s0, 1880
      %v1159 = vld [vmem:[%s1158] sm:$0xff]
      %v1160 = vmul.f32 %v1159, %v370
      %v1161 = vadd.f32 %v1157, %v1160
      %s1162 = scalar_lea.vmem %s0, 1888
      %v1163 = vld [vmem:[%s1162] sm:$0xff]
      %v1164 = vmul.f32 %v1163, %v386
      %v1165 = vadd.f32 %v1161, %v1164
      %s1166 = scalar_lea.vmem %s0, 1896
      %v1167 = vld [vmem:[%s1166] sm:$0xff]
      %v1168 = vmul.f32 %v1167, %v402
      %v1169 = vadd.f32 %v1165, %v1168
      %s1170 = scalar_lea.vmem %s0, 1904
      %v1171 = vld [vmem:[%s1170] sm:$0xff]
      %v1172 = vmul.f32 %v1171, %v418
      %v1173 = vadd.f32 %v1169, %v1172
      %s1174 = scalar_lea.vmem %s0, 1912
      %v1175 = vld [vmem:[%s1174] sm:$0xff]
      %v1176 = vmul.f32 %v1175, %v434
      %v1177 = vadd.f32 %v1173, %v1176
      %s1178 = scalar_lea.vmem %s0, 2640
      %v1179 = vld [vmem:[%s1178] sm:$0xff]
      %v1180 = vadd.f32 %v1177, %v1179
      %v1181 = vmul.f32 %v1180, 0.1
      %v1182 = vmax.f32 %v1180, %v1181
      %s1183 = scalar_lea.vmem %s0, 1920
      %v1184 = vld [vmem:[%s1183] sm:$0xff]
      %v1185 = vmul.f32 %v1184, %v194
      %s1186 = scalar_lea.vmem %s0, 1928
      %v1187 = vld [vmem:[%s1186] sm:$0xff]
      %v1188 = vmul.f32 %v1187, %v210
      %v1189 = vadd.f32 %v1185, %v1188
      %s1190 = scalar_lea.vmem %s0, 1936
      %v1191 = vld [vmem:[%s1190] sm:$0xff]
      %v1192 = vmul.f32 %v1191, %v226
      %v1193 = vadd.f32 %v1189, %v1192
      %s1194 = scalar_lea.vmem %s0, 1944
      %v1195 = vld [vmem:[%s1194] sm:$0xff]
      %v1196 = vmul.f32 %v1195, %v242
      %v1197 = vadd.f32 %v1193, %v1196
      %s1198 = scalar_lea.vmem %s0, 1952
      %v1199 = vld [vmem:[%s1198] sm:$0xff]
      %v1200 = vmul.f32 %v1199, %v258
      %v1201 = vadd.f32 %v1197, %v1200
      %s1202 = scalar_lea.vmem %s0, 1960
      %v1203 = vld [vmem:[%s1202] sm:$0xff]
      %v1204 = vmul.f32 %v1203, %v274
      %v1205 = vadd.f32 %v1201, %v1204
      %s1206 = scalar_lea.vmem %s0, 1968
      %v1207 = vld [vmem:[%s1206] sm:$0xff]
      %v1208 = vmul.f32 %v1207, %v290
      %v1209 = vadd.f32 %v1205, %v1208
      %s1210 = scalar_lea.vmem %s0, 1976
      %v1211 = vld [vmem:[%s1210] sm:$0xff]
      %v1212 = vmul.f32 %v1211, %v306
      %v1213 = vadd.f32 %v1209, %v1212
      %s1214 = scalar_lea.vmem %s0, 1984
      %v1215 = vld [vmem:[%s1214] sm:$0xff]
      %v1216 = vmul.f32 %v1215, %v322
      %v1217 = vadd.f32 %v1213, %v1216
      %s1218 = scalar_lea.vmem %s0, 1992
      %v1219 = vld [vmem:[%s1218] sm:$0xff]
      %v1220 = vmul.f32 %v1219, %v338
      %v1221 = vadd.f32 %v1217, %v1220
      %s1222 = scalar_lea.vmem %s0, 2000
      %v1223 = vld [vmem:[%s1222] sm:$0xff]
      %v1224 = vmul.f32 %v1223, %v354
      %v1225 = vadd.f32 %v1221, %v1224
      %s1226 = scalar_lea.vmem %s0, 2008
      %v1227 = vld [vmem:[%s1226] sm:$0xff]
      %v1228 = vmul.f32 %v1227, %v370
      %v1229 = vadd.f32 %v1225, %v1228
      %s1230 = scalar_lea.vmem %s0, 2016
      %v1231 = vld [vmem:[%s1230] sm:$0xff]
      %v1232 = vmul.f32 %v1231, %v386
      %v1233 = vadd.f32 %v1229, %v1232
      %s1234 = scalar_lea.vmem %s0, 2024
      %v1235 = vld [vmem:[%s1234] sm:$0xff]
      %v1236 = vmul.f32 %v1235, %v402
      %v1237 = vadd.f32 %v1233, %v1236
      %s1238 = scalar_lea.vmem %s0, 2032
      %v1239 = vld [vmem:[%s1238] sm:$0xff]
      %v1240 = vmul.f32 %v1239, %v418
      %v1241 = vadd.f32 %v1237, %v1240
      %s1242 = scalar_lea.vmem %s0, 2040
      %v1243 = vld [vmem:[%s1242] sm:$0xff]
      %v1244 = vmul.f32 %v1243, %v434
      %v1245 = vadd.f32 %v1241, %v1244
      %s1246 = scalar_lea.vmem %s0, 2648
      %v1247 = vld [vmem:[%s1246] sm:$0xff]
      %v1248 = vadd.f32 %v1245, %v1247
      %v1249 = vmul.f32 %v1248, 0.1
      %v1250 = vmax.f32 %v1248, %v1249
      %s1251 = scalar_lea.vmem %s0, 2048
      %v1252 = vld [vmem:[%s1251] sm:$0xff]
      %v1253 = vmul.f32 %v1252, %v194
      %s1254 = scalar_lea.vmem %s0, 2056
      %v1255 = vld [vmem:[%s1254] sm:$0xff]
      %v1256 = vmul.f32 %v1255, %v210
      %v1257 = vadd.f32 %v1253, %v1256
      %s1258 = scalar_lea.vmem %s0, 2064
      %v1259 = vld [vmem:[%s1258] sm:$0xff]
      %v1260 = vmul.f32 %v1259, %v226
      %v1261 = vadd.f32 %v1257, %v1260
      %s1262 = scalar_lea.vmem %s0, 2072
      %v1263 = vld [vmem:[%s1262] sm:$0xff]
      %v1264 = vmul.f32 %v1263, %v242
      %v1265 = vadd.f32 %v1261, %v1264
      %s1266 = scalar_lea.vmem %s0, 2080
      %v1267 = vld [vmem:[%s1266] sm:$0xff]
      %v1268 = vmul.f32 %v1267, %v258
      %v1269 = vadd.f32 %v1265, %v1268
      %s1270 = scalar_lea.vmem %s0, 2088
      %v1271 = vld [vmem:[%s1270] sm:$0xff]
      %v1272 = vmul.f32 %v1271, %v274
      %v1273 = vadd.f32 %v1269, %v1272
      %s1274 = scalar_lea.vmem %s0, 2096
      %v1275 = vld [vmem:[%s1274] sm:$0xff]
      %v1276 = vmul.f32 %v1275, %v290
      %v1277 = vadd.f32 %v1273, %v1276
      %s1278 = scalar_lea.vmem %s0, 2104
      %v1279 = vld [vmem:[%s1278] sm:$0xff]
      %v1280 = vmul.f32 %v1279, %v306
      %v1281 = vadd.f32 %v1277, %v1280
      %s1282 = scalar_lea.vmem %s0, 2112
      %v1283 = vld [vmem:[%s1282] sm:$0xff]
      %v1284 = vmul.f32 %v1283, %v322
      %v1285 = vadd.f32 %v1281, %v1284
      %s1286 = scalar_lea.vmem %s0, 2120
      %v1287 = vld [vmem:[%s1286] sm:$0xff]
      %v1288 = vmul.f32 %v1287, %v338
      %v1289 = vadd.f32 %v1285, %v1288
      %s1290 = scalar_lea.vmem %s0, 2128
      %v1291 = vld [vmem:[%s1290] sm:$0xff]
      %v1292 = vmul.f32 %v1291, %v354
      %v1293 = vadd.f32 %v1289, %v1292
      %s1294 = scalar_lea.vmem %s0, 2136
      %v1295 = vld [vmem:[%s1294] sm:$0xff]
      %v1296 = vmul.f32 %v1295, %v370
      %v1297 = vadd.f32 %v1293, %v1296
      %s1298 = scalar_lea.vmem %s0, 2144
      %v1299 = vld [vmem:[%s1298] sm:$0xff]
      %v1300 = vmul.f32 %v1299, %v386
      %v1301 = vadd.f32 %v1297, %v1300
      %s1302 = scalar_lea.vmem %s0, 2152
      %v1303 = vld [vmem:[%s1302] sm:$0xff]
      %v1304 = vmul.f32 %v1303, %v402
      %v1305 = vadd.f32 %v1301, %v1304
      %s1306 = scalar_lea.vmem %s0, 2160
      %v1307 = vld [vmem:[%s1306] sm:$0xff]
      %v1308 = vmul.f32 %v1307, %v418
      %v1309 = vadd.f32 %v1305, %v1308
      %s1310 = scalar_lea.vmem %s0, 2168
      %v1311 = vld [vmem:[%s1310] sm:$0xff]
      %v1312 = vmul.f32 %v1311, %v434
      %v1313 = vadd.f32 %v1309, %v1312
      %s1314 = scalar_lea.vmem %s0, 2656
      %v1315 = vld [vmem:[%s1314] sm:$0xff]
      %v1316 = vadd.f32 %v1313, %v1315
      %v1317 = vmul.f32 %v1316, 0.1
      %v1318 = vmax.f32 %v1316, %v1317
      %s1319 = scalar_lea.vmem %s0, 2176
      %v1320 = vld [vmem:[%s1319] sm:$0xff]
      %v1321 = vmul.f32 %v1320, %v194
      %s1322 = scalar_lea.vmem %s0, 2184
      %v1323 = vld [vmem:[%s1322] sm:$0xff]
      %v1324 = vmul.f32 %v1323, %v210
      %v1325 = vadd.f32 %v1321, %v1324
      %s1326 = scalar_lea.vmem %s0, 2192
      %v1327 = vld [vmem:[%s1326] sm:$0xff]
      %v1328 = vmul.f32 %v1327, %v226
      %v1329 = vadd.f32 %v1325, %v1328
      %s1330 = scalar_lea.vmem %s0, 2200
      %v1331 = vld [vmem:[%s1330] sm:$0xff]
      %v1332 = vmul.f32 %v1331, %v242
      %v1333 = vadd.f32 %v1329, %v1332
      %s1334 = scalar_lea.vmem %s0, 2208
      %v1335 = vld [vmem:[%s1334] sm:$0xff]
      %v1336 = vmul.f32 %v1335, %v258
      %v1337 = vadd.f32 %v1333, %v1336
      %s1338 = scalar_lea.vmem %s0, 2216
      %v1339 = vld [vmem:[%s1338] sm:$0xff]
      %v1340 = vmul.f32 %v1339, %v274
      %v1341 = vadd.f32 %v1337, %v1340
      %s1342 = scalar_lea.vmem %s0, 2224
      %v1343 = vld [vmem:[%s1342] sm:$0xff]
      %v1344 = vmul.f32 %v1343, %v290
      %v1345 = vadd.f32 %v1341, %v1344
      %s1346 = scalar_lea.vmem %s0, 2232
      %v1347 = vld [vmem:[%s1346] sm:$0xff]
      %v1348 = vmul.f32 %v1347, %v306
      %v1349 = vadd.f32 %v1345, %v1348
      %s1350 = scalar_lea.vmem %s0, 2240
      %v1351 = vld [vmem:[%s1350] sm:$0xff]
      %v1352 = vmul.f32 %v1351, %v322
      %v1353 = vadd.f32 %v1349, %v1352
      %s1354 = scalar_lea.vmem %s0, 2248
      %v1355 = vld [vmem:[%s1354] sm:$0xff]
      %v1356 = vmul.f32 %v1355, %v338
      %v1357 = vadd.f32 %v1353, %v1356
      %s1358 = scalar_lea.vmem %s0, 2256
      %v1359 = vld [vmem:[%s1358] sm:$0xff]
      %v1360 = vmul.f32 %v1359, %v354
      %v1361 = vadd.f32 %v1357, %v1360
      %s1362 = scalar_lea.vmem %s0, 2264
      %v1363 = vld [vmem:[%s1362] sm:$0xff]
      %v1364 = vmul.f32 %v1363, %v370
      %v1365 = vadd.f32 %v1361, %v1364
      %s1366 = scalar_lea.vmem %s0, 2272
      %v1367 = vld [vmem:[%s1366] sm:$0xff]
      %v1368 = vmul.f32 %v1367, %v386
      %v1369 = vadd.f32 %v1365, %v1368
      %s1370 = scalar_lea.vmem %s0, 2280
      %v1371 = vld [vmem:[%s1370] sm:$0xff]
      %v1372 = vmul.f32 %v1371, %v402
      %v1373 = vadd.f32 %v1369, %v1372
      %s1374 = scalar_lea.vmem %s0, 2288
      %v1375 = vld [vmem:[%s1374] sm:$0xff]
      %v1376 = vmul.f32 %v1375, %v418
      %v1377 = vadd.f32 %v1373, %v1376
      %s1378 = scalar_lea.vmem %s0, 2296
      %v1379 = vld [vmem:[%s1378] sm:$0xff]
      %v1380 = vmul.f32 %v1379, %v434
      %v1381 = vadd.f32 %v1377, %v1380
      %s1382 = scalar_lea.vmem %s0, 2664
      %v1383 = vld [vmem:[%s1382] sm:$0xff]
      %v1384 = vadd.f32 %v1381, %v1383
      %v1385 = vmul.f32 %v1384, 0.1
      %v1386 = vmax.f32 %v1384, %v1385
      %s1387 = scalar_lea.vmem %s0, 2304
      %v1388 = vld [vmem:[%s1387] sm:$0xff]
      %v1389 = vmul.f32 %v1388, %v194
      %s1390 = scalar_lea.vmem %s0, 2312
      %v1391 = vld [vmem:[%s1390] sm:$0xff]
      %v1392 = vmul.f32 %v1391, %v210
      %v1393 = vadd.f32 %v1389, %v1392
      %s1394 = scalar_lea.vmem %s0, 2320
      %v1395 = vld [vmem:[%s1394] sm:$0xff]
      %v1396 = vmul.f32 %v1395, %v226
      %v1397 = vadd.f32 %v1393, %v1396
      %s1398 = scalar_lea.vmem %s0, 2328
      %v1399 = vld [vmem:[%s1398] sm:$0xff]
      %v1400 = vmul.f32 %v1399, %v242
      %v1401 = vadd.f32 %v1397, %v1400
      %s1402 = scalar_lea.vmem %s0, 2336
      %v1403 = vld [vmem:[%s1402] sm:$0xff]
      %v1404 = vmul.f32 %v1403, %v258
      %v1405 = vadd.f32 %v1401, %v1404
      %s1406 = scalar_lea.vmem %s0, 2344
      %v1407 = vld [vmem:[%s1406] sm:$0xff]
      %v1408 = vmul.f32 %v1407, %v274
      %v1409 = vadd.f32 %v1405, %v1408
      %s1410 = scalar_lea.vmem %s0, 2352
      %v1411 = vld [vmem:[%s1410] sm:$0xff]
      %v1412 = vmul.f32 %v1411, %v290
      %v1413 = vadd.f32 %v1409, %v1412
      %s1414 = scalar_lea.vmem %s0, 2360
      %v1415 = vld [vmem:[%s1414] sm:$0xff]
      %v1416 = vmul.f32 %v1415, %v306
      %v1417 = vadd.f32 %v1413, %v1416
      %s1418 = scalar_lea.vmem %s0, 2368
      %v1419 = vld [vmem:[%s1418] sm:$0xff]
      %v1420 = vmul.f32 %v1419, %v322
      %v1421 = vadd.f32 %v1417, %v1420
      %s1422 = scalar_lea.vmem %s0, 2376
      %v1423 = vld [vmem:[%s1422] sm:$0xff]
      %v1424 = vmul.f32 %v1423, %v338
      %v1425 = vadd.f32 %v1421, %v1424
      %s1426 = scalar_lea.vmem %s0, 2384
      %v1427 = vld [vmem:[%s1426] sm:$0xff]
      %v1428 = vmul.f32 %v1427, %v354
      %v1429 = vadd.f32 %v1425, %v1428
      %s1430 = scalar_lea.vmem %s0, 2392
      %v1431 = vld [vmem:[%s1430] sm:$0xff]
      %v1432 = vmul.f32 %v1431, %v370
      %v1433 = vadd.f32 %v1429, %v1432
      %s1434 = scalar_lea.vmem %s0, 2400
      %v1435 = vld [vmem:[%s1434] sm:$0xff]
      %v1436 = vmul.f32 %v1435, %v386
      %v1437 = vadd.f32 %v1433, %v1436
      %s1438 = scalar_lea.vmem %s0, 2408
      %v1439 = vld [vmem:[%s1438] sm:$0xff]
      %v1440 = vmul.f32 %v1439, %v402
      %v1441 = vadd.f32 %v1437, %v1440
      %s1442 = scalar_lea.vmem %s0, 2416
      %v1443 = vld [vmem:[%s1442] sm:$0xff]
      %v1444 = vmul.f32 %v1443, %v418
      %v1445 = vadd.f32 %v1441, %v1444
      %s1446 = scalar_lea.vmem %s0, 2424
      %v1447 = vld [vmem:[%s1446] sm:$0xff]
      %v1448 = vmul.f32 %v1447, %v434
      %v1449 = vadd.f32 %v1445, %v1448
      %s1450 = scalar_lea.vmem %s0, 2672
      %v1451 = vld [vmem:[%s1450] sm:$0xff]
      %v1452 = vadd.f32 %v1449, %v1451
      %v1453 = vmul.f32 %v1452, 0.1
      %v1454 = vmax.f32 %v1452, %v1453
      %s1455 = scalar_lea.vmem %s0, 2432
      %v1456 = vld [vmem:[%s1455] sm:$0xff]
      %v1457 = vmul.f32 %v1456, %v194
      %s1458 = scalar_lea.vmem %s0, 2440
      %v1459 = vld [vmem:[%s1458] sm:$0xff]
      %v1460 = vmul.f32 %v1459, %v210
      %v1461 = vadd.f32 %v1457, %v1460
      %s1462 = scalar_lea.vmem %s0, 2448
      %v1463 = vld [vmem:[%s1462] sm:$0xff]
      %v1464 = vmul.f32 %v1463, %v226
      %v1465 = vadd.f32 %v1461, %v1464
      %s1466 = scalar_lea.vmem %s0, 2456
      %v1467 = vld [vmem:[%s1466] sm:$0xff]
      %v1468 = vmul.f32 %v1467, %v242
      %v1469 = vadd.f32 %v1465, %v1468
      %s1470 = scalar_lea.vmem %s0, 2464
      %v1471 = vld [vmem:[%s1470] sm:$0xff]
      %v1472 = vmul.f32 %v1471, %v258
      %v1473 = vadd.f32 %v1469, %v1472
      %s1474 = scalar_lea.vmem %s0, 2472
      %v1475 = vld [vmem:[%s1474] sm:$0xff]
      %v1476 = vmul.f32 %v1475, %v274
      %v1477 = vadd.f32 %v1473, %v1476
      %s1478 = scalar_lea.vmem %s0, 2480
      %v1479 = vld [vmem:[%s1478] sm:$0xff]
      %v1480 = vmul.f32 %v1479, %v290
      %v1481 = vadd.f32 %v1477, %v1480
      %s1482 = scalar_lea.vmem %s0, 2488
      %v1483 = vld [vmem:[%s1482] sm:$0xff]
      %v1484 = vmul.f32 %v1483, %v306
      %v1485 = vadd.f32 %v1481, %v1484
      %s1486 = scalar_lea.vmem %s0, 2496
      %v1487 = vld [vmem:[%s1486] sm:$0xff]
      %v1488 = vmul.f32 %v1487, %v322
      %v1489 = vadd.f32 %v1485, %v1488
      %s1490 = scalar_lea.vmem %s0, 2504
      %v1491 = vld [vmem:[%s1490] sm:$0xff]
      %v1492 = vmul.f32 %v1491, %v338
      %v1493 = vadd.f32 %v1489, %v1492
      %s1494 = scalar_lea.vmem %s0, 2512
      %v1495 = vld [vmem:[%s1494] sm:$0xff]
      %v1496 = vmul.f32 %v1495, %v354
      %v1497 = vadd.f32 %v1493, %v1496
      %s1498 = scalar_lea.vmem %s0, 2520
      %v1499 = vld [vmem:[%s1498] sm:$0xff]
      %v1500 = vmul.f32 %v1499, %v370
      %v1501 = vadd.f32 %v1497, %v1500
      %s1502 = scalar_lea.vmem %s0, 2528
      %v1503 = vld [vmem:[%s1502] sm:$0xff]
      %v1504 = vmul.f32 %v1503, %v386
      %v1505 = vadd.f32 %v1501, %v1504
      %s1506 = scalar_lea.vmem %s0, 2536
      %v1507 = vld [vmem:[%s1506] sm:$0xff]
      %v1508 = vmul.f32 %v1507, %v402
      %v1509 = vadd.f32 %v1505, %v1508
      %s1510 = scalar_lea.vmem %s0, 2544
      %v1511 = vld [vmem:[%s1510] sm:$0xff]
      %v1512 = vmul.f32 %v1511, %v418
      %v1513 = vadd.f32 %v1509, %v1512
      %s1514 = scalar_lea.vmem %s0, 2552
      %v1515 = vld [vmem:[%s1514] sm:$0xff]
      %v1516 = vmul.f32 %v1515, %v434
      %v1517 = vadd.f32 %v1513, %v1516
      %s1518 = scalar_lea.vmem %s0, 2680
      %v1519 = vld [vmem:[%s1518] sm:$0xff]
      %v1520 = vadd.f32 %v1517, %v1519
      %v1521 = vmul.f32 %v1520, 0.1
      %v1522 = vmax.f32 %v1520, %v1521
      %s1523 = scalar_lea.vmem %s0, 2688
      %v1524 = vld [vmem:[%s1523] sm:$0xff]
      %v1525 = vmul.f32 %v1524, %v502
      %s1526 = scalar_lea.vmem %s0, 2696
      %v1527 = vld [vmem:[%s1526] sm:$0xff]
      %v1528 = vmul.f32 %v1527, %v570
      %v1529 = vadd.f32 %v1525, %v1528
      %s1530 = scalar_lea.vmem %s0, 2704
      %v1531 = vld [vmem:[%s1530] sm:$0xff]
      %v1532 = vmul.f32 %v1531, %v638
      %v1533 = vadd.f32 %v1529, %v1532
      %s1534 = scalar_lea.vmem %s0, 2712
      %v1535 = vld [vmem:[%s1534] sm:$0xff]
      %v1536 = vmul.f32 %v1535, %v706
      %v1537 = vadd.f32 %v1533, %v1536
      %s1538 = scalar_lea.vmem %s0, 2720
      %v1539 = vld [vmem:[%s1538] sm:$0xff]
      %v1540 = vmul.f32 %v1539, %v774
      %v1541 = vadd.f32 %v1537, %v1540
      %s1542 = scalar_lea.vmem %s0, 2728
      %v1543 = vld [vmem:[%s1542] sm:$0xff]
      %v1544 = vmul.f32 %v1543, %v842
      %v1545 = vadd.f32 %v1541, %v1544
      %s1546 = scalar_lea.vmem %s0, 2736
      %v1547 = vld [vmem:[%s1546] sm:$0xff]
      %v1548 = vmul.f32 %v1547, %v910
      %v1549 = vadd.f32 %v1545, %v1548
      %s1550 = scalar_lea.vmem %s0, 2744
      %v1551 = vld [vmem:[%s1550] sm:$0xff]
      %v1552 = vmul.f32 %v1551, %v978
      %v1553 = vadd.f32 %v1549, %v1552
      %s1554 = scalar_lea.vmem %s0, 2752
      %v1555 = vld [vmem:[%s1554] sm:$0xff]
      %v1556 = vmul.f32 %v1555, %v1046
      %v1557 = vadd.f32 %v1553, %v1556
      %s1558 = scalar_lea.vmem %s0, 2760
      %v1559 = vld [vmem:[%s1558] sm:$0xff]
      %v1560 = vmul.f32 %v1559, %v1114
      %v1561 = vadd.f32 %v1557, %v1560
      %s1562 = scalar_lea.vmem %s0, 2768
      %v1563 = vld [vmem:[%s1562] sm:$0xff]
      %v1564 = vmul.f32 %v1563, %v1182
      %v1565 = vadd.f32 %v1561, %v1564
      %s1566 = scalar_lea.vmem %s0, 2776
      %v1567 = vld [vmem:[%s1566] sm:$0xff]
      %v1568 = vmul.f32 %v1567, %v1250
      %v1569 = vadd.f32 %v1565, %v1568
      %s1570 = scalar_lea.vmem %s0, 2784
      %v1571 = vld [vmem:[%s1570] sm:$0xff]
      %v1572 = vmul.f32 %v1571, %v1318
      %v1573 = vadd.f32 %v1569, %v1572
      %s1574 = scalar_lea.vmem %s0, 2792
      %v1575 = vld [vmem:[%s1574] sm:$0xff]
      %v1576 = vmul.f32 %v1575, %v1386
      %v1577 = vadd.f32 %v1573, %v1576
      %s1578 = scalar_lea.vmem %s0, 2800
      %v1579 = vld [vmem:[%s1578] sm:$0xff]
      %v1580 = vmul.f32 %v1579, %v1454
      %v1581 = vadd.f32 %v1577, %v1580
      %s1582 = scalar_lea.vmem %s0, 2808
      %v1583 = vld [vmem:[%s1582] sm:$0xff]
      %v1584 = vmul.f32 %v1583, %v1522
      %v1585 = vadd.f32 %v1581, %v1584
      %s1586 = scalar_lea.vmem %s0, 3200
      %v1587 = vld [vmem:[%s1586] sm:$0xff]
      %v1588 = vadd.f32 %v1585, %v1587
      %v1589 = vmul.f32 %v1588, 0.1
      %v1590 = vmax.f32 %v1588, %v1589
      %s1591 = scalar_lea.vmem %s0, 2816
      %v1592 = vld [vmem:[%s1591] sm:$0xff]
      %v1593 = vmul.f32 %v1592, %v502
      %s1594 = scalar_lea.vmem %s0, 2824
      %v1595 = vld [vmem:[%s1594] sm:$0xff]
      %v1596 = vmul.f32 %v1595, %v570
      %v1597 = vadd.f32 %v1593, %v1596
      %s1598 = scalar_lea.vmem %s0, 2832
      %v1599 = vld [vmem:[%s1598] sm:$0xff]
      %v1600 = vmul.f32 %v1599, %v638
      %v1601 = vadd.f32 %v1597, %v1600
      %s1602 = scalar_lea.vmem %s0, 2840
      %v1603 = vld [vmem:[%s1602] sm:$0xff]
      %v1604 = vmul.f32 %v1603, %v706
      %v1605 = vadd.f32 %v1601, %v1604
      %s1606 = scalar_lea.vmem %s0, 2848
      %v1607 = vld [vmem:[%s1606] sm:$0xff]
      %v1608 = vmul.f32 %v1607, %v774
      %v1609 = vadd.f32 %v1605, %v1608
      %s1610 = scalar_lea.vmem %s0, 2856
      %v1611 = vld [vmem:[%s1610] sm:$0xff]
      %v1612 = vmul.f32 %v1611, %v842
      %v1613 = vadd.f32 %v1609, %v1612
      %s1614 = scalar_lea.vmem %s0, 2864
      %v1615 = vld [vmem:[%s1614] sm:$0xff]
      %v1616 = vmul.f32 %v1615, %v910
      %v1617 = vadd.f32 %v1613, %v1616
      %s1618 = scalar_lea.vmem %s0, 2872
      %v1619 = vld [vmem:[%s1618] sm:$0xff]
      %v1620 = vmul.f32 %v1619, %v978
      %v1621 = vadd.f32 %v1617, %v1620
      %s1622 = scalar_lea.vmem %s0, 2880
      %v1623 = vld [vmem:[%s1622] sm:$0xff]
      %v1624 = vmul.f32 %v1623, %v1046
      %v1625 = vadd.f32 %v1621, %v1624
      %s1626 = scalar_lea.vmem %s0, 2888
      %v1627 = vld [vmem:[%s1626] sm:$0xff]
      %v1628 = vmul.f32 %v1627, %v1114
      %v1629 = vadd.f32 %v1625, %v1628
      %s1630 = scalar_lea.vmem %s0, 2896
      %v1631 = vld [vmem:[%s1630] sm:$0xff]
      %v1632 = vmul.f32 %v1631, %v1182
      %v1633 = vadd.f32 %v1629, %v1632
      %s1634 = scalar_lea.vmem %s0, 2904
      %v1635 = vld [vmem:[%s1634] sm:$0xff]
      %v1636 = vmul.f32 %v1635, %v1250
      %v1637 = vadd.f32 %v1633, %v1636
      %s1638 = scalar_lea.vmem %s0, 2912
      %v1639 = vld [vmem:[%s1638] sm:$0xff]
      %v1640 = vmul.f32 %v1639, %v1318
      %v1641 = vadd.f32 %v1637, %v1640
      %s1642 = scalar_lea.vmem %s0, 2920
      %v1643 = vld [vmem:[%s1642] sm:$0xff]
      %v1644 = vmul.f32 %v1643, %v1386
      %v1645 = vadd.f32 %v1641, %v1644
      %s1646 = scalar_lea.vmem %s0, 2928
      %v1647 = vld [vmem:[%s1646] sm:$0xff]
      %v1648 = vmul.f32 %v1647, %v1454
      %v1649 = vadd.f32 %v1645, %v1648
      %s1650 = scalar_lea.vmem %s0, 2936
      %v1651 = vld [vmem:[%s1650] sm:$0xff]
      %v1652 = vmul.f32 %v1651, %v1522
      %v1653 = vadd.f32 %v1649, %v1652
      %s1654 = scalar_lea.vmem %s0, 3208
      %v1655 = vld [vmem:[%s1654] sm:$0xff]
      %v1656 = vadd.f32 %v1653, %v1655
      %v1657 = vmul.f32 %v1656, 0.1
      %v1658 = vmax.f32 %v1656, %v1657
      %s1659 = scalar_lea.vmem %s0, 2944
      %v1660 = vld [vmem:[%s1659] sm:$0xff]
      %v1661 = vmul.f32 %v1660, %v502
      %s1662 = scalar_lea.vmem %s0, 2952
      %v1663 = vld [vmem:[%s1662] sm:$0xff]
      %v1664 = vmul.f32 %v1663, %v570
      %v1665 = vadd.f32 %v1661, %v1664
      %s1666 = scalar_lea.vmem %s0, 2960
      %v1667 = vld [vmem:[%s1666] sm:$0xff]
      %v1668 = vmul.f32 %v1667, %v638
      %v1669 = vadd.f32 %v1665, %v1668
      %s1670 = scalar_lea.vmem %s0, 2968
      %v1671 = vld [vmem:[%s1670] sm:$0xff]
      %v1672 = vmul.f32 %v1671, %v706
      %v1673 = vadd.f32 %v1669, %v1672
      %s1674 = scalar_lea.vmem %s0, 2976
      %v1675 = vld [vmem:[%s1674] sm:$0xff]
      %v1676 = vmul.f32 %v1675, %v774
      %v1677 = vadd.f32 %v1673, %v1676
      %s1678 = scalar_lea.vmem %s0, 2984
      %v1679 = vld [vmem:[%s1678] sm:$0xff]
      %v1680 = vmul.f32 %v1679, %v842
      %v1681 = vadd.f32 %v1677, %v1680
      %s1682 = scalar_lea.vmem %s0, 2992
      %v1683 = vld [vmem:[%s1682] sm:$0xff]
      %v1684 = vmul.f32 %v1683, %v910
      %v1685 = vadd.f32 %v1681, %v1684
      %s1686 = scalar_lea.vmem %s0, 3000
      %v1687 = vld [vmem:[%s1686] sm:$0xff]
      %v1688 = vmul.f32 %v1687, %v978
      %v1689 = vadd.f32 %v1685, %v1688
      %s1690 = scalar_lea.vmem %s0, 3008
      %v1691 = vld [vmem:[%s1690] sm:$0xff]
      %v1692 = vmul.f32 %v1691, %v1046
      %v1693 = vadd.f32 %v1689, %v1692
      %s1694 = scalar_lea.vmem %s0, 3016
      %v1695 = vld [vmem:[%s1694] sm:$0xff]
      %v1696 = vmul.f32 %v1695, %v1114
      %v1697 = vadd.f32 %v1693, %v1696
      %s1698 = scalar_lea.vmem %s0, 3024
      %v1699 = vld [vmem:[%s1698] sm:$0xff]
      %v1700 = vmul.f32 %v1699, %v1182
      %v1701 = vadd.f32 %v1697, %v1700
      %s1702 = scalar_lea.vmem %s0, 3032
      %v1703 = vld [vmem:[%s1702] sm:$0xff]
      %v1704 = vmul.f32 %v1703, %v1250
      %v1705 = vadd.f32 %v1701, %v1704
      %s1706 = scalar_lea.vmem %s0, 3040
      %v1707 = vld [vmem:[%s1706] sm:$0xff]
      %v1708 = vmul.f32 %v1707, %v1318
      %v1709 = vadd.f32 %v1705, %v1708
      %s1710 = scalar_lea.vmem %s0, 3048
      %v1711 = vld [vmem:[%s1710] sm:$0xff]
      %v1712 = vmul.f32 %v1711, %v1386
      %v1713 = vadd.f32 %v1709, %v1712
      %s1714 = scalar_lea.vmem %s0, 3056
      %v1715 = vld [vmem:[%s1714] sm:$0xff]
      %v1716 = vmul.f32 %v1715, %v1454
      %v1717 = vadd.f32 %v1713, %v1716
      %s1718 = scalar_lea.vmem %s0, 3064
      %v1719 = vld [vmem:[%s1718] sm:$0xff]
      %v1720 = vmul.f32 %v1719, %v1522
      %v1721 = vadd.f32 %v1717, %v1720
      %s1722 = scalar_lea.vmem %s0, 3216
      %v1723 = vld [vmem:[%s1722] sm:$0xff]
      %v1724 = vadd.f32 %v1721, %v1723
      %v1725 = vmul.f32 %v1724, 0.1
      %v1726 = vmax.f32 %v1724, %v1725
      %s1727 = scalar_lea.vmem %s0, 3072
      %v1728 = vld [vmem:[%s1727] sm:$0xff]
      %v1729 = vmul.f32 %v1728, %v502
      %s1730 = scalar_lea.vmem %s0, 3080
      %v1731 = vld [vmem:[%s1730] sm:$0xff]
      %v1732 = vmul.f32 %v1731, %v570
      %v1733 = vadd.f32 %v1729, %v1732
      %s1734 = scalar_lea.vmem %s0, 3088
      %v1735 = vld [vmem:[%s1734] sm:$0xff]
      %v1736 = vmul.f32 %v1735, %v638
      %v1737 = vadd.f32 %v1733, %v1736
      %s1738 = scalar_lea.vmem %s0, 3096
      %v1739 = vld [vmem:[%s1738] sm:$0xff]
      %v1740 = vmul.f32 %v1739, %v706
      %v1741 = vadd.f32 %v1737, %v1740
      %s1742 = scalar_lea.vmem %s0, 3104
      %v1743 = vld [vmem:[%s1742] sm:$0xff]
      %v1744 = vmul.f32 %v1743, %v774
      %v1745 = vadd.f32 %v1741, %v1744
      %s1746 = scalar_lea.vmem %s0, 3112
      %v1747 = vld [vmem:[%s1746] sm:$0xff]
      %v1748 = vmul.f32 %v1747, %v842
      %v1749 = vadd.f32 %v1745, %v1748
      %s1750 = scalar_lea.vmem %s0, 3120
      %v1751 = vld [vmem:[%s1750] sm:$0xff]
      %v1752 = vmul.f32 %v1751, %v910
      %v1753 = vadd.f32 %v1749, %v1752
      %s1754 = scalar_lea.vmem %s0, 3128
      %v1755 = vld [vmem:[%s1754] sm:$0xff]
      %v1756 = vmul.f32 %v1755, %v978
      %v1757 = vadd.f32 %v1753, %v1756
      %s1758 = scalar_lea.vmem %s0, 3136
      %v1759 = vld [vmem:[%s1758] sm:$0xff]
      %v1760 = vmul.f32 %v1759, %v1046
      %v1761 = vadd.f32 %v1757, %v1760
      %s1762 = scalar_lea.vmem %s0, 3144
      %v1763 = vld [vmem:[%s1762] sm:$0xff]
      %v1764 = vmul.f32 %v1763, %v1114
      %v1765 = vadd.f32 %v1761, %v1764
      %s1766 = scalar_lea.vmem %s0, 3152
      %v1767 = vld [vmem:[%s1766] sm:$0xff]
      %v1768 = vmul.f32 %v1767, %v1182
      %v1769 = vadd.f32 %v1765, %v1768
      %s1770 = scalar_lea.vmem %s0, 3160
      %v1771 = vld [vmem:[%s1770] sm:$0xff]
      %v1772 = vmul.f32 %v1771, %v1250
      %v1773 = vadd.f32 %v1769, %v1772
      %s1774 = scalar_lea.vmem %s0, 3168
      %v1775 = vld [vmem:[%s1774] sm:$0xff]
      %v1776 = vmul.f32 %v1775, %v1318
      %v1777 = vadd.f32 %v1773, %v1776
      %s1778 = scalar_lea.vmem %s0, 3176
      %v1779 = vld [vmem:[%s1778] sm:$0xff]
      %v1780 = vmul.f32 %v1779, %v1386
      %v1781 = vadd.f32 %v1777, %v1780
      %s1782 = scalar_lea.vmem %s0, 3184
      %v1783 = vld [vmem:[%s1782] sm:$0xff]
      %v1784 = vmul.f32 %v1783, %v1454
      %v1785 = vadd.f32 %v1781, %v1784
      %s1786 = scalar_lea.vmem %s0, 3192
      %v1787 = vld [vmem:[%s1786] sm:$0xff]
      %v1788 = vmul.f32 %v1787, %v1522
      %v1789 = vadd.f32 %v1785, %v1788
      %s1790 = scalar_lea.vmem %s0, 3224
      %v1791 = vld [vmem:[%s1790] sm:$0xff]
      %v1792 = vadd.f32 %v1789, %v1791
      %v1793 = vmul.f32 %v1792, 0.1
      %v1794 = vmax.f32 %v1792, %v1793
      %s1795 = scalar_lea.vmem %s0, 3232
      %v1796 = vld [vmem:[%s1795] sm:$0xff]
      %v1797 = vmul.f32 %v1796, %v1590
      %s1798 = scalar_lea.vmem %s0, 3240
      %v1799 = vld [vmem:[%s1798] sm:$0xff]
      %v1800 = vmul.f32 %v1799, %v1658
      %v1801 = vadd.f32 %v1797, %v1800
      %s1802 = scalar_lea.vmem %s0, 3248
      %v1803 = vld [vmem:[%s1802] sm:$0xff]
      %v1804 = vmul.f32 %v1803, %v1726
      %v1805 = vadd.f32 %v1801, %v1804
      %s1806 = scalar_lea.vmem %s0, 3256
      %v1807 = vld [vmem:[%s1806] sm:$0xff]
      %v1808 = vmul.f32 %v1807, %v1794
      %v1809 = vadd.f32 %v1805, %v1808
      %s1810 = scalar_lea.vmem %s0, 3360
      %v1811 = vld [vmem:[%s1810] sm:$0xff]
      %v1812 = vadd.f32 %v1809, %v1811
      %s1813 = scalar_lea.vmem %s0, 3264
      %v1814 = vld [vmem:[%s1813] sm:$0xff]
      %v1815 = vmul.f32 %v1814, %v1590
      %s1816 = scalar_lea.vmem %s0, 3272
      %v1817 = vld [vmem:[%s1816] sm:$0xff]
      %v1818 = vmul.f32 %v1817, %v1658
      %v1819 = vadd.f32 %v1815, %v1818
      %s1820 = scalar_lea.vmem %s0, 3280
      %v1821 = vld [vmem:[%s1820] sm:$0xff]
      %v1822 = vmul.f32 %v1821, %v1726
      %v1823 = vadd.f32 %v1819, %v1822
      %s1824 = scalar_lea.vmem %s0, 3288
      %v1825 = vld [vmem:[%s1824] sm:$0xff]
      %v1826 = vmul.f32 %v1825, %v1794
      %v1827 = vadd.f32 %v1823, %v1826
      %s1828 = scalar_lea.vmem %s0, 3368
      %v1829 = vld [vmem:[%s1828] sm:$0xff]
      %v1830 = vadd.f32 %v1827, %v1829
      %s1831 = scalar_lea.vmem %s0, 3296
      %v1832 = vld [vmem:[%s1831] sm:$0xff]
      %v1833 = vmul.f32 %v1832, %v1590
      %s1834 = scalar_lea.vmem %s0, 3304
      %v1835 = vld [vmem:[%s1834] sm:$0xff]
      %v1836 = vmul.f32 %v1835, %v1658
      %v1837 = vadd.f32 %v1833, %v1836
      %s1838 = scalar_lea.vmem %s0, 3312
      %v1839 = vld [vmem:[%s1838] sm:$0xff]
      %v1840 = vmul.f32 %v1839, %v1726
      %v1841 = vadd.f32 %v1837, %v1840
      %s1842 = scalar_lea.vmem %s0, 3320
      %v1843 = vld [vmem:[%s1842] sm:$0xff]
      %v1844 = vmul.f32 %v1843, %v1794
      %v1845 = vadd.f32 %v1841, %v1844
      %s1846 = scalar_lea.vmem %s0, 3376
      %v1847 = vld [vmem:[%s1846] sm:$0xff]
      %v1848 = vadd.f32 %v1845, %v1847
      %s1849 = scalar_lea.vmem %s0, 3328
      %v1850 = vld [vmem:[%s1849] sm:$0xff]
      %v1851 = vmul.f32 %v1850, %v1590
      %s1852 = scalar_lea.vmem %s0, 3336
      %v1853 = vld [vmem:[%s1852] sm:$0xff]
      %v1854 = vmul.f32 %v1853, %v1658
      %v1855 = vadd.f32 %v1851, %v1854
      %s1856 = scalar_lea.vmem %s0, 3344
      %v1857 = vld [vmem:[%s1856] sm:$0xff]
      %v1858 = vmul.f32 %v1857, %v1726
      %v1859 = vadd.f32 %v1855, %v1858
      %s1860 = scalar_lea.vmem %s0, 3352
      %v1861 = vld [vmem:[%s1860] sm:$0xff]
      %v1862 = vmul.f32 %v1861, %v1794
      %v1863 = vadd.f32 %v1859, %v1862
      %s1864 = scalar_lea.vmem %s0, 3384
      %v1865 = vld [vmem:[%s1864] sm:$0xff]
      %v1866 = vadd.f32 %v1863, %v1865
      %1867 = vst [vmem:[%s174] sm:$0x3] %v1812
      %s1868 = scalar_lea.vmem %s174, 2
      %1869 = vst [vmem:[%s1868] sm:$0x3] %v1830
      %s1870 = scalar_lea.vmem %s174, 4
      %1871 = vst [vmem:[%s1870] sm:$0x3] %v1848
      %s1872 = scalar_lea.vmem %s174, 6
      %1873 = vst [vmem:[%s1872] sm:$0x3] %v1866
      %p1874 = scmp.lt.s32.totalorder %s17, 1
      %s1875 = scalar_select %p1874, %s17, 1
      %p1876 = scmp.lt.s32.totalorder %s18, 0
      %s1877 = scalar_select %p1876, %s18, 0
      %s1878 = smul.addr %s1875, 4
      %s1879 = sadd.s32 %s1877, %s1878
      %s1880 = smul.addr %s1879, 2
      %s1881 = scalar_lea.vmem %s2, %s1880
      // Predicated region
      $region29: #{pkernel_forward.1} parent=27 // pred_check
        %p1882 = pneg %p94
      $region30: #{pkernel_forward.1} parent=27 // pred_check_branch
        %1884 = sbr.rel (%p1882) target = $region32
      $region31: #{pkernel_forward.1} parent=27 // pred_region
        _
      $region32: #{pkernel_forward.1} parent=27 // pred_fallthru
        _
    $region28: #{pkernel_forward.1} parent=5 // pred_fallthru
      _
    %p1885 = scmp.le.s32.totalorder 2, %s8
    // Predicated region
    $region33: #{pkernel_forward.1} parent=5 // pred_check
      %p1886 = pneg %p1885
    $region34: #{pkernel_forward.1} parent=5 // pred_check_branch
      %1888 = sbr.rel (%p1886) target = $region36
    $region35: #{pkernel_forward.1} parent=5 // pred_region
      %s1889 = ssub.s32 %s8, 2
      // Predicated region
      $region37: #{pkernel_forward.1} parent=35 // pred_check
        %p1890 = pneg %p100
      $region38: #{pkernel_forward.1} parent=35 // pred_check_branch
        %1892 = sbr.rel (%p1890) target = $region40
      $region39: #{pkernel_forward.1} parent=35 // pred_region
        %p1893 = scmp.lt.s32.totalorder %s19, 1
        %s1894 = scalar_select %p1893, %s19, 1
        %p1895 = scmp.lt.s32.totalorder %s20, 0
        %s1896 = scalar_select %p1895, %s20, 0
        %s1897 = smul.addr %s1894, 4
        %s1898 = sadd.s32 %s1896, %s1897
        %s1899 = smul.addr %s1898, 2
        %s1900 = scalar_lea.vmem %s2, %s1899
      $region40: #{pkernel_forward.1} parent=35 // pred_fallthru
        _
    $region36: #{pkernel_forward.1} parent=5 // pred_fallthru
      _
  $region6: #{pkernel_forward.1} parent=0 // loop_footer
    %s12 = sadd.s32 1, %s8
  $region7: #{pkernel_forward.1} parent=0 // loop_footer_branch
    %7 = sbr.rel target = $region3
  $region8: #{pkernel_forward.1} parent=0 // loop_exit
    _

</llo_original>
